<compile_context>
chip_gen: v7x
topology: tpu7x:2x2x1
jax: 0.10.0
libtpu: 0.0.40
codegen_flags: <defaults>
</compile_context>

<pallas_src>
import jax
import jax.numpy as jnp
from jax.experimental import pallas as pl
from jax.experimental.pallas import tpu as pltpu

BN_EPS = 1e-5
C1, C2, CP, CC = 64, 512, 128, 16      # channel sizes fixed by the PyTorch module
H, W = 32, 16                          # input spatial size this kernel is built for
OH, OW = 8, 8                          # spatial size after pool1 (stride 2)
POS = OH * OW                          # 64 positions per image
FEAT = CC * POS                        # 1024 flattened features


# --------------------------------------------------------------------------- kernel
def _fused_kernel(xp_ref, msk_ref, w1_ref, b1_ref, w2_ref, b2_ref,
                  wp1_ref, sc_ref, sh_ref, wc_ref, bc_ref,
                  aexp_ref, mt_ref, rsel_ref, lw_ref, lb_ref, o_ref):
    two_l = xp_ref.shape[1]            # 2 * bt * 64 columns (parity-major per tile)
    lpos = two_l // 2                  # bt * 64 columns per row-parity half

    # conv1 (3x3, cin=1) for every needed (parity, image, 8x8 position) column;
    # the precombined mask re-creates conv2's zero padding after bias+ReLU.
    g = jnp.dot(w1_ref[...], xp_ref[...], preferred_element_type=jnp.float32)
    g = jnp.maximum(g + b1_ref[...], 0.0) * msk_ref[...]
    g = g.astype(jnp.bfloat16)                                        # (576, 2L)

    # conv2 (3x3, 64->512) + ReLU: ONE MXU dot, K=576, N=2L (>=256).
    c2 = jnp.dot(w2_ref[...], g, preferred_element_type=jnp.float32)
    c2 = jnp.maximum(c2 + b2_ref[...], 0.0)                           # (512, 2L)

    # AvgPool2d((2,1)): add the two row-parity halves (0.5 folded into wp1), cast once.
    pooled = (c2[:, :lpos] + c2[:, lpos:]).astype(jnp.bfloat16)       # (512, L)

    # pool1 1x1 stride-2 conv (512->128) + folded eval-mode BN + ReLU.
    y = jnp.dot(wp1_ref[...], pooled, preferred_element_type=jnp.float32)
    y = jnp.maximum(y * sc_ref[...] + sh_ref[...], 0.0).astype(jnp.bfloat16)

    # 1x1 conv 128 -> 16 (stays on-chip).
    ych = jnp.dot(wc_ref[...], y, preferred_element_type=jnp.float32) + bc_ref[...]

    # NCHW flatten (b, c*64+pos) via MXU-friendly expand/select matmuls:
    #  ychT[col,c] -> X[col,c*64+pos] -> keep pos == col%64 -> reduce each image's 64
    #  columns.  No sub-lane scatter stores, no reshapes.
    ycht = ych.T.astype(jnp.bfloat16)                                  # (L, 16)
    x_exp = jnp.dot(ycht, aexp_ref[...], preferred_element_type=jnp.float32)
    x_exp = (x_exp * mt_ref[...]).astype(jnp.bfloat16)                 # (L, 1024)
    flat = jnp.dot(rsel_ref[...], x_exp, preferred_element_type=jnp.float32)
    flat = flat.astype(jnp.bfloat16)                                   # (bt, 1024)

    # Linear(1024 -> 256) + ReLU.
    out = jnp.dot(flat, lw_ref[...], preferred_element_type=jnp.float32) + lb_ref[...]
    o_ref[...] = jnp.maximum(out, 0.0)


def _const_spec(shape):
    nd = len(shape)
    return pl.BlockSpec(shape, lambda t, _nd=nd: (0,) * _nd)


# -------------------------------------------------------------------------- wrapper
def image_embedding_forward(x_nchw, p):
    bsz = x_nchw.shape[0]
    assert x_nchw.shape[1:] == (1, H, W), "kernel is specialized to (B, 1, 32, 16)"

    # Batch tiling: bt images per grid step (even, so the two row-parity halves are
    # 128-lane aligned); capped at 8 to bound per-step VMEM (v7x has 64 MiB physical).
    if bsz <= 8:
        bt = bsz + (bsz % 2)
    else:
        bt = 8
    bp = ((bsz + bt - 1) // bt) * bt
    nt = bp // bt
    lpos = bt * POS                    # columns per parity half in one tile
    tile_lanes = 2 * lpos

    x2d = x_nchw[:, 0].astype(jnp.float32)
    if bp != bsz:
        x2d = jnp.concatenate([x2d, jnp.zeros((bp - bsz, H, W), jnp.float32)], 0)
    xpad = jnp.pad(x2d, ((0, 0), (2, 2), (2, 2)))                      # (bp, 36, 20)

    # Patch tensor: rows = (s', dc, th, tw) conv1 taps, columns (per tile) ordered
    # (parity, image, 8x8 position).  Bakes pool1's stride-2 + avg-pool row pairs, so
    # conv2 is only evaluated at surviving positions (4x less work).
    rows = []
    for sp in range(3):
        for dc in range(3):
            for th in range(3):
                for tw in range(3):
                    per_delta = []
                    for delta in range(2):
                        r0 = delta + sp + th
                        c0 = dc + tw
                        sl = xpad[:, r0:r0 + 4 * OH:4, c0:c0 + 2 * OW:2]
                        per_delta.append(sl.reshape(bp, POS))
                    rows.append(jnp.stack(per_delta, 0))               # (2, bp, 64)
    xp = jnp.stack(rows, 0)                                            # (81, 2, bp, 64)
    xp = xp.reshape(81, 2, nt, bt, POS).transpose(0, 2, 1, 3, 4)
    xp = xp.reshape(81, nt * tile_lanes).astype(jnp.bfloat16)

    # conv1 weights as a block-diagonal (9 tap-group) matrix + tiled bias column.
    w1mat = p["fe_w1"].reshape(C1, 9).astype(jnp.float32)
    w1bd = jnp.kron(jnp.eye(9, dtype=jnp.float32), w1mat).astype(jnp.bfloat16)
    b1col = jnp.tile(p["fe_b1"].astype(jnp.float32), 9).reshape(9 * C1, 1)

    # Single multiplicand re-creating conv2's zero padding (conv1 row/col == -1).
    r = jnp.arange(9 * C1)
    sp_r = (r // C1) // 3
    dc_r = (r // C1) % 3
    l = jnp.arange(tile_lanes)
    delta_l = l // lpos
    i_l = (l % POS) // OW
    j_l = l % OW
    row_pad = (sp_r[:, None] == 0) & (delta_l[None, :] == 0) & (i_l[None, :] == 0)
    col_pad = (dc_r[:, None] == 0) & (j_l[None, :] == 0)
    msk = jnp.where(row_pad | col_pad, 0.0, 1.0).astype(jnp.float32)   # (576, 2L)

    # conv2 weight, columns ordered (kh, kw, cin) -> one contiguous K=576 contraction.
    w2m = jnp.transpose(p["fe_w2"], (0, 2, 3, 1)).reshape(C2, 9 * C1).astype(jnp.bfloat16)
    b2col = p["fe_b2"].reshape(C2, 1).astype(jnp.float32)

    # pool1 1x1 conv (AvgPool's 0.5 folded in) + eval-mode BatchNorm as scale/shift.
    # TODO(synk): BatchNorm2d is folded in eval mode (running stats); training-mode
    # batch statistics are not reproduced.
    bn_scale = p["bn_gamma"] / jnp.sqrt(p["bn_var"] + BN_EPS)
    bn_shift = (p["pool1_b"] - p["bn_mean"]) * bn_scale + p["bn_beta"]
    wp1 = (0.5 * p["pool1_w"].reshape(CP, C2)).astype(jnp.bfloat16)
    sc = bn_scale.reshape(CP, 1).astype(jnp.float32)
    sh = bn_shift.reshape(CP, 1).astype(jnp.float32)

    wc = p["conv_w"].reshape(CC, CP).astype(jnp.bfloat16)
    bc = p["conv_b"].reshape(CC, 1).astype(jnp.float32)

    # Flatten-as-matmul constants + linear weights.
    f = jnp.arange(FEAT)
    aexp = (jnp.arange(CC)[:, None] == (f[None, :] // POS)).astype(jnp.bfloat16)
    col = jnp.arange(lpos)
    mt = ((col[:, None] % POS) == (f[None, :] % POS)).astype(jnp.float32)
    rsel = (jnp.arange(bt)[:, None] == (col[None, :] // POS)).astype(jnp.bfloat16)
    lw = p["lin_w"].T.astype(jnp.bfloat16)                             # (1024, 256)
    lb = p["lin_b"].reshape(1, -1).astype(jnp.float32)
    out_dim = lb.shape[1]

    operands = (xp, msk, w1bd, b1col, w2m, b2col, wp1, sc, sh, wc, bc,
                aexp, mt, rsel, lw, lb)

    in_specs = [pl.BlockSpec((81, tile_lanes), lambda t: (0, t))]      # xp walks
    in_specs += [_const_spec(op.shape) for op in operands[1:]]         # rest resident

    out = pl.pallas_call(
        _fused_kernel,
        out_shape=jax.ShapeDtypeStruct((bp, out_dim), jnp.float32),
        grid=(nt,),
        in_specs=in_specs,
        out_specs=pl.BlockSpec((bt, out_dim), lambda t: (t, 0)),
        compiler_params=pltpu.CompilerParams(
            dimension_semantics=("parallel",),
            vmem_limit_bytes=64 * 1024 * 1024),
    )(*operands)
    return out[:bsz]


# ------------------------------------------------------------------ pure-JAX reference
def reference_forward(x_nchw, p):
    def conv(x, w, b, stride, pad):
        y = jax.lax.conv_general_dilated(
            x, w, (stride, stride), [(pad, pad), (pad, pad)],
            dimension_numbers=("NCHW", "OIHW", "NCHW"),
            precision=jax.lax.Precision.HIGHEST)
        return y + b[None, :, None, None]

    h = jax.nn.relu(conv(x_nchw, p["fe_w1"], p["fe_b1"], 1, 1))
    h = jax.nn.relu(conv(h, p["fe_w2"], p["fe_b2"], 1, 1))
    bsz, c, hh, ww = h.shape
    h = h.reshape(bsz, c, hh // 2, 2, ww).mean(axis=3)                 # AvgPool2d((2,1))
    h = conv(h, p["pool1_w"], p["pool1_b"], 2, 0)
    s = p["bn_gamma"] / jnp.sqrt(p["bn_var"] + BN_EPS)
    h = (h - p["bn_mean"][None, :, None, None]) * s[None, :, None, None] \
        + p["bn_beta"][None, :, None, None]
    h = jax.nn.relu(h)
    h = conv(h, p["conv_w"], p["conv_b"], 1, 0)
    h = h.reshape(h.shape[0], -1)
    h = jnp.dot(h, p["lin_w"].T, precision=jax.lax.Precision.HIGHEST) + p["lin_b"]
    return jax.nn.relu(h)


# ------------------------------------------------------------------------------ params
def init_params(key):
    ks = jax.random.split(key, 14)

    def nrm(k, shape, scale=0.05):
        return scale * jax.random.normal(k, shape, jnp.float32)

    return {
        "fe_w1": nrm(ks[0], (64, 1, 3, 3)),
        "fe_b1": nrm(ks[1], (64,)),
        "fe_w2": nrm(ks[2], (512, 64, 3, 3)),
        "fe_b2": nrm(ks[3], (512,)),
        "pool1_w": nrm(ks[4], (128, 512, 1, 1)),
        "pool1_b": nrm(ks[5], (128,)),
        "bn_gamma": 1.0 + 0.1 * jax.random.normal(ks[6], (128,), jnp.float32),
        "bn_beta": 0.1 * jax.random.normal(ks[7], (128,), jnp.float32),
        "bn_mean": 0.1 * jax.random.normal(ks[8], (128,), jnp.float32),
        "bn_var": jax.random.uniform(ks[9], (128,), jnp.float32, 0.5, 1.5),
        "conv_w": nrm(ks[10], (16, 128, 1, 1)),
        "conv_b": nrm(ks[11], (16,)),
        "lin_w": nrm(ks[12], (256, 1024)),
        "lin_b": nrm(ks[13], (256,)),
    }


if __name__ == "__main__":
    key = jax.random.PRNGKey(0)
    pkey, xkey = jax.random.split(key)
    params = init_params(pkey)
    x = jax.random.normal(xkey, (2, 1, 32, 16), jnp.float32)   # NCHW, like PyTorch

    fwd = jax.jit(image_embedding_forward)
    out = jax.block_until_ready(fwd(x, params))
    assert out.shape == (2, 256), out.shape

    ref = jax.block_until_ready(reference_forward(x, params))
    max_err = float(jnp.max(jnp.abs(out - ref)))
    assert max_err < 2e-2, f"mismatch vs reference: {max_err}"

    print("KERNEL_OK")
</pallas_src>

<mosaic_0001>
module attributes {stable_mosaic.version = 11 : i64} {
  func.func @_fused_kernel(%arg0: i32, %arg1: memref<81x256xbf16, #tpu.memory_space<vmem>>, %arg2: memref<576x256xf32, #tpu.memory_space<vmem>>, %arg3: memref<576x81xbf16, #tpu.memory_space<vmem>>, %arg4: memref<576x1xf32, #tpu.memory_space<vmem>>, %arg5: memref<512x576xbf16, #tpu.memory_space<vmem>>, %arg6: memref<512x1xf32, #tpu.memory_space<vmem>>, %arg7: memref<128x512xbf16, #tpu.memory_space<vmem>>, %arg8: memref<128x1xf32, #tpu.memory_space<vmem>>, %arg9: memref<128x1xf32, #tpu.memory_space<vmem>>, %arg10: memref<16x128xbf16, #tpu.memory_space<vmem>>, %arg11: memref<16x1xf32, #tpu.memory_space<vmem>>, %arg12: memref<16x1024xbf16, #tpu.memory_space<vmem>>, %arg13: memref<128x1024xf32, #tpu.memory_space<vmem>>, %arg14: memref<2x128xbf16, #tpu.memory_space<vmem>>, %arg15: memref<1024x256xbf16, #tpu.memory_space<vmem>>, %arg16: memref<1x256xf32, #tpu.memory_space<vmem>>, %arg17: memref<2x256xf32, #tpu.memory_space<vmem>>) attributes {dimension_semantics = [#tpu.dimension_semantics<parallel>], iteration_bounds = array<i64: 1>, scalar_prefetch = 0 : i64, scratch_operands = 0 : i64, tpu.core_type = #tpu.core_type<tc>, window_params = [{transform_indices = @transform_0, window_bounds = array<i64: 81, 256>}, {pipeline_mode = #tpu.pipeline_mode<synchronous>, transform_indices = @transform_1, window_bounds = array<i64: 576, 256>}, {pipeline_mode = #tpu.pipeline_mode<synchronous>, transform_indices = @transform_2, window_bounds = array<i64: 576, 81>}, {pipeline_mode = #tpu.pipeline_mode<synchronous>, transform_indices = @transform_3, window_bounds = array<i64: 576, 1>}, {pipeline_mode = #tpu.pipeline_mode<synchronous>, transform_indices = @transform_4, window_bounds = array<i64: 512, 576>}, {pipeline_mode = #tpu.pipeline_mode<synchronous>, transform_indices = @transform_5, window_bounds = array<i64: 512, 1>}, {pipeline_mode = #tpu.pipeline_mode<synchronous>, transform_indices = @transform_6, window_bounds = array<i64: 128, 512>}, {pipeline_mode = #tpu.pipeline_mode<synchronous>, transform_indices = @transform_7, window_bounds = array<i64: 128, 1>}, {pipeline_mode = #tpu.pipeline_mode<synchronous>, transform_indices = @transform_8, window_bounds = array<i64: 128, 1>}, {pipeline_mode = #tpu.pipeline_mode<synchronous>, transform_indices = @transform_9, window_bounds = array<i64: 16, 128>}, {pipeline_mode = #tpu.pipeline_mode<synchronous>, transform_indices = @transform_10, window_bounds = array<i64: 16, 1>}, {pipeline_mode = #tpu.pipeline_mode<synchronous>, transform_indices = @transform_11, window_bounds = array<i64: 16, 1024>}, {pipeline_mode = #tpu.pipeline_mode<synchronous>, transform_indices = @transform_12, window_bounds = array<i64: 128, 1024>}, {pipeline_mode = #tpu.pipeline_mode<synchronous>, transform_indices = @transform_13, window_bounds = array<i64: 2, 128>}, {pipeline_mode = #tpu.pipeline_mode<synchronous>, transform_indices = @transform_14, window_bounds = array<i64: 1024, 256>}, {pipeline_mode = #tpu.pipeline_mode<synchronous>, transform_indices = @transform_15, window_bounds = array<i64: 1, 256>}, {transform_indices = @transform_16, window_bounds = array<i64: 2, 256>}]} {
    %c0 = arith.constant 0 : index
    %c0_0 = arith.constant 0 : index
    %0 = vector.load %arg3[%c0, %c0_0] : memref<576x81xbf16, #tpu.memory_space<vmem>>, vector<576x81xbf16>
    %c0_1 = arith.constant 0 : index
    %c0_2 = arith.constant 0 : index
    %1 = vector.load %arg1[%c0_1, %c0_2] : memref<81x256xbf16, #tpu.memory_space<vmem>>, vector<81x256xbf16>
    %cst = arith.constant dense<0.000000e+00> : vector<576x256xf32>
    %2 = tpu.matmul %0, %1, %cst {dimension_numbers = #tpu.dot_dimension_numbers<[1], [0], [0], [1], [0, 0, 1, 1], [], []>} : vector<576x81xbf16>, vector<81x256xbf16>, vector<576x256xf32> -> vector<576x256xf32>
    %c0_3 = arith.constant 0 : index
    %c0_4 = arith.constant 0 : index
    %3 = vector.load %arg4[%c0_3, %c0_4] : memref<576x1xf32, #tpu.memory_space<vmem>>, vector<576x1xf32>
    %4 = vector.broadcast %3 : vector<576x1xf32> to vector<576x256xf32>
    %5 = arith.addf %2, %4 : vector<576x256xf32>
    %cst_5 = arith.constant 0.000000e+00 : f32
    %6 = vector.broadcast %cst_5 : f32 to vector<576x256xf32>
    %7 = arith.maximumf %5, %6 : vector<576x256xf32>
    %c0_6 = arith.constant 0 : index
    %c0_7 = arith.constant 0 : index
    %8 = vector.load %arg2[%c0_6, %c0_7] : memref<576x256xf32, #tpu.memory_space<vmem>>, vector<576x256xf32>
    %9 = arith.mulf %7, %8 : vector<576x256xf32>
    %10 = arith.truncf %9 : vector<576x256xf32> to vector<576x256xbf16>
    %c0_8 = arith.constant 0 : index
    %c0_9 = arith.constant 0 : index
    %11 = vector.load %arg5[%c0_8, %c0_9] : memref<512x576xbf16, #tpu.memory_space<vmem>>, vector<512x576xbf16>
    %cst_10 = arith.constant dense<0.000000e+00> : vector<512x256xf32>
    %12 = tpu.matmul %11, %10, %cst_10 {dimension_numbers = #tpu.dot_dimension_numbers<[1], [0], [0], [1], [0, 0, 1, 1], [], []>} : vector<512x576xbf16>, vector<576x256xbf16>, vector<512x256xf32> -> vector<512x256xf32>
    %c0_11 = arith.constant 0 : index
    %c0_12 = arith.constant 0 : index
    %13 = vector.load %arg6[%c0_11, %c0_12] : memref<512x1xf32, #tpu.memory_space<vmem>>, vector<512x1xf32>
    %14 = vector.broadcast %13 : vector<512x1xf32> to vector<512x256xf32>
    %15 = arith.addf %12, %14 : vector<512x256xf32>
    %cst_13 = arith.constant 0.000000e+00 : f32
    %16 = vector.broadcast %cst_13 : f32 to vector<512x256xf32>
    %17 = arith.maximumf %15, %16 : vector<512x256xf32>
    %18 = vector.extract_strided_slice %17 {offsets = [0, 0], sizes = [512, 128], strides = [1, 1]} : vector<512x256xf32> to vector<512x128xf32>
    %19 = vector.extract_strided_slice %17 {offsets = [0, 128], sizes = [512, 128], strides = [1, 1]} : vector<512x256xf32> to vector<512x128xf32>
    %20 = arith.addf %18, %19 : vector<512x128xf32>
    %21 = arith.truncf %20 : vector<512x128xf32> to vector<512x128xbf16>
    %c0_14 = arith.constant 0 : index
    %c0_15 = arith.constant 0 : index
    %22 = vector.load %arg7[%c0_14, %c0_15] : memref<128x512xbf16, #tpu.memory_space<vmem>>, vector<128x512xbf16>
    %cst_16 = arith.constant dense<0.000000e+00> : vector<128x128xf32>
    %23 = tpu.matmul %22, %21, %cst_16 {dimension_numbers = #tpu.dot_dimension_numbers<[1], [0], [0], [1], [0, 0, 1, 1], [], []>} : vector<128x512xbf16>, vector<512x128xbf16>, vector<128x128xf32> -> vector<128x128xf32>
    %c0_17 = arith.constant 0 : index
    %c0_18 = arith.constant 0 : index
    %24 = vector.load %arg8[%c0_17, %c0_18] : memref<128x1xf32, #tpu.memory_space<vmem>>, vector<128x1xf32>
    %25 = vector.broadcast %24 : vector<128x1xf32> to vector<128x128xf32>
    %26 = arith.mulf %23, %25 : vector<128x128xf32>
    %c0_19 = arith.constant 0 : index
    %c0_20 = arith.constant 0 : index
    %27 = vector.load %arg9[%c0_19, %c0_20] : memref<128x1xf32, #tpu.memory_space<vmem>>, vector<128x1xf32>
    %28 = vector.broadcast %27 : vector<128x1xf32> to vector<128x128xf32>
    %29 = arith.addf %26, %28 : vector<128x128xf32>
    %cst_21 = arith.constant 0.000000e+00 : f32
    %30 = vector.broadcast %cst_21 : f32 to vector<128x128xf32>
    %31 = arith.maximumf %29, %30 : vector<128x128xf32>
    %32 = arith.truncf %31 : vector<128x128xf32> to vector<128x128xbf16>
    %c0_22 = arith.constant 0 : index
    %c0_23 = arith.constant 0 : index
    %33 = vector.load %arg10[%c0_22, %c0_23] : memref<16x128xbf16, #tpu.memory_space<vmem>>, vector<16x128xbf16>
    %cst_24 = arith.constant dense<0.000000e+00> : vector<16x128xf32>
    %34 = tpu.matmul %33, %32, %cst_24 {dimension_numbers = #tpu.dot_dimension_numbers<[1], [0], [0], [1], [0, 0, 1, 1], [], []>} : vector<16x128xbf16>, vector<128x128xbf16>, vector<16x128xf32> -> vector<16x128xf32>
    %c0_25 = arith.constant 0 : index
    %c0_26 = arith.constant 0 : index
    %35 = vector.load %arg11[%c0_25, %c0_26] : memref<16x1xf32, #tpu.memory_space<vmem>>, vector<16x1xf32>
    %36 = vector.broadcast %35 : vector<16x1xf32> to vector<16x128xf32>
    %37 = arith.addf %34, %36 : vector<16x128xf32>
    %38 = tpu.transpose %37, [1, 0] : vector<16x128xf32> -> vector<128x16xf32>
    %39 = arith.truncf %38 : vector<128x16xf32> to vector<128x16xbf16>
    %c0_27 = arith.constant 0 : index
    %c0_28 = arith.constant 0 : index
    %40 = vector.load %arg12[%c0_27, %c0_28] : memref<16x1024xbf16, #tpu.memory_space<vmem>>, vector<16x1024xbf16>
    %cst_29 = arith.constant dense<0.000000e+00> : vector<128x1024xf32>
    %41 = tpu.matmul %39, %40, %cst_29 {dimension_numbers = #tpu.dot_dimension_numbers<[1], [0], [0], [1], [0, 0, 1, 1], [], []>} : vector<128x16xbf16>, vector<16x1024xbf16>, vector<128x1024xf32> -> vector<128x1024xf32>
    %c0_30 = arith.constant 0 : index
    %c0_31 = arith.constant 0 : index
    %42 = vector.load %arg13[%c0_30, %c0_31] : memref<128x1024xf32, #tpu.memory_space<vmem>>, vector<128x1024xf32>
    %43 = arith.mulf %41, %42 : vector<128x1024xf32>
    %44 = arith.truncf %43 : vector<128x1024xf32> to vector<128x1024xbf16>
    %c0_32 = arith.constant 0 : index
    %c0_33 = arith.constant 0 : index
    %45 = vector.load %arg14[%c0_32, %c0_33] : memref<2x128xbf16, #tpu.memory_space<vmem>>, vector<2x128xbf16>
    %cst_34 = arith.constant dense<0.000000e+00> : vector<2x1024xf32>
    %46 = tpu.matmul %45, %44, %cst_34 {dimension_numbers = #tpu.dot_dimension_numbers<[1], [0], [0], [1], [0, 0, 1, 1], [], []>} : vector<2x128xbf16>, vector<128x1024xbf16>, vector<2x1024xf32> -> vector<2x1024xf32>
    %47 = arith.truncf %46 : vector<2x1024xf32> to vector<2x1024xbf16>
    %c0_35 = arith.constant 0 : index
    %c0_36 = arith.constant 0 : index
    %48 = vector.load %arg15[%c0_35, %c0_36] : memref<1024x256xbf16, #tpu.memory_space<vmem>>, vector<1024x256xbf16>
    %cst_37 = arith.constant dense<0.000000e+00> : vector<2x256xf32>
    %49 = tpu.matmul %47, %48, %cst_37 {dimension_numbers = #tpu.dot_dimension_numbers<[1], [0], [0], [1], [0, 0, 1, 1], [], []>} : vector<2x1024xbf16>, vector<1024x256xbf16>, vector<2x256xf32> -> vector<2x256xf32>
    %c0_38 = arith.constant 0 : index
    %c0_39 = arith.constant 0 : index
    %50 = vector.load %arg16[%c0_38, %c0_39] : memref<1x256xf32, #tpu.memory_space<vmem>>, vector<1x256xf32>
    %51 = vector.broadcast %50 : vector<1x256xf32> to vector<2x256xf32>
    %52 = arith.addf %49, %51 : vector<2x256xf32>
    %cst_40 = arith.constant 0.000000e+00 : f32
    %53 = vector.broadcast %cst_40 : f32 to vector<2x256xf32>
    %54 = arith.maximumf %52, %53 : vector<2x256xf32>
    %c0_41 = arith.constant 0 : index
    %c0_42 = arith.constant 0 : index
    %55 = vector.load %arg17[%c0_41, %c0_42] : memref<2x256xf32, #tpu.memory_space<vmem>>, vector<2x256xf32>
    tpu.vector_store %arg17[%c0_41, %c0_42], %54 {strides = array<i32>} : memref<2x256xf32, #tpu.memory_space<vmem>>, vector<2x256xf32>,
    return
  }
  func.func @transform_0(%arg0: i32) -> (i32, i32) {
    %c0_i32 = arith.constant 0 : i32
    %c0_i32_0 = arith.constant 0 : i32
    return %c0_i32, %arg0 : i32, i32
  }
  func.func @transform_1(%arg0: i32) -> (i32, i32) {
    %c0_i32 = arith.constant 0 : i32
    %c0_i32_0 = arith.constant 0 : i32
    %c0_i32_1 = arith.constant 0 : i32
    return %c0_i32, %c0_i32_0 : i32, i32
  }
  func.func @transform_2(%arg0: i32) -> (i32, i32) {
    %c0_i32 = arith.constant 0 : i32
    %c0_i32_0 = arith.constant 0 : i32
    %c0_i32_1 = arith.constant 0 : i32
    return %c0_i32, %c0_i32_0 : i32, i32
  }
  func.func @transform_3(%arg0: i32) -> (i32, i32) {
    %c0_i32 = arith.constant 0 : i32
    %c0_i32_0 = arith.constant 0 : i32
    %c0_i32_1 = arith.constant 0 : i32
    return %c0_i32, %c0_i32_0 : i32, i32
  }
  func.func @transform_4(%arg0: i32) -> (i32, i32) {
    %c0_i32 = arith.constant 0 : i32
    %c0_i32_0 = arith.constant 0 : i32
    %c0_i32_1 = arith.constant 0 : i32
    return %c0_i32, %c0_i32_0 : i32, i32
  }
  func.func @transform_5(%arg0: i32) -> (i32, i32) {
    %c0_i32 = arith.constant 0 : i32
    %c0_i32_0 = arith.constant 0 : i32
    %c0_i32_1 = arith.constant 0 : i32
    return %c0_i32, %c0_i32_0 : i32, i32
  }
  func.func @transform_6(%arg0: i32) -> (i32, i32) {
    %c0_i32 = arith.constant 0 : i32
    %c0_i32_0 = arith.constant 0 : i32
    %c0_i32_1 = arith.constant 0 : i32
    return %c0_i32, %c0_i32_0 : i32, i32
  }
  func.func @transform_7(%arg0: i32) -> (i32, i32) {
    %c0_i32 = arith.constant 0 : i32
    %c0_i32_0 = arith.constant 0 : i32
    %c0_i32_1 = arith.constant 0 : i32
    return %c0_i32, %c0_i32_0 : i32, i32
  }
  func.func @transform_8(%arg0: i32) -> (i32, i32) {
    %c0_i32 = arith.constant 0 : i32
    %c0_i32_0 = arith.constant 0 : i32
    %c0_i32_1 = arith.constant 0 : i32
    return %c0_i32, %c0_i32_0 : i32, i32
  }
  func.func @transform_9(%arg0: i32) -> (i32, i32) {
    %c0_i32 = arith.constant 0 : i32
    %c0_i32_0 = arith.constant 0 : i32
    %c0_i32_1 = arith.constant 0 : i32
    return %c0_i32, %c0_i32_0 : i32, i32
  }
  func.func @transform_10(%arg0: i32) -> (i32, i32) {
    %c0_i32 = arith.constant 0 : i32
    %c0_i32_0 = arith.constant 0 : i32
    %c0_i32_1 = arith.constant 0 : i32
    return %c0_i32, %c0_i32_0 : i32, i32
  }
  func.func @transform_11(%arg0: i32) -> (i32, i32) {
    %c0_i32 = arith.constant 0 : i32
    %c0_i32_0 = arith.constant 0 : i32
    %c0_i32_1 = arith.constant 0 : i32
    return %c0_i32, %c0_i32_0 : i32, i32
  }
  func.func @transform_12(%arg0: i32) -> (i32, i32) {
    %c0_i32 = arith.constant 0 : i32
    %c0_i32_0 = arith.constant 0 : i32
    %c0_i32_1 = arith.constant 0 : i32
    return %c0_i32, %c0_i32_0 : i32, i32
  }
  func.func @transform_13(%arg0: i32) -> (i32, i32) {
    %c0_i32 = arith.constant 0 : i32
    %c0_i32_0 = arith.constant 0 : i32
    %c0_i32_1 = arith.constant 0 : i32
    return %c0_i32, %c0_i32_0 : i32, i32
  }
  func.func @transform_14(%arg0: i32) -> (i32, i32) {
    %c0_i32 = arith.constant 0 : i32
    %c0_i32_0 = arith.constant 0 : i32
    %c0_i32_1 = arith.constant 0 : i32
    return %c0_i32, %c0_i32_0 : i32, i32
  }
  func.func @transform_15(%arg0: i32) -> (i32, i32) {
    %c0_i32 = arith.constant 0 : i32
    %c0_i32_0 = arith.constant 0 : i32
    %c0_i32_1 = arith.constant 0 : i32
    return %c0_i32, %c0_i32_0 : i32, i32
  }
  func.func @transform_16(%arg0: i32) -> (i32, i32) {
    %c0_i32 = arith.constant 0 : i32
    %c0_i32_0 = arith.constant 0 : i32
    return %arg0, %c0_i32 : i32, i32
  }
}

</mosaic_0001>

<llo_original>
// kernel: mul.4
$region0: #{mul.4}
  %s0 = inlined_call_operand.vmem [shape: f32[64,3,3], index: 0, kind: input, shape index: {}]
  %s1 = inlined_call_operand.vmem [shape: f32[64,9], index: 1, kind: output, shape index: {}]
  $region1: #{mul.4} parent=0
    #allocation0 [shape = 'u8[12288]{0}', space=vmem, size = 0x3000, scoped, tag = 'scoped mem for input reshape']
    %s3 = sshllo.u32 0, 4
    %s4 = smul.addr 4, 2
    %s5 = scalar_lea.vmem %s0, %s4
    %v6 = vld [vmem:[%s5] sm:%s3]
    %s7 = scalar_lea.vmem [#allocation0], 16
    %8 = vst [vmem:[%s7] sm:%s3] %v6
    %s9 = scalar_lea.vmem %s0, 4
    %v10 = vld [vmem:[%s9] sm:%s3]
    %s11 = scalar_lea.vmem [#allocation0], 8
    %12 = vst [vmem:[%s11] sm:%s3] %v10
    %v13 = vld [vmem:[%s0] sm:%s3]
    %14 = vst [vmem:[#allocation0] sm:%s3] %v13
    %v15 = vld [vmem:[#allocation0] sm:$0x7]
    %vm16 = vcmask 523264
    %17 = vst.msk [vmem:[%s1] sm:$0x7] %vm16, %v15
    %s18 = scalar_lea.vmem [#allocation0], 8
    %v19 = vld [vmem:[%s18] sm:$0x7]
    %vm20 = vcmask 523264
    %s21 = scalar_lea.vmem %s1, 3
    %22 = vst.msk [vmem:[%s21] sm:$0x7] %vm20, %v19
    %s23 = scalar_lea.vmem [#allocation0], 16
    %v24 = vld [vmem:[%s23] sm:$0x7]
    %vm25 = vcmask 523264
    %s26 = scalar_lea.vmem %s1, 6
    %27 = vst.msk [vmem:[%s26] sm:$0x7] %vm25, %v24

// kernel: tile.8
$region0: #{tile.8}
  #allocation0 [shape = 's32[1]{0}', space=sflag, size = 0x4, scoped, tag = 'scoped memory for tile.8']
  %s0 = inlined_call_operand.vmem [shape: f32[64], index: 0, kind: input, shape index: {}]
  %s1 = inlined_call_operand.vmem [shape: f32[9,64], index: 1, kind: output, shape index: {}]
  // Predicated region
  $region2: #{tile.8} parent=0 // pred_check
    _
  $region3: #{tile.8} parent=0 // pred_check_branch
    %3 = sbr.rel (0) target = $region5
  $region4: #{tile.8} parent=0 // pred_region
    _
  $region5: #{tile.8} parent=0 // pred_fallthru
    _
  %v4 = vld [vmem:[%s0] ss:$0 sm:$0xff]
  %5 = vst [vmem:[%s1] sm:$0xff] %v4
  %s6 = scalar_lea.vmem %s1, 8
  %7 = vst [vmem:[%s6] sm:$0xff] %v4

// kernel: tile.0
$region0: #{tile.0}
  %s0 = inlined_call_operand.vmem [shape: f32[9,64], index: 0, kind: input, shape index: {}]
  %s1 = inlined_call_operand.hbm [shape: f32[576,1], index: 1, kind: output, shape index: {}]
  $region1: #{tile.0} parent=0
    #allocation0 [shape = 'u8[294912]{0}', space=vmem, size = 0x48000, scoped, tag = 'operand span for operand 1']
    #allocation1 [shape = 's32[1]{0}', space=sflag, size = 0x4, scoped, tag = 'scoped memory for tile.0']
    %2 = vsyncpa [#allocation1], 0
    %v3 = vld [vmem:[%s0] sm:$0xff]
    %vm4 = vcmask 7168
    %5 = vst.msk [vmem:[#allocation0] sm:$0x1] %vm4, %v3
    %s6 = scalar_lea.vmem [#allocation0], 63
    %7 = vst.msk [vmem:[%s6] sm:$0x2] %vm4, %v3
    %s8 = scalar_lea.vmem [#allocation0], 126
    %9 = vst.msk [vmem:[%s8] sm:$0x4] %vm4, %v3
    %s10 = scalar_lea.vmem [#allocation0], 189
    %11 = vst.msk [vmem:[%s10] sm:$0x8] %vm4, %v3
    %s12 = scalar_lea.vmem [#allocation0], 252
    %13 = vst.msk [vmem:[%s12] sm:$0x10] %vm4, %v3
    %s14 = scalar_lea.vmem [#allocation0], 315
    %15 = vst.msk [vmem:[%s14] sm:$0x20] %vm4, %v3
    %s16 = scalar_lea.vmem [#allocation0], 378
    %17 = vst.msk [vmem:[%s16] sm:$0x40] %vm4, %v3
    %s18 = scalar_lea.vmem [#allocation0], 441
    %19 = vst.msk [vmem:[%s18] sm:$0x80] %vm4, %v3
    %s20 = scalar_lea.vmem %s0, 8
    %v21 = vld [vmem:[%s20] sm:$0x1]
    %vm22 = vcmask 7168
    %s23 = scalar_lea.vmem [#allocation0], 512
    %24 = vst.msk [vmem:[%s23] sm:$0x1] %vm22, %v21
    %v25 = vld [vmem:[%s0] sm:$0xff]
    %26 = vrot.lane.b32.xlu0 %v25, 127
    %v27 = vpop.permute.xlu0 %26
    %vm28 = vcmask 7168
    %s29 = scalar_lea.vmem [#allocation0], 1
    %30 = vst.msk [vmem:[%s29] sm:$0x1] %vm28, %v27
    %s31 = scalar_lea.vmem [#allocation0], 64
    %32 = vst.msk [vmem:[%s31] sm:$0x2] %vm28, %v27
    %s33 = scalar_lea.vmem [#allocation0], 127
    %34 = vst.msk [vmem:[%s33] sm:$0x4] %vm28, %v27
    %s35 = scalar_lea.vmem [#allocation0], 190
    %36 = vst.msk [vmem:[%s35] sm:$0x8] %vm28, %v27
    %s37 = scalar_lea.vmem [#allocation0], 253
    %38 = vst.msk [vmem:[%s37] sm:$0x10] %vm28, %v27
    %s39 = scalar_lea.vmem [#allocation0], 316
    %40 = vst.msk [vmem:[%s39] sm:$0x20] %vm28, %v27
    %s41 = scalar_lea.vmem [#allocation0], 379
    %42 = vst.msk [vmem:[%s41] sm:$0x40] %vm28, %v27
    %s43 = scalar_lea.vmem [#allocation0], 442
    %44 = vst.msk [vmem:[%s43] sm:$0x80] %vm28, %v27
    %s45 = scalar_lea.vmem %s0, 8
    %v46 = vld [vmem:[%s45] sm:$0x1]
    %47 = vrot.lane.b32.xlu0 %v46, 127
    %v48 = vpop.permute.xlu0 %47
    %vm49 = vcmask 7168
    %s50 = scalar_lea.vmem [#allocation0], 513
    %51 = vst.msk [vmem:[%s50] sm:$0x1] %vm49, %v48
    %v52 = vld [vmem:[%s0] sm:$0xff]
    %53 = vrot.lane.b32.xlu0 %v52, 126
    %v54 = vpop.permute.xlu0 %53
    %vm55 = vcmask 7168
    %s56 = scalar_lea.vmem [#allocation0], 2
    %57 = vst.msk [vmem:[%s56] sm:$0x1] %vm55, %v54
    %s58 = scalar_lea.vmem [#allocation0], 65
    %59 = vst.msk [vmem:[%s58] sm:$0x2] %vm55, %v54
    %s60 = scalar_lea.vmem [#allocation0], 128
    %61 = vst.msk [vmem:[%s60] sm:$0x4] %vm55, %v54
    %s62 = scalar_lea.vmem [#allocation0], 191
    %63 = vst.msk [vmem:[%s62] sm:$0x8] %vm55, %v54
    %s64 = scalar_lea.vmem [#allocation0], 254
    %65 = vst.msk [vmem:[%s64] sm:$0x10] %vm55, %v54
    %s66 = scalar_lea.vmem [#allocation0], 317
    %67 = vst.msk [vmem:[%s66] sm:$0x20] %vm55, %v54
    %s68 = scalar_lea.vmem [#allocation0], 380
    %69 = vst.msk [vmem:[%s68] sm:$0x40] %vm55, %v54
    %s70 = scalar_lea.vmem [#allocation0], 443
    %71 = vst.msk [vmem:[%s70] sm:$0x80] %vm55, %v54
    %s72 = scalar_lea.vmem %s0, 8
    %v73 = vld [vmem:[%s72] sm:$0x1]
    %74 = vrot.lane.b32.xlu0 %v73, 126
    %v75 = vpop.permute.xlu0 %74
    %vm76 = vcmask 7168
    %s77 = scalar_lea.vmem [#allocation0], 514
    %78 = vst.msk [vmem:[%s77] sm:$0x1] %vm76, %v75
    %v79 = vld [vmem:[%s0] sm:$0xff]
    %80 = vrot.lane.b32.xlu0 %v79, 125
    %v81 = vpop.permute.xlu0 %80
    %vm82 = vcmask 7168
    %s83 = scalar_lea.vmem [#allocation0], 3
    %84 = vst.msk [vmem:[%s83] sm:$0x1] %vm82, %v81
    %s85 = scalar_lea.vmem [#allocation0], 66
    %86 = vst.msk [vmem:[%s85] sm:$0x2] %vm82, %v81
    %s87 = scalar_lea.vmem [#allocation0], 129
    %88 = vst.msk [vmem:[%s87] sm:$0x4] %vm82, %v81
    %s89 = scalar_lea.vmem [#allocation0], 192
    %90 = vst.msk [vmem:[%s89] sm:$0x8] %vm82, %v81
    %s91 = scalar_lea.vmem [#allocation0], 255
    %92 = vst.msk [vmem:[%s91] sm:$0x10] %vm82, %v81
    %s93 = scalar_lea.vmem [#allocation0], 318
    %94 = vst.msk [vmem:[%s93] sm:$0x20] %vm82, %v81
    %s95 = scalar_lea.vmem [#allocation0], 381
    %96 = vst.msk [vmem:[%s95] sm:$0x40] %vm82, %v81
    %s97 = scalar_lea.vmem [#allocation0], 444
    %98 = vst.msk [vmem:[%s97] sm:$0x80] %vm82, %v81
    %s99 = scalar_lea.vmem %s0, 8
    %v100 = vld [vmem:[%s99] sm:$0x1]
    %101 = vrot.lane.b32.xlu0 %v100, 125
    %v102 = vpop.permute.xlu0 %101
    %vm103 = vcmask 7168
    %s104 = scalar_lea.vmem [#allocation0], 515
    %105 = vst.msk [vmem:[%s104] sm:$0x1] %vm103, %v102
    %v106 = vld [vmem:[%s0] sm:$0xff]
    %107 = vrot.lane.b32.xlu0 %v106, 124
    %v108 = vpop.permute.xlu0 %107
    %vm109 = vcmask 7168
    %s110 = scalar_lea.vmem [#allocation0], 4
    %111 = vst.msk [vmem:[%s110] sm:$0x1] %vm109, %v108
    %s112 = scalar_lea.vmem [#allocation0], 67
    %113 = vst.msk [vmem:[%s112] sm:$0x2] %vm109, %v108
    %s114 = scalar_lea.vmem [#allocation0], 130
    %115 = vst.msk [vmem:[%s114] sm:$0x4] %vm109, %v108
    %s116 = scalar_lea.vmem [#allocation0], 193
    %117 = vst.msk [vmem:[%s116] sm:$0x8] %vm109, %v108
    %s118 = scalar_lea.vmem [#allocation0], 256
    %119 = vst.msk [vmem:[%s118] sm:$0x10] %vm109, %v108
    %s120 = scalar_lea.vmem [#allocation0], 319
    %121 = vst.msk [vmem:[%s120] sm:$0x20] %vm109, %v108
    %s122 = scalar_lea.vmem [#allocation0], 382
    %123 = vst.msk [vmem:[%s122] sm:$0x40] %vm109, %v108
    %s124 = scalar_lea.vmem [#allocation0], 445
    %125 = vst.msk [vmem:[%s124] sm:$0x80] %vm109, %v108
    %s126 = scalar_lea.vmem %s0, 8
    %v127 = vld [vmem:[%s126] sm:$0x1]
    %128 = vrot.lane.b32.xlu0 %v127, 124
    %v129 = vpop.permute.xlu0 %128
    %vm130 = vcmask 7168
    %s131 = scalar_lea.vmem [#allocation0], 516
    %132 = vst.msk [vmem:[%s131] sm:$0x1] %vm130, %v129
    %v133 = vld [vmem:[%s0] sm:$0xff]
    %134 = vrot.lane.b32.xlu0 %v133, 123
    %v135 = vpop.permute.xlu0 %134
    %vm136 = vcmask 7168
    %s137 = scalar_lea.vmem [#allocation0], 5
    %138 = vst.msk [vmem:[%s137] sm:$0x1] %vm136, %v135
    %s139 = scalar_lea.vmem [#allocation0], 68
    %140 = vst.msk [vmem:[%s139] sm:$0x2] %vm136, %v135
    %s141 = scalar_lea.vmem [#allocation0], 131
    %142 = vst.msk [vmem:[%s141] sm:$0x4] %vm136, %v135
    %s143 = scalar_lea.vmem [#allocation0], 194
    %144 = vst.msk [vmem:[%s143] sm:$0x8] %vm136, %v135
    %s145 = scalar_lea.vmem [#allocation0], 257
    %146 = vst.msk [vmem:[%s145] sm:$0x10] %vm136, %v135
    %s147 = scalar_lea.vmem [#allocation0], 320
    %148 = vst.msk [vmem:[%s147] sm:$0x20] %vm136, %v135
    %s149 = scalar_lea.vmem [#allocation0], 383
    %150 = vst.msk [vmem:[%s149] sm:$0x40] %vm136, %v135
    %s151 = scalar_lea.vmem [#allocation0], 446
    %152 = vst.msk [vmem:[%s151] sm:$0x80] %vm136, %v135
    %s153 = scalar_lea.vmem %s0, 8
    %v154 = vld [vmem:[%s153] sm:$0x1]
    %155 = vrot.lane.b32.xlu0 %v154, 123
    %v156 = vpop.permute.xlu0 %155
    %vm157 = vcmask 7168
    %s158 = scalar_lea.vmem [#allocation0], 517
    %159 = vst.msk [vmem:[%s158] sm:$0x1] %vm157, %v156
    %v160 = vld [vmem:[%s0] sm:$0xff]
    %161 = vrot.lane.b32.xlu0 %v160, 122
    %v162 = vpop.permute.xlu0 %161
    %vm163 = vcmask 7168
    %s164 = scalar_lea.vmem [#allocation0], 6
    %165 = vst.msk [vmem:[%s164] sm:$0x1] %vm163, %v162
    %s166 = scalar_lea.vmem [#allocation0], 69
    %167 = vst.msk [vmem:[%s166] sm:$0x2] %vm163, %v162
    %s168 = scalar_lea.vmem [#allocation0], 132
    %169 = vst.msk [vmem:[%s168] sm:$0x4] %vm163, %v162
    %s170 = scalar_lea.vmem [#allocation0], 195
    %171 = vst.msk [vmem:[%s170] sm:$0x8] %vm163, %v162
    %s172 = scalar_lea.vmem [#allocation0], 258
    %173 = vst.msk [vmem:[%s172] sm:$0x10] %vm163, %v162
    %s174 = scalar_lea.vmem [#allocation0], 321
    %175 = vst.msk [vmem:[%s174] sm:$0x20] %vm163, %v162
    %s176 = scalar_lea.vmem [#allocation0], 384
    %177 = vst.msk [vmem:[%s176] sm:$0x40] %vm163, %v162
    %s178 = scalar_lea.vmem [#allocation0], 447
    %179 = vst.msk [vmem:[%s178] sm:$0x80] %vm163, %v162
    %s180 = scalar_lea.vmem %s0, 8
    %v181 = vld [vmem:[%s180] sm:$0x1]
    %182 = vrot.lane.b32.xlu0 %v181, 122
    %v183 = vpop.permute.xlu0 %182
    %vm184 = vcmask 7168
    %s185 = scalar_lea.vmem [#allocation0], 518
    %186 = vst.msk [vmem:[%s185] sm:$0x1] %vm184, %v183
    %v187 = vld [vmem:[%s0] sm:$0xff]
    %188 = vrot.lane.b32.xlu0 %v187, 121
    %v189 = vpop.permute.xlu0 %188
    %vm190 = vcmask 7168
    %s191 = scalar_lea.vmem [#allocation0], 7
    %192 = vst.msk [vmem:[%s191] sm:$0x1] %vm190, %v189
    %s193 = scalar_lea.vmem [#allocation0], 70
    %194 = vst.msk [vmem:[%s193] sm:$0x2] %vm190, %v189
    %s195 = scalar_lea.vmem [#allocation0], 133
    %196 = vst.msk [vmem:[%s195] sm:$0x4] %vm190, %v189
    %s197 = scalar_lea.vmem [#allocation0], 196
    %198 = vst.msk [vmem:[%s197] sm:$0x8] %vm190, %v189
    %s199 = scalar_lea.vmem [#allocation0], 259
    %200 = vst.msk [vmem:[%s199] sm:$0x10] %vm190, %v189
    %s201 = scalar_lea.vmem [#allocation0], 322
    %202 = vst.msk [vmem:[%s201] sm:$0x20] %vm190, %v189
    %s203 = scalar_lea.vmem [#allocation0], 385
    %204 = vst.msk [vmem:[%s203] sm:$0x40] %vm190, %v189
    %s205 = scalar_lea.vmem [#allocation0], 448
    %206 = vst.msk [vmem:[%s205] sm:$0x80] %vm190, %v189
    %s207 = scalar_lea.vmem %s0, 8
    %v208 = vld [vmem:[%s207] sm:$0x1]
    %209 = vrot.lane.b32.xlu0 %v208, 121
    %v210 = vpop.permute.xlu0 %209
    %vm211 = vcmask 7168
    %s212 = scalar_lea.vmem [#allocation0], 519
    %213 = vst.msk [vmem:[%s212] sm:$0x1] %vm211, %v210
    %v214 = vld [vmem:[%s0] sm:$0xff]
    %215 = vrot.lane.b32.xlu0 %v214, 120
    %v216 = vpop.permute.xlu0 %215
    %vm217 = vcmask 7168
    %s218 = scalar_lea.vmem [#allocation0], 8
    %219 = vst.msk [vmem:[%s218] sm:$0x1] %vm217, %v216
    %s220 = scalar_lea.vmem [#allocation0], 71
    %221 = vst.msk [vmem:[%s220] sm:$0x2] %vm217, %v216
    %s222 = scalar_lea.vmem [#allocation0], 134
    %223 = vst.msk [vmem:[%s222] sm:$0x4] %vm217, %v216
    %s224 = scalar_lea.vmem [#allocation0], 197
    %225 = vst.msk [vmem:[%s224] sm:$0x8] %vm217, %v216
    %s226 = scalar_lea.vmem [#allocation0], 260
    %227 = vst.msk [vmem:[%s226] sm:$0x10] %vm217, %v216
    %s228 = scalar_lea.vmem [#allocation0], 323
    %229 = vst.msk [vmem:[%s228] sm:$0x20] %vm217, %v216
    %s230 = scalar_lea.vmem [#allocation0], 386
    %231 = vst.msk [vmem:[%s230] sm:$0x40] %vm217, %v216
    %s232 = scalar_lea.vmem [#allocation0], 449
    %233 = vst.msk [vmem:[%s232] sm:$0x80] %vm217, %v216
    %s234 = scalar_lea.vmem %s0, 8
    %v235 = vld [vmem:[%s234] sm:$0x1]
    %236 = vrot.lane.b32.xlu0 %v235, 120
    %v237 = vpop.permute.xlu0 %236
    %vm238 = vcmask 7168
    %s239 = scalar_lea.vmem [#allocation0], 520
    %240 = vst.msk [vmem:[%s239] sm:$0x1] %vm238, %v237
    %v241 = vld [vmem:[%s0] sm:$0xff]
    %242 = vrot.lane.b32.xlu0 %v241, 119
    %v243 = vpop.permute.xlu0 %242
    %vm244 = vcmask 7168
    %s245 = scalar_lea.vmem [#allocation0], 9
    %246 = vst.msk [vmem:[%s245] sm:$0x1] %vm244, %v243
    %s247 = scalar_lea.vmem [#allocation0], 72
    %248 = vst.msk [vmem:[%s247] sm:$0x2] %vm244, %v243
    %s249 = scalar_lea.vmem [#allocation0], 135
    %250 = vst.msk [vmem:[%s249] sm:$0x4] %vm244, %v243
    %s251 = scalar_lea.vmem [#allocation0], 198
    %252 = vst.msk [vmem:[%s251] sm:$0x8] %vm244, %v243
    %s253 = scalar_lea.vmem [#allocation0], 261
    %254 = vst.msk [vmem:[%s253] sm:$0x10] %vm244, %v243
    %s255 = scalar_lea.vmem [#allocation0], 324
    %256 = vst.msk [vmem:[%s255] sm:$0x20] %vm244, %v243
    %s257 = scalar_lea.vmem [#allocation0], 387
    %258 = vst.msk [vmem:[%s257] sm:$0x40] %vm244, %v243
    %s259 = scalar_lea.vmem [#allocation0], 450
    %260 = vst.msk [vmem:[%s259] sm:$0x80] %vm244, %v243
    %s261 = scalar_lea.vmem %s0, 8
    %v262 = vld [vmem:[%s261] sm:$0x1]
    %263 = vrot.lane.b32.xlu0 %v262, 119
    %v264 = vpop.permute.xlu0 %263
    %vm265 = vcmask 7168
    %s266 = scalar_lea.vmem [#allocation0], 521
    %267 = vst.msk [vmem:[%s266] sm:$0x1] %vm265, %v264
    %v268 = vld [vmem:[%s0] sm:$0xff]
    %269 = vrot.lane.b32.xlu0 %v268, 118
    %v270 = vpop.permute.xlu0 %269
    %vm271 = vcmask 7168
    %s272 = scalar_lea.vmem [#allocation0], 10
    %273 = vst.msk [vmem:[%s272] sm:$0x1] %vm271, %v270
    %s274 = scalar_lea.vmem [#allocation0], 73
    %275 = vst.msk [vmem:[%s274] sm:$0x2] %vm271, %v270
    %s276 = scalar_lea.vmem [#allocation0], 136
    %277 = vst.msk [vmem:[%s276] sm:$0x4] %vm271, %v270
    %s278 = scalar_lea.vmem [#allocation0], 199
    %279 = vst.msk [vmem:[%s278] sm:$0x8] %vm271, %v270
    %s280 = scalar_lea.vmem [#allocation0], 262
    %281 = vst.msk [vmem:[%s280] sm:$0x10] %vm271, %v270
    %s282 = scalar_lea.vmem [#allocation0], 325
    %283 = vst.msk [vmem:[%s282] sm:$0x20] %vm271, %v270
    %s284 = scalar_lea.vmem [#allocation0], 388
    %285 = vst.msk [vmem:[%s284] sm:$0x40] %vm271, %v270
    %s286 = scalar_lea.vmem [#allocation0], 451
    %287 = vst.msk [vmem:[%s286] sm:$0x80] %vm271, %v270
    %s288 = scalar_lea.vmem %s0, 8
    %v289 = vld [vmem:[%s288] sm:$0x1]
    %290 = vrot.lane.b32.xlu0 %v289, 118
    %v291 = vpop.permute.xlu0 %290
    %vm292 = vcmask 7168
    %s293 = scalar_lea.vmem [#allocation0], 522
    %294 = vst.msk [vmem:[%s293] sm:$0x1] %vm292, %v291
    %v295 = vld [vmem:[%s0] sm:$0xff]
    %296 = vrot.lane.b32.xlu0 %v295, 117
    %v297 = vpop.permute.xlu0 %296
    %vm298 = vcmask 7168
    %s299 = scalar_lea.vmem [#allocation0], 11
    %300 = vst.msk [vmem:[%s299] sm:$0x1] %vm298, %v297
    %s301 = scalar_lea.vmem [#allocation0], 74
    %302 = vst.msk [vmem:[%s301] sm:$0x2] %vm298, %v297
    %s303 = scalar_lea.vmem [#allocation0], 137
    %304 = vst.msk [vmem:[%s303] sm:$0x4] %vm298, %v297
    %s305 = scalar_lea.vmem [#allocation0], 200
    %306 = vst.msk [vmem:[%s305] sm:$0x8] %vm298, %v297
    %s307 = scalar_lea.vmem [#allocation0], 263
    %308 = vst.msk [vmem:[%s307] sm:$0x10] %vm298, %v297
    %s309 = scalar_lea.vmem [#allocation0], 326
    %310 = vst.msk [vmem:[%s309] sm:$0x20] %vm298, %v297
    %s311 = scalar_lea.vmem [#allocation0], 389
    %312 = vst.msk [vmem:[%s311] sm:$0x40] %vm298, %v297
    %s313 = scalar_lea.vmem [#allocation0], 452
    %314 = vst.msk [vmem:[%s313] sm:$0x80] %vm298, %v297
    %s315 = scalar_lea.vmem %s0, 8
    %v316 = vld [vmem:[%s315] sm:$0x1]
    %317 = vrot.lane.b32.xlu0 %v316, 117
    %v318 = vpop.permute.xlu0 %317
    %vm319 = vcmask 7168
    %s320 = scalar_lea.vmem [#allocation0], 523
    %321 = vst.msk [vmem:[%s320] sm:$0x1] %vm319, %v318
    %v322 = vld [vmem:[%s0] sm:$0xff]
    %323 = vrot.lane.b32.xlu0 %v322, 116
    %v324 = vpop.permute.xlu0 %323
    %vm325 = vcmask 7168
    %s326 = scalar_lea.vmem [#allocation0], 12
    %327 = vst.msk [vmem:[%s326] sm:$0x1] %vm325, %v324
    %s328 = scalar_lea.vmem [#allocation0], 75
    %329 = vst.msk [vmem:[%s328] sm:$0x2] %vm325, %v324
    %s330 = scalar_lea.vmem [#allocation0], 138
    %331 = vst.msk [vmem:[%s330] sm:$0x4] %vm325, %v324
    %s332 = scalar_lea.vmem [#allocation0], 201
    %333 = vst.msk [vmem:[%s332] sm:$0x8] %vm325, %v324
    %s334 = scalar_lea.vmem [#allocation0], 264
    %335 = vst.msk [vmem:[%s334] sm:$0x10] %vm325, %v324
    %s336 = scalar_lea.vmem [#allocation0], 327
    %337 = vst.msk [vmem:[%s336] sm:$0x20] %vm325, %v324
    %s338 = scalar_lea.vmem [#allocation0], 390
    %339 = vst.msk [vmem:[%s338] sm:$0x40] %vm325, %v324
    %s340 = scalar_lea.vmem [#allocation0], 453
    %341 = vst.msk [vmem:[%s340] sm:$0x80] %vm325, %v324
    %s342 = scalar_lea.vmem %s0, 8
    %v343 = vld [vmem:[%s342] sm:$0x1]
    %344 = vrot.lane.b32.xlu0 %v343, 116
    %v345 = vpop.permute.xlu0 %344
    %vm346 = vcmask 7168
    %s347 = scalar_lea.vmem [#allocation0], 524
    %348 = vst.msk [vmem:[%s347] sm:$0x1] %vm346, %v345
    %v349 = vld [vmem:[%s0] sm:$0xff]
    %350 = vrot.lane.b32.xlu0 %v349, 115
    %v351 = vpop.permute.xlu0 %350
    %vm352 = vcmask 7168
    %s353 = scalar_lea.vmem [#allocation0], 13
    %354 = vst.msk [vmem:[%s353] sm:$0x1] %vm352, %v351
    %s355 = scalar_lea.vmem [#allocation0], 76
    %356 = vst.msk [vmem:[%s355] sm:$0x2] %vm352, %v351
    %s357 = scalar_lea.vmem [#allocation0], 139
    %358 = vst.msk [vmem:[%s357] sm:$0x4] %vm352, %v351
    %s359 = scalar_lea.vmem [#allocation0], 202
    %360 = vst.msk [vmem:[%s359] sm:$0x8] %vm352, %v351
    %s361 = scalar_lea.vmem [#allocation0], 265
    %362 = vst.msk [vmem:[%s361] sm:$0x10] %vm352, %v351
    %s363 = scalar_lea.vmem [#allocation0], 328
    %364 = vst.msk [vmem:[%s363] sm:$0x20] %vm352, %v351
    %s365 = scalar_lea.vmem [#allocation0], 391
    %366 = vst.msk [vmem:[%s365] sm:$0x40] %vm352, %v351
    %s367 = scalar_lea.vmem [#allocation0], 454
    %368 = vst.msk [vmem:[%s367] sm:$0x80] %vm352, %v351
    %s369 = scalar_lea.vmem %s0, 8
    %v370 = vld [vmem:[%s369] sm:$0x1]
    %371 = vrot.lane.b32.xlu0 %v370, 115
    %v372 = vpop.permute.xlu0 %371
    %vm373 = vcmask 7168
    %s374 = scalar_lea.vmem [#allocation0], 525
    %375 = vst.msk [vmem:[%s374] sm:$0x1] %vm373, %v372
    %v376 = vld [vmem:[%s0] sm:$0xff]
    %377 = vrot.lane.b32.xlu0 %v376, 114
    %v378 = vpop.permute.xlu0 %377
    %vm379 = vcmask 7168
    %s380 = scalar_lea.vmem [#allocation0], 14
    %381 = vst.msk [vmem:[%s380] sm:$0x1] %vm379, %v378
    %s382 = scalar_lea.vmem [#allocation0], 77
    %383 = vst.msk [vmem:[%s382] sm:$0x2] %vm379, %v378
    %s384 = scalar_lea.vmem [#allocation0], 140
    %385 = vst.msk [vmem:[%s384] sm:$0x4] %vm379, %v378
    %s386 = scalar_lea.vmem [#allocation0], 203
    %387 = vst.msk [vmem:[%s386] sm:$0x8] %vm379, %v378
    %s388 = scalar_lea.vmem [#allocation0], 266
    %389 = vst.msk [vmem:[%s388] sm:$0x10] %vm379, %v378
    %s390 = scalar_lea.vmem [#allocation0], 329
    %391 = vst.msk [vmem:[%s390] sm:$0x20] %vm379, %v378
    %s392 = scalar_lea.vmem [#allocation0], 392
    %393 = vst.msk [vmem:[%s392] sm:$0x40] %vm379, %v378
    %s394 = scalar_lea.vmem [#allocation0], 455
    %395 = vst.msk [vmem:[%s394] sm:$0x80] %vm379, %v378
    %s396 = scalar_lea.vmem %s0, 8
    %v397 = vld [vmem:[%s396] sm:$0x1]
    %398 = vrot.lane.b32.xlu0 %v397, 114
    %v399 = vpop.permute.xlu0 %398
    %vm400 = vcmask 7168
    %s401 = scalar_lea.vmem [#allocation0], 526
    %402 = vst.msk [vmem:[%s401] sm:$0x1] %vm400, %v399
    %v403 = vld [vmem:[%s0] sm:$0xff]
    %404 = vrot.lane.b32.xlu0 %v403, 113
    %v405 = vpop.permute.xlu0 %404
    %vm406 = vcmask 7168
    %s407 = scalar_lea.vmem [#allocation0], 15
    %408 = vst.msk [vmem:[%s407] sm:$0x1] %vm406, %v405
    %s409 = scalar_lea.vmem [#allocation0], 78
    %410 = vst.msk [vmem:[%s409] sm:$0x2] %vm406, %v405
    %s411 = scalar_lea.vmem [#allocation0], 141
    %412 = vst.msk [vmem:[%s411] sm:$0x4] %vm406, %v405
    %s413 = scalar_lea.vmem [#allocation0], 204
    %414 = vst.msk [vmem:[%s413] sm:$0x8] %vm406, %v405
    %s415 = scalar_lea.vmem [#allocation0], 267
    %416 = vst.msk [vmem:[%s415] sm:$0x10] %vm406, %v405
    %s417 = scalar_lea.vmem [#allocation0], 330
    %418 = vst.msk [vmem:[%s417] sm:$0x20] %vm406, %v405
    %s419 = scalar_lea.vmem [#allocation0], 393
    %420 = vst.msk [vmem:[%s419] sm:$0x40] %vm406, %v405
    %s421 = scalar_lea.vmem [#allocation0], 456
    %422 = vst.msk [vmem:[%s421] sm:$0x80] %vm406, %v405
    %s423 = scalar_lea.vmem %s0, 8
    %v424 = vld [vmem:[%s423] sm:$0x1]
    %425 = vrot.lane.b32.xlu0 %v424, 113
    %v426 = vpop.permute.xlu0 %425
    %vm427 = vcmask 7168
    %s428 = scalar_lea.vmem [#allocation0], 527
    %429 = vst.msk [vmem:[%s428] sm:$0x1] %vm427, %v426
    %v430 = vld [vmem:[%s0] sm:$0xff]
    %431 = vrot.lane.b32.xlu0 %v430, 112
    %v432 = vpop.permute.xlu0 %431
    %vm433 = vcmask 7168
    %s434 = scalar_lea.vmem [#allocation0], 16
    %435 = vst.msk [vmem:[%s434] sm:$0x1] %vm433, %v432
    %s436 = scalar_lea.vmem [#allocation0], 79
    %437 = vst.msk [vmem:[%s436] sm:$0x2] %vm433, %v432
    %s438 = scalar_lea.vmem [#allocation0], 142
    %439 = vst.msk [vmem:[%s438] sm:$0x4] %vm433, %v432
    %s440 = scalar_lea.vmem [#allocation0], 205
    %441 = vst.msk [vmem:[%s440] sm:$0x8] %vm433, %v432
    %s442 = scalar_lea.vmem [#allocation0], 268
    %443 = vst.msk [vmem:[%s442] sm:$0x10] %vm433, %v432
    %s444 = scalar_lea.vmem [#allocation0], 331
    %445 = vst.msk [vmem:[%s444] sm:$0x20] %vm433, %v432
    %s446 = scalar_lea.vmem [#allocation0], 394
    %447 = vst.msk [vmem:[%s446] sm:$0x40] %vm433, %v432
    %s448 = scalar_lea.vmem [#allocation0], 457
    %449 = vst.msk [vmem:[%s448] sm:$0x80] %vm433, %v432
    %s450 = scalar_lea.vmem %s0, 8
    %v451 = vld [vmem:[%s450] sm:$0x1]
    %452 = vrot.lane.b32.xlu0 %v451, 112
    %v453 = vpop.permute.xlu0 %452
    %vm454 = vcmask 7168
    %s455 = scalar_lea.vmem [#allocation0], 528
    %456 = vst.msk [vmem:[%s455] sm:$0x1] %vm454, %v453
    %v457 = vld [vmem:[%s0] sm:$0xff]
    %458 = vrot.lane.b32.xlu0 %v457, 111
    %v459 = vpop.permute.xlu0 %458
    %vm460 = vcmask 7168
    %s461 = scalar_lea.vmem [#allocation0], 17
    %462 = vst.msk [vmem:[%s461] sm:$0x1] %vm460, %v459
    %s463 = scalar_lea.vmem [#allocation0], 80
    %464 = vst.msk [vmem:[%s463] sm:$0x2] %vm460, %v459
    %s465 = scalar_lea.vmem [#allocation0], 143
    %466 = vst.msk [vmem:[%s465] sm:$0x4] %vm460, %v459
    %s467 = scalar_lea.vmem [#allocation0], 206
    %468 = vst.msk [vmem:[%s467] sm:$0x8] %vm460, %v459
    %s469 = scalar_lea.vmem [#allocation0], 269
    %470 = vst.msk [vmem:[%s469] sm:$0x10] %vm460, %v459
    %s471 = scalar_lea.vmem [#allocation0], 332
    %472 = vst.msk [vmem:[%s471] sm:$0x20] %vm460, %v459
    %s473 = scalar_lea.vmem [#allocation0], 395
    %474 = vst.msk [vmem:[%s473] sm:$0x40] %vm460, %v459
    %s475 = scalar_lea.vmem [#allocation0], 458
    %476 = vst.msk [vmem:[%s475] sm:$0x80] %vm460, %v459
    %s477 = scalar_lea.vmem %s0, 8
    %v478 = vld [vmem:[%s477] sm:$0x1]
    %479 = vrot.lane.b32.xlu0 %v478, 111
    %v480 = vpop.permute.xlu0 %479
    %vm481 = vcmask 7168
    %s482 = scalar_lea.vmem [#allocation0], 529
    %483 = vst.msk [vmem:[%s482] sm:$0x1] %vm481, %v480
    %v484 = vld [vmem:[%s0] sm:$0xff]
    %485 = vrot.lane.b32.xlu0 %v484, 110
    %v486 = vpop.permute.xlu0 %485
    %vm487 = vcmask 7168
    %s488 = scalar_lea.vmem [#allocation0], 18
    %489 = vst.msk [vmem:[%s488] sm:$0x1] %vm487, %v486
    %s490 = scalar_lea.vmem [#allocation0], 81
    %491 = vst.msk [vmem:[%s490] sm:$0x2] %vm487, %v486
    %s492 = scalar_lea.vmem [#allocation0], 144
    %493 = vst.msk [vmem:[%s492] sm:$0x4] %vm487, %v486
    %s494 = scalar_lea.vmem [#allocation0], 207
    %495 = vst.msk [vmem:[%s494] sm:$0x8] %vm487, %v486
    %s496 = scalar_lea.vmem [#allocation0], 270
    %497 = vst.msk [vmem:[%s496] sm:$0x10] %vm487, %v486
    %s498 = scalar_lea.vmem [#allocation0], 333
    %499 = vst.msk [vmem:[%s498] sm:$0x20] %vm487, %v486
    %s500 = scalar_lea.vmem [#allocation0], 396
    %501 = vst.msk [vmem:[%s500] sm:$0x40] %vm487, %v486
    %s502 = scalar_lea.vmem [#allocation0], 459
    %503 = vst.msk [vmem:[%s502] sm:$0x80] %vm487, %v486
    %s504 = scalar_lea.vmem %s0, 8
    %v505 = vld [vmem:[%s504] sm:$0x1]
    %506 = vrot.lane.b32.xlu0 %v505, 110
    %v507 = vpop.permute.xlu0 %506
    %vm508 = vcmask 7168
    %s509 = scalar_lea.vmem [#allocation0], 530
    %510 = vst.msk [vmem:[%s509] sm:$0x1] %vm508, %v507
    %v511 = vld [vmem:[%s0] sm:$0xff]
    %512 = vrot.lane.b32.xlu0 %v511, 109
    %v513 = vpop.permute.xlu0 %512
    %vm514 = vcmask 7168
    %s515 = scalar_lea.vmem [#allocation0], 19
    %516 = vst.msk [vmem:[%s515] sm:$0x1] %vm514, %v513
    %s517 = scalar_lea.vmem [#allocation0], 82
    %518 = vst.msk [vmem:[%s517] sm:$0x2] %vm514, %v513
    %s519 = scalar_lea.vmem [#allocation0], 145
    %520 = vst.msk [vmem:[%s519] sm:$0x4] %vm514, %v513
    %s521 = scalar_lea.vmem [#allocation0], 208
    %522 = vst.msk [vmem:[%s521] sm:$0x8] %vm514, %v513
    %s523 = scalar_lea.vmem [#allocation0], 271
    %524 = vst.msk [vmem:[%s523] sm:$0x10] %vm514, %v513
    %s525 = scalar_lea.vmem [#allocation0], 334
    %526 = vst.msk [vmem:[%s525] sm:$0x20] %vm514, %v513
    %s527 = scalar_lea.vmem [#allocation0], 397
    %528 = vst.msk [vmem:[%s527] sm:$0x40] %vm514, %v513
    %s529 = scalar_lea.vmem [#allocation0], 460
    %530 = vst.msk [vmem:[%s529] sm:$0x80] %vm514, %v513
    %s531 = scalar_lea.vmem %s0, 8
    %v532 = vld [vmem:[%s531] sm:$0x1]
    %533 = vrot.lane.b32.xlu0 %v532, 109
    %v534 = vpop.permute.xlu0 %533
    %vm535 = vcmask 7168
    %s536 = scalar_lea.vmem [#allocation0], 531
    %537 = vst.msk [vmem:[%s536] sm:$0x1] %vm535, %v534
    %v538 = vld [vmem:[%s0] sm:$0xff]
    %539 = vrot.lane.b32.xlu0 %v538, 108
    %v540 = vpop.permute.xlu0 %539
    %vm541 = vcmask 7168
    %s542 = scalar_lea.vmem [#allocation0], 20
    %543 = vst.msk [vmem:[%s542] sm:$0x1] %vm541, %v540
    %s544 = scalar_lea.vmem [#allocation0], 83
    %545 = vst.msk [vmem:[%s544] sm:$0x2] %vm541, %v540
    %s546 = scalar_lea.vmem [#allocation0], 146
    %547 = vst.msk [vmem:[%s546] sm:$0x4] %vm541, %v540
    %s548 = scalar_lea.vmem [#allocation0], 209
    %549 = vst.msk [vmem:[%s548] sm:$0x8] %vm541, %v540
    %s550 = scalar_lea.vmem [#allocation0], 272
    %551 = vst.msk [vmem:[%s550] sm:$0x10] %vm541, %v540
    %s552 = scalar_lea.vmem [#allocation0], 335
    %553 = vst.msk [vmem:[%s552] sm:$0x20] %vm541, %v540
    %s554 = scalar_lea.vmem [#allocation0], 398
    %555 = vst.msk [vmem:[%s554] sm:$0x40] %vm541, %v540
    %s556 = scalar_lea.vmem [#allocation0], 461
    %557 = vst.msk [vmem:[%s556] sm:$0x80] %vm541, %v540
    %s558 = scalar_lea.vmem %s0, 8
    %v559 = vld [vmem:[%s558] sm:$0x1]
    %560 = vrot.lane.b32.xlu0 %v559, 108
    %v561 = vpop.permute.xlu0 %560
    %vm562 = vcmask 7168
    %s563 = scalar_lea.vmem [#allocation0], 532
    %564 = vst.msk [vmem:[%s563] sm:$0x1] %vm562, %v561
    %v565 = vld [vmem:[%s0] sm:$0xff]
    %566 = vrot.lane.b32.xlu0 %v565, 107
    %v567 = vpop.permute.xlu0 %566
    %vm568 = vcmask 7168
    %s569 = scalar_lea.vmem [#allocation0], 21
    %570 = vst.msk [vmem:[%s569] sm:$0x1] %vm568, %v567
    %s571 = scalar_lea.vmem [#allocation0], 84
    %572 = vst.msk [vmem:[%s571] sm:$0x2] %vm568, %v567
    %s573 = scalar_lea.vmem [#allocation0], 147
    %574 = vst.msk [vmem:[%s573] sm:$0x4] %vm568, %v567
    %s575 = scalar_lea.vmem [#allocation0], 210
    %576 = vst.msk [vmem:[%s575] sm:$0x8] %vm568, %v567
    %s577 = scalar_lea.vmem [#allocation0], 273
    %578 = vst.msk [vmem:[%s577] sm:$0x10] %vm568, %v567
    %s579 = scalar_lea.vmem [#allocation0], 336
    %580 = vst.msk [vmem:[%s579] sm:$0x20] %vm568, %v567
    %s581 = scalar_lea.vmem [#allocation0], 399
    %582 = vst.msk [vmem:[%s581] sm:$0x40] %vm568, %v567
    %s583 = scalar_lea.vmem [#allocation0], 462
    %584 = vst.msk [vmem:[%s583] sm:$0x80] %vm568, %v567
    %s585 = scalar_lea.vmem %s0, 8
    %v586 = vld [vmem:[%s585] sm:$0x1]
    %587 = vrot.lane.b32.xlu0 %v586, 107
    %v588 = vpop.permute.xlu0 %587
    %vm589 = vcmask 7168
    %s590 = scalar_lea.vmem [#allocation0], 533
    %591 = vst.msk [vmem:[%s590] sm:$0x1] %vm589, %v588
    %v592 = vld [vmem:[%s0] sm:$0xff]
    %593 = vrot.lane.b32.xlu0 %v592, 106
    %v594 = vpop.permute.xlu0 %593
    %vm595 = vcmask 7168
    %s596 = scalar_lea.vmem [#allocation0], 22
    %597 = vst.msk [vmem:[%s596] sm:$0x1] %vm595, %v594
    %s598 = scalar_lea.vmem [#allocation0], 85
    %599 = vst.msk [vmem:[%s598] sm:$0x2] %vm595, %v594
    %s600 = scalar_lea.vmem [#allocation0], 148
    %601 = vst.msk [vmem:[%s600] sm:$0x4] %vm595, %v594
    %s602 = scalar_lea.vmem [#allocation0], 211
    %603 = vst.msk [vmem:[%s602] sm:$0x8] %vm595, %v594
    %s604 = scalar_lea.vmem [#allocation0], 274
    %605 = vst.msk [vmem:[%s604] sm:$0x10] %vm595, %v594
    %s606 = scalar_lea.vmem [#allocation0], 337
    %607 = vst.msk [vmem:[%s606] sm:$0x20] %vm595, %v594
    %s608 = scalar_lea.vmem [#allocation0], 400
    %609 = vst.msk [vmem:[%s608] sm:$0x40] %vm595, %v594
    %s610 = scalar_lea.vmem [#allocation0], 463
    %611 = vst.msk [vmem:[%s610] sm:$0x80] %vm595, %v594
    %s612 = scalar_lea.vmem %s0, 8
    %v613 = vld [vmem:[%s612] sm:$0x1]
    %614 = vrot.lane.b32.xlu0 %v613, 106
    %v615 = vpop.permute.xlu0 %614
    %vm616 = vcmask 7168
    %s617 = scalar_lea.vmem [#allocation0], 534
    %618 = vst.msk [vmem:[%s617] sm:$0x1] %vm616, %v615
    %v619 = vld [vmem:[%s0] sm:$0xff]
    %620 = vrot.lane.b32.xlu0 %v619, 105
    %v621 = vpop.permute.xlu0 %620
    %vm622 = vcmask 7168
    %s623 = scalar_lea.vmem [#allocation0], 23
    %624 = vst.msk [vmem:[%s623] sm:$0x1] %vm622, %v621
    %s625 = scalar_lea.vmem [#allocation0], 86
    %626 = vst.msk [vmem:[%s625] sm:$0x2] %vm622, %v621
    %s627 = scalar_lea.vmem [#allocation0], 149
    %628 = vst.msk [vmem:[%s627] sm:$0x4] %vm622, %v621
    %s629 = scalar_lea.vmem [#allocation0], 212
    %630 = vst.msk [vmem:[%s629] sm:$0x8] %vm622, %v621
    %s631 = scalar_lea.vmem [#allocation0], 275
    %632 = vst.msk [vmem:[%s631] sm:$0x10] %vm622, %v621
    %s633 = scalar_lea.vmem [#allocation0], 338
    %634 = vst.msk [vmem:[%s633] sm:$0x20] %vm622, %v621
    %s635 = scalar_lea.vmem [#allocation0], 401
    %636 = vst.msk [vmem:[%s635] sm:$0x40] %vm622, %v621
    %s637 = scalar_lea.vmem [#allocation0], 464
    %638 = vst.msk [vmem:[%s637] sm:$0x80] %vm622, %v621
    %s639 = scalar_lea.vmem %s0, 8
    %v640 = vld [vmem:[%s639] sm:$0x1]
    %641 = vrot.lane.b32.xlu0 %v640, 105
    %v642 = vpop.permute.xlu0 %641
    %vm643 = vcmask 7168
    %s644 = scalar_lea.vmem [#allocation0], 535
    %645 = vst.msk [vmem:[%s644] sm:$0x1] %vm643, %v642
    %v646 = vld [vmem:[%s0] sm:$0xff]
    %647 = vrot.lane.b32.xlu0 %v646, 104
    %v648 = vpop.permute.xlu0 %647
    %vm649 = vcmask 7168
    %s650 = scalar_lea.vmem [#allocation0], 24
    %651 = vst.msk [vmem:[%s650] sm:$0x1] %vm649, %v648
    %s652 = scalar_lea.vmem [#allocation0], 87
    %653 = vst.msk [vmem:[%s652] sm:$0x2] %vm649, %v648
    %s654 = scalar_lea.vmem [#allocation0], 150
    %655 = vst.msk [vmem:[%s654] sm:$0x4] %vm649, %v648
    %s656 = scalar_lea.vmem [#allocation0], 213
    %657 = vst.msk [vmem:[%s656] sm:$0x8] %vm649, %v648
    %s658 = scalar_lea.vmem [#allocation0], 276
    %659 = vst.msk [vmem:[%s658] sm:$0x10] %vm649, %v648
    %s660 = scalar_lea.vmem [#allocation0], 339
    %661 = vst.msk [vmem:[%s660] sm:$0x20] %vm649, %v648
    %s662 = scalar_lea.vmem [#allocation0], 402
    %663 = vst.msk [vmem:[%s662] sm:$0x40] %vm649, %v648
    %s664 = scalar_lea.vmem [#allocation0], 465
    %665 = vst.msk [vmem:[%s664] sm:$0x80] %vm649, %v648
    %s666 = scalar_lea.vmem %s0, 8
    %v667 = vld [vmem:[%s666] sm:$0x1]
    %668 = vrot.lane.b32.xlu0 %v667, 104
    %v669 = vpop.permute.xlu0 %668
    %vm670 = vcmask 7168
    %s671 = scalar_lea.vmem [#allocation0], 536
    %672 = vst.msk [vmem:[%s671] sm:$0x1] %vm670, %v669
    %v673 = vld [vmem:[%s0] sm:$0xff]
    %674 = vrot.lane.b32.xlu0 %v673, 103
    %v675 = vpop.permute.xlu0 %674
    %vm676 = vcmask 7168
    %s677 = scalar_lea.vmem [#allocation0], 25
    %678 = vst.msk [vmem:[%s677] sm:$0x1] %vm676, %v675
    %s679 = scalar_lea.vmem [#allocation0], 88
    %680 = vst.msk [vmem:[%s679] sm:$0x2] %vm676, %v675
    %s681 = scalar_lea.vmem [#allocation0], 151
    %682 = vst.msk [vmem:[%s681] sm:$0x4] %vm676, %v675
    %s683 = scalar_lea.vmem [#allocation0], 214
    %684 = vst.msk [vmem:[%s683] sm:$0x8] %vm676, %v675
    %s685 = scalar_lea.vmem [#allocation0], 277
    %686 = vst.msk [vmem:[%s685] sm:$0x10] %vm676, %v675
    %s687 = scalar_lea.vmem [#allocation0], 340
    %688 = vst.msk [vmem:[%s687] sm:$0x20] %vm676, %v675
    %s689 = scalar_lea.vmem [#allocation0], 403
    %690 = vst.msk [vmem:[%s689] sm:$0x40] %vm676, %v675
    %s691 = scalar_lea.vmem [#allocation0], 466
    %692 = vst.msk [vmem:[%s691] sm:$0x80] %vm676, %v675
    %s693 = scalar_lea.vmem %s0, 8
    %v694 = vld [vmem:[%s693] sm:$0x1]
    %695 = vrot.lane.b32.xlu0 %v694, 103
    %v696 = vpop.permute.xlu0 %695
    %vm697 = vcmask 7168
    %s698 = scalar_lea.vmem [#allocation0], 537
    %699 = vst.msk [vmem:[%s698] sm:$0x1] %vm697, %v696
    %v700 = vld [vmem:[%s0] sm:$0xff]
    %701 = vrot.lane.b32.xlu0 %v700, 102
    %v702 = vpop.permute.xlu0 %701
    %vm703 = vcmask 7168
    %s704 = scalar_lea.vmem [#allocation0], 26
    %705 = vst.msk [vmem:[%s704] sm:$0x1] %vm703, %v702
    %s706 = scalar_lea.vmem [#allocation0], 89
    %707 = vst.msk [vmem:[%s706] sm:$0x2] %vm703, %v702
    %s708 = scalar_lea.vmem [#allocation0], 152
    %709 = vst.msk [vmem:[%s708] sm:$0x4] %vm703, %v702
    %s710 = scalar_lea.vmem [#allocation0], 215
    %711 = vst.msk [vmem:[%s710] sm:$0x8] %vm703, %v702
    %s712 = scalar_lea.vmem [#allocation0], 278
    %713 = vst.msk [vmem:[%s712] sm:$0x10] %vm703, %v702
    %s714 = scalar_lea.vmem [#allocation0], 341
    %715 = vst.msk [vmem:[%s714] sm:$0x20] %vm703, %v702
    %s716 = scalar_lea.vmem [#allocation0], 404
    %717 = vst.msk [vmem:[%s716] sm:$0x40] %vm703, %v702
    %s718 = scalar_lea.vmem [#allocation0], 467
    %719 = vst.msk [vmem:[%s718] sm:$0x80] %vm703, %v702
    %s720 = scalar_lea.vmem %s0, 8
    %v721 = vld [vmem:[%s720] sm:$0x1]
    %722 = vrot.lane.b32.xlu0 %v721, 102
    %v723 = vpop.permute.xlu0 %722
    %vm724 = vcmask 7168
    %s725 = scalar_lea.vmem [#allocation0], 538
    %726 = vst.msk [vmem:[%s725] sm:$0x1] %vm724, %v723
    %v727 = vld [vmem:[%s0] sm:$0xff]
    %728 = vrot.lane.b32.xlu0 %v727, 101
    %v729 = vpop.permute.xlu0 %728
    %vm730 = vcmask 7168
    %s731 = scalar_lea.vmem [#allocation0], 27
    %732 = vst.msk [vmem:[%s731] sm:$0x1] %vm730, %v729
    %s733 = scalar_lea.vmem [#allocation0], 90
    %734 = vst.msk [vmem:[%s733] sm:$0x2] %vm730, %v729
    %s735 = scalar_lea.vmem [#allocation0], 153
    %736 = vst.msk [vmem:[%s735] sm:$0x4] %vm730, %v729
    %s737 = scalar_lea.vmem [#allocation0], 216
    %738 = vst.msk [vmem:[%s737] sm:$0x8] %vm730, %v729
    %s739 = scalar_lea.vmem [#allocation0], 279
    %740 = vst.msk [vmem:[%s739] sm:$0x10] %vm730, %v729
    %s741 = scalar_lea.vmem [#allocation0], 342
    %742 = vst.msk [vmem:[%s741] sm:$0x20] %vm730, %v729
    %s743 = scalar_lea.vmem [#allocation0], 405
    %744 = vst.msk [vmem:[%s743] sm:$0x40] %vm730, %v729
    %s745 = scalar_lea.vmem [#allocation0], 468
    %746 = vst.msk [vmem:[%s745] sm:$0x80] %vm730, %v729
    %s747 = scalar_lea.vmem %s0, 8
    %v748 = vld [vmem:[%s747] sm:$0x1]
    %749 = vrot.lane.b32.xlu0 %v748, 101
    %v750 = vpop.permute.xlu0 %749
    %vm751 = vcmask 7168
    %s752 = scalar_lea.vmem [#allocation0], 539
    %753 = vst.msk [vmem:[%s752] sm:$0x1] %vm751, %v750
    %v754 = vld [vmem:[%s0] sm:$0xff]
    %755 = vrot.lane.b32.xlu0 %v754, 100
    %v756 = vpop.permute.xlu0 %755
    %vm757 = vcmask 7168
    %s758 = scalar_lea.vmem [#allocation0], 28
    %759 = vst.msk [vmem:[%s758] sm:$0x1] %vm757, %v756
    %s760 = scalar_lea.vmem [#allocation0], 91
    %761 = vst.msk [vmem:[%s760] sm:$0x2] %vm757, %v756
    %s762 = scalar_lea.vmem [#allocation0], 154
    %763 = vst.msk [vmem:[%s762] sm:$0x4] %vm757, %v756
    %s764 = scalar_lea.vmem [#allocation0], 217
    %765 = vst.msk [vmem:[%s764] sm:$0x8] %vm757, %v756
    %s766 = scalar_lea.vmem [#allocation0], 280
    %767 = vst.msk [vmem:[%s766] sm:$0x10] %vm757, %v756
    %s768 = scalar_lea.vmem [#allocation0], 343
    %769 = vst.msk [vmem:[%s768] sm:$0x20] %vm757, %v756
    %s770 = scalar_lea.vmem [#allocation0], 406
    %771 = vst.msk [vmem:[%s770] sm:$0x40] %vm757, %v756
    %s772 = scalar_lea.vmem [#allocation0], 469
    %773 = vst.msk [vmem:[%s772] sm:$0x80] %vm757, %v756
    %s774 = scalar_lea.vmem %s0, 8
    %v775 = vld [vmem:[%s774] sm:$0x1]
    %776 = vrot.lane.b32.xlu0 %v775, 100
    %v777 = vpop.permute.xlu0 %776
    %vm778 = vcmask 7168
    %s779 = scalar_lea.vmem [#allocation0], 540
    %780 = vst.msk [vmem:[%s779] sm:$0x1] %vm778, %v777
    %v781 = vld [vmem:[%s0] sm:$0xff]
    %782 = vrot.lane.b32.xlu0 %v781, 99
    %v783 = vpop.permute.xlu0 %782
    %vm784 = vcmask 7168
    %s785 = scalar_lea.vmem [#allocation0], 29
    %786 = vst.msk [vmem:[%s785] sm:$0x1] %vm784, %v783
    %s787 = scalar_lea.vmem [#allocation0], 92
    %788 = vst.msk [vmem:[%s787] sm:$0x2] %vm784, %v783
    %s789 = scalar_lea.vmem [#allocation0], 155
    %790 = vst.msk [vmem:[%s789] sm:$0x4] %vm784, %v783
    %s791 = scalar_lea.vmem [#allocation0], 218
    %792 = vst.msk [vmem:[%s791] sm:$0x8] %vm784, %v783
    %s793 = scalar_lea.vmem [#allocation0], 281
    %794 = vst.msk [vmem:[%s793] sm:$0x10] %vm784, %v783
    %s795 = scalar_lea.vmem [#allocation0], 344
    %796 = vst.msk [vmem:[%s795] sm:$0x20] %vm784, %v783
    %s797 = scalar_lea.vmem [#allocation0], 407
    %798 = vst.msk [vmem:[%s797] sm:$0x40] %vm784, %v783
    %s799 = scalar_lea.vmem [#allocation0], 470
    %800 = vst.msk [vmem:[%s799] sm:$0x80] %vm784, %v783
    %s801 = scalar_lea.vmem %s0, 8
    %v802 = vld [vmem:[%s801] sm:$0x1]
    %803 = vrot.lane.b32.xlu0 %v802, 99
    %v804 = vpop.permute.xlu0 %803
    %vm805 = vcmask 7168
    %s806 = scalar_lea.vmem [#allocation0], 541
    %807 = vst.msk [vmem:[%s806] sm:$0x1] %vm805, %v804
    %v808 = vld [vmem:[%s0] sm:$0xff]
    %809 = vrot.lane.b32.xlu0 %v808, 98
    %v810 = vpop.permute.xlu0 %809
    %vm811 = vcmask 7168
    %s812 = scalar_lea.vmem [#allocation0], 30
    %813 = vst.msk [vmem:[%s812] sm:$0x1] %vm811, %v810
    %s814 = scalar_lea.vmem [#allocation0], 93
    %815 = vst.msk [vmem:[%s814] sm:$0x2] %vm811, %v810
    %s816 = scalar_lea.vmem [#allocation0], 156
    %817 = vst.msk [vmem:[%s816] sm:$0x4] %vm811, %v810
    %s818 = scalar_lea.vmem [#allocation0], 219
    %819 = vst.msk [vmem:[%s818] sm:$0x8] %vm811, %v810
    %s820 = scalar_lea.vmem [#allocation0], 282
    %821 = vst.msk [vmem:[%s820] sm:$0x10] %vm811, %v810
    %s822 = scalar_lea.vmem [#allocation0], 345
    %823 = vst.msk [vmem:[%s822] sm:$0x20] %vm811, %v810
    %s824 = scalar_lea.vmem [#allocation0], 408
    %825 = vst.msk [vmem:[%s824] sm:$0x40] %vm811, %v810
    %s826 = scalar_lea.vmem [#allocation0], 471
    %827 = vst.msk [vmem:[%s826] sm:$0x80] %vm811, %v810
    %s828 = scalar_lea.vmem %s0, 8
    %v829 = vld [vmem:[%s828] sm:$0x1]
    %830 = vrot.lane.b32.xlu0 %v829, 98
    %v831 = vpop.permute.xlu0 %830
    %vm832 = vcmask 7168
    %s833 = scalar_lea.vmem [#allocation0], 542
    %834 = vst.msk [vmem:[%s833] sm:$0x1] %vm832, %v831
    %v835 = vld [vmem:[%s0] sm:$0xff]
    %836 = vrot.lane.b32.xlu0 %v835, 97
    %v837 = vpop.permute.xlu0 %836
    %vm838 = vcmask 7168
    %s839 = scalar_lea.vmem [#allocation0], 31
    %840 = vst.msk [vmem:[%s839] sm:$0x1] %vm838, %v837
    %s841 = scalar_lea.vmem [#allocation0], 94
    %842 = vst.msk [vmem:[%s841] sm:$0x2] %vm838, %v837
    %s843 = scalar_lea.vmem [#allocation0], 157
    %844 = vst.msk [vmem:[%s843] sm:$0x4] %vm838, %v837
    %s845 = scalar_lea.vmem [#allocation0], 220
    %846 = vst.msk [vmem:[%s845] sm:$0x8] %vm838, %v837
    %s847 = scalar_lea.vmem [#allocation0], 283
    %848 = vst.msk [vmem:[%s847] sm:$0x10] %vm838, %v837
    %s849 = scalar_lea.vmem [#allocation0], 346
    %850 = vst.msk [vmem:[%s849] sm:$0x20] %vm838, %v837
    %s851 = scalar_lea.vmem [#allocation0], 409
    %852 = vst.msk [vmem:[%s851] sm:$0x40] %vm838, %v837
    %s853 = scalar_lea.vmem [#allocation0], 472
    %854 = vst.msk [vmem:[%s853] sm:$0x80] %vm838, %v837
    %s855 = scalar_lea.vmem %s0, 8
    %v856 = vld [vmem:[%s855] sm:$0x1]
    %857 = vrot.lane.b32.xlu0 %v856, 97
    %v858 = vpop.permute.xlu0 %857
    %vm859 = vcmask 7168
    %s860 = scalar_lea.vmem [#allocation0], 543
    %861 = vst.msk [vmem:[%s860] sm:$0x1] %vm859, %v858
    %v862 = vld [vmem:[%s0] sm:$0xff]
    %863 = vrot.lane.b32.xlu0 %v862, 96
    %v864 = vpop.permute.xlu0 %863
    %vm865 = vcmask 7168
    %s866 = scalar_lea.vmem [#allocation0], 32
    %867 = vst.msk [vmem:[%s866] sm:$0x1] %vm865, %v864
    %s868 = scalar_lea.vmem [#allocation0], 95
    %869 = vst.msk [vmem:[%s868] sm:$0x2] %vm865, %v864
    %s870 = scalar_lea.vmem [#allocation0], 158
    %871 = vst.msk [vmem:[%s870] sm:$0x4] %vm865, %v864
    %s872 = scalar_lea.vmem [#allocation0], 221
    %873 = vst.msk [vmem:[%s872] sm:$0x8] %vm865, %v864
    %s874 = scalar_lea.vmem [#allocation0], 284
    %875 = vst.msk [vmem:[%s874] sm:$0x10] %vm865, %v864
    %s876 = scalar_lea.vmem [#allocation0], 347
    %877 = vst.msk [vmem:[%s876] sm:$0x20] %vm865, %v864
    %s878 = scalar_lea.vmem [#allocation0], 410
    %879 = vst.msk [vmem:[%s878] sm:$0x40] %vm865, %v864
    %s880 = scalar_lea.vmem [#allocation0], 473
    %881 = vst.msk [vmem:[%s880] sm:$0x80] %vm865, %v864
    %s882 = scalar_lea.vmem %s0, 8
    %v883 = vld [vmem:[%s882] sm:$0x1]
    %884 = vrot.lane.b32.xlu0 %v883, 96
    %v885 = vpop.permute.xlu0 %884
    %vm886 = vcmask 7168
    %s887 = scalar_lea.vmem [#allocation0], 544
    %888 = vst.msk [vmem:[%s887] sm:$0x1] %vm886, %v885
    %v889 = vld [vmem:[%s0] sm:$0xff]
    %890 = vrot.lane.b32.xlu0 %v889, 95
    %v891 = vpop.permute.xlu0 %890
    %vm892 = vcmask 7168
    %s893 = scalar_lea.vmem [#allocation0], 33
    %894 = vst.msk [vmem:[%s893] sm:$0x1] %vm892, %v891
    %s895 = scalar_lea.vmem [#allocation0], 96
    %896 = vst.msk [vmem:[%s895] sm:$0x2] %vm892, %v891
    %s897 = scalar_lea.vmem [#allocation0], 159
    %898 = vst.msk [vmem:[%s897] sm:$0x4] %vm892, %v891
    %s899 = scalar_lea.vmem [#allocation0], 222
    %900 = vst.msk [vmem:[%s899] sm:$0x8] %vm892, %v891
    %s901 = scalar_lea.vmem [#allocation0], 285
    %902 = vst.msk [vmem:[%s901] sm:$0x10] %vm892, %v891
    %s903 = scalar_lea.vmem [#allocation0], 348
    %904 = vst.msk [vmem:[%s903] sm:$0x20] %vm892, %v891
    %s905 = scalar_lea.vmem [#allocation0], 411
    %906 = vst.msk [vmem:[%s905] sm:$0x40] %vm892, %v891
    %s907 = scalar_lea.vmem [#allocation0], 474
    %908 = vst.msk [vmem:[%s907] sm:$0x80] %vm892, %v891
    %s909 = scalar_lea.vmem %s0, 8
    %v910 = vld [vmem:[%s909] sm:$0x1]
    %911 = vrot.lane.b32.xlu0 %v910, 95
    %v912 = vpop.permute.xlu0 %911
    %vm913 = vcmask 7168
    %s914 = scalar_lea.vmem [#allocation0], 545
    %915 = vst.msk [vmem:[%s914] sm:$0x1] %vm913, %v912
    %v916 = vld [vmem:[%s0] sm:$0xff]
    %917 = vrot.lane.b32.xlu0 %v916, 94
    %v918 = vpop.permute.xlu0 %917
    %vm919 = vcmask 7168
    %s920 = scalar_lea.vmem [#allocation0], 34
    %921 = vst.msk [vmem:[%s920] sm:$0x1] %vm919, %v918
    %s922 = scalar_lea.vmem [#allocation0], 97
    %923 = vst.msk [vmem:[%s922] sm:$0x2] %vm919, %v918
    %s924 = scalar_lea.vmem [#allocation0], 160
    %925 = vst.msk [vmem:[%s924] sm:$0x4] %vm919, %v918
    %s926 = scalar_lea.vmem [#allocation0], 223
    %927 = vst.msk [vmem:[%s926] sm:$0x8] %vm919, %v918
    %s928 = scalar_lea.vmem [#allocation0], 286
    %929 = vst.msk [vmem:[%s928] sm:$0x10] %vm919, %v918
    %s930 = scalar_lea.vmem [#allocation0], 349
    %931 = vst.msk [vmem:[%s930] sm:$0x20] %vm919, %v918
    %s932 = scalar_lea.vmem [#allocation0], 412
    %933 = vst.msk [vmem:[%s932] sm:$0x40] %vm919, %v918
    %s934 = scalar_lea.vmem [#allocation0], 475
    %935 = vst.msk [vmem:[%s934] sm:$0x80] %vm919, %v918
    %s936 = scalar_lea.vmem %s0, 8
    %v937 = vld [vmem:[%s936] sm:$0x1]
    %938 = vrot.lane.b32.xlu0 %v937, 94
    %v939 = vpop.permute.xlu0 %938
    %vm940 = vcmask 7168
    %s941 = scalar_lea.vmem [#allocation0], 546
    %942 = vst.msk [vmem:[%s941] sm:$0x1] %vm940, %v939
    %v943 = vld [vmem:[%s0] sm:$0xff]
    %944 = vrot.lane.b32.xlu0 %v943, 93
    %v945 = vpop.permute.xlu0 %944
    %vm946 = vcmask 7168
    %s947 = scalar_lea.vmem [#allocation0], 35
    %948 = vst.msk [vmem:[%s947] sm:$0x1] %vm946, %v945
    %s949 = scalar_lea.vmem [#allocation0], 98
    %950 = vst.msk [vmem:[%s949] sm:$0x2] %vm946, %v945
    %s951 = scalar_lea.vmem [#allocation0], 161
    %952 = vst.msk [vmem:[%s951] sm:$0x4] %vm946, %v945
    %s953 = scalar_lea.vmem [#allocation0], 224
    %954 = vst.msk [vmem:[%s953] sm:$0x8] %vm946, %v945
    %s955 = scalar_lea.vmem [#allocation0], 287
    %956 = vst.msk [vmem:[%s955] sm:$0x10] %vm946, %v945
    %s957 = scalar_lea.vmem [#allocation0], 350
    %958 = vst.msk [vmem:[%s957] sm:$0x20] %vm946, %v945
    %s959 = scalar_lea.vmem [#allocation0], 413
    %960 = vst.msk [vmem:[%s959] sm:$0x40] %vm946, %v945
    %s961 = scalar_lea.vmem [#allocation0], 476
    %962 = vst.msk [vmem:[%s961] sm:$0x80] %vm946, %v945
    %s963 = scalar_lea.vmem %s0, 8
    %v964 = vld [vmem:[%s963] sm:$0x1]
    %965 = vrot.lane.b32.xlu0 %v964, 93
    %v966 = vpop.permute.xlu0 %965
    %vm967 = vcmask 7168
    %s968 = scalar_lea.vmem [#allocation0], 547
    %969 = vst.msk [vmem:[%s968] sm:$0x1] %vm967, %v966
    %v970 = vld [vmem:[%s0] sm:$0xff]
    %971 = vrot.lane.b32.xlu0 %v970, 92
    %v972 = vpop.permute.xlu0 %971
    %vm973 = vcmask 7168
    %s974 = scalar_lea.vmem [#allocation0], 36
    %975 = vst.msk [vmem:[%s974] sm:$0x1] %vm973, %v972
    %s976 = scalar_lea.vmem [#allocation0], 99
    %977 = vst.msk [vmem:[%s976] sm:$0x2] %vm973, %v972
    %s978 = scalar_lea.vmem [#allocation0], 162
    %979 = vst.msk [vmem:[%s978] sm:$0x4] %vm973, %v972
    %s980 = scalar_lea.vmem [#allocation0], 225
    %981 = vst.msk [vmem:[%s980] sm:$0x8] %vm973, %v972
    %s982 = scalar_lea.vmem [#allocation0], 288
    %983 = vst.msk [vmem:[%s982] sm:$0x10] %vm973, %v972
    %s984 = scalar_lea.vmem [#allocation0], 351
    %985 = vst.msk [vmem:[%s984] sm:$0x20] %vm973, %v972
    %s986 = scalar_lea.vmem [#allocation0], 414
    %987 = vst.msk [vmem:[%s986] sm:$0x40] %vm973, %v972
    %s988 = scalar_lea.vmem [#allocation0], 477
    %989 = vst.msk [vmem:[%s988] sm:$0x80] %vm973, %v972
    %s990 = scalar_lea.vmem %s0, 8
    %v991 = vld [vmem:[%s990] sm:$0x1]
    %992 = vrot.lane.b32.xlu0 %v991, 92
    %v993 = vpop.permute.xlu0 %992
    %vm994 = vcmask 7168
    %s995 = scalar_lea.vmem [#allocation0], 548
    %996 = vst.msk [vmem:[%s995] sm:$0x1] %vm994, %v993
    %v997 = vld [vmem:[%s0] sm:$0xff]
    %998 = vrot.lane.b32.xlu0 %v997, 91
    %v999 = vpop.permute.xlu0 %998
    %vm1000 = vcmask 7168
    %s1001 = scalar_lea.vmem [#allocation0], 37
    %1002 = vst.msk [vmem:[%s1001] sm:$0x1] %vm1000, %v999
    %s1003 = scalar_lea.vmem [#allocation0], 100
    %1004 = vst.msk [vmem:[%s1003] sm:$0x2] %vm1000, %v999
    %s1005 = scalar_lea.vmem [#allocation0], 163
    %1006 = vst.msk [vmem:[%s1005] sm:$0x4] %vm1000, %v999
    %s1007 = scalar_lea.vmem [#allocation0], 226
    %1008 = vst.msk [vmem:[%s1007] sm:$0x8] %vm1000, %v999
    %s1009 = scalar_lea.vmem [#allocation0], 289
    %1010 = vst.msk [vmem:[%s1009] sm:$0x10] %vm1000, %v999
    %s1011 = scalar_lea.vmem [#allocation0], 352
    %1012 = vst.msk [vmem:[%s1011] sm:$0x20] %vm1000, %v999
    %s1013 = scalar_lea.vmem [#allocation0], 415
    %1014 = vst.msk [vmem:[%s1013] sm:$0x40] %vm1000, %v999
    %s1015 = scalar_lea.vmem [#allocation0], 478
    %1016 = vst.msk [vmem:[%s1015] sm:$0x80] %vm1000, %v999
    %s1017 = scalar_lea.vmem %s0, 8
    %v1018 = vld [vmem:[%s1017] sm:$0x1]
    %1019 = vrot.lane.b32.xlu0 %v1018, 91
    %v1020 = vpop.permute.xlu0 %1019
    %vm1021 = vcmask 7168
    %s1022 = scalar_lea.vmem [#allocation0], 549
    %1023 = vst.msk [vmem:[%s1022] sm:$0x1] %vm1021, %v1020
    %v1024 = vld [vmem:[%s0] sm:$0xff]
    %1025 = vrot.lane.b32.xlu0 %v1024, 90
    %v1026 = vpop.permute.xlu0 %1025
    %vm1027 = vcmask 7168
    %s1028 = scalar_lea.vmem [#allocation0], 38
    %1029 = vst.msk [vmem:[%s1028] sm:$0x1] %vm1027, %v1026
    %s1030 = scalar_lea.vmem [#allocation0], 101
    %1031 = vst.msk [vmem:[%s1030] sm:$0x2] %vm1027, %v1026
    %s1032 = scalar_lea.vmem [#allocation0], 164
    %1033 = vst.msk [vmem:[%s1032] sm:$0x4] %vm1027, %v1026
    %s1034 = scalar_lea.vmem [#allocation0], 227
    %1035 = vst.msk [vmem:[%s1034] sm:$0x8] %vm1027, %v1026
    %s1036 = scalar_lea.vmem [#allocation0], 290
    %1037 = vst.msk [vmem:[%s1036] sm:$0x10] %vm1027, %v1026
    %s1038 = scalar_lea.vmem [#allocation0], 353
    %1039 = vst.msk [vmem:[%s1038] sm:$0x20] %vm1027, %v1026
    %s1040 = scalar_lea.vmem [#allocation0], 416
    %1041 = vst.msk [vmem:[%s1040] sm:$0x40] %vm1027, %v1026
    %s1042 = scalar_lea.vmem [#allocation0], 479
    %1043 = vst.msk [vmem:[%s1042] sm:$0x80] %vm1027, %v1026
    %s1044 = scalar_lea.vmem %s0, 8
    %v1045 = vld [vmem:[%s1044] sm:$0x1]
    %1046 = vrot.lane.b32.xlu0 %v1045, 90
    %v1047 = vpop.permute.xlu0 %1046
    %vm1048 = vcmask 7168
    %s1049 = scalar_lea.vmem [#allocation0], 550
    %1050 = vst.msk [vmem:[%s1049] sm:$0x1] %vm1048, %v1047
    %v1051 = vld [vmem:[%s0] sm:$0xff]
    %1052 = vrot.lane.b32.xlu0 %v1051, 89
    %v1053 = vpop.permute.xlu0 %1052
    %vm1054 = vcmask 7168
    %s1055 = scalar_lea.vmem [#allocation0], 39
    %1056 = vst.msk [vmem:[%s1055] sm:$0x1] %vm1054, %v1053
    %s1057 = scalar_lea.vmem [#allocation0], 102
    %1058 = vst.msk [vmem:[%s1057] sm:$0x2] %vm1054, %v1053
    %s1059 = scalar_lea.vmem [#allocation0], 165
    %1060 = vst.msk [vmem:[%s1059] sm:$0x4] %vm1054, %v1053
    %s1061 = scalar_lea.vmem [#allocation0], 228
    %1062 = vst.msk [vmem:[%s1061] sm:$0x8] %vm1054, %v1053
    %s1063 = scalar_lea.vmem [#allocation0], 291
    %1064 = vst.msk [vmem:[%s1063] sm:$0x10] %vm1054, %v1053
    %s1065 = scalar_lea.vmem [#allocation0], 354
    %1066 = vst.msk [vmem:[%s1065] sm:$0x20] %vm1054, %v1053
    %s1067 = scalar_lea.vmem [#allocation0], 417
    %1068 = vst.msk [vmem:[%s1067] sm:$0x40] %vm1054, %v1053
    %s1069 = scalar_lea.vmem [#allocation0], 480
    %1070 = vst.msk [vmem:[%s1069] sm:$0x80] %vm1054, %v1053
    %s1071 = scalar_lea.vmem %s0, 8
    %v1072 = vld [vmem:[%s1071] sm:$0x1]
    %1073 = vrot.lane.b32.xlu0 %v1072, 89
    %v1074 = vpop.permute.xlu0 %1073
    %vm1075 = vcmask 7168
    %s1076 = scalar_lea.vmem [#allocation0], 551
    %1077 = vst.msk [vmem:[%s1076] sm:$0x1] %vm1075, %v1074
    %v1078 = vld [vmem:[%s0] sm:$0xff]
    %1079 = vrot.lane.b32.xlu0 %v1078, 88
    %v1080 = vpop.permute.xlu0 %1079
    %vm1081 = vcmask 7168
    %s1082 = scalar_lea.vmem [#allocation0], 40
    %1083 = vst.msk [vmem:[%s1082] sm:$0x1] %vm1081, %v1080
    %s1084 = scalar_lea.vmem [#allocation0], 103
    %1085 = vst.msk [vmem:[%s1084] sm:$0x2] %vm1081, %v1080
    %s1086 = scalar_lea.vmem [#allocation0], 166
    %1087 = vst.msk [vmem:[%s1086] sm:$0x4] %vm1081, %v1080
    %s1088 = scalar_lea.vmem [#allocation0], 229
    %1089 = vst.msk [vmem:[%s1088] sm:$0x8] %vm1081, %v1080
    %s1090 = scalar_lea.vmem [#allocation0], 292
    %1091 = vst.msk [vmem:[%s1090] sm:$0x10] %vm1081, %v1080
    %s1092 = scalar_lea.vmem [#allocation0], 355
    %1093 = vst.msk [vmem:[%s1092] sm:$0x20] %vm1081, %v1080
    %s1094 = scalar_lea.vmem [#allocation0], 418
    %1095 = vst.msk [vmem:[%s1094] sm:$0x40] %vm1081, %v1080
    %s1096 = scalar_lea.vmem [#allocation0], 481
    %1097 = vst.msk [vmem:[%s1096] sm:$0x80] %vm1081, %v1080
    %s1098 = scalar_lea.vmem %s0, 8
    %v1099 = vld [vmem:[%s1098] sm:$0x1]
    %1100 = vrot.lane.b32.xlu0 %v1099, 88
    %v1101 = vpop.permute.xlu0 %1100
    %vm1102 = vcmask 7168
    %s1103 = scalar_lea.vmem [#allocation0], 552
    %1104 = vst.msk [vmem:[%s1103] sm:$0x1] %vm1102, %v1101
    %v1105 = vld [vmem:[%s0] sm:$0xff]
    %1106 = vrot.lane.b32.xlu0 %v1105, 87
    %v1107 = vpop.permute.xlu0 %1106
    %vm1108 = vcmask 7168
    %s1109 = scalar_lea.vmem [#allocation0], 41
    %1110 = vst.msk [vmem:[%s1109] sm:$0x1] %vm1108, %v1107
    %s1111 = scalar_lea.vmem [#allocation0], 104
    %1112 = vst.msk [vmem:[%s1111] sm:$0x2] %vm1108, %v1107
    %s1113 = scalar_lea.vmem [#allocation0], 167
    %1114 = vst.msk [vmem:[%s1113] sm:$0x4] %vm1108, %v1107
    %s1115 = scalar_lea.vmem [#allocation0], 230
    %1116 = vst.msk [vmem:[%s1115] sm:$0x8] %vm1108, %v1107
    %s1117 = scalar_lea.vmem [#allocation0], 293
    %1118 = vst.msk [vmem:[%s1117] sm:$0x10] %vm1108, %v1107
    %s1119 = scalar_lea.vmem [#allocation0], 356
    %1120 = vst.msk [vmem:[%s1119] sm:$0x20] %vm1108, %v1107
    %s1121 = scalar_lea.vmem [#allocation0], 419
    %1122 = vst.msk [vmem:[%s1121] sm:$0x40] %vm1108, %v1107
    %s1123 = scalar_lea.vmem [#allocation0], 482
    %1124 = vst.msk [vmem:[%s1123] sm:$0x80] %vm1108, %v1107
    %s1125 = scalar_lea.vmem %s0, 8
    %v1126 = vld [vmem:[%s1125] sm:$0x1]
    %1127 = vrot.lane.b32.xlu0 %v1126, 87
    %v1128 = vpop.permute.xlu0 %1127
    %vm1129 = vcmask 7168
    %s1130 = scalar_lea.vmem [#allocation0], 553
    %1131 = vst.msk [vmem:[%s1130] sm:$0x1] %vm1129, %v1128
    %v1132 = vld [vmem:[%s0] sm:$0xff]
    %1133 = vrot.lane.b32.xlu0 %v1132, 86
    %v1134 = vpop.permute.xlu0 %1133
    %vm1135 = vcmask 7168
    %s1136 = scalar_lea.vmem [#allocation0], 42
    %1137 = vst.msk [vmem:[%s1136] sm:$0x1] %vm1135, %v1134
    %s1138 = scalar_lea.vmem [#allocation0], 105
    %1139 = vst.msk [vmem:[%s1138] sm:$0x2] %vm1135, %v1134
    %s1140 = scalar_lea.vmem [#allocation0], 168
    %1141 = vst.msk [vmem:[%s1140] sm:$0x4] %vm1135, %v1134
    %s1142 = scalar_lea.vmem [#allocation0], 231
    %1143 = vst.msk [vmem:[%s1142] sm:$0x8] %vm1135, %v1134
    %s1144 = scalar_lea.vmem [#allocation0], 294
    %1145 = vst.msk [vmem:[%s1144] sm:$0x10] %vm1135, %v1134
    %s1146 = scalar_lea.vmem [#allocation0], 357
    %1147 = vst.msk [vmem:[%s1146] sm:$0x20] %vm1135, %v1134
    %s1148 = scalar_lea.vmem [#allocation0], 420
    %1149 = vst.msk [vmem:[%s1148] sm:$0x40] %vm1135, %v1134
    %s1150 = scalar_lea.vmem [#allocation0], 483
    %1151 = vst.msk [vmem:[%s1150] sm:$0x80] %vm1135, %v1134
    %s1152 = scalar_lea.vmem %s0, 8
    %v1153 = vld [vmem:[%s1152] sm:$0x1]
    %1154 = vrot.lane.b32.xlu0 %v1153, 86
    %v1155 = vpop.permute.xlu0 %1154
    %vm1156 = vcmask 7168
    %s1157 = scalar_lea.vmem [#allocation0], 554
    %1158 = vst.msk [vmem:[%s1157] sm:$0x1] %vm1156, %v1155
    %v1159 = vld [vmem:[%s0] sm:$0xff]
    %1160 = vrot.lane.b32.xlu0 %v1159, 85
    %v1161 = vpop.permute.xlu0 %1160
    %vm1162 = vcmask 7168
    %s1163 = scalar_lea.vmem [#allocation0], 43
    %1164 = vst.msk [vmem:[%s1163] sm:$0x1] %vm1162, %v1161
    %s1165 = scalar_lea.vmem [#allocation0], 106
    %1166 = vst.msk [vmem:[%s1165] sm:$0x2] %vm1162, %v1161
    %s1167 = scalar_lea.vmem [#allocation0], 169
    %1168 = vst.msk [vmem:[%s1167] sm:$0x4] %vm1162, %v1161
    %s1169 = scalar_lea.vmem [#allocation0], 232
    %1170 = vst.msk [vmem:[%s1169] sm:$0x8] %vm1162, %v1161
    %s1171 = scalar_lea.vmem [#allocation0], 295
    %1172 = vst.msk [vmem:[%s1171] sm:$0x10] %vm1162, %v1161
    %s1173 = scalar_lea.vmem [#allocation0], 358
    %1174 = vst.msk [vmem:[%s1173] sm:$0x20] %vm1162, %v1161
    %s1175 = scalar_lea.vmem [#allocation0], 421
    %1176 = vst.msk [vmem:[%s1175] sm:$0x40] %vm1162, %v1161
    %s1177 = scalar_lea.vmem [#allocation0], 484
    %1178 = vst.msk [vmem:[%s1177] sm:$0x80] %vm1162, %v1161
    %s1179 = scalar_lea.vmem %s0, 8
    %v1180 = vld [vmem:[%s1179] sm:$0x1]
    %1181 = vrot.lane.b32.xlu0 %v1180, 85
    %v1182 = vpop.permute.xlu0 %1181
    %vm1183 = vcmask 7168
    %s1184 = scalar_lea.vmem [#allocation0], 555
    %1185 = vst.msk [vmem:[%s1184] sm:$0x1] %vm1183, %v1182
    %v1186 = vld [vmem:[%s0] sm:$0xff]
    %1187 = vrot.lane.b32.xlu0 %v1186, 84
    %v1188 = vpop.permute.xlu0 %1187
    %vm1189 = vcmask 7168
    %s1190 = scalar_lea.vmem [#allocation0], 44
    %1191 = vst.msk [vmem:[%s1190] sm:$0x1] %vm1189, %v1188
    %s1192 = scalar_lea.vmem [#allocation0], 107
    %1193 = vst.msk [vmem:[%s1192] sm:$0x2] %vm1189, %v1188
    %s1194 = scalar_lea.vmem [#allocation0], 170
    %1195 = vst.msk [vmem:[%s1194] sm:$0x4] %vm1189, %v1188
    %s1196 = scalar_lea.vmem [#allocation0], 233
    %1197 = vst.msk [vmem:[%s1196] sm:$0x8] %vm1189, %v1188
    %s1198 = scalar_lea.vmem [#allocation0], 296
    %1199 = vst.msk [vmem:[%s1198] sm:$0x10] %vm1189, %v1188
    %s1200 = scalar_lea.vmem [#allocation0], 359
    %1201 = vst.msk [vmem:[%s1200] sm:$0x20] %vm1189, %v1188
    %s1202 = scalar_lea.vmem [#allocation0], 422
    %1203 = vst.msk [vmem:[%s1202] sm:$0x40] %vm1189, %v1188
    %s1204 = scalar_lea.vmem [#allocation0], 485
    %1205 = vst.msk [vmem:[%s1204] sm:$0x80] %vm1189, %v1188
    %s1206 = scalar_lea.vmem %s0, 8
    %v1207 = vld [vmem:[%s1206] sm:$0x1]
    %1208 = vrot.lane.b32.xlu0 %v1207, 84
    %v1209 = vpop.permute.xlu0 %1208
    %vm1210 = vcmask 7168
    %s1211 = scalar_lea.vmem [#allocation0], 556
    %1212 = vst.msk [vmem:[%s1211] sm:$0x1] %vm1210, %v1209
    %v1213 = vld [vmem:[%s0] sm:$0xff]
    %1214 = vrot.lane.b32.xlu0 %v1213, 83
    %v1215 = vpop.permute.xlu0 %1214
    %vm1216 = vcmask 7168
    %s1217 = scalar_lea.vmem [#allocation0], 45
    %1218 = vst.msk [vmem:[%s1217] sm:$0x1] %vm1216, %v1215
    %s1219 = scalar_lea.vmem [#allocation0], 108
    %1220 = vst.msk [vmem:[%s1219] sm:$0x2] %vm1216, %v1215
    %s1221 = scalar_lea.vmem [#allocation0], 171
    %1222 = vst.msk [vmem:[%s1221] sm:$0x4] %vm1216, %v1215
    %s1223 = scalar_lea.vmem [#allocation0], 234
    %1224 = vst.msk [vmem:[%s1223] sm:$0x8] %vm1216, %v1215
    %s1225 = scalar_lea.vmem [#allocation0], 297
    %1226 = vst.msk [vmem:[%s1225] sm:$0x10] %vm1216, %v1215
    %s1227 = scalar_lea.vmem [#allocation0], 360
    %1228 = vst.msk [vmem:[%s1227] sm:$0x20] %vm1216, %v1215
    %s1229 = scalar_lea.vmem [#allocation0], 423
    %1230 = vst.msk [vmem:[%s1229] sm:$0x40] %vm1216, %v1215
    %s1231 = scalar_lea.vmem [#allocation0], 486
    %1232 = vst.msk [vmem:[%s1231] sm:$0x80] %vm1216, %v1215
    %s1233 = scalar_lea.vmem %s0, 8
    %v1234 = vld [vmem:[%s1233] sm:$0x1]
    %1235 = vrot.lane.b32.xlu0 %v1234, 83
    %v1236 = vpop.permute.xlu0 %1235
    %vm1237 = vcmask 7168
    %s1238 = scalar_lea.vmem [#allocation0], 557
    %1239 = vst.msk [vmem:[%s1238] sm:$0x1] %vm1237, %v1236
    %v1240 = vld [vmem:[%s0] sm:$0xff]
    %1241 = vrot.lane.b32.xlu0 %v1240, 82
    %v1242 = vpop.permute.xlu0 %1241
    %vm1243 = vcmask 7168
    %s1244 = scalar_lea.vmem [#allocation0], 46
    %1245 = vst.msk [vmem:[%s1244] sm:$0x1] %vm1243, %v1242
    %s1246 = scalar_lea.vmem [#allocation0], 109
    %1247 = vst.msk [vmem:[%s1246] sm:$0x2] %vm1243, %v1242
    %s1248 = scalar_lea.vmem [#allocation0], 172
    %1249 = vst.msk [vmem:[%s1248] sm:$0x4] %vm1243, %v1242
    %s1250 = scalar_lea.vmem [#allocation0], 235
    %1251 = vst.msk [vmem:[%s1250] sm:$0x8] %vm1243, %v1242
    %s1252 = scalar_lea.vmem [#allocation0], 298
    %1253 = vst.msk [vmem:[%s1252] sm:$0x10] %vm1243, %v1242
    %s1254 = scalar_lea.vmem [#allocation0], 361
    %1255 = vst.msk [vmem:[%s1254] sm:$0x20] %vm1243, %v1242
    %s1256 = scalar_lea.vmem [#allocation0], 424
    %1257 = vst.msk [vmem:[%s1256] sm:$0x40] %vm1243, %v1242
    %s1258 = scalar_lea.vmem [#allocation0], 487
    %1259 = vst.msk [vmem:[%s1258] sm:$0x80] %vm1243, %v1242
    %s1260 = scalar_lea.vmem %s0, 8
    %v1261 = vld [vmem:[%s1260] sm:$0x1]
    %1262 = vrot.lane.b32.xlu0 %v1261, 82
    %v1263 = vpop.permute.xlu0 %1262
    %vm1264 = vcmask 7168
    %s1265 = scalar_lea.vmem [#allocation0], 558
    %1266 = vst.msk [vmem:[%s1265] sm:$0x1] %vm1264, %v1263
    %v1267 = vld [vmem:[%s0] sm:$0xff]
    %1268 = vrot.lane.b32.xlu0 %v1267, 81
    %v1269 = vpop.permute.xlu0 %1268
    %vm1270 = vcmask 7168
    %s1271 = scalar_lea.vmem [#allocation0], 47
    %1272 = vst.msk [vmem:[%s1271] sm:$0x1] %vm1270, %v1269
    %s1273 = scalar_lea.vmem [#allocation0], 110
    %1274 = vst.msk [vmem:[%s1273] sm:$0x2] %vm1270, %v1269
    %s1275 = scalar_lea.vmem [#allocation0], 173
    %1276 = vst.msk [vmem:[%s1275] sm:$0x4] %vm1270, %v1269
    %s1277 = scalar_lea.vmem [#allocation0], 236
    %1278 = vst.msk [vmem:[%s1277] sm:$0x8] %vm1270, %v1269
    %s1279 = scalar_lea.vmem [#allocation0], 299
    %1280 = vst.msk [vmem:[%s1279] sm:$0x10] %vm1270, %v1269
    %s1281 = scalar_lea.vmem [#allocation0], 362
    %1282 = vst.msk [vmem:[%s1281] sm:$0x20] %vm1270, %v1269
    %s1283 = scalar_lea.vmem [#allocation0], 425
    %1284 = vst.msk [vmem:[%s1283] sm:$0x40] %vm1270, %v1269
    %s1285 = scalar_lea.vmem [#allocation0], 488
    %1286 = vst.msk [vmem:[%s1285] sm:$0x80] %vm1270, %v1269
    %s1287 = scalar_lea.vmem %s0, 8
    %v1288 = vld [vmem:[%s1287] sm:$0x1]
    %1289 = vrot.lane.b32.xlu0 %v1288, 81
    %v1290 = vpop.permute.xlu0 %1289
    %vm1291 = vcmask 7168
    %s1292 = scalar_lea.vmem [#allocation0], 559
    %1293 = vst.msk [vmem:[%s1292] sm:$0x1] %vm1291, %v1290
    %v1294 = vld [vmem:[%s0] sm:$0xff]
    %1295 = vrot.lane.b32.xlu0 %v1294, 80
    %v1296 = vpop.permute.xlu0 %1295
    %vm1297 = vcmask 7168
    %s1298 = scalar_lea.vmem [#allocation0], 48
    %1299 = vst.msk [vmem:[%s1298] sm:$0x1] %vm1297, %v1296
    %s1300 = scalar_lea.vmem [#allocation0], 111
    %1301 = vst.msk [vmem:[%s1300] sm:$0x2] %vm1297, %v1296
    %s1302 = scalar_lea.vmem [#allocation0], 174
    %1303 = vst.msk [vmem:[%s1302] sm:$0x4] %vm1297, %v1296
    %s1304 = scalar_lea.vmem [#allocation0], 237
    %1305 = vst.msk [vmem:[%s1304] sm:$0x8] %vm1297, %v1296
    %s1306 = scalar_lea.vmem [#allocation0], 300
    %1307 = vst.msk [vmem:[%s1306] sm:$0x10] %vm1297, %v1296
    %s1308 = scalar_lea.vmem [#allocation0], 363
    %1309 = vst.msk [vmem:[%s1308] sm:$0x20] %vm1297, %v1296
    %s1310 = scalar_lea.vmem [#allocation0], 426
    %1311 = vst.msk [vmem:[%s1310] sm:$0x40] %vm1297, %v1296
    %s1312 = scalar_lea.vmem [#allocation0], 489
    %1313 = vst.msk [vmem:[%s1312] sm:$0x80] %vm1297, %v1296
    %s1314 = scalar_lea.vmem %s0, 8
    %v1315 = vld [vmem:[%s1314] sm:$0x1]
    %1316 = vrot.lane.b32.xlu0 %v1315, 80
    %v1317 = vpop.permute.xlu0 %1316
    %vm1318 = vcmask 7168
    %s1319 = scalar_lea.vmem [#allocation0], 560
    %1320 = vst.msk [vmem:[%s1319] sm:$0x1] %vm1318, %v1317
    %v1321 = vld [vmem:[%s0] sm:$0xff]
    %1322 = vrot.lane.b32.xlu0 %v1321, 79
    %v1323 = vpop.permute.xlu0 %1322
    %vm1324 = vcmask 7168
    %s1325 = scalar_lea.vmem [#allocation0], 49
    %1326 = vst.msk [vmem:[%s1325] sm:$0x1] %vm1324, %v1323
    %s1327 = scalar_lea.vmem [#allocation0], 112
    %1328 = vst.msk [vmem:[%s1327] sm:$0x2] %vm1324, %v1323
    %s1329 = scalar_lea.vmem [#allocation0], 175
    %1330 = vst.msk [vmem:[%s1329] sm:$0x4] %vm1324, %v1323
    %s1331 = scalar_lea.vmem [#allocation0], 238
    %1332 = vst.msk [vmem:[%s1331] sm:$0x8] %vm1324, %v1323
    %s1333 = scalar_lea.vmem [#allocation0], 301
    %1334 = vst.msk [vmem:[%s1333] sm:$0x10] %vm1324, %v1323
    %s1335 = scalar_lea.vmem [#allocation0], 364
    %1336 = vst.msk [vmem:[%s1335] sm:$0x20] %vm1324, %v1323
    %s1337 = scalar_lea.vmem [#allocation0], 427
    %1338 = vst.msk [vmem:[%s1337] sm:$0x40] %vm1324, %v1323
    %s1339 = scalar_lea.vmem [#allocation0], 490
    %1340 = vst.msk [vmem:[%s1339] sm:$0x80] %vm1324, %v1323
    %s1341 = scalar_lea.vmem %s0, 8
    %v1342 = vld [vmem:[%s1341] sm:$0x1]
    %1343 = vrot.lane.b32.xlu0 %v1342, 79
    %v1344 = vpop.permute.xlu0 %1343
    %vm1345 = vcmask 7168
    %s1346 = scalar_lea.vmem [#allocation0], 561
    %1347 = vst.msk [vmem:[%s1346] sm:$0x1] %vm1345, %v1344
    %v1348 = vld [vmem:[%s0] sm:$0xff]
    %1349 = vrot.lane.b32.xlu0 %v1348, 78
    %v1350 = vpop.permute.xlu0 %1349
    %vm1351 = vcmask 7168
    %s1352 = scalar_lea.vmem [#allocation0], 50
    %1353 = vst.msk [vmem:[%s1352] sm:$0x1] %vm1351, %v1350
    %s1354 = scalar_lea.vmem [#allocation0], 113
    %1355 = vst.msk [vmem:[%s1354] sm:$0x2] %vm1351, %v1350
    %s1356 = scalar_lea.vmem [#allocation0], 176
    %1357 = vst.msk [vmem:[%s1356] sm:$0x4] %vm1351, %v1350
    %s1358 = scalar_lea.vmem [#allocation0], 239
    %1359 = vst.msk [vmem:[%s1358] sm:$0x8] %vm1351, %v1350
    %s1360 = scalar_lea.vmem [#allocation0], 302
    %1361 = vst.msk [vmem:[%s1360] sm:$0x10] %vm1351, %v1350
    %s1362 = scalar_lea.vmem [#allocation0], 365
    %1363 = vst.msk [vmem:[%s1362] sm:$0x20] %vm1351, %v1350
    %s1364 = scalar_lea.vmem [#allocation0], 428
    %1365 = vst.msk [vmem:[%s1364] sm:$0x40] %vm1351, %v1350
    %s1366 = scalar_lea.vmem [#allocation0], 491
    %1367 = vst.msk [vmem:[%s1366] sm:$0x80] %vm1351, %v1350
    %s1368 = scalar_lea.vmem %s0, 8
    %v1369 = vld [vmem:[%s1368] sm:$0x1]
    %1370 = vrot.lane.b32.xlu0 %v1369, 78
    %v1371 = vpop.permute.xlu0 %1370
    %vm1372 = vcmask 7168
    %s1373 = scalar_lea.vmem [#allocation0], 562
    %1374 = vst.msk [vmem:[%s1373] sm:$0x1] %vm1372, %v1371
    %v1375 = vld [vmem:[%s0] sm:$0xff]
    %1376 = vrot.lane.b32.xlu0 %v1375, 77
    %v1377 = vpop.permute.xlu0 %1376
    %vm1378 = vcmask 7168
    %s1379 = scalar_lea.vmem [#allocation0], 51
    %1380 = vst.msk [vmem:[%s1379] sm:$0x1] %vm1378, %v1377
    %s1381 = scalar_lea.vmem [#allocation0], 114
    %1382 = vst.msk [vmem:[%s1381] sm:$0x2] %vm1378, %v1377
    %s1383 = scalar_lea.vmem [#allocation0], 177
    %1384 = vst.msk [vmem:[%s1383] sm:$0x4] %vm1378, %v1377
    %s1385 = scalar_lea.vmem [#allocation0], 240
    %1386 = vst.msk [vmem:[%s1385] sm:$0x8] %vm1378, %v1377
    %s1387 = scalar_lea.vmem [#allocation0], 303
    %1388 = vst.msk [vmem:[%s1387] sm:$0x10] %vm1378, %v1377
    %s1389 = scalar_lea.vmem [#allocation0], 366
    %1390 = vst.msk [vmem:[%s1389] sm:$0x20] %vm1378, %v1377
    %s1391 = scalar_lea.vmem [#allocation0], 429
    %1392 = vst.msk [vmem:[%s1391] sm:$0x40] %vm1378, %v1377
    %s1393 = scalar_lea.vmem [#allocation0], 492
    %1394 = vst.msk [vmem:[%s1393] sm:$0x80] %vm1378, %v1377
    %s1395 = scalar_lea.vmem %s0, 8
    %v1396 = vld [vmem:[%s1395] sm:$0x1]
    %1397 = vrot.lane.b32.xlu0 %v1396, 77
    %v1398 = vpop.permute.xlu0 %1397
    %vm1399 = vcmask 7168
    %s1400 = scalar_lea.vmem [#allocation0], 563
    %1401 = vst.msk [vmem:[%s1400] sm:$0x1] %vm1399, %v1398
    %v1402 = vld [vmem:[%s0] sm:$0xff]
    %1403 = vrot.lane.b32.xlu0 %v1402, 76
    %v1404 = vpop.permute.xlu0 %1403
    %vm1405 = vcmask 7168
    %s1406 = scalar_lea.vmem [#allocation0], 52
    %1407 = vst.msk [vmem:[%s1406] sm:$0x1] %vm1405, %v1404
    %s1408 = scalar_lea.vmem [#allocation0], 115
    %1409 = vst.msk [vmem:[%s1408] sm:$0x2] %vm1405, %v1404
    %s1410 = scalar_lea.vmem [#allocation0], 178
    %1411 = vst.msk [vmem:[%s1410] sm:$0x4] %vm1405, %v1404
    %s1412 = scalar_lea.vmem [#allocation0], 241
    %1413 = vst.msk [vmem:[%s1412] sm:$0x8] %vm1405, %v1404
    %s1414 = scalar_lea.vmem [#allocation0], 304
    %1415 = vst.msk [vmem:[%s1414] sm:$0x10] %vm1405, %v1404
    %s1416 = scalar_lea.vmem [#allocation0], 367
    %1417 = vst.msk [vmem:[%s1416] sm:$0x20] %vm1405, %v1404
    %s1418 = scalar_lea.vmem [#allocation0], 430
    %1419 = vst.msk [vmem:[%s1418] sm:$0x40] %vm1405, %v1404
    %s1420 = scalar_lea.vmem [#allocation0], 493
    %1421 = vst.msk [vmem:[%s1420] sm:$0x80] %vm1405, %v1404
    %s1422 = scalar_lea.vmem %s0, 8
    %v1423 = vld [vmem:[%s1422] sm:$0x1]
    %1424 = vrot.lane.b32.xlu0 %v1423, 76
    %v1425 = vpop.permute.xlu0 %1424
    %vm1426 = vcmask 7168
    %s1427 = scalar_lea.vmem [#allocation0], 564
    %1428 = vst.msk [vmem:[%s1427] sm:$0x1] %vm1426, %v1425
    %v1429 = vld [vmem:[%s0] sm:$0xff]
    %1430 = vrot.lane.b32.xlu0 %v1429, 75
    %v1431 = vpop.permute.xlu0 %1430
    %vm1432 = vcmask 7168
    %s1433 = scalar_lea.vmem [#allocation0], 53
    %1434 = vst.msk [vmem:[%s1433] sm:$0x1] %vm1432, %v1431
    %s1435 = scalar_lea.vmem [#allocation0], 116
    %1436 = vst.msk [vmem:[%s1435] sm:$0x2] %vm1432, %v1431
    %s1437 = scalar_lea.vmem [#allocation0], 179
    %1438 = vst.msk [vmem:[%s1437] sm:$0x4] %vm1432, %v1431
    %s1439 = scalar_lea.vmem [#allocation0], 242
    %1440 = vst.msk [vmem:[%s1439] sm:$0x8] %vm1432, %v1431
    %s1441 = scalar_lea.vmem [#allocation0], 305
    %1442 = vst.msk [vmem:[%s1441] sm:$0x10] %vm1432, %v1431
    %s1443 = scalar_lea.vmem [#allocation0], 368
    %1444 = vst.msk [vmem:[%s1443] sm:$0x20] %vm1432, %v1431
    %s1445 = scalar_lea.vmem [#allocation0], 431
    %1446 = vst.msk [vmem:[%s1445] sm:$0x40] %vm1432, %v1431
    %s1447 = scalar_lea.vmem [#allocation0], 494
    %1448 = vst.msk [vmem:[%s1447] sm:$0x80] %vm1432, %v1431
    %s1449 = scalar_lea.vmem %s0, 8
    %v1450 = vld [vmem:[%s1449] sm:$0x1]
    %1451 = vrot.lane.b32.xlu0 %v1450, 75
    %v1452 = vpop.permute.xlu0 %1451
    %vm1453 = vcmask 7168
    %s1454 = scalar_lea.vmem [#allocation0], 565
    %1455 = vst.msk [vmem:[%s1454] sm:$0x1] %vm1453, %v1452
    %v1456 = vld [vmem:[%s0] sm:$0xff]
    %1457 = vrot.lane.b32.xlu0 %v1456, 74
    %v1458 = vpop.permute.xlu0 %1457
    %vm1459 = vcmask 7168
    %s1460 = scalar_lea.vmem [#allocation0], 54
    %1461 = vst.msk [vmem:[%s1460] sm:$0x1] %vm1459, %v1458
    %s1462 = scalar_lea.vmem [#allocation0], 117
    %1463 = vst.msk [vmem:[%s1462] sm:$0x2] %vm1459, %v1458
    %s1464 = scalar_lea.vmem [#allocation0], 180
    %1465 = vst.msk [vmem:[%s1464] sm:$0x4] %vm1459, %v1458
    %s1466 = scalar_lea.vmem [#allocation0], 243
    %1467 = vst.msk [vmem:[%s1466] sm:$0x8] %vm1459, %v1458
    %s1468 = scalar_lea.vmem [#allocation0], 306
    %1469 = vst.msk [vmem:[%s1468] sm:$0x10] %vm1459, %v1458
    %s1470 = scalar_lea.vmem [#allocation0], 369
    %1471 = vst.msk [vmem:[%s1470] sm:$0x20] %vm1459, %v1458
    %s1472 = scalar_lea.vmem [#allocation0], 432
    %1473 = vst.msk [vmem:[%s1472] sm:$0x40] %vm1459, %v1458
    %s1474 = scalar_lea.vmem [#allocation0], 495
    %1475 = vst.msk [vmem:[%s1474] sm:$0x80] %vm1459, %v1458
    %s1476 = scalar_lea.vmem %s0, 8
    %v1477 = vld [vmem:[%s1476] sm:$0x1]
    %1478 = vrot.lane.b32.xlu0 %v1477, 74
    %v1479 = vpop.permute.xlu0 %1478
    %vm1480 = vcmask 7168
    %s1481 = scalar_lea.vmem [#allocation0], 566
    %1482 = vst.msk [vmem:[%s1481] sm:$0x1] %vm1480, %v1479
    %v1483 = vld [vmem:[%s0] sm:$0xff]
    %1484 = vrot.lane.b32.xlu0 %v1483, 73
    %v1485 = vpop.permute.xlu0 %1484
    %vm1486 = vcmask 7168
    %s1487 = scalar_lea.vmem [#allocation0], 55
    %1488 = vst.msk [vmem:[%s1487] sm:$0x1] %vm1486, %v1485
    %s1489 = scalar_lea.vmem [#allocation0], 118
    %1490 = vst.msk [vmem:[%s1489] sm:$0x2] %vm1486, %v1485
    %s1491 = scalar_lea.vmem [#allocation0], 181
    %1492 = vst.msk [vmem:[%s1491] sm:$0x4] %vm1486, %v1485
    %s1493 = scalar_lea.vmem [#allocation0], 244
    %1494 = vst.msk [vmem:[%s1493] sm:$0x8] %vm1486, %v1485
    %s1495 = scalar_lea.vmem [#allocation0], 307
    %1496 = vst.msk [vmem:[%s1495] sm:$0x10] %vm1486, %v1485
    %s1497 = scalar_lea.vmem [#allocation0], 370
    %1498 = vst.msk [vmem:[%s1497] sm:$0x20] %vm1486, %v1485
    %s1499 = scalar_lea.vmem [#allocation0], 433
    %1500 = vst.msk [vmem:[%s1499] sm:$0x40] %vm1486, %v1485
    %s1501 = scalar_lea.vmem [#allocation0], 496
    %1502 = vst.msk [vmem:[%s1501] sm:$0x80] %vm1486, %v1485
    %s1503 = scalar_lea.vmem %s0, 8
    %v1504 = vld [vmem:[%s1503] sm:$0x1]
    %1505 = vrot.lane.b32.xlu0 %v1504, 73
    %v1506 = vpop.permute.xlu0 %1505
    %vm1507 = vcmask 7168
    %s1508 = scalar_lea.vmem [#allocation0], 567
    %1509 = vst.msk [vmem:[%s1508] sm:$0x1] %vm1507, %v1506
    %v1510 = vld [vmem:[%s0] sm:$0xff]
    %1511 = vrot.lane.b32.xlu0 %v1510, 72
    %v1512 = vpop.permute.xlu0 %1511
    %vm1513 = vcmask 7168
    %s1514 = scalar_lea.vmem [#allocation0], 56
    %1515 = vst.msk [vmem:[%s1514] sm:$0x1] %vm1513, %v1512
    %s1516 = scalar_lea.vmem [#allocation0], 119
    %1517 = vst.msk [vmem:[%s1516] sm:$0x2] %vm1513, %v1512
    %s1518 = scalar_lea.vmem [#allocation0], 182
    %1519 = vst.msk [vmem:[%s1518] sm:$0x4] %vm1513, %v1512
    %s1520 = scalar_lea.vmem [#allocation0], 245
    %1521 = vst.msk [vmem:[%s1520] sm:$0x8] %vm1513, %v1512
    %s1522 = scalar_lea.vmem [#allocation0], 308
    %1523 = vst.msk [vmem:[%s1522] sm:$0x10] %vm1513, %v1512
    %s1524 = scalar_lea.vmem [#allocation0], 371
    %1525 = vst.msk [vmem:[%s1524] sm:$0x20] %vm1513, %v1512
    %s1526 = scalar_lea.vmem [#allocation0], 434
    %1527 = vst.msk [vmem:[%s1526] sm:$0x40] %vm1513, %v1512
    %s1528 = scalar_lea.vmem [#allocation0], 497
    %1529 = vst.msk [vmem:[%s1528] sm:$0x80] %vm1513, %v1512
    %s1530 = scalar_lea.vmem %s0, 8
    %v1531 = vld [vmem:[%s1530] sm:$0x1]
    %1532 = vrot.lane.b32.xlu0 %v1531, 72
    %v1533 = vpop.permute.xlu0 %1532
    %vm1534 = vcmask 7168
    %s1535 = scalar_lea.vmem [#allocation0], 568
    %1536 = vst.msk [vmem:[%s1535] sm:$0x1] %vm1534, %v1533
    %v1537 = vld [vmem:[%s0] sm:$0xff]
    %1538 = vrot.lane.b32.xlu0 %v1537, 71
    %v1539 = vpop.permute.xlu0 %1538
    %vm1540 = vcmask 7168
    %s1541 = scalar_lea.vmem [#allocation0], 57
    %1542 = vst.msk [vmem:[%s1541] sm:$0x1] %vm1540, %v1539
    %s1543 = scalar_lea.vmem [#allocation0], 120
    %1544 = vst.msk [vmem:[%s1543] sm:$0x2] %vm1540, %v1539
    %s1545 = scalar_lea.vmem [#allocation0], 183
    %1546 = vst.msk [vmem:[%s1545] sm:$0x4] %vm1540, %v1539
    %s1547 = scalar_lea.vmem [#allocation0], 246
    %1548 = vst.msk [vmem:[%s1547] sm:$0x8] %vm1540, %v1539
    %s1549 = scalar_lea.vmem [#allocation0], 309
    %1550 = vst.msk [vmem:[%s1549] sm:$0x10] %vm1540, %v1539
    %s1551 = scalar_lea.vmem [#allocation0], 372
    %1552 = vst.msk [vmem:[%s1551] sm:$0x20] %vm1540, %v1539
    %s1553 = scalar_lea.vmem [#allocation0], 435
    %1554 = vst.msk [vmem:[%s1553] sm:$0x40] %vm1540, %v1539
    %s1555 = scalar_lea.vmem [#allocation0], 498
    %1556 = vst.msk [vmem:[%s1555] sm:$0x80] %vm1540, %v1539
    %s1557 = scalar_lea.vmem %s0, 8
    %v1558 = vld [vmem:[%s1557] sm:$0x1]
    %1559 = vrot.lane.b32.xlu0 %v1558, 71
    %v1560 = vpop.permute.xlu0 %1559
    %vm1561 = vcmask 7168
    %s1562 = scalar_lea.vmem [#allocation0], 569
    %1563 = vst.msk [vmem:[%s1562] sm:$0x1] %vm1561, %v1560
    %v1564 = vld [vmem:[%s0] sm:$0xff]
    %1565 = vrot.lane.b32.xlu0 %v1564, 70
    %v1566 = vpop.permute.xlu0 %1565
    %vm1567 = vcmask 7168
    %s1568 = scalar_lea.vmem [#allocation0], 58
    %1569 = vst.msk [vmem:[%s1568] sm:$0x1] %vm1567, %v1566
    %s1570 = scalar_lea.vmem [#allocation0], 121
    %1571 = vst.msk [vmem:[%s1570] sm:$0x2] %vm1567, %v1566
    %s1572 = scalar_lea.vmem [#allocation0], 184
    %1573 = vst.msk [vmem:[%s1572] sm:$0x4] %vm1567, %v1566
    %s1574 = scalar_lea.vmem [#allocation0], 247
    %1575 = vst.msk [vmem:[%s1574] sm:$0x8] %vm1567, %v1566
    %s1576 = scalar_lea.vmem [#allocation0], 310
    %1577 = vst.msk [vmem:[%s1576] sm:$0x10] %vm1567, %v1566
    %s1578 = scalar_lea.vmem [#allocation0], 373
    %1579 = vst.msk [vmem:[%s1578] sm:$0x20] %vm1567, %v1566
    %s1580 = scalar_lea.vmem [#allocation0], 436
    %1581 = vst.msk [vmem:[%s1580] sm:$0x40] %vm1567, %v1566
    %s1582 = scalar_lea.vmem [#allocation0], 499
    %1583 = vst.msk [vmem:[%s1582] sm:$0x80] %vm1567, %v1566
    %s1584 = scalar_lea.vmem %s0, 8
    %v1585 = vld [vmem:[%s1584] sm:$0x1]
    %1586 = vrot.lane.b32.xlu0 %v1585, 70
    %v1587 = vpop.permute.xlu0 %1586
    %vm1588 = vcmask 7168
    %s1589 = scalar_lea.vmem [#allocation0], 570
    %1590 = vst.msk [vmem:[%s1589] sm:$0x1] %vm1588, %v1587
    %v1591 = vld [vmem:[%s0] sm:$0xff]
    %1592 = vrot.lane.b32.xlu0 %v1591, 69
    %v1593 = vpop.permute.xlu0 %1592
    %vm1594 = vcmask 7168
    %s1595 = scalar_lea.vmem [#allocation0], 59
    %1596 = vst.msk [vmem:[%s1595] sm:$0x1] %vm1594, %v1593
    %s1597 = scalar_lea.vmem [#allocation0], 122
    %1598 = vst.msk [vmem:[%s1597] sm:$0x2] %vm1594, %v1593
    %s1599 = scalar_lea.vmem [#allocation0], 185
    %1600 = vst.msk [vmem:[%s1599] sm:$0x4] %vm1594, %v1593
    %s1601 = scalar_lea.vmem [#allocation0], 248
    %1602 = vst.msk [vmem:[%s1601] sm:$0x8] %vm1594, %v1593
    %s1603 = scalar_lea.vmem [#allocation0], 311
    %1604 = vst.msk [vmem:[%s1603] sm:$0x10] %vm1594, %v1593
    %s1605 = scalar_lea.vmem [#allocation0], 374
    %1606 = vst.msk [vmem:[%s1605] sm:$0x20] %vm1594, %v1593
    %s1607 = scalar_lea.vmem [#allocation0], 437
    %1608 = vst.msk [vmem:[%s1607] sm:$0x40] %vm1594, %v1593
    %s1609 = scalar_lea.vmem [#allocation0], 500
    %1610 = vst.msk [vmem:[%s1609] sm:$0x80] %vm1594, %v1593
    %s1611 = scalar_lea.vmem %s0, 8
    %v1612 = vld [vmem:[%s1611] sm:$0x1]
    %1613 = vrot.lane.b32.xlu0 %v1612, 69
    %v1614 = vpop.permute.xlu0 %1613
    %vm1615 = vcmask 7168
    %s1616 = scalar_lea.vmem [#allocation0], 571
    %1617 = vst.msk [vmem:[%s1616] sm:$0x1] %vm1615, %v1614
    %v1618 = vld [vmem:[%s0] sm:$0xff]
    %1619 = vrot.lane.b32.xlu0 %v1618, 68
    %v1620 = vpop.permute.xlu0 %1619
    %vm1621 = vcmask 7168
    %s1622 = scalar_lea.vmem [#allocation0], 60
    %1623 = vst.msk [vmem:[%s1622] sm:$0x1] %vm1621, %v1620
    %s1624 = scalar_lea.vmem [#allocation0], 123
    %1625 = vst.msk [vmem:[%s1624] sm:$0x2] %vm1621, %v1620
    %s1626 = scalar_lea.vmem [#allocation0], 186
    %1627 = vst.msk [vmem:[%s1626] sm:$0x4] %vm1621, %v1620
    %s1628 = scalar_lea.vmem [#allocation0], 249
    %1629 = vst.msk [vmem:[%s1628] sm:$0x8] %vm1621, %v1620
    %s1630 = scalar_lea.vmem [#allocation0], 312
    %1631 = vst.msk [vmem:[%s1630] sm:$0x10] %vm1621, %v1620
    %s1632 = scalar_lea.vmem [#allocation0], 375
    %1633 = vst.msk [vmem:[%s1632] sm:$0x20] %vm1621, %v1620
    %s1634 = scalar_lea.vmem [#allocation0], 438
    %1635 = vst.msk [vmem:[%s1634] sm:$0x40] %vm1621, %v1620
    %s1636 = scalar_lea.vmem [#allocation0], 501
    %1637 = vst.msk [vmem:[%s1636] sm:$0x80] %vm1621, %v1620
    %s1638 = scalar_lea.vmem %s0, 8
    %v1639 = vld [vmem:[%s1638] sm:$0x1]
    %1640 = vrot.lane.b32.xlu0 %v1639, 68
    %v1641 = vpop.permute.xlu0 %1640
    %vm1642 = vcmask 7168
    %s1643 = scalar_lea.vmem [#allocation0], 572
    %1644 = vst.msk [vmem:[%s1643] sm:$0x1] %vm1642, %v1641
    %v1645 = vld [vmem:[%s0] sm:$0xff]
    %1646 = vrot.lane.b32.xlu0 %v1645, 67
    %v1647 = vpop.permute.xlu0 %1646
    %vm1648 = vcmask 7168
    %s1649 = scalar_lea.vmem [#allocation0], 61
    %1650 = vst.msk [vmem:[%s1649] sm:$0x1] %vm1648, %v1647
    %s1651 = scalar_lea.vmem [#allocation0], 124
    %1652 = vst.msk [vmem:[%s1651] sm:$0x2] %vm1648, %v1647
    %s1653 = scalar_lea.vmem [#allocation0], 187
    %1654 = vst.msk [vmem:[%s1653] sm:$0x4] %vm1648, %v1647
    %s1655 = scalar_lea.vmem [#allocation0], 250
    %1656 = vst.msk [vmem:[%s1655] sm:$0x8] %vm1648, %v1647
    %s1657 = scalar_lea.vmem [#allocation0], 313
    %1658 = vst.msk [vmem:[%s1657] sm:$0x10] %vm1648, %v1647
    %s1659 = scalar_lea.vmem [#allocation0], 376
    %1660 = vst.msk [vmem:[%s1659] sm:$0x20] %vm1648, %v1647
    %s1661 = scalar_lea.vmem [#allocation0], 439
    %1662 = vst.msk [vmem:[%s1661] sm:$0x40] %vm1648, %v1647
    %s1663 = scalar_lea.vmem [#allocation0], 502
    %1664 = vst.msk [vmem:[%s1663] sm:$0x80] %vm1648, %v1647
    %s1665 = scalar_lea.vmem %s0, 8
    %v1666 = vld [vmem:[%s1665] sm:$0x1]
    %1667 = vrot.lane.b32.xlu0 %v1666, 67
    %v1668 = vpop.permute.xlu0 %1667
    %vm1669 = vcmask 7168
    %s1670 = scalar_lea.vmem [#allocation0], 573
    %1671 = vst.msk [vmem:[%s1670] sm:$0x1] %vm1669, %v1668
    %v1672 = vld [vmem:[%s0] sm:$0xff]
    %1673 = vrot.lane.b32.xlu0 %v1672, 66
    %v1674 = vpop.permute.xlu0 %1673
    %vm1675 = vcmask 7168
    %s1676 = scalar_lea.vmem [#allocation0], 62
    %1677 = vst.msk [vmem:[%s1676] sm:$0x1] %vm1675, %v1674
    %s1678 = scalar_lea.vmem [#allocation0], 125
    %1679 = vst.msk [vmem:[%s1678] sm:$0x2] %vm1675, %v1674
    %s1680 = scalar_lea.vmem [#allocation0], 188
    %1681 = vst.msk [vmem:[%s1680] sm:$0x4] %vm1675, %v1674
    %s1682 = scalar_lea.vmem [#allocation0], 251
    %1683 = vst.msk [vmem:[%s1682] sm:$0x8] %vm1675, %v1674
    %s1684 = scalar_lea.vmem [#allocation0], 314
    %1685 = vst.msk [vmem:[%s1684] sm:$0x10] %vm1675, %v1674
    %s1686 = scalar_lea.vmem [#allocation0], 377
    %1687 = vst.msk [vmem:[%s1686] sm:$0x20] %vm1675, %v1674
    %s1688 = scalar_lea.vmem [#allocation0], 440
    %1689 = vst.msk [vmem:[%s1688] sm:$0x40] %vm1675, %v1674
    %s1690 = scalar_lea.vmem [#allocation0], 503
    %1691 = vst.msk [vmem:[%s1690] sm:$0x80] %vm1675, %v1674
    %s1692 = scalar_lea.vmem %s0, 8
    %v1693 = vld [vmem:[%s1692] sm:$0x1]
    %1694 = vrot.lane.b32.xlu0 %v1693, 66
    %v1695 = vpop.permute.xlu0 %1694
    %vm1696 = vcmask 7168
    %s1697 = scalar_lea.vmem [#allocation0], 574
    %1698 = vst.msk [vmem:[%s1697] sm:$0x1] %vm1696, %v1695
    %v1699 = vld [vmem:[%s0] sm:$0xff]
    %1700 = vrot.lane.b32.xlu0 %v1699, 65
    %v1701 = vpop.permute.xlu0 %1700
    %vm1702 = vcmask 7168
    %s1703 = scalar_lea.vmem [#allocation0], 63
    %1704 = vst.msk [vmem:[%s1703] sm:$0x1] %vm1702, %v1701
    %s1705 = scalar_lea.vmem [#allocation0], 126
    %1706 = vst.msk [vmem:[%s1705] sm:$0x2] %vm1702, %v1701
    %s1707 = scalar_lea.vmem [#allocation0], 189
    %1708 = vst.msk [vmem:[%s1707] sm:$0x4] %vm1702, %v1701
    %s1709 = scalar_lea.vmem [#allocation0], 252
    %1710 = vst.msk [vmem:[%s1709] sm:$0x8] %vm1702, %v1701
    %s1711 = scalar_lea.vmem [#allocation0], 315
    %1712 = vst.msk [vmem:[%s1711] sm:$0x10] %vm1702, %v1701
    %s1713 = scalar_lea.vmem [#allocation0], 378
    %1714 = vst.msk [vmem:[%s1713] sm:$0x20] %vm1702, %v1701
    %s1715 = scalar_lea.vmem [#allocation0], 441
    %1716 = vst.msk [vmem:[%s1715] sm:$0x40] %vm1702, %v1701
    %s1717 = scalar_lea.vmem [#allocation0], 504
    %1718 = vst.msk [vmem:[%s1717] sm:$0x80] %vm1702, %v1701
    %s1719 = scalar_lea.vmem %s0, 8
    %v1720 = vld [vmem:[%s1719] sm:$0x1]
    %1721 = vrot.lane.b32.xlu0 %v1720, 65
    %v1722 = vpop.permute.xlu0 %1721
    %vm1723 = vcmask 7168
    %s1724 = scalar_lea.vmem [#allocation0], 575
    %1725 = vst.msk [vmem:[%s1724] sm:$0x1] %vm1723, %v1722
    %s1727 = ssub.s32 9216, 9216
    %1728 = vsyncadd [#allocation1], %s1727
    %s1730 = sshll.u32 [#allocation0], 4
    %s1731 = int_to_ptr.vmem [resolvable:$true] %s1730
    %1733 = dma.vmem_to_hbm [thread:$0]  %s1731, 9216, %s1, [#allocation1]
    %1734 = dma.done [#allocation1], 9216
    %1735 = vsyncpa [#allocation1], 1

// kernel: image_embedding_forward.1
$region0: #{image_embedding_forward.1}
  #allocation0 [shape = 'u32[]', space=smem, size = 0x4, offset = 0x4, fixed_abs, tag = 'smem constant byte address 0x4 - core index']
  #allocation1 [shape = 'u32[144,128]{1,0:T(1,128)}', space=vmem, size = 0x12000, scoped, tag = 'internal scratch']
  %s0 = inlined_call_operand.hbm [shape: bf16[81,256], index: 0, kind: input, shape index: {}]
  %s1 = inlined_call_operand.hbm [shape: f32[576,256], index: 1, kind: input, shape index: {}]
  %s2 = inlined_call_operand.hbm [shape: bf16[576,81], index: 2, kind: input, shape index: {}]
  %s3 = inlined_call_operand.hbm [shape: f32[576,1], index: 3, kind: input, shape index: {}]
  %s4 = inlined_call_operand.hbm [shape: bf16[512,576], index: 4, kind: input, shape index: {}]
  %s5 = inlined_call_operand.hbm [shape: f32[512,1], index: 5, kind: input, shape index: {}]
  %s6 = inlined_call_operand.hbm [shape: bf16[128,512], index: 6, kind: input, shape index: {}]
  %s7 = inlined_call_operand.hbm [shape: f32[128,1], index: 7, kind: input, shape index: {}]
  %s8 = inlined_call_operand.hbm [shape: f32[128,1], index: 8, kind: input, shape index: {}]
  %s9 = inlined_call_operand.hbm [shape: bf16[16,128], index: 9, kind: input, shape index: {}]
  %s10 = inlined_call_operand.hbm [shape: f32[16,1], index: 10, kind: input, shape index: {}]
  %s11 = inlined_call_operand.hbm [shape: bf16[16,1024], index: 11, kind: input, shape index: {}]
  %s12 = inlined_call_operand.hbm [shape: f32[128,1024], index: 12, kind: input, shape index: {}]
  %s13 = inlined_call_operand.hbm [shape: bf16[2,128], index: 13, kind: input, shape index: {}]
  %s14 = inlined_call_operand.hbm [shape: bf16[1024,256], index: 14, kind: input, shape index: {}]
  %s15 = inlined_call_operand.hbm [shape: f32[1,256], index: 15, kind: input, shape index: {}]
  %s16 = inlined_call_operand.hbm [shape: f32[2,256], index: 16, kind: output, shape index: {}]
  %s17 = sld [smem:[#allocation0]]
  $region138: #{image_embedding_forward.1} parent=0
    _
  %s19 = ssub.s32 1, %s17
  %s20 = scalar_select 0, %s19, %s17
  $region1: #{image_embedding_forward.1} parent=0
    #allocation2 [shape = 'u8[45056]{0}', space=vmem, size = 0xb000, scoped, tag = 'input window, operand 0, single buffered']
    #allocation3 [shape = 's32[1]{0}', space=sflag, size = 0x4, scoped, tag = 'scoped memory for image_embedding_forward.1']
    #allocation4 [shape = 's32[1]{0}', space=sflag, size = 0x4, scoped, tag = 'scoped memory for image_embedding_forward.1']
    #allocation5 [shape = 'u8[589824]{0}', space=vmem, size = 0x90000, scoped, tag = 'input window, operand 1, single buffered']
    #allocation6 [shape = 's32[1]{0}', space=sflag, size = 0x4, scoped, tag = 'scoped memory for image_embedding_forward.1']
    #allocation7 [shape = 'u8[147456]{0}', space=vmem, size = 0x24000, scoped, tag = 'input window, operand 2, single buffered']
    #allocation8 [shape = 'u8[294912]{0}', space=vmem, size = 0x48000, scoped, tag = 'input window, operand 3, single buffered']
    #allocation9 [shape = 's32[1]{0}', space=sflag, size = 0x4, scoped, tag = 'scoped memory for image_embedding_forward.1']
    #allocation10 [shape = 'u8[655360]{0}', space=vmem, size = 0xa0000, scoped, tag = 'input window, operand 4, single buffered']
    #allocation11 [shape = 'u8[262144]{0}', space=vmem, size = 0x40000, scoped, tag = 'input window, operand 5, single buffered']
    #allocation12 [shape = 's32[1]{0}', space=sflag, size = 0x4, scoped, tag = 'scoped memory for image_embedding_forward.1']
    #allocation13 [shape = 'u8[131072]{0}', space=vmem, size = 0x20000, scoped, tag = 'input window, operand 6, single buffered']
    #allocation14 [shape = 'u8[65536]{0}', space=vmem, size = 0x10000, scoped, tag = 'input window, operand 7, single buffered']
    #allocation15 [shape = 's32[1]{0}', space=sflag, size = 0x4, scoped, tag = 'scoped memory for image_embedding_forward.1']
    #allocation16 [shape = 'u8[65536]{0}', space=vmem, size = 0x10000, scoped, tag = 'input window, operand 8, single buffered']
    #allocation17 [shape = 'u8[4096]{0}', space=vmem, size = 0x1000, scoped, tag = 'input window, operand 9, single buffered']
    #allocation18 [shape = 's32[1]{0}', space=sflag, size = 0x4, scoped, tag = 'scoped memory for image_embedding_forward.1']
    #allocation19 [shape = 'u8[8192]{0}', space=vmem, size = 0x2000, scoped, tag = 'input window, operand 10, single buffered']
    #allocation20 [shape = 'u8[32768]{0}', space=vmem, size = 0x8000, scoped, tag = 'input window, operand 11, single buffered']
    #allocation21 [shape = 's32[1]{0}', space=sflag, size = 0x4, scoped, tag = 'scoped memory for image_embedding_forward.1']
    #allocation22 [shape = 'u8[524288]{0}', space=vmem, size = 0x80000, scoped, tag = 'input window, operand 12, single buffered']
    #allocation23 [shape = 'u8[512]{0}', space=vmem, size = 0x400, scoped, tag = 'input window, operand 13, single buffered']
    #allocation24 [shape = 's32[1]{0}', space=sflag, size = 0x4, scoped, tag = 'scoped memory for image_embedding_forward.1']
    #allocation25 [shape = 'u8[524288]{0}', space=vmem, size = 0x80000, scoped, tag = 'input window, operand 14, single buffered']
    #allocation26 [shape = 'u8[1024]{0}', space=vmem, size = 0x400, scoped, tag = 'input window, operand 15, single buffered']
    #allocation27 [shape = 's32[1]{0}', space=sflag, size = 0x4, scoped, tag = 'scoped memory for image_embedding_forward.1']
    #allocation28 [shape = 'u8[2048]{0}', space=vmem, size = 0x800, scoped, tag = 'output window, operand 0, single buffered']
    %21 = vsyncpa [#allocation3], 0
    %22 = vsyncpa [#allocation6], 0
    %23 = vsyncpa [#allocation9], 0
    %24 = vsyncpa [#allocation12], 0
    %25 = vsyncpa [#allocation15], 0
    %26 = vsyncpa [#allocation18], 0
    %27 = vsyncpa [#allocation21], 0
    %28 = vsyncpa [#allocation24], 0
    %29 = vsyncpa [#allocation27], 0
    %30 = vsyncpa [#allocation4], 0
    // Predicated region
    $region2: #{image_embedding_forward.1} parent=1 // pred_check
      _
    $region3: #{image_embedding_forward.1} parent=1 // pred_check_branch
      %32 = sbr.rel (0) target = $region5
    $region4: #{image_embedding_forward.1} parent=1 // pred_region
      %s34 = ssub.s32 1408, 1408
      %35 = vsyncadd [#allocation3], %s34
      %s36 = sshll.u32 [#allocation2], 4
      %s37 = int_to_ptr.vmem [resolvable:$true] %s36
      %42 = dma.hbm_to_vmem [thread:$0]  %s0, 1408, %s37, [#allocation3], 128, 128, 8
    $region5: #{image_embedding_forward.1} parent=1 // pred_fallthru
      _
    // Predicated region
    $region6: #{image_embedding_forward.1} parent=1 // pred_check
      _
    $region7: #{image_embedding_forward.1} parent=1 // pred_check_branch
      %44 = sbr.rel (0) target = $region9
    $region8: #{image_embedding_forward.1} parent=1 // pred_region
      %s46 = ssub.s32 18432, 18432
      %47 = vsyncadd [#allocation6], %s46
      %s48 = sshll.u32 [#allocation5], 4
      %s49 = int_to_ptr.vmem [resolvable:$true] %s48
      %54 = dma.hbm_to_vmem [thread:$0]  %s1, 18432, %s49, [#allocation6], 256, 256, 16
    $region9: #{image_embedding_forward.1} parent=1 // pred_fallthru
      _
    // Predicated region
    $region10: #{image_embedding_forward.1} parent=1 // pred_check
      _
    $region11: #{image_embedding_forward.1} parent=1 // pred_check_branch
      %56 = sbr.rel (0) target = $region13
    $region12: #{image_embedding_forward.1} parent=1 // pred_region
      %s58 = ssub.s32 4608, 4608
      %59 = vsyncadd [#allocation6], %s58
      %s60 = sshll.u32 [#allocation7], 4
      %s61 = int_to_ptr.vmem [resolvable:$true] %s60
      %66 = dma.hbm_to_vmem [thread:$0]  %s2, 4608, %s61, [#allocation6], 64, 64, 4
    $region13: #{image_embedding_forward.1} parent=1 // pred_fallthru
      _
    // Predicated region
    $region14: #{image_embedding_forward.1} parent=1 // pred_check
      _
    $region15: #{image_embedding_forward.1} parent=1 // pred_check_branch
      %68 = sbr.rel (0) target = $region17
    $region16: #{image_embedding_forward.1} parent=1 // pred_region
      %s70 = ssub.s32 9216, 9216
      %71 = vsyncadd [#allocation9], %s70
      %s72 = sshll.u32 [#allocation8], 4
      %s73 = int_to_ptr.vmem [resolvable:$true] %s72
      %78 = dma.hbm_to_vmem [thread:$0]  %s3, 9216, %s73, [#allocation9], 128, 128, 8
    $region17: #{image_embedding_forward.1} parent=1 // pred_fallthru
      _
    // Predicated region
    $region18: #{image_embedding_forward.1} parent=1 // pred_check
      _
    $region19: #{image_embedding_forward.1} parent=1 // pred_check_branch
      %80 = sbr.rel (0) target = $region21
    $region20: #{image_embedding_forward.1} parent=1 // pred_region
      %s82 = ssub.s32 20480, 20480
      %83 = vsyncadd [#allocation9], %s82
      %s84 = sshll.u32 [#allocation10], 4
      %s85 = int_to_ptr.vmem [resolvable:$true] %s84
      %90 = dma.hbm_to_vmem [thread:$0]  %s4, 20480, %s85, [#allocation9], 320, 320, 20
    $region21: #{image_embedding_forward.1} parent=1 // pred_fallthru
      _
    // Predicated region
    $region22: #{image_embedding_forward.1} parent=1 // pred_check
      _
    $region23: #{image_embedding_forward.1} parent=1 // pred_check_branch
      %92 = sbr.rel (0) target = $region25
    $region24: #{image_embedding_forward.1} parent=1 // pred_region
      %s94 = ssub.s32 8192, 8192
      %95 = vsyncadd [#allocation12], %s94
      %s96 = sshll.u32 [#allocation11], 4
      %s97 = int_to_ptr.vmem [resolvable:$true] %s96
      %102 = dma.hbm_to_vmem [thread:$0]  %s5, 8192, %s97, [#allocation12], 128, 128, 8
    $region25: #{image_embedding_forward.1} parent=1 // pred_fallthru
      _
    // Predicated region
    $region26: #{image_embedding_forward.1} parent=1 // pred_check
      _
    $region27: #{image_embedding_forward.1} parent=1 // pred_check_branch
      %104 = sbr.rel (0) target = $region29
    $region28: #{image_embedding_forward.1} parent=1 // pred_region
      %s106 = ssub.s32 4096, 4096
      %107 = vsyncadd [#allocation12], %s106
      %s108 = sshll.u32 [#allocation13], 4
      %s109 = int_to_ptr.vmem [resolvable:$true] %s108
      %114 = dma.hbm_to_vmem [thread:$0]  %s6, 4096, %s109, [#allocation12], 256, 256, 16
    $region29: #{image_embedding_forward.1} parent=1 // pred_fallthru
      _
    // Predicated region
    $region30: #{image_embedding_forward.1} parent=1 // pred_check
      _
    $region31: #{image_embedding_forward.1} parent=1 // pred_check_branch
      %116 = sbr.rel (0) target = $region33
    $region32: #{image_embedding_forward.1} parent=1 // pred_region
      %s118 = ssub.s32 2048, 2048
      %119 = vsyncadd [#allocation15], %s118
      %s120 = sshll.u32 [#allocation14], 4
      %s121 = int_to_ptr.vmem [resolvable:$true] %s120
      %126 = dma.hbm_to_vmem [thread:$0]  %s7, 2048, %s121, [#allocation15], 128, 128, 8
    $region33: #{image_embedding_forward.1} parent=1 // pred_fallthru
      _
    // Predicated region
    $region34: #{image_embedding_forward.1} parent=1 // pred_check
      _
    $region35: #{image_embedding_forward.1} parent=1 // pred_check_branch
      %128 = sbr.rel (0) target = $region37
    $region36: #{image_embedding_forward.1} parent=1 // pred_region
      %s130 = ssub.s32 2048, 2048
      %131 = vsyncadd [#allocation15], %s130
      %s132 = sshll.u32 [#allocation16], 4
      %s133 = int_to_ptr.vmem [resolvable:$true] %s132
      %138 = dma.hbm_to_vmem [thread:$0]  %s8, 2048, %s133, [#allocation15], 128, 128, 8
    $region37: #{image_embedding_forward.1} parent=1 // pred_fallthru
      _
    // Predicated region
    $region38: #{image_embedding_forward.1} parent=1 // pred_check
      _
    $region39: #{image_embedding_forward.1} parent=1 // pred_check_branch
      %140 = sbr.rel (0) target = $region41
    $region40: #{image_embedding_forward.1} parent=1 // pred_region
      %s142 = ssub.s32 128, 128
      %143 = vsyncadd [#allocation18], %s142
      %s144 = sshll.u32 [#allocation17], 4
      %s145 = int_to_ptr.vmem [resolvable:$true] %s144
      %150 = dma.hbm_to_vmem [thread:$0]  %s9, 128, %s145, [#allocation18], 64, 64, 4
    $region41: #{image_embedding_forward.1} parent=1 // pred_fallthru
      _
    // Predicated region
    $region42: #{image_embedding_forward.1} parent=1 // pred_check
      _
    $region43: #{image_embedding_forward.1} parent=1 // pred_check_branch
      %152 = sbr.rel (0) target = $region45
    $region44: #{image_embedding_forward.1} parent=1 // pred_region
      %s154 = ssub.s32 256, 256
      %155 = vsyncadd [#allocation18], %s154
      %s156 = sshll.u32 [#allocation19], 4
      %s157 = int_to_ptr.vmem [resolvable:$true] %s156
      %162 = dma.hbm_to_vmem [thread:$0]  %s10, 256, %s157, [#allocation18], 128, 128, 8
    $region45: #{image_embedding_forward.1} parent=1 // pred_fallthru
      _
    // Predicated region
    $region46: #{image_embedding_forward.1} parent=1 // pred_check
      _
    $region47: #{image_embedding_forward.1} parent=1 // pred_check_branch
      %164 = sbr.rel (0) target = $region49
    $region48: #{image_embedding_forward.1} parent=1 // pred_region
      %s166 = ssub.s32 1024, 1024
      %167 = vsyncadd [#allocation21], %s166
      %s168 = sshll.u32 [#allocation20], 4
      %s169 = int_to_ptr.vmem [resolvable:$true] %s168
      %174 = dma.hbm_to_vmem [thread:$0]  %s11, 1024, %s169, [#allocation21], 512, 512, 32
    $region49: #{image_embedding_forward.1} parent=1 // pred_fallthru
      _
    // Predicated region
    $region50: #{image_embedding_forward.1} parent=1 // pred_check
      _
    $region51: #{image_embedding_forward.1} parent=1 // pred_check_branch
      %176 = sbr.rel (0) target = $region53
    $region52: #{image_embedding_forward.1} parent=1 // pred_region
      %s178 = ssub.s32 16384, 16384
      %179 = vsyncadd [#allocation21], %s178
      %s180 = sshll.u32 [#allocation22], 4
      %s181 = int_to_ptr.vmem [resolvable:$true] %s180
      %186 = dma.hbm_to_vmem [thread:$0]  %s12, 16384, %s181, [#allocation21], 1024, 1024, 64
    $region53: #{image_embedding_forward.1} parent=1 // pred_fallthru
      _
    // Predicated region
    $region54: #{image_embedding_forward.1} parent=1 // pred_check
      _
    $region55: #{image_embedding_forward.1} parent=1 // pred_check_branch
      %188 = sbr.rel (0) target = $region57
    $region56: #{image_embedding_forward.1} parent=1 // pred_region
      %s190 = ssub.s32 16, 16
      %191 = vsyncadd [#allocation24], %s190
      %s193 = sshll.u32 [#allocation23], 4
      %s194 = int_to_ptr.vmem [resolvable:$true] %s193
      %196 = dma.hbm_to_vmem [thread:$0]  %s13, 16, %s194, [#allocation24]
    $region57: #{image_embedding_forward.1} parent=1 // pred_fallthru
      _
    // Predicated region
    $region58: #{image_embedding_forward.1} parent=1 // pred_check
      _
    $region59: #{image_embedding_forward.1} parent=1 // pred_check_branch
      %198 = sbr.rel (0) target = $region61
    $region60: #{image_embedding_forward.1} parent=1 // pred_region
      %s200 = ssub.s32 16384, 16384
      %201 = vsyncadd [#allocation24], %s200
      %s202 = sshll.u32 [#allocation25], 4
      %s203 = int_to_ptr.vmem [resolvable:$true] %s202
      %208 = dma.hbm_to_vmem [thread:$0]  %s14, 16384, %s203, [#allocation24], 128, 128, 8
    $region61: #{image_embedding_forward.1} parent=1 // pred_fallthru
      _
    // Predicated region
    $region62: #{image_embedding_forward.1} parent=1 // pred_check
      _
    $region63: #{image_embedding_forward.1} parent=1 // pred_check_branch
      %210 = sbr.rel (0) target = $region65
    $region64: #{image_embedding_forward.1} parent=1 // pred_region
      %s212 = ssub.s32 32, 32
      %213 = vsyncadd [#allocation27], %s212
      %s215 = sshll.u32 [#allocation26], 4
      %s216 = int_to_ptr.vmem [resolvable:$true] %s215
      %218 = dma.hbm_to_vmem [thread:$0]  %s15, 32, %s216, [#allocation27]
    $region65: #{image_embedding_forward.1} parent=1 // pred_fallthru
      _
    // Predicated region
    $region66: #{image_embedding_forward.1} parent=1 // pred_check
      _
    $region67: #{image_embedding_forward.1} parent=1 // pred_check_branch
      %220 = sbr.rel (0) target = $region69
    $region68: #{image_embedding_forward.1} parent=1 // pred_region
      %221 = dma.done [#allocation3], 1408
    $region69: #{image_embedding_forward.1} parent=1 // pred_fallthru
      _
    // Predicated region
    $region70: #{image_embedding_forward.1} parent=1 // pred_check
      _
    $region71: #{image_embedding_forward.1} parent=1 // pred_check_branch
      %223 = sbr.rel (0) target = $region73
    $region72: #{image_embedding_forward.1} parent=1 // pred_region
      %224 = dma.done [#allocation6], 18432
    $region73: #{image_embedding_forward.1} parent=1 // pred_fallthru
      _
    // Predicated region
    $region74: #{image_embedding_forward.1} parent=1 // pred_check
      _
    $region75: #{image_embedding_forward.1} parent=1 // pred_check_branch
      %226 = sbr.rel (0) target = $region77
    $region76: #{image_embedding_forward.1} parent=1 // pred_region
      %227 = dma.done [#allocation6], 4608
    $region77: #{image_embedding_forward.1} parent=1 // pred_fallthru
      _
    // Predicated region
    $region78: #{image_embedding_forward.1} parent=1 // pred_check
      _
    $region79: #{image_embedding_forward.1} parent=1 // pred_check_branch
      %229 = sbr.rel (0) target = $region81
    $region80: #{image_embedding_forward.1} parent=1 // pred_region
      %230 = dma.done [#allocation9], 9216
    $region81: #{image_embedding_forward.1} parent=1 // pred_fallthru
      _
    // Predicated region
    $region82: #{image_embedding_forward.1} parent=1 // pred_check
      _
    $region83: #{image_embedding_forward.1} parent=1 // pred_check_branch
      %232 = sbr.rel (0) target = $region85
    $region84: #{image_embedding_forward.1} parent=1 // pred_region
      %233 = dma.done [#allocation9], 20480
    $region85: #{image_embedding_forward.1} parent=1 // pred_fallthru
      _
    // Predicated region
    $region86: #{image_embedding_forward.1} parent=1 // pred_check
      _
    $region87: #{image_embedding_forward.1} parent=1 // pred_check_branch
      %235 = sbr.rel (0) target = $region89
    $region88: #{image_embedding_forward.1} parent=1 // pred_region
      %236 = dma.done [#allocation12], 8192
    $region89: #{image_embedding_forward.1} parent=1 // pred_fallthru
      _
    // Predicated region
    $region90: #{image_embedding_forward.1} parent=1 // pred_check
      _
    $region91: #{image_embedding_forward.1} parent=1 // pred_check_branch
      %238 = sbr.rel (0) target = $region93
    $region92: #{image_embedding_forward.1} parent=1 // pred_region
      %239 = dma.done [#allocation12], 4096
    $region93: #{image_embedding_forward.1} parent=1 // pred_fallthru
      _
    // Predicated region
    $region94: #{image_embedding_forward.1} parent=1 // pred_check
      _
    $region95: #{image_embedding_forward.1} parent=1 // pred_check_branch
      %241 = sbr.rel (0) target = $region97
    $region96: #{image_embedding_forward.1} parent=1 // pred_region
      %242 = dma.done [#allocation15], 2048
    $region97: #{image_embedding_forward.1} parent=1 // pred_fallthru
      _
    // Predicated region
    $region98: #{image_embedding_forward.1} parent=1 // pred_check
      _
    $region99: #{image_embedding_forward.1} parent=1 // pred_check_branch
      %244 = sbr.rel (0) target = $region101
    $region100: #{image_embedding_forward.1} parent=1 // pred_region
      %245 = dma.done [#allocation15], 2048
    $region101: #{image_embedding_forward.1} parent=1 // pred_fallthru
      _
    // Predicated region
    $region102: #{image_embedding_forward.1} parent=1 // pred_check
      _
    $region103: #{image_embedding_forward.1} parent=1 // pred_check_branch
      %247 = sbr.rel (0) target = $region105
    $region104: #{image_embedding_forward.1} parent=1 // pred_region
      %248 = dma.done [#allocation18], 128
    $region105: #{image_embedding_forward.1} parent=1 // pred_fallthru
      _
    // Predicated region
    $region106: #{image_embedding_forward.1} parent=1 // pred_check
      _
    $region107: #{image_embedding_forward.1} parent=1 // pred_check_branch
      %250 = sbr.rel (0) target = $region109
    $region108: #{image_embedding_forward.1} parent=1 // pred_region
      %251 = dma.done [#allocation18], 256
    $region109: #{image_embedding_forward.1} parent=1 // pred_fallthru
      _
    // Predicated region
    $region110: #{image_embedding_forward.1} parent=1 // pred_check
      _
    $region111: #{image_embedding_forward.1} parent=1 // pred_check_branch
      %253 = sbr.rel (0) target = $region113
    $region112: #{image_embedding_forward.1} parent=1 // pred_region
      %254 = dma.done [#allocation21], 1024
    $region113: #{image_embedding_forward.1} parent=1 // pred_fallthru
      _
    // Predicated region
    $region114: #{image_embedding_forward.1} parent=1 // pred_check
      _
    $region115: #{image_embedding_forward.1} parent=1 // pred_check_branch
      %256 = sbr.rel (0) target = $region117
    $region116: #{image_embedding_forward.1} parent=1 // pred_region
      %257 = dma.done [#allocation21], 16384
    $region117: #{image_embedding_forward.1} parent=1 // pred_fallthru
      _
    // Predicated region
    $region118: #{image_embedding_forward.1} parent=1 // pred_check
      _
    $region119: #{image_embedding_forward.1} parent=1 // pred_check_branch
      %259 = sbr.rel (0) target = $region121
    $region120: #{image_embedding_forward.1} parent=1 // pred_region
      %260 = dma.done [#allocation24], 16
    $region121: #{image_embedding_forward.1} parent=1 // pred_fallthru
      _
    // Predicated region
    $region122: #{image_embedding_forward.1} parent=1 // pred_check
      _
    $region123: #{image_embedding_forward.1} parent=1 // pred_check_branch
      %262 = sbr.rel (0) target = $region125
    $region124: #{image_embedding_forward.1} parent=1 // pred_region
      %263 = dma.done [#allocation24], 16384
    $region125: #{image_embedding_forward.1} parent=1 // pred_fallthru
      _
    // Predicated region
    $region126: #{image_embedding_forward.1} parent=1 // pred_check
      _
    $region127: #{image_embedding_forward.1} parent=1 // pred_check_branch
      %265 = sbr.rel (0) target = $region129
    $region128: #{image_embedding_forward.1} parent=1 // pred_region
      %266 = dma.done [#allocation27], 32
    $region129: #{image_embedding_forward.1} parent=1 // pred_fallthru
      _
    %v268 = vld [vmem:[#allocation7] sm:$0xf]
    %v269 = vld [vmem:[#allocation7 + $0x4] sm:$0xf]
    %v270 = vld [vmem:[#allocation7 + $0x8] sm:$0xf]
    %v271 = vld [vmem:[#allocation7 + $0xc] sm:$0xf]
    %v272 = vld [vmem:[#allocation7 + $0x10] sm:$0xf]
    %v273 = vld [vmem:[#allocation7 + $0x14] sm:$0xf]
    %v274 = vld [vmem:[#allocation7 + $0x18] sm:$0xf]
    %v275 = vld [vmem:[#allocation7 + $0x1c] sm:$0xf]
    %v276 = vld [vmem:[#allocation7 + $0x20] sm:$0xf]
    %v277 = vld [vmem:[#allocation7 + $0x24] sm:$0xf]
    %v278 = vld [vmem:[#allocation7 + $0x28] sm:$0xf]
    %v279 = vld [vmem:[#allocation7 + $0x2c] sm:$0xf]
    %v280 = vld [vmem:[#allocation7 + $0x30] sm:$0xf]
    %v281 = vld [vmem:[#allocation7 + $0x34] sm:$0xf]
    %v282 = vld [vmem:[#allocation7 + $0x38] sm:$0xf]
    %v283 = vld [vmem:[#allocation7 + $0x3c] sm:$0xf]
    %v284 = vld [vmem:[#allocation7 + $0x40] sm:$0xf]
    %v285 = vld [vmem:[#allocation7 + $0x44] sm:$0xf]
    %v286 = vld [vmem:[#allocation7 + $0x48] sm:$0xf]
    %v287 = vld [vmem:[#allocation7 + $0x4c] sm:$0xf]
    %v288 = vld [vmem:[#allocation7 + $0x50] sm:$0xf]
    %v289 = vld [vmem:[#allocation7 + $0x54] sm:$0xf]
    %v290 = vld [vmem:[#allocation7 + $0x58] sm:$0xf]
    %v291 = vld [vmem:[#allocation7 + $0x5c] sm:$0xf]
    %v292 = vld [vmem:[#allocation7 + $0x60] sm:$0xf]
    %v293 = vld [vmem:[#allocation7 + $0x64] sm:$0xf]
    %v294 = vld [vmem:[#allocation7 + $0x68] sm:$0xf]
    %v295 = vld [vmem:[#allocation7 + $0x6c] sm:$0xf]
    %v296 = vld [vmem:[#allocation7 + $0x70] sm:$0xf]
    %v297 = vld [vmem:[#allocation7 + $0x74] sm:$0xf]
    %v298 = vld [vmem:[#allocation7 + $0x78] sm:$0xf]
    %v299 = vld [vmem:[#allocation7 + $0x7c] sm:$0xf]
    %v300 = vld [vmem:[#allocation7 + $0x80] sm:$0xf]
    %v301 = vld [vmem:[#allocation7 + $0x84] sm:$0xf]
    %v302 = vld [vmem:[#allocation7 + $0x88] sm:$0xf]
    %v303 = vld [vmem:[#allocation7 + $0x8c] sm:$0xf]
    %v304 = vld [vmem:[#allocation7 + $0x90] sm:$0xf]
    %v305 = vld [vmem:[#allocation7 + $0x94] sm:$0xf]
    %v306 = vld [vmem:[#allocation7 + $0x98] sm:$0xf]
    %v307 = vld [vmem:[#allocation7 + $0x9c] sm:$0xf]
    %v308 = vld [vmem:[#allocation7 + $0xa0] sm:$0xf]
    %v309 = vld [vmem:[#allocation7 + $0xa4] sm:$0xf]
    %v310 = vld [vmem:[#allocation7 + $0xa8] sm:$0xf]
    %v311 = vld [vmem:[#allocation7 + $0xac] sm:$0xf]
    %v312 = vld [vmem:[#allocation7 + $0xb0] sm:$0xf]
    %v313 = vld [vmem:[#allocation7 + $0xb4] sm:$0xf]
    %v314 = vld [vmem:[#allocation7 + $0xb8] sm:$0xf]
    %v315 = vld [vmem:[#allocation7 + $0xbc] sm:$0xf]
    %v316 = vld [vmem:[#allocation7 + $0xc0] sm:$0xf]
    %v317 = vld [vmem:[#allocation7 + $0xc4] sm:$0xf]
    %v318 = vld [vmem:[#allocation7 + $0xc8] sm:$0xf]
    %v319 = vld [vmem:[#allocation7 + $0xcc] sm:$0xf]
    %v320 = vld [vmem:[#allocation7 + $0xd0] sm:$0xf]
    %v321 = vld [vmem:[#allocation7 + $0xd4] sm:$0xf]
    %v322 = vld [vmem:[#allocation7 + $0xd8] sm:$0xf]
    %v323 = vld [vmem:[#allocation7 + $0xdc] sm:$0xf]
    %v324 = vld [vmem:[#allocation7 + $0xe0] sm:$0xf]
    %v325 = vld [vmem:[#allocation7 + $0xe4] sm:$0xf]
    %v326 = vld [vmem:[#allocation7 + $0xe8] sm:$0xf]
    %v327 = vld [vmem:[#allocation7 + $0xec] sm:$0xf]
    %v328 = vld [vmem:[#allocation7 + $0xf0] sm:$0xf]
    %v329 = vld [vmem:[#allocation7 + $0xf4] sm:$0xf]
    %v330 = vld [vmem:[#allocation7 + $0xf8] sm:$0xf]
    %v331 = vld [vmem:[#allocation7 + $0xfc] sm:$0xf]
    %v332 = vld [vmem:[#allocation7 + $0x100] sm:$0xf]
    %v333 = vld [vmem:[#allocation7 + $0x104] sm:$0xf]
    %v334 = vld [vmem:[#allocation7 + $0x108] sm:$0xf]
    %v335 = vld [vmem:[#allocation7 + $0x10c] sm:$0xf]
    %v336 = vld [vmem:[#allocation7 + $0x110] sm:$0xf]
    %v337 = vld [vmem:[#allocation7 + $0x114] sm:$0xf]
    %v338 = vld [vmem:[#allocation7 + $0x118] sm:$0xf]
    %v339 = vld [vmem:[#allocation7 + $0x11c] sm:$0xf]
    %v340 = vld [vmem:[#allocation2] sm:$0xff]
    %v341 = vld [vmem:[#allocation2 + $0x8] sm:$0xff]
    %v342 = vld [vmem:[#allocation2 + $0x10] sm:$0xff]
    %v343 = vld [vmem:[#allocation2 + $0x18] sm:$0xff]
    %v344 = vld [vmem:[#allocation2 + $0x20] sm:$0xff]
    %v345 = vld [vmem:[#allocation2 + $0x28] sm:$0xff]
    %v346 = vld [vmem:[#allocation2 + $0x30] sm:$0xff]
    %v347 = vld [vmem:[#allocation2 + $0x38] sm:$0xff]
    %v348 = vld [vmem:[#allocation2 + $0x40] sm:$0xff]
    %v349 = vld [vmem:[#allocation2 + $0x48] sm:$0xff]
    %v350 = vld [vmem:[#allocation2 + $0x50] sm:$0x11]
    %v351 = vld [vmem:[#allocation8] sm:$0xff]
    %v352 = vld [vmem:[#allocation8 + $0x8] sm:$0xff]
    %v353 = vld [vmem:[#allocation8 + $0x10] sm:$0xff]
    %v354 = vld [vmem:[#allocation8 + $0x18] sm:$0xff]
    %v355 = vld [vmem:[#allocation8 + $0x20] sm:$0xff]
    %v356 = vld [vmem:[#allocation8 + $0x28] sm:$0xff]
    %v357 = vld [vmem:[#allocation8 + $0x30] sm:$0xff]
    %v358 = vld [vmem:[#allocation8 + $0x38] sm:$0xff]
    %v359 = vld [vmem:[#allocation8 + $0x40] sm:$0xff]
    %v360 = vld [vmem:[#allocation8 + $0x48] sm:$0xff]
    %v361 = vld [vmem:[#allocation8 + $0x50] sm:$0xff]
    %v362 = vld [vmem:[#allocation8 + $0x58] sm:$0xff]
    %v363 = vld [vmem:[#allocation8 + $0x60] sm:$0xff]
    %v364 = vld [vmem:[#allocation8 + $0x68] sm:$0xff]
    %v365 = vld [vmem:[#allocation8 + $0x70] sm:$0xff]
    %v366 = vld [vmem:[#allocation8 + $0x78] sm:$0xff]
    %v367 = vld [vmem:[#allocation8 + $0x80] sm:$0xff]
    %v368 = vld [vmem:[#allocation8 + $0x88] sm:$0xff]
    %v369 = vld [vmem:[#allocation8 + $0x90] sm:$0xff]
    %v370 = vld [vmem:[#allocation8 + $0x98] sm:$0xff]
    %v371 = vld [vmem:[#allocation8 + $0xa0] sm:$0xff]
    %v372 = vld [vmem:[#allocation8 + $0xa8] sm:$0xff]
    %v373 = vld [vmem:[#allocation8 + $0xb0] sm:$0xff]
    %v374 = vld [vmem:[#allocation8 + $0xb8] sm:$0xff]
    %v375 = vld [vmem:[#allocation8 + $0xc0] sm:$0xff]
    %v376 = vld [vmem:[#allocation8 + $0xc8] sm:$0xff]
    %v377 = vld [vmem:[#allocation8 + $0xd0] sm:$0xff]
    %v378 = vld [vmem:[#allocation8 + $0xd8] sm:$0xff]
    %v379 = vld [vmem:[#allocation8 + $0xe0] sm:$0xff]
    %v380 = vld [vmem:[#allocation8 + $0xe8] sm:$0xff]
    %v381 = vld [vmem:[#allocation8 + $0xf0] sm:$0xff]
    %v382 = vld [vmem:[#allocation8 + $0xf8] sm:$0xff]
    %v383 = vld [vmem:[#allocation8 + $0x100] sm:$0xff]
    %v384 = vld [vmem:[#allocation8 + $0x108] sm:$0xff]
    %v385 = vld [vmem:[#allocation8 + $0x110] sm:$0xff]
    %v386 = vld [vmem:[#allocation8 + $0x118] sm:$0xff]
    %v387 = vld [vmem:[#allocation8 + $0x120] sm:$0xff]
    %v388 = vld [vmem:[#allocation8 + $0x128] sm:$0xff]
    %v389 = vld [vmem:[#allocation8 + $0x130] sm:$0xff]
    %v390 = vld [vmem:[#allocation8 + $0x138] sm:$0xff]
    %v391 = vld [vmem:[#allocation8 + $0x140] sm:$0xff]
    %v392 = vld [vmem:[#allocation8 + $0x148] sm:$0xff]
    %v393 = vld [vmem:[#allocation8 + $0x150] sm:$0xff]
    %v394 = vld [vmem:[#allocation8 + $0x158] sm:$0xff]
    %v395 = vld [vmem:[#allocation8 + $0x160] sm:$0xff]
    %v396 = vld [vmem:[#allocation8 + $0x168] sm:$0xff]
    %v397 = vld [vmem:[#allocation8 + $0x170] sm:$0xff]
    %v398 = vld [vmem:[#allocation8 + $0x178] sm:$0xff]
    %v399 = vld [vmem:[#allocation8 + $0x180] sm:$0xff]
    %v400 = vld [vmem:[#allocation8 + $0x188] sm:$0xff]
    %v401 = vld [vmem:[#allocation8 + $0x190] sm:$0xff]
    %v402 = vld [vmem:[#allocation8 + $0x198] sm:$0xff]
    %v403 = vld [vmem:[#allocation8 + $0x1a0] sm:$0xff]
    %v404 = vld [vmem:[#allocation8 + $0x1a8] sm:$0xff]
    %v405 = vld [vmem:[#allocation8 + $0x1b0] sm:$0xff]
    %v406 = vld [vmem:[#allocation8 + $0x1b8] sm:$0xff]
    %v407 = vld [vmem:[#allocation8 + $0x1c0] sm:$0xff]
    %v408 = vld [vmem:[#allocation8 + $0x1c8] sm:$0xff]
    %v409 = vld [vmem:[#allocation8 + $0x1d0] sm:$0xff]
    %v410 = vld [vmem:[#allocation8 + $0x1d8] sm:$0xff]
    %v411 = vld [vmem:[#allocation8 + $0x1e0] sm:$0xff]
    %v412 = vld [vmem:[#allocation8 + $0x1e8] sm:$0xff]
    %v413 = vld [vmem:[#allocation8 + $0x1f0] sm:$0xff]
    %v414 = vld [vmem:[#allocation8 + $0x1f8] sm:$0xff]
    %v415 = vld [vmem:[#allocation8 + $0x200] sm:$0xff]
    %v416 = vld [vmem:[#allocation8 + $0x208] sm:$0xff]
    %v417 = vld [vmem:[#allocation8 + $0x210] sm:$0xff]
    %v418 = vld [vmem:[#allocation8 + $0x218] sm:$0xff]
    %v419 = vld [vmem:[#allocation8 + $0x220] sm:$0xff]
    %v420 = vld [vmem:[#allocation8 + $0x228] sm:$0xff]
    %v421 = vld [vmem:[#allocation8 + $0x230] sm:$0xff]
    %v422 = vld [vmem:[#allocation8 + $0x238] sm:$0xff]
    %424 = vset.pattern.permute.xlu0 0
    %425 = vperm.xlu0 %424, %v351
    %v426 = vpop.permute.xlu0 %425
    %429 = vset.pattern.permute.xlu0 0
    %430 = vperm.xlu0 %429, %v352
    %v431 = vpop.permute.xlu0 %430
    %434 = vset.pattern.permute.xlu0 0
    %435 = vperm.xlu0 %434, %v353
    %v436 = vpop.permute.xlu0 %435
    %439 = vset.pattern.permute.xlu0 0
    %440 = vperm.xlu0 %439, %v354
    %v441 = vpop.permute.xlu0 %440
    %444 = vset.pattern.permute.xlu0 0
    %445 = vperm.xlu0 %444, %v355
    %v446 = vpop.permute.xlu0 %445
    %449 = vset.pattern.permute.xlu0 0
    %450 = vperm.xlu0 %449, %v356
    %v451 = vpop.permute.xlu0 %450
    %454 = vset.pattern.permute.xlu0 0
    %455 = vperm.xlu0 %454, %v357
    %v456 = vpop.permute.xlu0 %455
    %459 = vset.pattern.permute.xlu0 0
    %460 = vperm.xlu0 %459, %v358
    %v461 = vpop.permute.xlu0 %460
    %464 = vset.pattern.permute.xlu0 0
    %465 = vperm.xlu0 %464, %v359
    %v466 = vpop.permute.xlu0 %465
    %469 = vset.pattern.permute.xlu0 0
    %470 = vperm.xlu0 %469, %v360
    %v471 = vpop.permute.xlu0 %470
    %474 = vset.pattern.permute.xlu0 0
    %475 = vperm.xlu0 %474, %v361
    %v476 = vpop.permute.xlu0 %475
    %479 = vset.pattern.permute.xlu0 0
    %480 = vperm.xlu0 %479, %v362
    %v481 = vpop.permute.xlu0 %480
    %484 = vset.pattern.permute.xlu0 0
    %485 = vperm.xlu0 %484, %v363
    %v486 = vpop.permute.xlu0 %485
    %489 = vset.pattern.permute.xlu0 0
    %490 = vperm.xlu0 %489, %v364
    %v491 = vpop.permute.xlu0 %490
    %494 = vset.pattern.permute.xlu0 0
    %495 = vperm.xlu0 %494, %v365
    %v496 = vpop.permute.xlu0 %495
    %499 = vset.pattern.permute.xlu0 0
    %500 = vperm.xlu0 %499, %v366
    %v501 = vpop.permute.xlu0 %500
    %504 = vset.pattern.permute.xlu0 0
    %505 = vperm.xlu0 %504, %v367
    %v506 = vpop.permute.xlu0 %505
    %509 = vset.pattern.permute.xlu0 0
    %510 = vperm.xlu0 %509, %v368
    %v511 = vpop.permute.xlu0 %510
    %514 = vset.pattern.permute.xlu0 0
    %515 = vperm.xlu0 %514, %v369
    %v516 = vpop.permute.xlu0 %515
    %519 = vset.pattern.permute.xlu0 0
    %520 = vperm.xlu0 %519, %v370
    %v521 = vpop.permute.xlu0 %520
    %524 = vset.pattern.permute.xlu0 0
    %525 = vperm.xlu0 %524, %v371
    %v526 = vpop.permute.xlu0 %525
    %529 = vset.pattern.permute.xlu0 0
    %530 = vperm.xlu0 %529, %v372
    %v531 = vpop.permute.xlu0 %530
    %534 = vset.pattern.permute.xlu0 0
    %535 = vperm.xlu0 %534, %v373
    %v536 = vpop.permute.xlu0 %535
    %539 = vset.pattern.permute.xlu0 0
    %540 = vperm.xlu0 %539, %v374
    %v541 = vpop.permute.xlu0 %540
    %544 = vset.pattern.permute.xlu0 0
    %545 = vperm.xlu0 %544, %v375
    %v546 = vpop.permute.xlu0 %545
    %549 = vset.pattern.permute.xlu0 0
    %550 = vperm.xlu0 %549, %v376
    %v551 = vpop.permute.xlu0 %550
    %554 = vset.pattern.permute.xlu0 0
    %555 = vperm.xlu0 %554, %v377
    %v556 = vpop.permute.xlu0 %555
    %559 = vset.pattern.permute.xlu0 0
    %560 = vperm.xlu0 %559, %v378
    %v561 = vpop.permute.xlu0 %560
    %564 = vset.pattern.permute.xlu0 0
    %565 = vperm.xlu0 %564, %v379
    %v566 = vpop.permute.xlu0 %565
    %569 = vset.pattern.permute.xlu0 0
    %570 = vperm.xlu0 %569, %v380
    %v571 = vpop.permute.xlu0 %570
    %574 = vset.pattern.permute.xlu0 0
    %575 = vperm.xlu0 %574, %v381
    %v576 = vpop.permute.xlu0 %575
    %579 = vset.pattern.permute.xlu0 0
    %580 = vperm.xlu0 %579, %v382
    %v581 = vpop.permute.xlu0 %580
    %584 = vset.pattern.permute.xlu0 0
    %585 = vperm.xlu0 %584, %v383
    %v586 = vpop.permute.xlu0 %585
    %589 = vset.pattern.permute.xlu0 0
    %590 = vperm.xlu0 %589, %v384
    %v591 = vpop.permute.xlu0 %590
    %594 = vset.pattern.permute.xlu0 0
    %595 = vperm.xlu0 %594, %v385
    %v596 = vpop.permute.xlu0 %595
    %599 = vset.pattern.permute.xlu0 0
    %600 = vperm.xlu0 %599, %v386
    %v601 = vpop.permute.xlu0 %600
    %604 = vset.pattern.permute.xlu0 0
    %605 = vperm.xlu0 %604, %v387
    %v606 = vpop.permute.xlu0 %605
    %609 = vset.pattern.permute.xlu0 0
    %610 = vperm.xlu0 %609, %v388
    %v611 = vpop.permute.xlu0 %610
    %614 = vset.pattern.permute.xlu0 0
    %615 = vperm.xlu0 %614, %v389
    %v616 = vpop.permute.xlu0 %615
    %619 = vset.pattern.permute.xlu0 0
    %620 = vperm.xlu0 %619, %v390
    %v621 = vpop.permute.xlu0 %620
    %624 = vset.pattern.permute.xlu0 0
    %625 = vperm.xlu0 %624, %v391
    %v626 = vpop.permute.xlu0 %625
    %629 = vset.pattern.permute.xlu0 0
    %630 = vperm.xlu0 %629, %v392
    %v631 = vpop.permute.xlu0 %630
    %634 = vset.pattern.permute.xlu0 0
    %635 = vperm.xlu0 %634, %v393
    %v636 = vpop.permute.xlu0 %635
    %639 = vset.pattern.permute.xlu0 0
    %640 = vperm.xlu0 %639, %v394
    %v641 = vpop.permute.xlu0 %640
    %644 = vset.pattern.permute.xlu0 0
    %645 = vperm.xlu0 %644, %v395
    %v646 = vpop.permute.xlu0 %645
    %649 = vset.pattern.permute.xlu0 0
    %650 = vperm.xlu0 %649, %v396
    %v651 = vpop.permute.xlu0 %650
    %654 = vset.pattern.permute.xlu0 0
    %655 = vperm.xlu0 %654, %v397
    %v656 = vpop.permute.xlu0 %655
    %659 = vset.pattern.permute.xlu0 0
    %660 = vperm.xlu0 %659, %v398
    %v661 = vpop.permute.xlu0 %660
    %664 = vset.pattern.permute.xlu0 0
    %665 = vperm.xlu0 %664, %v399
    %v666 = vpop.permute.xlu0 %665
    %669 = vset.pattern.permute.xlu0 0
    %670 = vperm.xlu0 %669, %v400
    %v671 = vpop.permute.xlu0 %670
    %674 = vset.pattern.permute.xlu0 0
    %675 = vperm.xlu0 %674, %v401
    %v676 = vpop.permute.xlu0 %675
    %679 = vset.pattern.permute.xlu0 0
    %680 = vperm.xlu0 %679, %v402
    %v681 = vpop.permute.xlu0 %680
    %684 = vset.pattern.permute.xlu0 0
    %685 = vperm.xlu0 %684, %v403
    %v686 = vpop.permute.xlu0 %685
    %689 = vset.pattern.permute.xlu0 0
    %690 = vperm.xlu0 %689, %v404
    %v691 = vpop.permute.xlu0 %690
    %694 = vset.pattern.permute.xlu0 0
    %695 = vperm.xlu0 %694, %v405
    %v696 = vpop.permute.xlu0 %695
    %699 = vset.pattern.permute.xlu0 0
    %700 = vperm.xlu0 %699, %v406
    %v701 = vpop.permute.xlu0 %700
    %704 = vset.pattern.permute.xlu0 0
    %705 = vperm.xlu0 %704, %v407
    %v706 = vpop.permute.xlu0 %705
    %709 = vset.pattern.permute.xlu0 0
    %710 = vperm.xlu0 %709, %v408
    %v711 = vpop.permute.xlu0 %710
    %714 = vset.pattern.permute.xlu0 0
    %715 = vperm.xlu0 %714, %v409
    %v716 = vpop.permute.xlu0 %715
    %719 = vset.pattern.permute.xlu0 0
    %720 = vperm.xlu0 %719, %v410
    %v721 = vpop.permute.xlu0 %720
    %724 = vset.pattern.permute.xlu0 0
    %725 = vperm.xlu0 %724, %v411
    %v726 = vpop.permute.xlu0 %725
    %729 = vset.pattern.permute.xlu0 0
    %730 = vperm.xlu0 %729, %v412
    %v731 = vpop.permute.xlu0 %730
    %734 = vset.pattern.permute.xlu0 0
    %735 = vperm.xlu0 %734, %v413
    %v736 = vpop.permute.xlu0 %735
    %739 = vset.pattern.permute.xlu0 0
    %740 = vperm.xlu0 %739, %v414
    %v741 = vpop.permute.xlu0 %740
    %744 = vset.pattern.permute.xlu0 0
    %745 = vperm.xlu0 %744, %v415
    %v746 = vpop.permute.xlu0 %745
    %749 = vset.pattern.permute.xlu0 0
    %750 = vperm.xlu0 %749, %v416
    %v751 = vpop.permute.xlu0 %750
    %754 = vset.pattern.permute.xlu0 0
    %755 = vperm.xlu0 %754, %v417
    %v756 = vpop.permute.xlu0 %755
    %759 = vset.pattern.permute.xlu0 0
    %760 = vperm.xlu0 %759, %v418
    %v761 = vpop.permute.xlu0 %760
    %764 = vset.pattern.permute.xlu0 0
    %765 = vperm.xlu0 %764, %v419
    %v766 = vpop.permute.xlu0 %765
    %769 = vset.pattern.permute.xlu0 0
    %770 = vperm.xlu0 %769, %v420
    %v771 = vpop.permute.xlu0 %770
    %774 = vset.pattern.permute.xlu0 0
    %775 = vperm.xlu0 %774, %v421
    %v776 = vpop.permute.xlu0 %775
    %779 = vset.pattern.permute.xlu0 0
    %780 = vperm.xlu0 %779, %v422
    %v781 = vpop.permute.xlu0 %780
    %v855 = vunpack.c.l.b16 %v268
    %v856 = vunpack.c.l.b16 %v269
    %v857 = vunpack.c.l.b16 %v270
    %v858 = vunpack.c.l.b16 %v271
    %v859 = vunpack.c.l.b16 %v272
    %v860 = vunpack.c.l.b16 %v273
    %v861 = vunpack.c.l.b16 %v274
    %v862 = vunpack.c.l.b16 %v275
    %v863 = vunpack.c.l.b16 %v276
    %v864 = vunpack.c.l.b16 %v277
    %v865 = vunpack.c.l.b16 %v278
    %v866 = vunpack.c.l.b16 %v279
    %v867 = vunpack.c.l.b16 %v280
    %v868 = vunpack.c.l.b16 %v281
    %v869 = vunpack.c.l.b16 %v282
    %v870 = vunpack.c.l.b16 %v283
    %v871 = vunpack.c.l.b16 %v284
    %v872 = vunpack.c.l.b16 %v285
    %v873 = vunpack.c.l.b16 %v286
    %v874 = vunpack.c.l.b16 %v287
    %v875 = vunpack.c.l.b16 %v288
    %v876 = vunpack.c.l.b16 %v289
    %v877 = vunpack.c.l.b16 %v290
    %v878 = vunpack.c.l.b16 %v291
    %v879 = vunpack.c.l.b16 %v292
    %v880 = vunpack.c.l.b16 %v293
    %v881 = vunpack.c.l.b16 %v294
    %v882 = vunpack.c.l.b16 %v295
    %v883 = vunpack.c.l.b16 %v296
    %v884 = vunpack.c.l.b16 %v297
    %v885 = vunpack.c.l.b16 %v298
    %v886 = vunpack.c.l.b16 %v299
    %v887 = vunpack.c.l.b16 %v300
    %v888 = vunpack.c.l.b16 %v301
    %v889 = vunpack.c.l.b16 %v302
    %v890 = vunpack.c.l.b16 %v303
    %v891 = vunpack.c.l.b16 %v304
    %v892 = vunpack.c.l.b16 %v305
    %v893 = vunpack.c.l.b16 %v306
    %v894 = vunpack.c.l.b16 %v307
    %v895 = vunpack.c.l.b16 %v308
    %v896 = vunpack.c.l.b16 %v309
    %v897 = vunpack.c.l.b16 %v310
    %v898 = vunpack.c.l.b16 %v311
    %v899 = vunpack.c.l.b16 %v312
    %v900 = vunpack.c.l.b16 %v313
    %v901 = vunpack.c.l.b16 %v314
    %v902 = vunpack.c.l.b16 %v315
    %v903 = vunpack.c.l.b16 %v316
    %v904 = vunpack.c.l.b16 %v317
    %v905 = vunpack.c.l.b16 %v318
    %v906 = vunpack.c.l.b16 %v319
    %v907 = vunpack.c.l.b16 %v320
    %v908 = vunpack.c.l.b16 %v321
    %v909 = vunpack.c.l.b16 %v322
    %v910 = vunpack.c.l.b16 %v323
    %v911 = vunpack.c.l.b16 %v324
    %v912 = vunpack.c.l.b16 %v325
    %v913 = vunpack.c.l.b16 %v326
    %v914 = vunpack.c.l.b16 %v327
    %v915 = vunpack.c.l.b16 %v328
    %v916 = vunpack.c.l.b16 %v329
    %v917 = vunpack.c.l.b16 %v330
    %v918 = vunpack.c.l.b16 %v331
    %v919 = vunpack.c.l.b16 %v332
    %v920 = vunpack.c.l.b16 %v333
    %v921 = vunpack.c.l.b16 %v334
    %v922 = vunpack.c.l.b16 %v335
    %v923 = vunpack.c.l.b16 %v336
    %v924 = vunpack.c.l.b16 %v337
    %v925 = vunpack.c.l.b16 %v338
    %v926 = vunpack.c.l.b16 %v339
    %v927 = vpack.c.b16 %v856, %v855
    %v928 = vpack.c.b16 %v858, %v857
    %v929 = vpack.c.b16 %v860, %v859
    %v930 = vpack.c.b16 %v862, %v861
    %v931 = vpack.c.b16 %v864, %v863
    %v932 = vpack.c.b16 %v866, %v865
    %v933 = vpack.c.b16 %v868, %v867
    %v934 = vpack.c.b16 %v870, %v869
    %v935 = vpack.c.b16 %v872, %v871
    %v936 = vpack.c.b16 %v874, %v873
    %v937 = vpack.c.b16 %v876, %v875
    %v938 = vpack.c.b16 %v878, %v877
    %v939 = vpack.c.b16 %v880, %v879
    %v940 = vpack.c.b16 %v882, %v881
    %v941 = vpack.c.b16 %v884, %v883
    %v942 = vpack.c.b16 %v886, %v885
    %v943 = vpack.c.b16 %v888, %v887
    %v944 = vpack.c.b16 %v890, %v889
    %v945 = vpack.c.b16 %v892, %v891
    %v946 = vpack.c.b16 %v894, %v893
    %v947 = vpack.c.b16 %v896, %v895
    %v948 = vpack.c.b16 %v898, %v897
    %v949 = vpack.c.b16 %v900, %v899
    %v950 = vpack.c.b16 %v902, %v901
    %v951 = vpack.c.b16 %v904, %v903
    %v952 = vpack.c.b16 %v906, %v905
    %v953 = vpack.c.b16 %v908, %v907
    %v954 = vpack.c.b16 %v910, %v909
    %v955 = vpack.c.b16 %v912, %v911
    %v956 = vpack.c.b16 %v914, %v913
    %v957 = vpack.c.b16 %v916, %v915
    %v958 = vpack.c.b16 %v918, %v917
    %v959 = vpack.c.b16 %v920, %v919
    %v960 = vpack.c.b16 %v922, %v921
    %v961 = vpack.c.b16 %v924, %v923
    %v962 = vpack.c.b16 %v926, %v925
    %v974 = vunpack.c.l.b16 %v340
    %v975 = vunpack.c.h.b16 %v340
    %v976 = vunpack.c.l.b16 %v341
    %v977 = vunpack.c.h.b16 %v341
    %v978 = vunpack.c.l.b16 %v342
    %v979 = vunpack.c.h.b16 %v342
    %v980 = vunpack.c.l.b16 %v343
    %v981 = vunpack.c.h.b16 %v343
    %v982 = vunpack.c.l.b16 %v344
    %v983 = vunpack.c.h.b16 %v344
    %v984 = vunpack.c.l.b16 %v345
    %v985 = vunpack.c.h.b16 %v345
    %v986 = vunpack.c.l.b16 %v346
    %v987 = vunpack.c.h.b16 %v346
    %v988 = vunpack.c.l.b16 %v347
    %v989 = vunpack.c.h.b16 %v347
    %v990 = vunpack.c.l.b16 %v348
    %v991 = vunpack.c.h.b16 %v348
    %v992 = vunpack.c.l.b16 %v349
    %v993 = vunpack.c.h.b16 %v349
    %v994 = vunpack.c.l.b16 %v350
    %v995 = vunpack.c.h.b16 %v350
    %v996 = vpack.c.b16 %v976, %v974
    %v997 = vpack.c.b16 %v977, %v975
    %v998 = vpack.c.b16 %v980, %v978
    %v999 = vpack.c.b16 %v981, %v979
    %v1000 = vpack.c.b16 %v984, %v982
    %v1001 = vpack.c.b16 %v985, %v983
    %v1002 = vpack.c.b16 %v988, %v986
    %v1003 = vpack.c.b16 %v989, %v987
    %v1004 = vpack.c.b16 %v992, %v990
    %v1005 = vpack.c.b16 %v993, %v991
    %v1006 = vpack.c.b16 %v994, %v994
    %v1007 = vpack.c.b16 %v995, %v995
    %vm1018 = vcmask 662528
    %v1020 = vsel %vm1018, %v927, 0
    %v1023 = vsel %vm1018, %v928, 0
    %v1026 = vsel %vm1018, %v929, 0
    %v1029 = vsel %vm1018, %v930, 0
    %v1032 = vsel %vm1018, %v931, 0
    %v1035 = vsel %vm1018, %v932, 0
    %v1038 = vsel %vm1018, %v933, 0
    %v1041 = vsel %vm1018, %v934, 0
    %v1044 = vsel %vm1018, %v935, 0
    %v1047 = vsel %vm1018, %v936, 0
    %v1050 = vsel %vm1018, %v937, 0
    %v1053 = vsel %vm1018, %v938, 0
    %v1056 = vsel %vm1018, %v939, 0
    %v1059 = vsel %vm1018, %v940, 0
    %v1062 = vsel %vm1018, %v941, 0
    %v1065 = vsel %vm1018, %v942, 0
    %v1068 = vsel %vm1018, %v943, 0
    %v1071 = vsel %vm1018, %v944, 0
    %v1074 = vsel %vm1018, %v945, 0
    %v1077 = vsel %vm1018, %v946, 0
    %v1080 = vsel %vm1018, %v947, 0
    %v1083 = vsel %vm1018, %v948, 0
    %v1086 = vsel %vm1018, %v949, 0
    %v1089 = vsel %vm1018, %v950, 0
    %v1092 = vsel %vm1018, %v951, 0
    %v1095 = vsel %vm1018, %v952, 0
    %v1098 = vsel %vm1018, %v953, 0
    %v1101 = vsel %vm1018, %v954, 0
    %v1104 = vsel %vm1018, %v955, 0
    %v1107 = vsel %vm1018, %v956, 0
    %v1110 = vsel %vm1018, %v957, 0
    %v1113 = vsel %vm1018, %v958, 0
    %v1116 = vsel %vm1018, %v959, 0
    %v1119 = vsel %vm1018, %v960, 0
    %v1122 = vsel %vm1018, %v961, 0
    %v1125 = vsel %vm1018, %v962, 0
    %vm1127 = vcmask 1040384
    %v1128 = vsel 0, 4294967295, 65535
    %v1129 = vsel %vm1127, %v1128, 0
    %v1131 = vand.u32 %v1006, %v1129
    %v1134 = vand.u32 %v1007, %v1129
    %1136 = vmatprep.subr.bf16.mxu0 %v997
    %1137 = vmatpush1.bf16.msra.mxu0 %v996
    %1138 = vmatprep.subr.bf16.mxu0 %v999
    %1139 = vmatpush1.bf16.msra.mxu0 %v998
    %1140 = vmatprep.subr.bf16.mxu0 %v1001
    %1141 = vmatpush1.bf16.msra.mxu0 %v1000
    %1142 = vmatprep.subr.bf16.mxu0 %v1003
    %1143 = vmatpush1.bf16.msra.mxu0 %v1002
    %1144 = vmatprep.subr.bf16.mxu0 %v1005
    %1145 = vmatpush1.bf16.msra.mxu0 %v1004
    %1146 = vmatprep.subr.bf16.mxu0 %v1134
    %1147 = vmatpush1.bf16.msra.mxu0 %v1131
    %1148 = vmatprep.subr.bf16.mxu0 0
    %1149 = vmatpush1.bf16.msra.mxu0 0
    %1150 = vmatprep.subr.bf16.mxu0 0
    %1151 = vmatpush1.bf16.msra.mxu0 0
    %1152 = vmatprep.subr.bf16.mxu0 0
    %1153 = vmatpush1.bf16.msra.mxu0 0
    %1154 = vmatprep.subr.bf16.mxu0 0
    %1155 = vmatpush1.bf16.msra.mxu0 0
    %1156 = vmatprep.subr.bf16.mxu0 0
    %1157 = vmatpush1.bf16.msra.mxu0 0
    %1158 = vmatprep.subr.bf16.mxu0 0
    %1159 = vmatpush1.bf16.msra.mxu0 0
    %1160 = vmatprep.subr.bf16.mxu0 0
    %1161 = vmatpush1.bf16.msra.mxu0 0
    %1162 = vmatprep.subr.bf16.mxu0 0
    %1163 = vmatpush1.bf16.msra.mxu0 0
    %1164 = vmatprep.subr.bf16.mxu0 0
    %1165 = vmatpush1.bf16.msra.mxu0 0
    %1166 = vmatprep.subr.bf16.mxu0 0
    %1167 = vmatpush1.bf16.msra.mxu0 0
    %1168 = vmatprep.mubr.bf16.mxu0 0
    %1169 = vmatmul.mubr.bf16.gmra.mrb[0].mxu0 %v1020
    %v1170 = vpop.f32.mrb[0].mxu0
    %v1171 = vadd.f32 %v426, %v1170
    %v1172 = vpop.f32.mrb[0].mxu0
    %v1173 = vadd.f32 %v426, %v1172
    %v1174 = vpop.f32.mrb[0].mxu0
    %v1175 = vadd.f32 %v431, %v1174
    %v1176 = vpop.f32.mrb[0].mxu0
    %v1177 = vadd.f32 %v431, %v1176
    %1178 = vmatprep.mubr.bf16.mxu0 0
    %1179 = vmatmul.mubr.bf16.gmra.mrb[0].mxu0 %v1023
    %v1180 = vpop.f32.mrb[0].mxu0
    %v1181 = vadd.f32 %v436, %v1180
    %v1182 = vpop.f32.mrb[0].mxu0
    %v1183 = vadd.f32 %v436, %v1182
    %v1184 = vpop.f32.mrb[0].mxu0
    %v1185 = vadd.f32 %v441, %v1184
    %v1186 = vpop.f32.mrb[0].mxu0
    %v1187 = vadd.f32 %v441, %v1186
    %1188 = vmatprep.mubr.bf16.mxu0 0
    %1189 = vmatmul.mubr.bf16.gmra.mrb[0].mxu0 %v1026
    %v1190 = vpop.f32.mrb[0].mxu0
    %v1191 = vadd.f32 %v446, %v1190
    %v1192 = vpop.f32.mrb[0].mxu0
    %v1193 = vadd.f32 %v446, %v1192
    %v1194 = vpop.f32.mrb[0].mxu0
    %v1195 = vadd.f32 %v451, %v1194
    %v1196 = vpop.f32.mrb[0].mxu0
    %v1197 = vadd.f32 %v451, %v1196
    %1198 = vmatprep.mubr.bf16.mxu0 0
    %1199 = vmatmul.mubr.bf16.gmra.mrb[0].mxu0 %v1029
    %v1200 = vpop.f32.mrb[0].mxu0
    %v1201 = vadd.f32 %v456, %v1200
    %v1202 = vpop.f32.mrb[0].mxu0
    %v1203 = vadd.f32 %v456, %v1202
    %v1204 = vpop.f32.mrb[0].mxu0
    %v1205 = vadd.f32 %v461, %v1204
    %v1206 = vpop.f32.mrb[0].mxu0
    %v1207 = vadd.f32 %v461, %v1206
    %1208 = vmatprep.mubr.bf16.mxu0 0
    %1209 = vmatmul.mubr.bf16.gmra.mrb[0].mxu0 %v1032
    %v1210 = vpop.f32.mrb[0].mxu0
    %v1211 = vadd.f32 %v466, %v1210
    %v1212 = vpop.f32.mrb[0].mxu0
    %v1213 = vadd.f32 %v466, %v1212
    %v1214 = vpop.f32.mrb[0].mxu0
    %v1215 = vadd.f32 %v471, %v1214
    %v1216 = vpop.f32.mrb[0].mxu0
    %v1217 = vadd.f32 %v471, %v1216
    %1218 = vmatprep.mubr.bf16.mxu0 0
    %1219 = vmatmul.mubr.bf16.gmra.mrb[0].mxu0 %v1035
    %v1220 = vpop.f32.mrb[0].mxu0
    %v1221 = vadd.f32 %v476, %v1220
    %v1222 = vpop.f32.mrb[0].mxu0
    %v1223 = vadd.f32 %v476, %v1222
    %v1224 = vpop.f32.mrb[0].mxu0
    %v1225 = vadd.f32 %v481, %v1224
    %v1226 = vpop.f32.mrb[0].mxu0
    %v1227 = vadd.f32 %v481, %v1226
    %1228 = vmatprep.mubr.bf16.mxu0 0
    %1229 = vmatmul.mubr.bf16.gmra.mrb[0].mxu0 %v1038
    %v1230 = vpop.f32.mrb[0].mxu0
    %v1231 = vadd.f32 %v486, %v1230
    %v1232 = vpop.f32.mrb[0].mxu0
    %v1233 = vadd.f32 %v486, %v1232
    %v1234 = vpop.f32.mrb[0].mxu0
    %v1235 = vadd.f32 %v491, %v1234
    %v1236 = vpop.f32.mrb[0].mxu0
    %v1237 = vadd.f32 %v491, %v1236
    %1238 = vmatprep.mubr.bf16.mxu0 0
    %1239 = vmatmul.mubr.bf16.gmra.mrb[0].mxu0 %v1041
    %v1240 = vpop.f32.mrb[0].mxu0
    %v1241 = vadd.f32 %v496, %v1240
    %v1242 = vpop.f32.mrb[0].mxu0
    %v1243 = vadd.f32 %v496, %v1242
    %v1244 = vpop.f32.mrb[0].mxu0
    %v1245 = vadd.f32 %v501, %v1244
    %v1246 = vpop.f32.mrb[0].mxu0
    %v1247 = vadd.f32 %v501, %v1246
    %1248 = vmatprep.mubr.bf16.mxu0 0
    %1249 = vmatmul.mubr.bf16.gmra.mrb[0].mxu0 %v1044
    %v1250 = vpop.f32.mrb[0].mxu0
    %v1251 = vadd.f32 %v506, %v1250
    %v1252 = vpop.f32.mrb[0].mxu0
    %v1253 = vadd.f32 %v506, %v1252
    %v1254 = vpop.f32.mrb[0].mxu0
    %v1255 = vadd.f32 %v511, %v1254
    %v1256 = vpop.f32.mrb[0].mxu0
    %v1257 = vadd.f32 %v511, %v1256
    %1258 = vmatprep.mubr.bf16.mxu0 0
    %1259 = vmatmul.mubr.bf16.gmra.mrb[0].mxu0 %v1047
    %v1260 = vpop.f32.mrb[0].mxu0
    %v1261 = vadd.f32 %v516, %v1260
    %v1262 = vpop.f32.mrb[0].mxu0
    %v1263 = vadd.f32 %v516, %v1262
    %v1264 = vpop.f32.mrb[0].mxu0
    %v1265 = vadd.f32 %v521, %v1264
    %v1266 = vpop.f32.mrb[0].mxu0
    %v1267 = vadd.f32 %v521, %v1266
    %1268 = vmatprep.mubr.bf16.mxu0 0
    %1269 = vmatmul.mubr.bf16.gmra.mrb[0].mxu0 %v1050
    %v1270 = vpop.f32.mrb[0].mxu0
    %v1271 = vadd.f32 %v526, %v1270
    %v1272 = vpop.f32.mrb[0].mxu0
    %v1273 = vadd.f32 %v526, %v1272
    %v1274 = vpop.f32.mrb[0].mxu0
    %v1275 = vadd.f32 %v531, %v1274
    %v1276 = vpop.f32.mrb[0].mxu0
    %v1277 = vadd.f32 %v531, %v1276
    %1278 = vmatprep.mubr.bf16.mxu0 0
    %1279 = vmatmul.mubr.bf16.gmra.mrb[0].mxu0 %v1053
    %v1280 = vpop.f32.mrb[0].mxu0
    %v1281 = vadd.f32 %v536, %v1280
    %v1282 = vpop.f32.mrb[0].mxu0
    %v1283 = vadd.f32 %v536, %v1282
    %v1284 = vpop.f32.mrb[0].mxu0
    %v1285 = vadd.f32 %v541, %v1284
    %v1286 = vpop.f32.mrb[0].mxu0
    %v1287 = vadd.f32 %v541, %v1286
    %1288 = vmatprep.mubr.bf16.mxu0 0
    %1289 = vmatmul.mubr.bf16.gmra.mrb[0].mxu0 %v1056
    %v1290 = vpop.f32.mrb[0].mxu0
    %v1291 = vadd.f32 %v546, %v1290
    %v1292 = vpop.f32.mrb[0].mxu0
    %v1293 = vadd.f32 %v546, %v1292
    %v1294 = vpop.f32.mrb[0].mxu0
    %v1295 = vadd.f32 %v551, %v1294
    %v1296 = vpop.f32.mrb[0].mxu0
    %v1297 = vadd.f32 %v551, %v1296
    %1298 = vmatprep.mubr.bf16.mxu0 0
    %1299 = vmatmul.mubr.bf16.gmra.mrb[0].mxu0 %v1059
    %v1300 = vpop.f32.mrb[0].mxu0
    %v1301 = vadd.f32 %v556, %v1300
    %v1302 = vpop.f32.mrb[0].mxu0
    %v1303 = vadd.f32 %v556, %v1302
    %v1304 = vpop.f32.mrb[0].mxu0
    %v1305 = vadd.f32 %v561, %v1304
    %v1306 = vpop.f32.mrb[0].mxu0
    %v1307 = vadd.f32 %v561, %v1306
    %1308 = vmatprep.mubr.bf16.mxu0 0
    %1309 = vmatmul.mubr.bf16.gmra.mrb[0].mxu0 %v1062
    %v1310 = vpop.f32.mrb[0].mxu0
    %v1311 = vadd.f32 %v566, %v1310
    %v1312 = vpop.f32.mrb[0].mxu0
    %v1313 = vadd.f32 %v566, %v1312
    %v1314 = vpop.f32.mrb[0].mxu0
    %v1315 = vadd.f32 %v571, %v1314
    %v1316 = vpop.f32.mrb[0].mxu0
    %v1317 = vadd.f32 %v571, %v1316
    %1318 = vmatprep.mubr.bf16.mxu0 0
    %1319 = vmatmul.mubr.bf16.gmra.mrb[0].mxu0 %v1065
    %v1320 = vpop.f32.mrb[0].mxu0
    %v1321 = vadd.f32 %v576, %v1320
    %v1322 = vpop.f32.mrb[0].mxu0
    %v1323 = vadd.f32 %v576, %v1322
    %v1324 = vpop.f32.mrb[0].mxu0
    %v1325 = vadd.f32 %v581, %v1324
    %v1326 = vpop.f32.mrb[0].mxu0
    %v1327 = vadd.f32 %v581, %v1326
    %1328 = vmatprep.mubr.bf16.mxu0 0
    %1329 = vmatmul.mubr.bf16.gmra.mrb[0].mxu0 %v1068
    %v1330 = vpop.f32.mrb[0].mxu0
    %v1331 = vadd.f32 %v586, %v1330
    %v1332 = vpop.f32.mrb[0].mxu0
    %v1333 = vadd.f32 %v586, %v1332
    %v1334 = vpop.f32.mrb[0].mxu0
    %v1335 = vadd.f32 %v591, %v1334
    %v1336 = vpop.f32.mrb[0].mxu0
    %v1337 = vadd.f32 %v591, %v1336
    %1338 = vmatprep.mubr.bf16.mxu0 0
    %1339 = vmatmul.mubr.bf16.gmra.mrb[0].mxu0 %v1071
    %v1340 = vpop.f32.mrb[0].mxu0
    %v1341 = vadd.f32 %v596, %v1340
    %v1342 = vpop.f32.mrb[0].mxu0
    %v1343 = vadd.f32 %v596, %v1342
    %v1344 = vpop.f32.mrb[0].mxu0
    %v1345 = vadd.f32 %v601, %v1344
    %v1346 = vpop.f32.mrb[0].mxu0
    %v1347 = vadd.f32 %v601, %v1346
    %1348 = vmatprep.mubr.bf16.mxu0 0
    %1349 = vmatmul.mubr.bf16.gmra.mrb[0].mxu0 %v1074
    %v1350 = vpop.f32.mrb[0].mxu0
    %v1351 = vadd.f32 %v606, %v1350
    %v1352 = vpop.f32.mrb[0].mxu0
    %v1353 = vadd.f32 %v606, %v1352
    %v1354 = vpop.f32.mrb[0].mxu0
    %v1355 = vadd.f32 %v611, %v1354
    %v1356 = vpop.f32.mrb[0].mxu0
    %v1357 = vadd.f32 %v611, %v1356
    %1358 = vmatprep.mubr.bf16.mxu0 0
    %1359 = vmatmul.mubr.bf16.gmra.mrb[0].mxu0 %v1077
    %v1360 = vpop.f32.mrb[0].mxu0
    %v1361 = vadd.f32 %v616, %v1360
    %v1362 = vpop.f32.mrb[0].mxu0
    %v1363 = vadd.f32 %v616, %v1362
    %v1364 = vpop.f32.mrb[0].mxu0
    %v1365 = vadd.f32 %v621, %v1364
    %v1366 = vpop.f32.mrb[0].mxu0
    %v1367 = vadd.f32 %v621, %v1366
    %1368 = vmatprep.mubr.bf16.mxu0 0
    %1369 = vmatmul.mubr.bf16.gmra.mrb[0].mxu0 %v1080
    %v1370 = vpop.f32.mrb[0].mxu0
    %v1371 = vadd.f32 %v626, %v1370
    %v1372 = vpop.f32.mrb[0].mxu0
    %v1373 = vadd.f32 %v626, %v1372
    %v1374 = vpop.f32.mrb[0].mxu0
    %v1375 = vadd.f32 %v631, %v1374
    %v1376 = vpop.f32.mrb[0].mxu0
    %v1377 = vadd.f32 %v631, %v1376
    %1378 = vmatprep.mubr.bf16.mxu0 0
    %1379 = vmatmul.mubr.bf16.gmra.mrb[0].mxu0 %v1083
    %v1380 = vpop.f32.mrb[0].mxu0
    %v1381 = vadd.f32 %v636, %v1380
    %v1382 = vpop.f32.mrb[0].mxu0
    %v1383 = vadd.f32 %v636, %v1382
    %v1384 = vpop.f32.mrb[0].mxu0
    %v1385 = vadd.f32 %v641, %v1384
    %v1386 = vpop.f32.mrb[0].mxu0
    %v1387 = vadd.f32 %v641, %v1386
    %1388 = vmatprep.mubr.bf16.mxu0 0
    %1389 = vmatmul.mubr.bf16.gmra.mrb[0].mxu0 %v1086
    %v1390 = vpop.f32.mrb[0].mxu0
    %v1391 = vadd.f32 %v646, %v1390
    %v1392 = vpop.f32.mrb[0].mxu0
    %v1393 = vadd.f32 %v646, %v1392
    %v1394 = vpop.f32.mrb[0].mxu0
    %v1395 = vadd.f32 %v651, %v1394
    %v1396 = vpop.f32.mrb[0].mxu0
    %v1397 = vadd.f32 %v651, %v1396
    %1398 = vmatprep.mubr.bf16.mxu0 0
    %1399 = vmatmul.mubr.bf16.gmra.mrb[0].mxu0 %v1089
    %v1400 = vpop.f32.mrb[0].mxu0
    %v1401 = vadd.f32 %v656, %v1400
    %v1402 = vpop.f32.mrb[0].mxu0
    %v1403 = vadd.f32 %v656, %v1402
    %v1404 = vpop.f32.mrb[0].mxu0
    %v1405 = vadd.f32 %v661, %v1404
    %v1406 = vpop.f32.mrb[0].mxu0
    %v1407 = vadd.f32 %v661, %v1406
    %1408 = vmatprep.mubr.bf16.mxu0 0
    %1409 = vmatmul.mubr.bf16.gmra.mrb[0].mxu0 %v1092
    %v1410 = vpop.f32.mrb[0].mxu0
    %v1411 = vadd.f32 %v666, %v1410
    %v1412 = vpop.f32.mrb[0].mxu0
    %v1413 = vadd.f32 %v666, %v1412
    %v1414 = vpop.f32.mrb[0].mxu0
    %v1415 = vadd.f32 %v671, %v1414
    %v1416 = vpop.f32.mrb[0].mxu0
    %v1417 = vadd.f32 %v671, %v1416
    %1418 = vmatprep.mubr.bf16.mxu0 0
    %1419 = vmatmul.mubr.bf16.gmra.mrb[0].mxu0 %v1095
    %v1420 = vpop.f32.mrb[0].mxu0
    %v1421 = vadd.f32 %v676, %v1420
    %v1422 = vpop.f32.mrb[0].mxu0
    %v1423 = vadd.f32 %v676, %v1422
    %v1424 = vpop.f32.mrb[0].mxu0
    %v1425 = vadd.f32 %v681, %v1424
    %v1426 = vpop.f32.mrb[0].mxu0
    %v1427 = vadd.f32 %v681, %v1426
    %1428 = vmatprep.mubr.bf16.mxu0 0
    %1429 = vmatmul.mubr.bf16.gmra.mrb[0].mxu0 %v1098
    %v1430 = vpop.f32.mrb[0].mxu0
    %v1431 = vadd.f32 %v686, %v1430
    %v1432 = vpop.f32.mrb[0].mxu0
    %v1433 = vadd.f32 %v686, %v1432
    %v1434 = vpop.f32.mrb[0].mxu0
    %v1435 = vadd.f32 %v691, %v1434
    %v1436 = vpop.f32.mrb[0].mxu0
    %v1437 = vadd.f32 %v691, %v1436
    %1438 = vmatprep.mubr.bf16.mxu0 0
    %1439 = vmatmul.mubr.bf16.gmra.mrb[0].mxu0 %v1101
    %v1440 = vpop.f32.mrb[0].mxu0
    %v1441 = vadd.f32 %v696, %v1440
    %v1442 = vpop.f32.mrb[0].mxu0
    %v1443 = vadd.f32 %v696, %v1442
    %v1444 = vpop.f32.mrb[0].mxu0
    %v1445 = vadd.f32 %v701, %v1444
    %v1446 = vpop.f32.mrb[0].mxu0
    %v1447 = vadd.f32 %v701, %v1446
    %1448 = vmatprep.mubr.bf16.mxu0 0
    %1449 = vmatmul.mubr.bf16.gmra.mrb[0].mxu0 %v1104
    %v1450 = vpop.f32.mrb[0].mxu0
    %v1451 = vadd.f32 %v706, %v1450
    %v1452 = vpop.f32.mrb[0].mxu0
    %v1453 = vadd.f32 %v706, %v1452
    %v1454 = vpop.f32.mrb[0].mxu0
    %v1455 = vadd.f32 %v711, %v1454
    %v1456 = vpop.f32.mrb[0].mxu0
    %v1457 = vadd.f32 %v711, %v1456
    %1458 = vmatprep.mubr.bf16.mxu0 0
    %1459 = vmatmul.mubr.bf16.gmra.mrb[0].mxu0 %v1107
    %v1460 = vpop.f32.mrb[0].mxu0
    %v1461 = vadd.f32 %v716, %v1460
    %v1462 = vpop.f32.mrb[0].mxu0
    %v1463 = vadd.f32 %v716, %v1462
    %v1464 = vpop.f32.mrb[0].mxu0
    %v1465 = vadd.f32 %v721, %v1464
    %v1466 = vpop.f32.mrb[0].mxu0
    %v1467 = vadd.f32 %v721, %v1466
    %1468 = vmatprep.mubr.bf16.mxu0 0
    %1469 = vmatmul.mubr.bf16.gmra.mrb[0].mxu0 %v1110
    %v1470 = vpop.f32.mrb[0].mxu0
    %v1471 = vadd.f32 %v726, %v1470
    %v1472 = vpop.f32.mrb[0].mxu0
    %v1473 = vadd.f32 %v726, %v1472
    %v1474 = vpop.f32.mrb[0].mxu0
    %v1475 = vadd.f32 %v731, %v1474
    %v1476 = vpop.f32.mrb[0].mxu0
    %v1477 = vadd.f32 %v731, %v1476
    %1478 = vmatprep.mubr.bf16.mxu0 0
    %1479 = vmatmul.mubr.bf16.gmra.mrb[0].mxu0 %v1113
    %v1480 = vpop.f32.mrb[0].mxu0
    %v1481 = vadd.f32 %v736, %v1480
    %v1482 = vpop.f32.mrb[0].mxu0
    %v1483 = vadd.f32 %v736, %v1482
    %v1484 = vpop.f32.mrb[0].mxu0
    %v1485 = vadd.f32 %v741, %v1484
    %v1486 = vpop.f32.mrb[0].mxu0
    %v1487 = vadd.f32 %v741, %v1486
    %1488 = vmatprep.mubr.bf16.mxu0 0
    %1489 = vmatmul.mubr.bf16.gmra.mrb[0].mxu0 %v1116
    %v1490 = vpop.f32.mrb[0].mxu0
    %v1491 = vadd.f32 %v746, %v1490
    %v1492 = vpop.f32.mrb[0].mxu0
    %v1493 = vadd.f32 %v746, %v1492
    %v1494 = vpop.f32.mrb[0].mxu0
    %v1495 = vadd.f32 %v751, %v1494
    %v1496 = vpop.f32.mrb[0].mxu0
    %v1497 = vadd.f32 %v751, %v1496
    %1498 = vmatprep.mubr.bf16.mxu0 0
    %1499 = vmatmul.mubr.bf16.gmra.mrb[0].mxu0 %v1119
    %v1500 = vpop.f32.mrb[0].mxu0
    %v1501 = vadd.f32 %v756, %v1500
    %v1502 = vpop.f32.mrb[0].mxu0
    %v1503 = vadd.f32 %v756, %v1502
    %v1504 = vpop.f32.mrb[0].mxu0
    %v1505 = vadd.f32 %v761, %v1504
    %v1506 = vpop.f32.mrb[0].mxu0
    %v1507 = vadd.f32 %v761, %v1506
    %1508 = vmatprep.mubr.bf16.mxu0 0
    %1509 = vmatmul.mubr.bf16.gmra.mrb[0].mxu0 %v1122
    %v1510 = vpop.f32.mrb[0].mxu0
    %v1511 = vadd.f32 %v766, %v1510
    %v1512 = vpop.f32.mrb[0].mxu0
    %v1513 = vadd.f32 %v766, %v1512
    %v1514 = vpop.f32.mrb[0].mxu0
    %v1515 = vadd.f32 %v771, %v1514
    %v1516 = vpop.f32.mrb[0].mxu0
    %v1517 = vadd.f32 %v771, %v1516
    %1518 = vmatprep.mubr.bf16.mxu0 0
    %1519 = vmatmul.mubr.bf16.gmra.mrb[0].mxu0 %v1125
    %v1520 = vpop.f32.mrb[0].mxu0
    %v1521 = vadd.f32 %v776, %v1520
    %v1522 = vpop.f32.mrb[0].mxu0
    %v1523 = vadd.f32 %v776, %v1522
    %v1524 = vpop.f32.mrb[0].mxu0
    %v1525 = vadd.f32 %v781, %v1524
    %v1526 = vpop.f32.mrb[0].mxu0
    %v1527 = vadd.f32 %v781, %v1526
    %1528 = vdwg.mxu0
    %v1529 = vmax.f32 %v1171, 0.0
    %v1530 = vmax.f32 %v1173, 0.0
    %v1531 = vmax.f32 %v1175, 0.0
    %v1532 = vmax.f32 %v1177, 0.0
    %v1533 = vmax.f32 %v1181, 0.0
    %v1534 = vmax.f32 %v1183, 0.0
    %v1535 = vmax.f32 %v1185, 0.0
    %v1536 = vmax.f32 %v1187, 0.0
    %v1537 = vmax.f32 %v1191, 0.0
    %v1538 = vmax.f32 %v1193, 0.0
    %v1539 = vmax.f32 %v1195, 0.0
    %v1540 = vmax.f32 %v1197, 0.0
    %v1541 = vmax.f32 %v1201, 0.0
    %v1542 = vmax.f32 %v1203, 0.0
    %v1543 = vmax.f32 %v1205, 0.0
    %v1544 = vmax.f32 %v1207, 0.0
    %v1545 = vmax.f32 %v1211, 0.0
    %v1546 = vmax.f32 %v1213, 0.0
    %v1547 = vmax.f32 %v1215, 0.0
    %v1548 = vmax.f32 %v1217, 0.0
    %v1549 = vmax.f32 %v1221, 0.0
    %v1550 = vmax.f32 %v1223, 0.0
    %v1551 = vmax.f32 %v1225, 0.0
    %v1552 = vmax.f32 %v1227, 0.0
    %v1553 = vmax.f32 %v1231, 0.0
    %v1554 = vmax.f32 %v1233, 0.0
    %v1555 = vmax.f32 %v1235, 0.0
    %v1556 = vmax.f32 %v1237, 0.0
    %v1557 = vmax.f32 %v1241, 0.0
    %v1558 = vmax.f32 %v1243, 0.0
    %v1559 = vmax.f32 %v1245, 0.0
    %v1560 = vmax.f32 %v1247, 0.0
    %v1561 = vmax.f32 %v1251, 0.0
    %v1562 = vmax.f32 %v1253, 0.0
    %v1563 = vmax.f32 %v1255, 0.0
    %v1564 = vmax.f32 %v1257, 0.0
    %v1565 = vmax.f32 %v1261, 0.0
    %v1566 = vmax.f32 %v1263, 0.0
    %v1567 = vmax.f32 %v1265, 0.0
    %v1568 = vmax.f32 %v1267, 0.0
    %v1569 = vmax.f32 %v1271, 0.0
    %v1570 = vmax.f32 %v1273, 0.0
    %v1571 = vmax.f32 %v1275, 0.0
    %v1572 = vmax.f32 %v1277, 0.0
    %v1573 = vmax.f32 %v1281, 0.0
    %v1574 = vmax.f32 %v1283, 0.0
    %v1575 = vmax.f32 %v1285, 0.0
    %v1576 = vmax.f32 %v1287, 0.0
    %v1577 = vmax.f32 %v1291, 0.0
    %v1578 = vmax.f32 %v1293, 0.0
    %v1579 = vmax.f32 %v1295, 0.0
    %v1580 = vmax.f32 %v1297, 0.0
    %v1581 = vmax.f32 %v1301, 0.0
    %v1582 = vmax.f32 %v1303, 0.0
    %v1583 = vmax.f32 %v1305, 0.0
    %v1584 = vmax.f32 %v1307, 0.0
    %v1585 = vmax.f32 %v1311, 0.0
    %v1586 = vmax.f32 %v1313, 0.0
    %v1587 = vmax.f32 %v1315, 0.0
    %v1588 = vmax.f32 %v1317, 0.0
    %v1589 = vmax.f32 %v1321, 0.0
    %v1590 = vmax.f32 %v1323, 0.0
    %v1591 = vmax.f32 %v1325, 0.0
    %v1592 = vmax.f32 %v1327, 0.0
    %v1593 = vmax.f32 %v1331, 0.0
    %v1594 = vmax.f32 %v1333, 0.0
    %v1595 = vmax.f32 %v1335, 0.0
    %v1596 = vmax.f32 %v1337, 0.0
    %v1597 = vmax.f32 %v1341, 0.0
    %v1598 = vmax.f32 %v1343, 0.0
    %v1599 = vmax.f32 %v1345, 0.0
    %v1600 = vmax.f32 %v1347, 0.0
    %v1601 = vmax.f32 %v1351, 0.0
    %v1602 = vmax.f32 %v1353, 0.0
    %v1603 = vmax.f32 %v1355, 0.0
    %v1604 = vmax.f32 %v1357, 0.0
    %v1605 = vmax.f32 %v1361, 0.0
    %v1606 = vmax.f32 %v1363, 0.0
    %v1607 = vmax.f32 %v1365, 0.0
    %v1608 = vmax.f32 %v1367, 0.0
    %v1609 = vmax.f32 %v1371, 0.0
    %v1610 = vmax.f32 %v1373, 0.0
    %v1611 = vmax.f32 %v1375, 0.0
    %v1612 = vmax.f32 %v1377, 0.0
    %v1613 = vmax.f32 %v1381, 0.0
    %v1614 = vmax.f32 %v1383, 0.0
    %v1615 = vmax.f32 %v1385, 0.0
    %v1616 = vmax.f32 %v1387, 0.0
    %v1617 = vmax.f32 %v1391, 0.0
    %v1618 = vmax.f32 %v1393, 0.0
    %v1619 = vmax.f32 %v1395, 0.0
    %v1620 = vmax.f32 %v1397, 0.0
    %v1621 = vmax.f32 %v1401, 0.0
    %v1622 = vmax.f32 %v1403, 0.0
    %v1623 = vmax.f32 %v1405, 0.0
    %v1624 = vmax.f32 %v1407, 0.0
    %v1625 = vmax.f32 %v1411, 0.0
    %v1626 = vmax.f32 %v1413, 0.0
    %v1627 = vmax.f32 %v1415, 0.0
    %v1628 = vmax.f32 %v1417, 0.0
    %v1629 = vmax.f32 %v1421, 0.0
    %v1630 = vmax.f32 %v1423, 0.0
    %v1631 = vmax.f32 %v1425, 0.0
    %v1632 = vmax.f32 %v1427, 0.0
    %v1633 = vmax.f32 %v1431, 0.0
    %v1634 = vmax.f32 %v1433, 0.0
    %v1635 = vmax.f32 %v1435, 0.0
    %v1636 = vmax.f32 %v1437, 0.0
    %v1637 = vmax.f32 %v1441, 0.0
    %v1638 = vmax.f32 %v1443, 0.0
    %v1639 = vmax.f32 %v1445, 0.0
    %v1640 = vmax.f32 %v1447, 0.0
    %v1641 = vmax.f32 %v1451, 0.0
    %v1642 = vmax.f32 %v1453, 0.0
    %v1643 = vmax.f32 %v1455, 0.0
    %v1644 = vmax.f32 %v1457, 0.0
    %v1645 = vmax.f32 %v1461, 0.0
    %v1646 = vmax.f32 %v1463, 0.0
    %v1647 = vmax.f32 %v1465, 0.0
    %v1648 = vmax.f32 %v1467, 0.0
    %v1649 = vmax.f32 %v1471, 0.0
    %v1650 = vmax.f32 %v1473, 0.0
    %v1651 = vmax.f32 %v1475, 0.0
    %v1652 = vmax.f32 %v1477, 0.0
    %v1653 = vmax.f32 %v1481, 0.0
    %v1654 = vmax.f32 %v1483, 0.0
    %v1655 = vmax.f32 %v1485, 0.0
    %v1656 = vmax.f32 %v1487, 0.0
    %v1657 = vmax.f32 %v1491, 0.0
    %v1658 = vmax.f32 %v1493, 0.0
    %v1659 = vmax.f32 %v1495, 0.0
    %v1660 = vmax.f32 %v1497, 0.0
    %v1661 = vmax.f32 %v1501, 0.0
    %v1662 = vmax.f32 %v1503, 0.0
    %v1663 = vmax.f32 %v1505, 0.0
    %v1664 = vmax.f32 %v1507, 0.0
    %v1665 = vmax.f32 %v1511, 0.0
    %v1666 = vmax.f32 %v1513, 0.0
    %v1667 = vmax.f32 %v1515, 0.0
    %v1668 = vmax.f32 %v1517, 0.0
    %v1669 = vmax.f32 %v1521, 0.0
    %v1670 = vmax.f32 %v1523, 0.0
    %v1671 = vmax.f32 %v1525, 0.0
    %v1672 = vmax.f32 %v1527, 0.0
    %v1673 = vld [vmem:[#allocation5] sm:$0xff]
    %v1674 = vld [vmem:[#allocation5 + $0x8] sm:$0xff]
    %v1675 = vld [vmem:[#allocation5 + $0x10] sm:$0xff]
    %v1676 = vld [vmem:[#allocation5 + $0x18] sm:$0xff]
    %v1677 = vld [vmem:[#allocation5 + $0x20] sm:$0xff]
    %v1678 = vld [vmem:[#allocation5 + $0x28] sm:$0xff]
    %v1679 = vld [vmem:[#allocation5 + $0x30] sm:$0xff]
    %v1680 = vld [vmem:[#allocation5 + $0x38] sm:$0xff]
    %v1681 = vld [vmem:[#allocation5 + $0x40] sm:$0xff]
    %v1682 = vld [vmem:[#allocation5 + $0x48] sm:$0xff]
    %v1683 = vld [vmem:[#allocation5 + $0x50] sm:$0xff]
    %v1684 = vld [vmem:[#allocation5 + $0x58] sm:$0xff]
    %v1685 = vld [vmem:[#allocation5 + $0x60] sm:$0xff]
    %v1686 = vld [vmem:[#allocation5 + $0x68] sm:$0xff]
    %v1687 = vld [vmem:[#allocation5 + $0x70] sm:$0xff]
    %v1688 = vld [vmem:[#allocation5 + $0x78] sm:$0xff]
    %v1689 = vld [vmem:[#allocation5 + $0x80] sm:$0xff]
    %v1690 = vld [vmem:[#allocation5 + $0x88] sm:$0xff]
    %v1691 = vld [vmem:[#allocation5 + $0x90] sm:$0xff]
    %v1692 = vld [vmem:[#allocation5 + $0x98] sm:$0xff]
    %v1693 = vld [vmem:[#allocation5 + $0xa0] sm:$0xff]
    %v1694 = vld [vmem:[#allocation5 + $0xa8] sm:$0xff]
    %v1695 = vld [vmem:[#allocation5 + $0xb0] sm:$0xff]
    %v1696 = vld [vmem:[#allocation5 + $0xb8] sm:$0xff]
    %v1697 = vld [vmem:[#allocation5 + $0xc0] sm:$0xff]
    %v1698 = vld [vmem:[#allocation5 + $0xc8] sm:$0xff]
    %v1699 = vld [vmem:[#allocation5 + $0xd0] sm:$0xff]
    %v1700 = vld [vmem:[#allocation5 + $0xd8] sm:$0xff]
    %v1701 = vld [vmem:[#allocation5 + $0xe0] sm:$0xff]
    %v1702 = vld [vmem:[#allocation5 + $0xe8] sm:$0xff]
    %v1703 = vld [vmem:[#allocation5 + $0xf0] sm:$0xff]
    %v1704 = vld [vmem:[#allocation5 + $0xf8] sm:$0xff]
    %v1705 = vld [vmem:[#allocation5 + $0x100] sm:$0xff]
    %v1706 = vld [vmem:[#allocation5 + $0x108] sm:$0xff]
    %v1707 = vld [vmem:[#allocation5 + $0x110] sm:$0xff]
    %v1708 = vld [vmem:[#allocation5 + $0x118] sm:$0xff]
    %v1709 = vld [vmem:[#allocation5 + $0x120] sm:$0xff]
    %v1710 = vld [vmem:[#allocation5 + $0x128] sm:$0xff]
    %v1711 = vld [vmem:[#allocation5 + $0x130] sm:$0xff]
    %v1712 = vld [vmem:[#allocation5 + $0x138] sm:$0xff]
    %v1713 = vld [vmem:[#allocation5 + $0x140] sm:$0xff]
    %v1714 = vld [vmem:[#allocation5 + $0x148] sm:$0xff]
    %v1715 = vld [vmem:[#allocation5 + $0x150] sm:$0xff]
    %v1716 = vld [vmem:[#allocation5 + $0x158] sm:$0xff]
    %v1717 = vld [vmem:[#allocation5 + $0x160] sm:$0xff]
    %v1718 = vld [vmem:[#allocation5 + $0x168] sm:$0xff]
    %v1719 = vld [vmem:[#allocation5 + $0x170] sm:$0xff]
    %v1720 = vld [vmem:[#allocation5 + $0x178] sm:$0xff]
    %v1721 = vld [vmem:[#allocation5 + $0x180] sm:$0xff]
    %v1722 = vld [vmem:[#allocation5 + $0x188] sm:$0xff]
    %v1723 = vld [vmem:[#allocation5 + $0x190] sm:$0xff]
    %v1724 = vld [vmem:[#allocation5 + $0x198] sm:$0xff]
    %v1725 = vld [vmem:[#allocation5 + $0x1a0] sm:$0xff]
    %v1726 = vld [vmem:[#allocation5 + $0x1a8] sm:$0xff]
    %v1727 = vld [vmem:[#allocation5 + $0x1b0] sm:$0xff]
    %v1728 = vld [vmem:[#allocation5 + $0x1b8] sm:$0xff]
    %v1729 = vld [vmem:[#allocation5 + $0x1c0] sm:$0xff]
    %v1730 = vld [vmem:[#allocation5 + $0x1c8] sm:$0xff]
    %v1731 = vld [vmem:[#allocation5 + $0x1d0] sm:$0xff]
    %v1732 = vld [vmem:[#allocation5 + $0x1d8] sm:$0xff]
    %v1733 = vld [vmem:[#allocation5 + $0x1e0] sm:$0xff]
    %v1734 = vld [vmem:[#allocation5 + $0x1e8] sm:$0xff]
    %v1735 = vld [vmem:[#allocation5 + $0x1f0] sm:$0xff]
    %v1736 = vld [vmem:[#allocation5 + $0x1f8] sm:$0xff]
    %v1737 = vld [vmem:[#allocation5 + $0x200] sm:$0xff]
    %v1738 = vld [vmem:[#allocation5 + $0x208] sm:$0xff]
    %v1739 = vld [vmem:[#allocation5 + $0x210] sm:$0xff]
    %v1740 = vld [vmem:[#allocation5 + $0x218] sm:$0xff]
    %v1741 = vld [vmem:[#allocation5 + $0x220] sm:$0xff]
    %v1742 = vld [vmem:[#allocation5 + $0x228] sm:$0xff]
    %v1743 = vld [vmem:[#allocation5 + $0x230] sm:$0xff]
    %v1744 = vld [vmem:[#allocation5 + $0x238] sm:$0xff]
    %v1745 = vld [vmem:[#allocation5 + $0x240] sm:$0xff]
    %v1746 = vld [vmem:[#allocation5 + $0x248] sm:$0xff]
    %v1747 = vld [vmem:[#allocation5 + $0x250] sm:$0xff]
    %v1748 = vld [vmem:[#allocation5 + $0x258] sm:$0xff]
    %v1749 = vld [vmem:[#allocation5 + $0x260] sm:$0xff]
    %v1750 = vld [vmem:[#allocation5 + $0x268] sm:$0xff]
    %v1751 = vld [vmem:[#allocation5 + $0x270] sm:$0xff]
    %v1752 = vld [vmem:[#allocation5 + $0x278] sm:$0xff]
    %v1753 = vld [vmem:[#allocation5 + $0x280] sm:$0xff]
    %v1754 = vld [vmem:[#allocation5 + $0x288] sm:$0xff]
    %v1755 = vld [vmem:[#allocation5 + $0x290] sm:$0xff]
    %v1756 = vld [vmem:[#allocation5 + $0x298] sm:$0xff]
    %v1757 = vld [vmem:[#allocation5 + $0x2a0] sm:$0xff]
    %v1758 = vld [vmem:[#allocation5 + $0x2a8] sm:$0xff]
    %v1759 = vld [vmem:[#allocation5 + $0x2b0] sm:$0xff]
    %v1760 = vld [vmem:[#allocation5 + $0x2b8] sm:$0xff]
    %v1761 = vld [vmem:[#allocation5 + $0x2c0] sm:$0xff]
    %v1762 = vld [vmem:[#allocation5 + $0x2c8] sm:$0xff]
    %v1763 = vld [vmem:[#allocation5 + $0x2d0] sm:$0xff]
    %v1764 = vld [vmem:[#allocation5 + $0x2d8] sm:$0xff]
    %v1765 = vld [vmem:[#allocation5 + $0x2e0] sm:$0xff]
    %v1766 = vld [vmem:[#allocation5 + $0x2e8] sm:$0xff]
    %v1767 = vld [vmem:[#allocation5 + $0x2f0] sm:$0xff]
    %v1768 = vld [vmem:[#allocation5 + $0x2f8] sm:$0xff]
    %v1769 = vld [vmem:[#allocation5 + $0x300] sm:$0xff]
    %v1770 = vld [vmem:[#allocation5 + $0x308] sm:$0xff]
    %v1771 = vld [vmem:[#allocation5 + $0x310] sm:$0xff]
    %v1772 = vld [vmem:[#allocation5 + $0x318] sm:$0xff]
    %v1773 = vld [vmem:[#allocation5 + $0x320] sm:$0xff]
    %v1774 = vld [vmem:[#allocation5 + $0x328] sm:$0xff]
    %v1775 = vld [vmem:[#allocation5 + $0x330] sm:$0xff]
    %v1776 = vld [vmem:[#allocation5 + $0x338] sm:$0xff]
    %v1777 = vld [vmem:[#allocation5 + $0x340] sm:$0xff]
    %v1778 = vld [vmem:[#allocation5 + $0x348] sm:$0xff]
    %v1779 = vld [vmem:[#allocation5 + $0x350] sm:$0xff]
    %v1780 = vld [vmem:[#allocation5 + $0x358] sm:$0xff]
    %v1781 = vld [vmem:[#allocation5 + $0x360] sm:$0xff]
    %v1782 = vld [vmem:[#allocation5 + $0x368] sm:$0xff]
    %v1783 = vld [vmem:[#allocation5 + $0x370] sm:$0xff]
    %v1784 = vld [vmem:[#allocation5 + $0x378] sm:$0xff]
    %v1785 = vld [vmem:[#allocation5 + $0x380] sm:$0xff]
    %v1786 = vld [vmem:[#allocation5 + $0x388] sm:$0xff]
    %v1787 = vld [vmem:[#allocation5 + $0x390] sm:$0xff]
    %v1788 = vld [vmem:[#allocation5 + $0x398] sm:$0xff]
    %v1789 = vld [vmem:[#allocation5 + $0x3a0] sm:$0xff]
    %v1790 = vld [vmem:[#allocation5 + $0x3a8] sm:$0xff]
    %v1791 = vld [vmem:[#allocation5 + $0x3b0] sm:$0xff]
    %v1792 = vld [vmem:[#allocation5 + $0x3b8] sm:$0xff]
    %v1793 = vld [vmem:[#allocation5 + $0x3c0] sm:$0xff]
    %v1794 = vld [vmem:[#allocation5 + $0x3c8] sm:$0xff]
    %v1795 = vld [vmem:[#allocation5 + $0x3d0] sm:$0xff]
    %v1796 = vld [vmem:[#allocation5 + $0x3d8] sm:$0xff]
    %v1797 = vld [vmem:[#allocation5 + $0x3e0] sm:$0xff]
    %v1798 = vld [vmem:[#allocation5 + $0x3e8] sm:$0xff]
    %v1799 = vld [vmem:[#allocation5 + $0x3f0] sm:$0xff]
    %v1800 = vld [vmem:[#allocation5 + $0x3f8] sm:$0xff]
    %v1801 = vld [vmem:[#allocation5 + $0x400] sm:$0xff]
    %v1802 = vld [vmem:[#allocation5 + $0x408] sm:$0xff]
    %v1803 = vld [vmem:[#allocation5 + $0x410] sm:$0xff]
    %v1804 = vld [vmem:[#allocation5 + $0x418] sm:$0xff]
    %v1805 = vld [vmem:[#allocation5 + $0x420] sm:$0xff]
    %v1806 = vld [vmem:[#allocation5 + $0x428] sm:$0xff]
    %v1807 = vld [vmem:[#allocation5 + $0x430] sm:$0xff]
    %v1808 = vld [vmem:[#allocation5 + $0x438] sm:$0xff]
    %v1809 = vld [vmem:[#allocation5 + $0x440] sm:$0xff]
    %v1810 = vld [vmem:[#allocation5 + $0x448] sm:$0xff]
    %v1811 = vld [vmem:[#allocation5 + $0x450] sm:$0xff]
    %v1812 = vld [vmem:[#allocation5 + $0x458] sm:$0xff]
    %v1813 = vld [vmem:[#allocation5 + $0x460] sm:$0xff]
    %v1814 = vld [vmem:[#allocation5 + $0x468] sm:$0xff]
    %v1815 = vld [vmem:[#allocation5 + $0x470] sm:$0xff]
    %v1816 = vld [vmem:[#allocation5 + $0x478] sm:$0xff]
    %v1817 = vmul.f32 %v1529, %v1673
    %v1818 = vmul.f32 %v1530, %v1674
    %v1819 = vmul.f32 %v1531, %v1675
    %v1820 = vmul.f32 %v1532, %v1676
    %v1821 = vmul.f32 %v1533, %v1677
    %v1822 = vmul.f32 %v1534, %v1678
    %v1823 = vmul.f32 %v1535, %v1679
    %v1824 = vmul.f32 %v1536, %v1680
    %v1825 = vmul.f32 %v1537, %v1681
    %v1826 = vmul.f32 %v1538, %v1682
    %v1827 = vmul.f32 %v1539, %v1683
    %v1828 = vmul.f32 %v1540, %v1684
    %v1829 = vmul.f32 %v1541, %v1685
    %v1830 = vmul.f32 %v1542, %v1686
    %v1831 = vmul.f32 %v1543, %v1687
    %v1832 = vmul.f32 %v1544, %v1688
    %v1833 = vmul.f32 %v1545, %v1689
    %v1834 = vmul.f32 %v1546, %v1690
    %v1835 = vmul.f32 %v1547, %v1691
    %v1836 = vmul.f32 %v1548, %v1692
    %v1837 = vmul.f32 %v1549, %v1693
    %v1838 = vmul.f32 %v1550, %v1694
    %v1839 = vmul.f32 %v1551, %v1695
    %v1840 = vmul.f32 %v1552, %v1696
    %v1841 = vmul.f32 %v1553, %v1697
    %v1842 = vmul.f32 %v1554, %v1698
    %v1843 = vmul.f32 %v1555, %v1699
    %v1844 = vmul.f32 %v1556, %v1700
    %v1845 = vmul.f32 %v1557, %v1701
    %v1846 = vmul.f32 %v1558, %v1702
    %v1847 = vmul.f32 %v1559, %v1703
    %v1848 = vmul.f32 %v1560, %v1704
    %v1849 = vmul.f32 %v1561, %v1705
    %v1850 = vmul.f32 %v1562, %v1706
    %v1851 = vmul.f32 %v1563, %v1707
    %v1852 = vmul.f32 %v1564, %v1708
    %v1853 = vmul.f32 %v1565, %v1709
    %v1854 = vmul.f32 %v1566, %v1710
    %v1855 = vmul.f32 %v1567, %v1711
    %v1856 = vmul.f32 %v1568, %v1712
    %v1857 = vmul.f32 %v1569, %v1713
    %v1858 = vmul.f32 %v1570, %v1714
    %v1859 = vmul.f32 %v1571, %v1715
    %v1860 = vmul.f32 %v1572, %v1716
    %v1861 = vmul.f32 %v1573, %v1717
    %v1862 = vmul.f32 %v1574, %v1718
    %v1863 = vmul.f32 %v1575, %v1719
    %v1864 = vmul.f32 %v1576, %v1720
    %v1865 = vmul.f32 %v1577, %v1721
    %v1866 = vmul.f32 %v1578, %v1722
    %v1867 = vmul.f32 %v1579, %v1723
    %v1868 = vmul.f32 %v1580, %v1724
    %v1869 = vmul.f32 %v1581, %v1725
    %v1870 = vmul.f32 %v1582, %v1726
    %v1871 = vmul.f32 %v1583, %v1727
    %v1872 = vmul.f32 %v1584, %v1728
    %v1873 = vmul.f32 %v1585, %v1729
    %v1874 = vmul.f32 %v1586, %v1730
    %v1875 = vmul.f32 %v1587, %v1731
    %v1876 = vmul.f32 %v1588, %v1732
    %v1877 = vmul.f32 %v1589, %v1733
    %v1878 = vmul.f32 %v1590, %v1734
    %v1879 = vmul.f32 %v1591, %v1735
    %v1880 = vmul.f32 %v1592, %v1736
    %v1881 = vmul.f32 %v1593, %v1737
    %v1882 = vmul.f32 %v1594, %v1738
    %v1883 = vmul.f32 %v1595, %v1739
    %v1884 = vmul.f32 %v1596, %v1740
    %v1885 = vmul.f32 %v1597, %v1741
    %v1886 = vmul.f32 %v1598, %v1742
    %v1887 = vmul.f32 %v1599, %v1743
    %v1888 = vmul.f32 %v1600, %v1744
    %v1889 = vmul.f32 %v1601, %v1745
    %v1890 = vmul.f32 %v1602, %v1746
    %v1891 = vmul.f32 %v1603, %v1747
    %v1892 = vmul.f32 %v1604, %v1748
    %v1893 = vmul.f32 %v1605, %v1749
    %v1894 = vmul.f32 %v1606, %v1750
    %v1895 = vmul.f32 %v1607, %v1751
    %v1896 = vmul.f32 %v1608, %v1752
    %v1897 = vmul.f32 %v1609, %v1753
    %v1898 = vmul.f32 %v1610, %v1754
    %v1899 = vmul.f32 %v1611, %v1755
    %v1900 = vmul.f32 %v1612, %v1756
    %v1901 = vmul.f32 %v1613, %v1757
    %v1902 = vmul.f32 %v1614, %v1758
    %v1903 = vmul.f32 %v1615, %v1759
    %v1904 = vmul.f32 %v1616, %v1760
    %v1905 = vmul.f32 %v1617, %v1761
    %v1906 = vmul.f32 %v1618, %v1762
    %v1907 = vmul.f32 %v1619, %v1763
    %v1908 = vmul.f32 %v1620, %v1764
    %v1909 = vmul.f32 %v1621, %v1765
    %v1910 = vmul.f32 %v1622, %v1766
    %v1911 = vmul.f32 %v1623, %v1767
    %v1912 = vmul.f32 %v1624, %v1768
    %v1913 = vmul.f32 %v1625, %v1769
    %v1914 = vmul.f32 %v1626, %v1770
    %v1915 = vmul.f32 %v1627, %v1771
    %v1916 = vmul.f32 %v1628, %v1772
    %v1917 = vmul.f32 %v1629, %v1773
    %v1918 = vmul.f32 %v1630, %v1774
    %v1919 = vmul.f32 %v1631, %v1775
    %v1920 = vmul.f32 %v1632, %v1776
    %v1921 = vmul.f32 %v1633, %v1777
    %v1922 = vmul.f32 %v1634, %v1778
    %v1923 = vmul.f32 %v1635, %v1779
    %v1924 = vmul.f32 %v1636, %v1780
    %v1925 = vmul.f32 %v1637, %v1781
    %v1926 = vmul.f32 %v1638, %v1782
    %v1927 = vmul.f32 %v1639, %v1783
    %v1928 = vmul.f32 %v1640, %v1784
    %v1929 = vmul.f32 %v1641, %v1785
    %v1930 = vmul.f32 %v1642, %v1786
    %v1931 = vmul.f32 %v1643, %v1787
    %v1932 = vmul.f32 %v1644, %v1788
    %v1933 = vmul.f32 %v1645, %v1789
    %v1934 = vmul.f32 %v1646, %v1790
    %v1935 = vmul.f32 %v1647, %v1791
    %v1936 = vmul.f32 %v1648, %v1792
    %v1937 = vmul.f32 %v1649, %v1793
    %v1938 = vmul.f32 %v1650, %v1794
    %v1939 = vmul.f32 %v1651, %v1795
    %v1940 = vmul.f32 %v1652, %v1796
    %v1941 = vmul.f32 %v1653, %v1797
    %v1942 = vmul.f32 %v1654, %v1798
    %v1943 = vmul.f32 %v1655, %v1799
    %v1944 = vmul.f32 %v1656, %v1800
    %v1945 = vmul.f32 %v1657, %v1801
    %v1946 = vmul.f32 %v1658, %v1802
    %v1947 = vmul.f32 %v1659, %v1803
    %v1948 = vmul.f32 %v1660, %v1804
    %v1949 = vmul.f32 %v1661, %v1805
    %v1950 = vmul.f32 %v1662, %v1806
    %v1951 = vmul.f32 %v1663, %v1807
    %v1952 = vmul.f32 %v1664, %v1808
    %v1953 = vmul.f32 %v1665, %v1809
    %v1954 = vmul.f32 %v1666, %v1810
    %v1955 = vmul.f32 %v1667, %v1811
    %v1956 = vmul.f32 %v1668, %v1812
    %v1957 = vmul.f32 %v1669, %v1813
    %v1958 = vmul.f32 %v1670, %v1814
    %v1959 = vmul.f32 %v1671, %v1815
    %v1960 = vmul.f32 %v1672, %v1816
    %v1961 = vpack.c.bf16 %v1819, %v1817
    %v1962 = vpack.c.bf16 %v1820, %v1818
    %v1963 = vpack.c.bf16 %v1823, %v1821
    %v1964 = vpack.c.bf16 %v1824, %v1822
    %v1965 = vpack.c.bf16 %v1827, %v1825
    %v1966 = vpack.c.bf16 %v1828, %v1826
    %v1967 = vpack.c.bf16 %v1831, %v1829
    %v1968 = vpack.c.bf16 %v1832, %v1830
    %v1969 = vpack.c.bf16 %v1835, %v1833
    %v1970 = vpack.c.bf16 %v1836, %v1834
    %v1971 = vpack.c.bf16 %v1839, %v1837
    %v1972 = vpack.c.bf16 %v1840, %v1838
    %v1973 = vpack.c.bf16 %v1843, %v1841
    %v1974 = vpack.c.bf16 %v1844, %v1842
    %v1975 = vpack.c.bf16 %v1847, %v1845
    %v1976 = vpack.c.bf16 %v1848, %v1846
    %v1977 = vpack.c.bf16 %v1851, %v1849
    %v1978 = vpack.c.bf16 %v1852, %v1850
    %v1979 = vpack.c.bf16 %v1855, %v1853
    %v1980 = vpack.c.bf16 %v1856, %v1854
    %v1981 = vpack.c.bf16 %v1859, %v1857
    %v1982 = vpack.c.bf16 %v1860, %v1858
    %v1983 = vpack.c.bf16 %v1863, %v1861
    %v1984 = vpack.c.bf16 %v1864, %v1862
    %v1985 = vpack.c.bf16 %v1867, %v1865
    %v1986 = vpack.c.bf16 %v1868, %v1866
    %v1987 = vpack.c.bf16 %v1871, %v1869
    %v1988 = vpack.c.bf16 %v1872, %v1870
    %v1989 = vpack.c.bf16 %v1875, %v1873
    %v1990 = vpack.c.bf16 %v1876, %v1874
    %v1991 = vpack.c.bf16 %v1879, %v1877
    %v1992 = vpack.c.bf16 %v1880, %v1878
    %v1993 = vpack.c.bf16 %v1883, %v1881
    %v1994 = vpack.c.bf16 %v1884, %v1882
    %v1995 = vpack.c.bf16 %v1887, %v1885
    %v1996 = vpack.c.bf16 %v1888, %v1886
    %v1997 = vpack.c.bf16 %v1891, %v1889
    %v1998 = vpack.c.bf16 %v1892, %v1890
    %v1999 = vpack.c.bf16 %v1895, %v1893
    %v2000 = vpack.c.bf16 %v1896, %v1894
    %v2001 = vpack.c.bf16 %v1899, %v1897
    %v2002 = vpack.c.bf16 %v1900, %v1898
    %v2003 = vpack.c.bf16 %v1903, %v1901
    %v2004 = vpack.c.bf16 %v1904, %v1902
    %v2005 = vpack.c.bf16 %v1907, %v1905
    %v2006 = vpack.c.bf16 %v1908, %v1906
    %v2007 = vpack.c.bf16 %v1911, %v1909
    %v2008 = vpack.c.bf16 %v1912, %v1910
    %v2009 = vpack.c.bf16 %v1915, %v1913
    %v2010 = vpack.c.bf16 %v1916, %v1914
    %v2011 = vpack.c.bf16 %v1919, %v1917
    %v2012 = vpack.c.bf16 %v1920, %v1918
    %v2013 = vpack.c.bf16 %v1923, %v1921
    %v2014 = vpack.c.bf16 %v1924, %v1922
    %v2015 = vpack.c.bf16 %v1927, %v1925
    %v2016 = vpack.c.bf16 %v1928, %v1926
    %v2017 = vpack.c.bf16 %v1931, %v1929
    %v2018 = vpack.c.bf16 %v1932, %v1930
    %v2019 = vpack.c.bf16 %v1935, %v1933
    %v2020 = vpack.c.bf16 %v1936, %v1934
    %v2021 = vpack.c.bf16 %v1939, %v1937
    %v2022 = vpack.c.bf16 %v1940, %v1938
    %v2023 = vpack.c.bf16 %v1943, %v1941
    %v2024 = vpack.c.bf16 %v1944, %v1942
    %v2025 = vpack.c.bf16 %v1947, %v1945
    %v2026 = vpack.c.bf16 %v1948, %v1946
    %v2027 = vpack.c.bf16 %v1951, %v1949
    %v2028 = vpack.c.bf16 %v1952, %v1950
    %v2029 = vpack.c.bf16 %v1955, %v1953
    %v2030 = vpack.c.bf16 %v1956, %v1954
    %v2031 = vpack.c.bf16 %v1959, %v1957
    %v2032 = vpack.c.bf16 %v1960, %v1958
    %v2033 = vld [vmem:[#allocation10] sm:$0xff]
    %v2034 = vld [vmem:[#allocation10 + $0x8] sm:$0xff]
    %v2035 = vld [vmem:[#allocation10 + $0x10] sm:$0xf]
    %v2036 = vld [vmem:[#allocation10 + $0x14] sm:$0xff]
    %v2037 = vld [vmem:[#allocation10 + $0x1c] sm:$0xff]
    %v2038 = vld [vmem:[#allocation10 + $0x24] sm:$0xf]
    %v2039 = vld [vmem:[#allocation10 + $0x28] sm:$0xff]
    %v2040 = vld [vmem:[#allocation10 + $0x30] sm:$0xff]
    %v2041 = vld [vmem:[#allocation10 + $0x38] sm:$0xf]
    %v2042 = vld [vmem:[#allocation10 + $0x3c] sm:$0xff]
    %v2043 = vld [vmem:[#allocation10 + $0x44] sm:$0xff]
    %v2044 = vld [vmem:[#allocation10 + $0x4c] sm:$0xf]
    %v2045 = vld [vmem:[#allocation10 + $0x50] sm:$0xff]
    %v2046 = vld [vmem:[#allocation10 + $0x58] sm:$0xff]
    %v2047 = vld [vmem:[#allocation10 + $0x60] sm:$0xf]
    %v2048 = vld [vmem:[#allocation10 + $0x64] sm:$0xff]
    %v2049 = vld [vmem:[#allocation10 + $0x6c] sm:$0xff]
    %v2050 = vld [vmem:[#allocation10 + $0x74] sm:$0xf]
    %v2051 = vld [vmem:[#allocation10 + $0x78] sm:$0xff]
    %v2052 = vld [vmem:[#allocation10 + $0x80] sm:$0xff]
    %v2053 = vld [vmem:[#allocation10 + $0x88] sm:$0xf]
    %v2054 = vld [vmem:[#allocation10 + $0x8c] sm:$0xff]
    %v2055 = vld [vmem:[#allocation10 + $0x94] sm:$0xff]
    %v2056 = vld [vmem:[#allocation10 + $0x9c] sm:$0xf]
    %v2057 = vld [vmem:[#allocation10 + $0xa0] sm:$0xff]
    %v2058 = vld [vmem:[#allocation10 + $0xa8] sm:$0xff]
    %v2059 = vld [vmem:[#allocation10 + $0xb0] sm:$0xf]
    %v2060 = vld [vmem:[#allocation10 + $0xb4] sm:$0xff]
    %v2061 = vld [vmem:[#allocation10 + $0xbc] sm:$0xff]
    %v2062 = vld [vmem:[#allocation10 + $0xc4] sm:$0xf]
    %v2063 = vld [vmem:[#allocation10 + $0xc8] sm:$0xff]
    %v2064 = vld [vmem:[#allocation10 + $0xd0] sm:$0xff]
    %v2065 = vld [vmem:[#allocation10 + $0xd8] sm:$0xf]
    %v2066 = vld [vmem:[#allocation10 + $0xdc] sm:$0xff]
    %v2067 = vld [vmem:[#allocation10 + $0xe4] sm:$0xff]
    %v2068 = vld [vmem:[#allocation10 + $0xec] sm:$0xf]
    %v2069 = vld [vmem:[#allocation10 + $0xf0] sm:$0xff]
    %v2070 = vld [vmem:[#allocation10 + $0xf8] sm:$0xff]
    %v2071 = vld [vmem:[#allocation10 + $0x100] sm:$0xf]
    %v2072 = vld [vmem:[#allocation10 + $0x104] sm:$0xff]
    %v2073 = vld [vmem:[#allocation10 + $0x10c] sm:$0xff]
    %v2074 = vld [vmem:[#allocation10 + $0x114] sm:$0xf]
    %v2075 = vld [vmem:[#allocation10 + $0x118] sm:$0xff]
    %v2076 = vld [vmem:[#allocation10 + $0x120] sm:$0xff]
    %v2077 = vld [vmem:[#allocation10 + $0x128] sm:$0xf]
    %v2078 = vld [vmem:[#allocation10 + $0x12c] sm:$0xff]
    %v2079 = vld [vmem:[#allocation10 + $0x134] sm:$0xff]
    %v2080 = vld [vmem:[#allocation10 + $0x13c] sm:$0xf]
    %v2081 = vld [vmem:[#allocation10 + $0x140] sm:$0xff]
    %v2082 = vld [vmem:[#allocation10 + $0x148] sm:$0xff]
    %v2083 = vld [vmem:[#allocation10 + $0x150] sm:$0xf]
    %v2084 = vld [vmem:[#allocation10 + $0x154] sm:$0xff]
    %v2085 = vld [vmem:[#allocation10 + $0x15c] sm:$0xff]
    %v2086 = vld [vmem:[#allocation10 + $0x164] sm:$0xf]
    %v2087 = vld [vmem:[#allocation10 + $0x168] sm:$0xff]
    %v2088 = vld [vmem:[#allocation10 + $0x170] sm:$0xff]
    %v2089 = vld [vmem:[#allocation10 + $0x178] sm:$0xf]
    %v2090 = vld [vmem:[#allocation10 + $0x17c] sm:$0xff]
    %v2091 = vld [vmem:[#allocation10 + $0x184] sm:$0xff]
    %v2092 = vld [vmem:[#allocation10 + $0x18c] sm:$0xf]
    %v2093 = vld [vmem:[#allocation10 + $0x190] sm:$0xff]
    %v2094 = vld [vmem:[#allocation10 + $0x198] sm:$0xff]
    %v2095 = vld [vmem:[#allocation10 + $0x1a0] sm:$0xf]
    %v2096 = vld [vmem:[#allocation10 + $0x1a4] sm:$0xff]
    %v2097 = vld [vmem:[#allocation10 + $0x1ac] sm:$0xff]
    %v2098 = vld [vmem:[#allocation10 + $0x1b4] sm:$0xf]
    %v2099 = vld [vmem:[#allocation10 + $0x1b8] sm:$0xff]
    %v2100 = vld [vmem:[#allocation10 + $0x1c0] sm:$0xff]
    %v2101 = vld [vmem:[#allocation10 + $0x1c8] sm:$0xf]
    %v2102 = vld [vmem:[#allocation10 + $0x1cc] sm:$0xff]
    %v2103 = vld [vmem:[#allocation10 + $0x1d4] sm:$0xff]
    %v2104 = vld [vmem:[#allocation10 + $0x1dc] sm:$0xf]
    %v2105 = vld [vmem:[#allocation10 + $0x1e0] sm:$0xff]
    %v2106 = vld [vmem:[#allocation10 + $0x1e8] sm:$0xff]
    %v2107 = vld [vmem:[#allocation10 + $0x1f0] sm:$0xf]
    %v2108 = vld [vmem:[#allocation10 + $0x1f4] sm:$0xff]
    %v2109 = vld [vmem:[#allocation10 + $0x1fc] sm:$0xff]
    %v2110 = vld [vmem:[#allocation10 + $0x204] sm:$0xf]
    %v2111 = vld [vmem:[#allocation10 + $0x208] sm:$0xff]
    %v2112 = vld [vmem:[#allocation10 + $0x210] sm:$0xff]
    %v2113 = vld [vmem:[#allocation10 + $0x218] sm:$0xf]
    %v2114 = vld [vmem:[#allocation10 + $0x21c] sm:$0xff]
    %v2115 = vld [vmem:[#allocation10 + $0x224] sm:$0xff]
    %v2116 = vld [vmem:[#allocation10 + $0x22c] sm:$0xf]
    %v2117 = vld [vmem:[#allocation10 + $0x230] sm:$0xff]
    %v2118 = vld [vmem:[#allocation10 + $0x238] sm:$0xff]
    %v2119 = vld [vmem:[#allocation10 + $0x240] sm:$0xf]
    %v2120 = vld [vmem:[#allocation10 + $0x244] sm:$0xff]
    %v2121 = vld [vmem:[#allocation10 + $0x24c] sm:$0xff]
    %v2122 = vld [vmem:[#allocation10 + $0x254] sm:$0xf]
    %v2123 = vld [vmem:[#allocation10 + $0x258] sm:$0xff]
    %v2124 = vld [vmem:[#allocation10 + $0x260] sm:$0xff]
    %v2125 = vld [vmem:[#allocation10 + $0x268] sm:$0xf]
    %v2126 = vld [vmem:[#allocation10 + $0x26c] sm:$0xff]
    %v2127 = vld [vmem:[#allocation10 + $0x274] sm:$0xff]
    %v2128 = vld [vmem:[#allocation10 + $0x27c] sm:$0xf]
    %v2129 = vld [vmem:[#allocation10 + $0x280] sm:$0xff]
    %v2130 = vld [vmem:[#allocation10 + $0x288] sm:$0xff]
    %v2131 = vld [vmem:[#allocation10 + $0x290] sm:$0xf]
    %v2132 = vld [vmem:[#allocation10 + $0x294] sm:$0xff]
    %v2133 = vld [vmem:[#allocation10 + $0x29c] sm:$0xff]
    %v2134 = vld [vmem:[#allocation10 + $0x2a4] sm:$0xf]
    %v2135 = vld [vmem:[#allocation10 + $0x2a8] sm:$0xff]
    %v2136 = vld [vmem:[#allocation10 + $0x2b0] sm:$0xff]
    %v2137 = vld [vmem:[#allocation10 + $0x2b8] sm:$0xf]
    %v2138 = vld [vmem:[#allocation10 + $0x2bc] sm:$0xff]
    %v2139 = vld [vmem:[#allocation10 + $0x2c4] sm:$0xff]
    %v2140 = vld [vmem:[#allocation10 + $0x2cc] sm:$0xf]
    %v2141 = vld [vmem:[#allocation10 + $0x2d0] sm:$0xff]
    %v2142 = vld [vmem:[#allocation10 + $0x2d8] sm:$0xff]
    %v2143 = vld [vmem:[#allocation10 + $0x2e0] sm:$0xf]
    %v2144 = vld [vmem:[#allocation10 + $0x2e4] sm:$0xff]
    %v2145 = vld [vmem:[#allocation10 + $0x2ec] sm:$0xff]
    %v2146 = vld [vmem:[#allocation10 + $0x2f4] sm:$0xf]
    %v2147 = vld [vmem:[#allocation10 + $0x2f8] sm:$0xff]
    %v2148 = vld [vmem:[#allocation10 + $0x300] sm:$0xff]
    %v2149 = vld [vmem:[#allocation10 + $0x308] sm:$0xf]
    %v2150 = vld [vmem:[#allocation10 + $0x30c] sm:$0xff]
    %v2151 = vld [vmem:[#allocation10 + $0x314] sm:$0xff]
    %v2152 = vld [vmem:[#allocation10 + $0x31c] sm:$0xf]
    %v2153 = vld [vmem:[#allocation10 + $0x320] sm:$0xff]
    %v2154 = vld [vmem:[#allocation10 + $0x328] sm:$0xff]
    %v2155 = vld [vmem:[#allocation10 + $0x330] sm:$0xf]
    %v2156 = vld [vmem:[#allocation10 + $0x334] sm:$0xff]
    %v2157 = vld [vmem:[#allocation10 + $0x33c] sm:$0xff]
    %v2158 = vld [vmem:[#allocation10 + $0x344] sm:$0xf]
    %v2159 = vld [vmem:[#allocation10 + $0x348] sm:$0xff]
    %v2160 = vld [vmem:[#allocation10 + $0x350] sm:$0xff]
    %v2161 = vld [vmem:[#allocation10 + $0x358] sm:$0xf]
    %v2162 = vld [vmem:[#allocation10 + $0x35c] sm:$0xff]
    %v2163 = vld [vmem:[#allocation10 + $0x364] sm:$0xff]
    %v2164 = vld [vmem:[#allocation10 + $0x36c] sm:$0xf]
    %v2165 = vld [vmem:[#allocation10 + $0x370] sm:$0xff]
    %v2166 = vld [vmem:[#allocation10 + $0x378] sm:$0xff]
    %v2167 = vld [vmem:[#allocation10 + $0x380] sm:$0xf]
    %v2168 = vld [vmem:[#allocation10 + $0x384] sm:$0xff]
    %v2169 = vld [vmem:[#allocation10 + $0x38c] sm:$0xff]
    %v2170 = vld [vmem:[#allocation10 + $0x394] sm:$0xf]
    %v2171 = vld [vmem:[#allocation10 + $0x398] sm:$0xff]
    %v2172 = vld [vmem:[#allocation10 + $0x3a0] sm:$0xff]
    %v2173 = vld [vmem:[#allocation10 + $0x3a8] sm:$0xf]
    %v2174 = vld [vmem:[#allocation10 + $0x3ac] sm:$0xff]
    %v2175 = vld [vmem:[#allocation10 + $0x3b4] sm:$0xff]
    %v2176 = vld [vmem:[#allocation10 + $0x3bc] sm:$0xf]
    %v2177 = vld [vmem:[#allocation10 + $0x3c0] sm:$0xff]
    %v2178 = vld [vmem:[#allocation10 + $0x3c8] sm:$0xff]
    %v2179 = vld [vmem:[#allocation10 + $0x3d0] sm:$0xf]
    %v2180 = vld [vmem:[#allocation10 + $0x3d4] sm:$0xff]
    %v2181 = vld [vmem:[#allocation10 + $0x3dc] sm:$0xff]
    %v2182 = vld [vmem:[#allocation10 + $0x3e4] sm:$0xf]
    %v2183 = vld [vmem:[#allocation10 + $0x3e8] sm:$0xff]
    %v2184 = vld [vmem:[#allocation10 + $0x3f0] sm:$0xff]
    %v2185 = vld [vmem:[#allocation10 + $0x3f8] sm:$0xf]
    %v2186 = vld [vmem:[#allocation10 + $0x3fc] sm:$0xff]
    %v2187 = vld [vmem:[#allocation10 + $0x404] sm:$0xff]
    %v2188 = vld [vmem:[#allocation10 + $0x40c] sm:$0xf]
    %v2189 = vld [vmem:[#allocation10 + $0x410] sm:$0xff]
    %v2190 = vld [vmem:[#allocation10 + $0x418] sm:$0xff]
    %v2191 = vld [vmem:[#allocation10 + $0x420] sm:$0xf]
    %v2192 = vld [vmem:[#allocation10 + $0x424] sm:$0xff]
    %v2193 = vld [vmem:[#allocation10 + $0x42c] sm:$0xff]
    %v2194 = vld [vmem:[#allocation10 + $0x434] sm:$0xf]
    %v2195 = vld [vmem:[#allocation10 + $0x438] sm:$0xff]
    %v2196 = vld [vmem:[#allocation10 + $0x440] sm:$0xff]
    %v2197 = vld [vmem:[#allocation10 + $0x448] sm:$0xf]
    %v2198 = vld [vmem:[#allocation10 + $0x44c] sm:$0xff]
    %v2199 = vld [vmem:[#allocation10 + $0x454] sm:$0xff]
    %v2200 = vld [vmem:[#allocation10 + $0x45c] sm:$0xf]
    %v2201 = vld [vmem:[#allocation10 + $0x460] sm:$0xff]
    %v2202 = vld [vmem:[#allocation10 + $0x468] sm:$0xff]
    %v2203 = vld [vmem:[#allocation10 + $0x470] sm:$0xf]
    %v2204 = vld [vmem:[#allocation10 + $0x474] sm:$0xff]
    %v2205 = vld [vmem:[#allocation10 + $0x47c] sm:$0xff]
    %v2206 = vld [vmem:[#allocation10 + $0x484] sm:$0xf]
    %v2207 = vld [vmem:[#allocation10 + $0x488] sm:$0xff]
    %v2208 = vld [vmem:[#allocation10 + $0x490] sm:$0xff]
    %v2209 = vld [vmem:[#allocation10 + $0x498] sm:$0xf]
    %v2210 = vld [vmem:[#allocation10 + $0x49c] sm:$0xff]
    %v2211 = vld [vmem:[#allocation10 + $0x4a4] sm:$0xff]
    %v2212 = vld [vmem:[#allocation10 + $0x4ac] sm:$0xf]
    %v2213 = vld [vmem:[#allocation10 + $0x4b0] sm:$0xff]
    %v2214 = vld [vmem:[#allocation10 + $0x4b8] sm:$0xff]
    %v2215 = vld [vmem:[#allocation10 + $0x4c0] sm:$0xf]
    %v2216 = vld [vmem:[#allocation10 + $0x4c4] sm:$0xff]
    %v2217 = vld [vmem:[#allocation10 + $0x4cc] sm:$0xff]
    %v2218 = vld [vmem:[#allocation10 + $0x4d4] sm:$0xf]
    %v2219 = vld [vmem:[#allocation10 + $0x4d8] sm:$0xff]
    %v2220 = vld [vmem:[#allocation10 + $0x4e0] sm:$0xff]
    %v2221 = vld [vmem:[#allocation10 + $0x4e8] sm:$0xf]
    %v2222 = vld [vmem:[#allocation10 + $0x4ec] sm:$0xff]
    %v2223 = vld [vmem:[#allocation10 + $0x4f4] sm:$0xff]
    %v2224 = vld [vmem:[#allocation10 + $0x4fc] sm:$0xf]
    %v2225 = vld [vmem:[#allocation11] sm:$0xff]
    %v2226 = vld [vmem:[#allocation11 + $0x8] sm:$0xff]
    %v2227 = vld [vmem:[#allocation11 + $0x10] sm:$0xff]
    %v2228 = vld [vmem:[#allocation11 + $0x18] sm:$0xff]
    %v2229 = vld [vmem:[#allocation11 + $0x20] sm:$0xff]
    %v2230 = vld [vmem:[#allocation11 + $0x28] sm:$0xff]
    %v2231 = vld [vmem:[#allocation11 + $0x30] sm:$0xff]
    %v2232 = vld [vmem:[#allocation11 + $0x38] sm:$0xff]
    %v2233 = vld [vmem:[#allocation11 + $0x40] sm:$0xff]
    %v2234 = vld [vmem:[#allocation11 + $0x48] sm:$0xff]
    %v2235 = vld [vmem:[#allocation11 + $0x50] sm:$0xff]
    %v2236 = vld [vmem:[#allocation11 + $0x58] sm:$0xff]
    %v2237 = vld [vmem:[#allocation11 + $0x60] sm:$0xff]
    %v2238 = vld [vmem:[#allocation11 + $0x68] sm:$0xff]
    %v2239 = vld [vmem:[#allocation11 + $0x70] sm:$0xff]
    %v2240 = vld [vmem:[#allocation11 + $0x78] sm:$0xff]
    %v2241 = vld [vmem:[#allocation11 + $0x80] sm:$0xff]
    %v2242 = vld [vmem:[#allocation11 + $0x88] sm:$0xff]
    %v2243 = vld [vmem:[#allocation11 + $0x90] sm:$0xff]
    %v2244 = vld [vmem:[#allocation11 + $0x98] sm:$0xff]
    %v2245 = vld [vmem:[#allocation11 + $0xa0] sm:$0xff]
    %v2246 = vld [vmem:[#allocation11 + $0xa8] sm:$0xff]
    %v2247 = vld [vmem:[#allocation11 + $0xb0] sm:$0xff]
    %v2248 = vld [vmem:[#allocation11 + $0xb8] sm:$0xff]
    %v2249 = vld [vmem:[#allocation11 + $0xc0] sm:$0xff]
    %v2250 = vld [vmem:[#allocation11 + $0xc8] sm:$0xff]
    %v2251 = vld [vmem:[#allocation11 + $0xd0] sm:$0xff]
    %v2252 = vld [vmem:[#allocation11 + $0xd8] sm:$0xff]
    %v2253 = vld [vmem:[#allocation11 + $0xe0] sm:$0xff]
    %v2254 = vld [vmem:[#allocation11 + $0xe8] sm:$0xff]
    %v2255 = vld [vmem:[#allocation11 + $0xf0] sm:$0xff]
    %v2256 = vld [vmem:[#allocation11 + $0xf8] sm:$0xff]
    %v2257 = vld [vmem:[#allocation11 + $0x100] sm:$0xff]
    %v2258 = vld [vmem:[#allocation11 + $0x108] sm:$0xff]
    %v2259 = vld [vmem:[#allocation11 + $0x110] sm:$0xff]
    %v2260 = vld [vmem:[#allocation11 + $0x118] sm:$0xff]
    %v2261 = vld [vmem:[#allocation11 + $0x120] sm:$0xff]
    %v2262 = vld [vmem:[#allocation11 + $0x128] sm:$0xff]
    %v2263 = vld [vmem:[#allocation11 + $0x130] sm:$0xff]
    %v2264 = vld [vmem:[#allocation11 + $0x138] sm:$0xff]
    %v2265 = vld [vmem:[#allocation11 + $0x140] sm:$0xff]
    %v2266 = vld [vmem:[#allocation11 + $0x148] sm:$0xff]
    %v2267 = vld [vmem:[#allocation11 + $0x150] sm:$0xff]
    %v2268 = vld [vmem:[#allocation11 + $0x158] sm:$0xff]
    %v2269 = vld [vmem:[#allocation11 + $0x160] sm:$0xff]
    %v2270 = vld [vmem:[#allocation11 + $0x168] sm:$0xff]
    %v2271 = vld [vmem:[#allocation11 + $0x170] sm:$0xff]
    %v2272 = vld [vmem:[#allocation11 + $0x178] sm:$0xff]
    %v2273 = vld [vmem:[#allocation11 + $0x180] sm:$0xff]
    %v2274 = vld [vmem:[#allocation11 + $0x188] sm:$0xff]
    %v2275 = vld [vmem:[#allocation11 + $0x190] sm:$0xff]
    %v2276 = vld [vmem:[#allocation11 + $0x198] sm:$0xff]
    %v2277 = vld [vmem:[#allocation11 + $0x1a0] sm:$0xff]
    %v2278 = vld [vmem:[#allocation11 + $0x1a8] sm:$0xff]
    %v2279 = vld [vmem:[#allocation11 + $0x1b0] sm:$0xff]
    %v2280 = vld [vmem:[#allocation11 + $0x1b8] sm:$0xff]
    %v2281 = vld [vmem:[#allocation11 + $0x1c0] sm:$0xff]
    %v2282 = vld [vmem:[#allocation11 + $0x1c8] sm:$0xff]
    %v2283 = vld [vmem:[#allocation11 + $0x1d0] sm:$0xff]
    %v2284 = vld [vmem:[#allocation11 + $0x1d8] sm:$0xff]
    %v2285 = vld [vmem:[#allocation11 + $0x1e0] sm:$0xff]
    %v2286 = vld [vmem:[#allocation11 + $0x1e8] sm:$0xff]
    %v2287 = vld [vmem:[#allocation11 + $0x1f0] sm:$0xff]
    %v2288 = vld [vmem:[#allocation11 + $0x1f8] sm:$0xff]
    %2290 = vset.pattern.permute.xlu0 0
    %2291 = vperm.xlu0 %2290, %v2225
    %v2292 = vpop.permute.xlu0 %2291
    %2295 = vset.pattern.permute.xlu0 0
    %2296 = vperm.xlu0 %2295, %v2226
    %v2297 = vpop.permute.xlu0 %2296
    %2300 = vset.pattern.permute.xlu0 0
    %2301 = vperm.xlu0 %2300, %v2227
    %v2302 = vpop.permute.xlu0 %2301
    %2305 = vset.pattern.permute.xlu0 0
    %2306 = vperm.xlu0 %2305, %v2228
    %v2307 = vpop.permute.xlu0 %2306
    %2310 = vset.pattern.permute.xlu0 0
    %2311 = vperm.xlu0 %2310, %v2229
    %v2312 = vpop.permute.xlu0 %2311
    %2315 = vset.pattern.permute.xlu0 0
    %2316 = vperm.xlu0 %2315, %v2230
    %v2317 = vpop.permute.xlu0 %2316
    %2320 = vset.pattern.permute.xlu0 0
    %2321 = vperm.xlu0 %2320, %v2231
    %v2322 = vpop.permute.xlu0 %2321
    %2325 = vset.pattern.permute.xlu0 0
    %2326 = vperm.xlu0 %2325, %v2232
    %v2327 = vpop.permute.xlu0 %2326
    %2330 = vset.pattern.permute.xlu0 0
    %2331 = vperm.xlu0 %2330, %v2233
    %v2332 = vpop.permute.xlu0 %2331
    %2335 = vset.pattern.permute.xlu0 0
    %2336 = vperm.xlu0 %2335, %v2234
    %v2337 = vpop.permute.xlu0 %2336
    %2340 = vset.pattern.permute.xlu0 0
    %2341 = vperm.xlu0 %2340, %v2235
    %v2342 = vpop.permute.xlu0 %2341
    %2345 = vset.pattern.permute.xlu0 0
    %2346 = vperm.xlu0 %2345, %v2236
    %v2347 = vpop.permute.xlu0 %2346
    %2350 = vset.pattern.permute.xlu0 0
    %2351 = vperm.xlu0 %2350, %v2237
    %v2352 = vpop.permute.xlu0 %2351
    %2355 = vset.pattern.permute.xlu0 0
    %2356 = vperm.xlu0 %2355, %v2238
    %v2357 = vpop.permute.xlu0 %2356
    %2360 = vset.pattern.permute.xlu0 0
    %2361 = vperm.xlu0 %2360, %v2239
    %v2362 = vpop.permute.xlu0 %2361
    %2365 = vset.pattern.permute.xlu0 0
    %2366 = vperm.xlu0 %2365, %v2240
    %v2367 = vpop.permute.xlu0 %2366
    %2370 = vset.pattern.permute.xlu0 0
    %2371 = vperm.xlu0 %2370, %v2241
    %v2372 = vpop.permute.xlu0 %2371
    %2375 = vset.pattern.permute.xlu0 0
    %2376 = vperm.xlu0 %2375, %v2242
    %v2377 = vpop.permute.xlu0 %2376
    %2380 = vset.pattern.permute.xlu0 0
    %2381 = vperm.xlu0 %2380, %v2243
    %v2382 = vpop.permute.xlu0 %2381
    %2385 = vset.pattern.permute.xlu0 0
    %2386 = vperm.xlu0 %2385, %v2244
    %v2387 = vpop.permute.xlu0 %2386
    %2390 = vset.pattern.permute.xlu0 0
    %2391 = vperm.xlu0 %2390, %v2245
    %v2392 = vpop.permute.xlu0 %2391
    %2395 = vset.pattern.permute.xlu0 0
    %2396 = vperm.xlu0 %2395, %v2246
    %v2397 = vpop.permute.xlu0 %2396
    %2400 = vset.pattern.permute.xlu0 0
    %2401 = vperm.xlu0 %2400, %v2247
    %v2402 = vpop.permute.xlu0 %2401
    %2405 = vset.pattern.permute.xlu0 0
    %2406 = vperm.xlu0 %2405, %v2248
    %v2407 = vpop.permute.xlu0 %2406
    %2410 = vset.pattern.permute.xlu0 0
    %2411 = vperm.xlu0 %2410, %v2249
    %v2412 = vpop.permute.xlu0 %2411
    %2415 = vset.pattern.permute.xlu0 0
    %2416 = vperm.xlu0 %2415, %v2250
    %v2417 = vpop.permute.xlu0 %2416
    %2420 = vset.pattern.permute.xlu0 0
    %2421 = vperm.xlu0 %2420, %v2251
    %v2422 = vpop.permute.xlu0 %2421
    %2425 = vset.pattern.permute.xlu0 0
    %2426 = vperm.xlu0 %2425, %v2252
    %v2427 = vpop.permute.xlu0 %2426
    %2430 = vset.pattern.permute.xlu0 0
    %2431 = vperm.xlu0 %2430, %v2253
    %v2432 = vpop.permute.xlu0 %2431
    %2435 = vset.pattern.permute.xlu0 0
    %2436 = vperm.xlu0 %2435, %v2254
    %v2437 = vpop.permute.xlu0 %2436
    %2440 = vset.pattern.permute.xlu0 0
    %2441 = vperm.xlu0 %2440, %v2255
    %v2442 = vpop.permute.xlu0 %2441
    %2445 = vset.pattern.permute.xlu0 0
    %2446 = vperm.xlu0 %2445, %v2256
    %v2447 = vpop.permute.xlu0 %2446
    %2450 = vset.pattern.permute.xlu0 0
    %2451 = vperm.xlu0 %2450, %v2257
    %v2452 = vpop.permute.xlu0 %2451
    %2455 = vset.pattern.permute.xlu0 0
    %2456 = vperm.xlu0 %2455, %v2258
    %v2457 = vpop.permute.xlu0 %2456
    %2460 = vset.pattern.permute.xlu0 0
    %2461 = vperm.xlu0 %2460, %v2259
    %v2462 = vpop.permute.xlu0 %2461
    %2465 = vset.pattern.permute.xlu0 0
    %2466 = vperm.xlu0 %2465, %v2260
    %v2467 = vpop.permute.xlu0 %2466
    %2470 = vset.pattern.permute.xlu0 0
    %2471 = vperm.xlu0 %2470, %v2261
    %v2472 = vpop.permute.xlu0 %2471
    %2475 = vset.pattern.permute.xlu0 0
    %2476 = vperm.xlu0 %2475, %v2262
    %v2477 = vpop.permute.xlu0 %2476
    %2480 = vset.pattern.permute.xlu0 0
    %2481 = vperm.xlu0 %2480, %v2263
    %v2482 = vpop.permute.xlu0 %2481
    %2485 = vset.pattern.permute.xlu0 0
    %2486 = vperm.xlu0 %2485, %v2264
    %v2487 = vpop.permute.xlu0 %2486
    %2490 = vset.pattern.permute.xlu0 0
    %2491 = vperm.xlu0 %2490, %v2265
    %v2492 = vpop.permute.xlu0 %2491
    %2495 = vset.pattern.permute.xlu0 0
    %2496 = vperm.xlu0 %2495, %v2266
    %v2497 = vpop.permute.xlu0 %2496
    %2500 = vset.pattern.permute.xlu0 0
    %2501 = vperm.xlu0 %2500, %v2267
    %v2502 = vpop.permute.xlu0 %2501
    %2505 = vset.pattern.permute.xlu0 0
    %2506 = vperm.xlu0 %2505, %v2268
    %v2507 = vpop.permute.xlu0 %2506
    %2510 = vset.pattern.permute.xlu0 0
    %2511 = vperm.xlu0 %2510, %v2269
    %v2512 = vpop.permute.xlu0 %2511
    %2515 = vset.pattern.permute.xlu0 0
    %2516 = vperm.xlu0 %2515, %v2270
    %v2517 = vpop.permute.xlu0 %2516
    %2520 = vset.pattern.permute.xlu0 0
    %2521 = vperm.xlu0 %2520, %v2271
    %v2522 = vpop.permute.xlu0 %2521
    %2525 = vset.pattern.permute.xlu0 0
    %2526 = vperm.xlu0 %2525, %v2272
    %v2527 = vpop.permute.xlu0 %2526
    %2530 = vset.pattern.permute.xlu0 0
    %2531 = vperm.xlu0 %2530, %v2273
    %v2532 = vpop.permute.xlu0 %2531
    %2535 = vset.pattern.permute.xlu0 0
    %2536 = vperm.xlu0 %2535, %v2274
    %v2537 = vpop.permute.xlu0 %2536
    %2540 = vset.pattern.permute.xlu0 0
    %2541 = vperm.xlu0 %2540, %v2275
    %v2542 = vpop.permute.xlu0 %2541
    %2545 = vset.pattern.permute.xlu0 0
    %2546 = vperm.xlu0 %2545, %v2276
    %v2547 = vpop.permute.xlu0 %2546
    %2550 = vset.pattern.permute.xlu0 0
    %2551 = vperm.xlu0 %2550, %v2277
    %v2552 = vpop.permute.xlu0 %2551
    %2555 = vset.pattern.permute.xlu0 0
    %2556 = vperm.xlu0 %2555, %v2278
    %v2557 = vpop.permute.xlu0 %2556
    %2560 = vset.pattern.permute.xlu0 0
    %2561 = vperm.xlu0 %2560, %v2279
    %v2562 = vpop.permute.xlu0 %2561
    %2565 = vset.pattern.permute.xlu0 0
    %2566 = vperm.xlu0 %2565, %v2280
    %v2567 = vpop.permute.xlu0 %2566
    %2570 = vset.pattern.permute.xlu0 0
    %2571 = vperm.xlu0 %2570, %v2281
    %v2572 = vpop.permute.xlu0 %2571
    %2575 = vset.pattern.permute.xlu0 0
    %2576 = vperm.xlu0 %2575, %v2282
    %v2577 = vpop.permute.xlu0 %2576
    %2580 = vset.pattern.permute.xlu0 0
    %2581 = vperm.xlu0 %2580, %v2283
    %v2582 = vpop.permute.xlu0 %2581
    %2585 = vset.pattern.permute.xlu0 0
    %2586 = vperm.xlu0 %2585, %v2284
    %v2587 = vpop.permute.xlu0 %2586
    %2590 = vset.pattern.permute.xlu0 0
    %2591 = vperm.xlu0 %2590, %v2285
    %v2592 = vpop.permute.xlu0 %2591
    %2595 = vset.pattern.permute.xlu0 0
    %2596 = vperm.xlu0 %2595, %v2286
    %v2597 = vpop.permute.xlu0 %2596
    %2600 = vset.pattern.permute.xlu0 0
    %2601 = vperm.xlu0 %2600, %v2287
    %v2602 = vpop.permute.xlu0 %2601
    %2605 = vset.pattern.permute.xlu0 0
    %2606 = vperm.xlu0 %2605, %v2288
    %v2607 = vpop.permute.xlu0 %2606
    %v2801 = vunpack.c.l.b16 %v2033
    %v2802 = vunpack.c.h.b16 %v2033
    %v2803 = vunpack.c.l.b16 %v2034
    %v2804 = vunpack.c.h.b16 %v2034
    %v2805 = vunpack.c.l.b16 %v2035
    %v2806 = vunpack.c.l.b16 %v2036
    %v2807 = vunpack.c.h.b16 %v2036
    %v2808 = vunpack.c.l.b16 %v2037
    %v2809 = vunpack.c.h.b16 %v2037
    %v2810 = vunpack.c.l.b16 %v2038
    %v2811 = vunpack.c.l.b16 %v2039
    %v2812 = vunpack.c.h.b16 %v2039
    %v2813 = vunpack.c.l.b16 %v2040
    %v2814 = vunpack.c.h.b16 %v2040
    %v2815 = vunpack.c.l.b16 %v2041
    %v2816 = vunpack.c.l.b16 %v2042
    %v2817 = vunpack.c.h.b16 %v2042
    %v2818 = vunpack.c.l.b16 %v2043
    %v2819 = vunpack.c.h.b16 %v2043
    %v2820 = vunpack.c.l.b16 %v2044
    %v2821 = vunpack.c.l.b16 %v2045
    %v2822 = vunpack.c.h.b16 %v2045
    %v2823 = vunpack.c.l.b16 %v2046
    %v2824 = vunpack.c.h.b16 %v2046
    %v2825 = vunpack.c.l.b16 %v2047
    %v2826 = vunpack.c.l.b16 %v2048
    %v2827 = vunpack.c.h.b16 %v2048
    %v2828 = vunpack.c.l.b16 %v2049
    %v2829 = vunpack.c.h.b16 %v2049
    %v2830 = vunpack.c.l.b16 %v2050
    %v2831 = vunpack.c.l.b16 %v2051
    %v2832 = vunpack.c.h.b16 %v2051
    %v2833 = vunpack.c.l.b16 %v2052
    %v2834 = vunpack.c.h.b16 %v2052
    %v2835 = vunpack.c.l.b16 %v2053
    %v2836 = vunpack.c.l.b16 %v2054
    %v2837 = vunpack.c.h.b16 %v2054
    %v2838 = vunpack.c.l.b16 %v2055
    %v2839 = vunpack.c.h.b16 %v2055
    %v2840 = vunpack.c.l.b16 %v2056
    %v2841 = vunpack.c.l.b16 %v2057
    %v2842 = vunpack.c.h.b16 %v2057
    %v2843 = vunpack.c.l.b16 %v2058
    %v2844 = vunpack.c.h.b16 %v2058
    %v2845 = vunpack.c.l.b16 %v2059
    %v2846 = vunpack.c.l.b16 %v2060
    %v2847 = vunpack.c.h.b16 %v2060
    %v2848 = vunpack.c.l.b16 %v2061
    %v2849 = vunpack.c.h.b16 %v2061
    %v2850 = vunpack.c.l.b16 %v2062
    %v2851 = vunpack.c.l.b16 %v2063
    %v2852 = vunpack.c.h.b16 %v2063
    %v2853 = vunpack.c.l.b16 %v2064
    %v2854 = vunpack.c.h.b16 %v2064
    %v2855 = vunpack.c.l.b16 %v2065
    %v2856 = vunpack.c.l.b16 %v2066
    %v2857 = vunpack.c.h.b16 %v2066
    %v2858 = vunpack.c.l.b16 %v2067
    %v2859 = vunpack.c.h.b16 %v2067
    %v2860 = vunpack.c.l.b16 %v2068
    %v2861 = vunpack.c.l.b16 %v2069
    %v2862 = vunpack.c.h.b16 %v2069
    %v2863 = vunpack.c.l.b16 %v2070
    %v2864 = vunpack.c.h.b16 %v2070
    %v2865 = vunpack.c.l.b16 %v2071
    %v2866 = vunpack.c.l.b16 %v2072
    %v2867 = vunpack.c.h.b16 %v2072
    %v2868 = vunpack.c.l.b16 %v2073
    %v2869 = vunpack.c.h.b16 %v2073
    %v2870 = vunpack.c.l.b16 %v2074
    %v2871 = vunpack.c.l.b16 %v2075
    %v2872 = vunpack.c.h.b16 %v2075
    %v2873 = vunpack.c.l.b16 %v2076
    %v2874 = vunpack.c.h.b16 %v2076
    %v2875 = vunpack.c.l.b16 %v2077
    %v2876 = vunpack.c.l.b16 %v2078
    %v2877 = vunpack.c.h.b16 %v2078
    %v2878 = vunpack.c.l.b16 %v2079
    %v2879 = vunpack.c.h.b16 %v2079
    %v2880 = vunpack.c.l.b16 %v2080
    %v2881 = vunpack.c.l.b16 %v2081
    %v2882 = vunpack.c.h.b16 %v2081
    %v2883 = vunpack.c.l.b16 %v2082
    %v2884 = vunpack.c.h.b16 %v2082
    %v2885 = vunpack.c.l.b16 %v2083
    %v2886 = vunpack.c.l.b16 %v2084
    %v2887 = vunpack.c.h.b16 %v2084
    %v2888 = vunpack.c.l.b16 %v2085
    %v2889 = vunpack.c.h.b16 %v2085
    %v2890 = vunpack.c.l.b16 %v2086
    %v2891 = vunpack.c.l.b16 %v2087
    %v2892 = vunpack.c.h.b16 %v2087
    %v2893 = vunpack.c.l.b16 %v2088
    %v2894 = vunpack.c.h.b16 %v2088
    %v2895 = vunpack.c.l.b16 %v2089
    %v2896 = vunpack.c.l.b16 %v2090
    %v2897 = vunpack.c.h.b16 %v2090
    %v2898 = vunpack.c.l.b16 %v2091
    %v2899 = vunpack.c.h.b16 %v2091
    %v2900 = vunpack.c.l.b16 %v2092
    %v2901 = vunpack.c.l.b16 %v2093
    %v2902 = vunpack.c.h.b16 %v2093
    %v2903 = vunpack.c.l.b16 %v2094
    %v2904 = vunpack.c.h.b16 %v2094
    %v2905 = vunpack.c.l.b16 %v2095
    %v2906 = vunpack.c.l.b16 %v2096
    %v2907 = vunpack.c.h.b16 %v2096
    %v2908 = vunpack.c.l.b16 %v2097
    %v2909 = vunpack.c.h.b16 %v2097
    %v2910 = vunpack.c.l.b16 %v2098
    %v2911 = vunpack.c.l.b16 %v2099
    %v2912 = vunpack.c.h.b16 %v2099
    %v2913 = vunpack.c.l.b16 %v2100
    %v2914 = vunpack.c.h.b16 %v2100
    %v2915 = vunpack.c.l.b16 %v2101
    %v2916 = vunpack.c.l.b16 %v2102
    %v2917 = vunpack.c.h.b16 %v2102
    %v2918 = vunpack.c.l.b16 %v2103
    %v2919 = vunpack.c.h.b16 %v2103
    %v2920 = vunpack.c.l.b16 %v2104
    %v2921 = vunpack.c.l.b16 %v2105
    %v2922 = vunpack.c.h.b16 %v2105
    %v2923 = vunpack.c.l.b16 %v2106
    %v2924 = vunpack.c.h.b16 %v2106
    %v2925 = vunpack.c.l.b16 %v2107
    %v2926 = vunpack.c.l.b16 %v2108
    %v2927 = vunpack.c.h.b16 %v2108
    %v2928 = vunpack.c.l.b16 %v2109
    %v2929 = vunpack.c.h.b16 %v2109
    %v2930 = vunpack.c.l.b16 %v2110
    %v2931 = vunpack.c.l.b16 %v2111
    %v2932 = vunpack.c.h.b16 %v2111
    %v2933 = vunpack.c.l.b16 %v2112
    %v2934 = vunpack.c.h.b16 %v2112
    %v2935 = vunpack.c.l.b16 %v2113
    %v2936 = vunpack.c.l.b16 %v2114
    %v2937 = vunpack.c.h.b16 %v2114
    %v2938 = vunpack.c.l.b16 %v2115
    %v2939 = vunpack.c.h.b16 %v2115
    %v2940 = vunpack.c.l.b16 %v2116
    %v2941 = vunpack.c.l.b16 %v2117
    %v2942 = vunpack.c.h.b16 %v2117
    %v2943 = vunpack.c.l.b16 %v2118
    %v2944 = vunpack.c.h.b16 %v2118
    %v2945 = vunpack.c.l.b16 %v2119
    %v2946 = vunpack.c.l.b16 %v2120
    %v2947 = vunpack.c.h.b16 %v2120
    %v2948 = vunpack.c.l.b16 %v2121
    %v2949 = vunpack.c.h.b16 %v2121
    %v2950 = vunpack.c.l.b16 %v2122
    %v2951 = vunpack.c.l.b16 %v2123
    %v2952 = vunpack.c.h.b16 %v2123
    %v2953 = vunpack.c.l.b16 %v2124
    %v2954 = vunpack.c.h.b16 %v2124
    %v2955 = vunpack.c.l.b16 %v2125
    %v2956 = vunpack.c.l.b16 %v2126
    %v2957 = vunpack.c.h.b16 %v2126
    %v2958 = vunpack.c.l.b16 %v2127
    %v2959 = vunpack.c.h.b16 %v2127
    %v2960 = vunpack.c.l.b16 %v2128
    %v2961 = vunpack.c.l.b16 %v2129
    %v2962 = vunpack.c.h.b16 %v2129
    %v2963 = vunpack.c.l.b16 %v2130
    %v2964 = vunpack.c.h.b16 %v2130
    %v2965 = vunpack.c.l.b16 %v2131
    %v2966 = vunpack.c.l.b16 %v2132
    %v2967 = vunpack.c.h.b16 %v2132
    %v2968 = vunpack.c.l.b16 %v2133
    %v2969 = vunpack.c.h.b16 %v2133
    %v2970 = vunpack.c.l.b16 %v2134
    %v2971 = vunpack.c.l.b16 %v2135
    %v2972 = vunpack.c.h.b16 %v2135
    %v2973 = vunpack.c.l.b16 %v2136
    %v2974 = vunpack.c.h.b16 %v2136
    %v2975 = vunpack.c.l.b16 %v2137
    %v2976 = vunpack.c.l.b16 %v2138
    %v2977 = vunpack.c.h.b16 %v2138
    %v2978 = vunpack.c.l.b16 %v2139
    %v2979 = vunpack.c.h.b16 %v2139
    %v2980 = vunpack.c.l.b16 %v2140
    %v2981 = vunpack.c.l.b16 %v2141
    %v2982 = vunpack.c.h.b16 %v2141
    %v2983 = vunpack.c.l.b16 %v2142
    %v2984 = vunpack.c.h.b16 %v2142
    %v2985 = vunpack.c.l.b16 %v2143
    %v2986 = vunpack.c.l.b16 %v2144
    %v2987 = vunpack.c.h.b16 %v2144
    %v2988 = vunpack.c.l.b16 %v2145
    %v2989 = vunpack.c.h.b16 %v2145
    %v2990 = vunpack.c.l.b16 %v2146
    %v2991 = vunpack.c.l.b16 %v2147
    %v2992 = vunpack.c.h.b16 %v2147
    %v2993 = vunpack.c.l.b16 %v2148
    %v2994 = vunpack.c.h.b16 %v2148
    %v2995 = vunpack.c.l.b16 %v2149
    %v2996 = vunpack.c.l.b16 %v2150
    %v2997 = vunpack.c.h.b16 %v2150
    %v2998 = vunpack.c.l.b16 %v2151
    %v2999 = vunpack.c.h.b16 %v2151
    %v3000 = vunpack.c.l.b16 %v2152
    %v3001 = vunpack.c.l.b16 %v2153
    %v3002 = vunpack.c.h.b16 %v2153
    %v3003 = vunpack.c.l.b16 %v2154
    %v3004 = vunpack.c.h.b16 %v2154
    %v3005 = vunpack.c.l.b16 %v2155
    %v3006 = vunpack.c.l.b16 %v2156
    %v3007 = vunpack.c.h.b16 %v2156
    %v3008 = vunpack.c.l.b16 %v2157
    %v3009 = vunpack.c.h.b16 %v2157
    %v3010 = vunpack.c.l.b16 %v2158
    %v3011 = vunpack.c.l.b16 %v2159
    %v3012 = vunpack.c.h.b16 %v2159
    %v3013 = vunpack.c.l.b16 %v2160
    %v3014 = vunpack.c.h.b16 %v2160
    %v3015 = vunpack.c.l.b16 %v2161
    %v3016 = vunpack.c.l.b16 %v2162
    %v3017 = vunpack.c.h.b16 %v2162
    %v3018 = vunpack.c.l.b16 %v2163
    %v3019 = vunpack.c.h.b16 %v2163
    %v3020 = vunpack.c.l.b16 %v2164
    %v3021 = vunpack.c.l.b16 %v2165
    %v3022 = vunpack.c.h.b16 %v2165
    %v3023 = vunpack.c.l.b16 %v2166
    %v3024 = vunpack.c.h.b16 %v2166
    %v3025 = vunpack.c.l.b16 %v2167
    %v3026 = vunpack.c.l.b16 %v2168
    %v3027 = vunpack.c.h.b16 %v2168
    %v3028 = vunpack.c.l.b16 %v2169
    %v3029 = vunpack.c.h.b16 %v2169
    %v3030 = vunpack.c.l.b16 %v2170
    %v3031 = vunpack.c.l.b16 %v2171
    %v3032 = vunpack.c.h.b16 %v2171
    %v3033 = vunpack.c.l.b16 %v2172
    %v3034 = vunpack.c.h.b16 %v2172
    %v3035 = vunpack.c.l.b16 %v2173
    %v3036 = vunpack.c.l.b16 %v2174
    %v3037 = vunpack.c.h.b16 %v2174
    %v3038 = vunpack.c.l.b16 %v2175
    %v3039 = vunpack.c.h.b16 %v2175
    %v3040 = vunpack.c.l.b16 %v2176
    %v3041 = vunpack.c.l.b16 %v2177
    %v3042 = vunpack.c.h.b16 %v2177
    %v3043 = vunpack.c.l.b16 %v2178
    %v3044 = vunpack.c.h.b16 %v2178
    %v3045 = vunpack.c.l.b16 %v2179
    %v3046 = vunpack.c.l.b16 %v2180
    %v3047 = vunpack.c.h.b16 %v2180
    %v3048 = vunpack.c.l.b16 %v2181
    %v3049 = vunpack.c.h.b16 %v2181
    %v3050 = vunpack.c.l.b16 %v2182
    %v3051 = vunpack.c.l.b16 %v2183
    %v3052 = vunpack.c.h.b16 %v2183
    %v3053 = vunpack.c.l.b16 %v2184
    %v3054 = vunpack.c.h.b16 %v2184
    %v3055 = vunpack.c.l.b16 %v2185
    %v3056 = vunpack.c.l.b16 %v2186
    %v3057 = vunpack.c.h.b16 %v2186
    %v3058 = vunpack.c.l.b16 %v2187
    %v3059 = vunpack.c.h.b16 %v2187
    %v3060 = vunpack.c.l.b16 %v2188
    %v3061 = vunpack.c.l.b16 %v2189
    %v3062 = vunpack.c.h.b16 %v2189
    %v3063 = vunpack.c.l.b16 %v2190
    %v3064 = vunpack.c.h.b16 %v2190
    %v3065 = vunpack.c.l.b16 %v2191
    %v3066 = vunpack.c.l.b16 %v2192
    %v3067 = vunpack.c.h.b16 %v2192
    %v3068 = vunpack.c.l.b16 %v2193
    %v3069 = vunpack.c.h.b16 %v2193
    %v3070 = vunpack.c.l.b16 %v2194
    %v3071 = vunpack.c.l.b16 %v2195
    %v3072 = vunpack.c.h.b16 %v2195
    %v3073 = vunpack.c.l.b16 %v2196
    %v3074 = vunpack.c.h.b16 %v2196
    %v3075 = vunpack.c.l.b16 %v2197
    %v3076 = vunpack.c.l.b16 %v2198
    %v3077 = vunpack.c.h.b16 %v2198
    %v3078 = vunpack.c.l.b16 %v2199
    %v3079 = vunpack.c.h.b16 %v2199
    %v3080 = vunpack.c.l.b16 %v2200
    %v3081 = vunpack.c.l.b16 %v2201
    %v3082 = vunpack.c.h.b16 %v2201
    %v3083 = vunpack.c.l.b16 %v2202
    %v3084 = vunpack.c.h.b16 %v2202
    %v3085 = vunpack.c.l.b16 %v2203
    %v3086 = vunpack.c.l.b16 %v2204
    %v3087 = vunpack.c.h.b16 %v2204
    %v3088 = vunpack.c.l.b16 %v2205
    %v3089 = vunpack.c.h.b16 %v2205
    %v3090 = vunpack.c.l.b16 %v2206
    %v3091 = vunpack.c.l.b16 %v2207
    %v3092 = vunpack.c.h.b16 %v2207
    %v3093 = vunpack.c.l.b16 %v2208
    %v3094 = vunpack.c.h.b16 %v2208
    %v3095 = vunpack.c.l.b16 %v2209
    %v3096 = vunpack.c.l.b16 %v2210
    %v3097 = vunpack.c.h.b16 %v2210
    %v3098 = vunpack.c.l.b16 %v2211
    %v3099 = vunpack.c.h.b16 %v2211
    %v3100 = vunpack.c.l.b16 %v2212
    %v3101 = vunpack.c.l.b16 %v2213
    %v3102 = vunpack.c.h.b16 %v2213
    %v3103 = vunpack.c.l.b16 %v2214
    %v3104 = vunpack.c.h.b16 %v2214
    %v3105 = vunpack.c.l.b16 %v2215
    %v3106 = vunpack.c.l.b16 %v2216
    %v3107 = vunpack.c.h.b16 %v2216
    %v3108 = vunpack.c.l.b16 %v2217
    %v3109 = vunpack.c.h.b16 %v2217
    %v3110 = vunpack.c.l.b16 %v2218
    %v3111 = vunpack.c.l.b16 %v2219
    %v3112 = vunpack.c.h.b16 %v2219
    %v3113 = vunpack.c.l.b16 %v2220
    %v3114 = vunpack.c.h.b16 %v2220
    %v3115 = vunpack.c.l.b16 %v2221
    %v3116 = vunpack.c.l.b16 %v2222
    %v3117 = vunpack.c.h.b16 %v2222
    %v3118 = vunpack.c.l.b16 %v2223
    %v3119 = vunpack.c.h.b16 %v2223
    %v3120 = vunpack.c.l.b16 %v2224
    %v3121 = vpack.c.b16 %v2806, %v2801
    %v3122 = vpack.c.b16 %v2807, %v2802
    %v3123 = vpack.c.b16 %v2808, %v2803
    %v3124 = vpack.c.b16 %v2809, %v2804
    %v3125 = vpack.c.b16 %v2810, %v2805
    %v3126 = vpack.c.b16 %v2816, %v2811
    %v3127 = vpack.c.b16 %v2817, %v2812
    %v3128 = vpack.c.b16 %v2818, %v2813
    %v3129 = vpack.c.b16 %v2819, %v2814
    %v3130 = vpack.c.b16 %v2820, %v2815
    %v3131 = vpack.c.b16 %v2826, %v2821
    %v3132 = vpack.c.b16 %v2827, %v2822
    %v3133 = vpack.c.b16 %v2828, %v2823
    %v3134 = vpack.c.b16 %v2829, %v2824
    %v3135 = vpack.c.b16 %v2830, %v2825
    %v3136 = vpack.c.b16 %v2836, %v2831
    %v3137 = vpack.c.b16 %v2837, %v2832
    %v3138 = vpack.c.b16 %v2838, %v2833
    %v3139 = vpack.c.b16 %v2839, %v2834
    %v3140 = vpack.c.b16 %v2840, %v2835
    %v3141 = vpack.c.b16 %v2846, %v2841
    %v3142 = vpack.c.b16 %v2847, %v2842
    %v3143 = vpack.c.b16 %v2848, %v2843
    %v3144 = vpack.c.b16 %v2849, %v2844
    %v3145 = vpack.c.b16 %v2850, %v2845
    %v3146 = vpack.c.b16 %v2856, %v2851
    %v3147 = vpack.c.b16 %v2857, %v2852
    %v3148 = vpack.c.b16 %v2858, %v2853
    %v3149 = vpack.c.b16 %v2859, %v2854
    %v3150 = vpack.c.b16 %v2860, %v2855
    %v3151 = vpack.c.b16 %v2866, %v2861
    %v3152 = vpack.c.b16 %v2867, %v2862
    %v3153 = vpack.c.b16 %v2868, %v2863
    %v3154 = vpack.c.b16 %v2869, %v2864
    %v3155 = vpack.c.b16 %v2870, %v2865
    %v3156 = vpack.c.b16 %v2876, %v2871
    %v3157 = vpack.c.b16 %v2877, %v2872
    %v3158 = vpack.c.b16 %v2878, %v2873
    %v3159 = vpack.c.b16 %v2879, %v2874
    %v3160 = vpack.c.b16 %v2880, %v2875
    %v3161 = vpack.c.b16 %v2886, %v2881
    %v3162 = vpack.c.b16 %v2887, %v2882
    %v3163 = vpack.c.b16 %v2888, %v2883
    %v3164 = vpack.c.b16 %v2889, %v2884
    %v3165 = vpack.c.b16 %v2890, %v2885
    %v3166 = vpack.c.b16 %v2896, %v2891
    %v3167 = vpack.c.b16 %v2897, %v2892
    %v3168 = vpack.c.b16 %v2898, %v2893
    %v3169 = vpack.c.b16 %v2899, %v2894
    %v3170 = vpack.c.b16 %v2900, %v2895
    %v3171 = vpack.c.b16 %v2906, %v2901
    %v3172 = vpack.c.b16 %v2907, %v2902
    %v3173 = vpack.c.b16 %v2908, %v2903
    %v3174 = vpack.c.b16 %v2909, %v2904
    %v3175 = vpack.c.b16 %v2910, %v2905
    %v3176 = vpack.c.b16 %v2916, %v2911
    %v3177 = vpack.c.b16 %v2917, %v2912
    %v3178 = vpack.c.b16 %v2918, %v2913
    %v3179 = vpack.c.b16 %v2919, %v2914
    %v3180 = vpack.c.b16 %v2920, %v2915
    %v3181 = vpack.c.b16 %v2926, %v2921
    %v3182 = vpack.c.b16 %v2927, %v2922
    %v3183 = vpack.c.b16 %v2928, %v2923
    %v3184 = vpack.c.b16 %v2929, %v2924
    %v3185 = vpack.c.b16 %v2930, %v2925
    %v3186 = vpack.c.b16 %v2936, %v2931
    %v3187 = vpack.c.b16 %v2937, %v2932
    %v3188 = vpack.c.b16 %v2938, %v2933
    %v3189 = vpack.c.b16 %v2939, %v2934
    %v3190 = vpack.c.b16 %v2940, %v2935
    %v3191 = vpack.c.b16 %v2946, %v2941
    %v3192 = vpack.c.b16 %v2947, %v2942
    %v3193 = vpack.c.b16 %v2948, %v2943
    %v3194 = vpack.c.b16 %v2949, %v2944
    %v3195 = vpack.c.b16 %v2950, %v2945
    %v3196 = vpack.c.b16 %v2956, %v2951
    %v3197 = vpack.c.b16 %v2957, %v2952
    %v3198 = vpack.c.b16 %v2958, %v2953
    %v3199 = vpack.c.b16 %v2959, %v2954
    %v3200 = vpack.c.b16 %v2960, %v2955
    %v3201 = vpack.c.b16 %v2966, %v2961
    %v3202 = vpack.c.b16 %v2967, %v2962
    %v3203 = vpack.c.b16 %v2968, %v2963
    %v3204 = vpack.c.b16 %v2969, %v2964
    %v3205 = vpack.c.b16 %v2970, %v2965
    %v3206 = vpack.c.b16 %v2976, %v2971
    %v3207 = vpack.c.b16 %v2977, %v2972
    %v3208 = vpack.c.b16 %v2978, %v2973
    %v3209 = vpack.c.b16 %v2979, %v2974
    %v3210 = vpack.c.b16 %v2980, %v2975
    %v3211 = vpack.c.b16 %v2986, %v2981
    %v3212 = vpack.c.b16 %v2987, %v2982
    %v3213 = vpack.c.b16 %v2988, %v2983
    %v3214 = vpack.c.b16 %v2989, %v2984
    %v3215 = vpack.c.b16 %v2990, %v2985
    %v3216 = vpack.c.b16 %v2996, %v2991
    %v3217 = vpack.c.b16 %v2997, %v2992
    %v3218 = vpack.c.b16 %v2998, %v2993
    %v3219 = vpack.c.b16 %v2999, %v2994
    %v3220 = vpack.c.b16 %v3000, %v2995
    %v3221 = vpack.c.b16 %v3006, %v3001
    %v3222 = vpack.c.b16 %v3007, %v3002
    %v3223 = vpack.c.b16 %v3008, %v3003
    %v3224 = vpack.c.b16 %v3009, %v3004
    %v3225 = vpack.c.b16 %v3010, %v3005
    %v3226 = vpack.c.b16 %v3016, %v3011
    %v3227 = vpack.c.b16 %v3017, %v3012
    %v3228 = vpack.c.b16 %v3018, %v3013
    %v3229 = vpack.c.b16 %v3019, %v3014
    %v3230 = vpack.c.b16 %v3020, %v3015
    %v3231 = vpack.c.b16 %v3026, %v3021
    %v3232 = vpack.c.b16 %v3027, %v3022
    %v3233 = vpack.c.b16 %v3028, %v3023
    %v3234 = vpack.c.b16 %v3029, %v3024
    %v3235 = vpack.c.b16 %v3030, %v3025
    %v3236 = vpack.c.b16 %v3036, %v3031
    %v3237 = vpack.c.b16 %v3037, %v3032
    %v3238 = vpack.c.b16 %v3038, %v3033
    %v3239 = vpack.c.b16 %v3039, %v3034
    %v3240 = vpack.c.b16 %v3040, %v3035
    %v3241 = vpack.c.b16 %v3046, %v3041
    %v3242 = vpack.c.b16 %v3047, %v3042
    %v3243 = vpack.c.b16 %v3048, %v3043
    %v3244 = vpack.c.b16 %v3049, %v3044
    %v3245 = vpack.c.b16 %v3050, %v3045
    %v3246 = vpack.c.b16 %v3056, %v3051
    %v3247 = vpack.c.b16 %v3057, %v3052
    %v3248 = vpack.c.b16 %v3058, %v3053
    %v3249 = vpack.c.b16 %v3059, %v3054
    %v3250 = vpack.c.b16 %v3060, %v3055
    %v3251 = vpack.c.b16 %v3066, %v3061
    %v3252 = vpack.c.b16 %v3067, %v3062
    %v3253 = vpack.c.b16 %v3068, %v3063
    %v3254 = vpack.c.b16 %v3069, %v3064
    %v3255 = vpack.c.b16 %v3070, %v3065
    %v3256 = vpack.c.b16 %v3076, %v3071
    %v3257 = vpack.c.b16 %v3077, %v3072
    %v3258 = vpack.c.b16 %v3078, %v3073
    %v3259 = vpack.c.b16 %v3079, %v3074
    %v3260 = vpack.c.b16 %v3080, %v3075
    %v3261 = vpack.c.b16 %v3086, %v3081
    %v3262 = vpack.c.b16 %v3087, %v3082
    %v3263 = vpack.c.b16 %v3088, %v3083
    %v3264 = vpack.c.b16 %v3089, %v3084
    %v3265 = vpack.c.b16 %v3090, %v3085
    %v3266 = vpack.c.b16 %v3096, %v3091
    %v3267 = vpack.c.b16 %v3097, %v3092
    %v3268 = vpack.c.b16 %v3098, %v3093
    %v3269 = vpack.c.b16 %v3099, %v3094
    %v3270 = vpack.c.b16 %v3100, %v3095
    %v3271 = vpack.c.b16 %v3106, %v3101
    %v3272 = vpack.c.b16 %v3107, %v3102
    %v3273 = vpack.c.b16 %v3108, %v3103
    %v3274 = vpack.c.b16 %v3109, %v3104
    %v3275 = vpack.c.b16 %v3110, %v3105
    %v3276 = vpack.c.b16 %v3116, %v3111
    %v3277 = vpack.c.b16 %v3117, %v3112
    %v3278 = vpack.c.b16 %v3118, %v3113
    %v3279 = vpack.c.b16 %v3119, %v3114
    %v3280 = vpack.c.b16 %v3120, %v3115
    %vm3409 = vcmask 523264
    %v3411 = vsel %vm3409, %v3125, 0
    %v3414 = vsel %vm3409, %v3130, 0
    %v3417 = vsel %vm3409, %v3135, 0
    %v3420 = vsel %vm3409, %v3140, 0
    %v3423 = vsel %vm3409, %v3145, 0
    %v3426 = vsel %vm3409, %v3150, 0
    %v3429 = vsel %vm3409, %v3155, 0
    %v3432 = vsel %vm3409, %v3160, 0
    %v3435 = vsel %vm3409, %v3165, 0
    %v3438 = vsel %vm3409, %v3170, 0
    %v3441 = vsel %vm3409, %v3175, 0
    %v3444 = vsel %vm3409, %v3180, 0
    %v3447 = vsel %vm3409, %v3185, 0
    %v3450 = vsel %vm3409, %v3190, 0
    %v3453 = vsel %vm3409, %v3195, 0
    %v3456 = vsel %vm3409, %v3200, 0
    %v3459 = vsel %vm3409, %v3205, 0
    %v3462 = vsel %vm3409, %v3210, 0
    %v3465 = vsel %vm3409, %v3215, 0
    %v3468 = vsel %vm3409, %v3220, 0
    %v3471 = vsel %vm3409, %v3225, 0
    %v3474 = vsel %vm3409, %v3230, 0
    %v3477 = vsel %vm3409, %v3235, 0
    %v3480 = vsel %vm3409, %v3240, 0
    %v3483 = vsel %vm3409, %v3245, 0
    %v3486 = vsel %vm3409, %v3250, 0
    %v3489 = vsel %vm3409, %v3255, 0
    %v3492 = vsel %vm3409, %v3260, 0
    %v3495 = vsel %vm3409, %v3265, 0
    %v3498 = vsel %vm3409, %v3270, 0
    %v3501 = vsel %vm3409, %v3275, 0
    %v3504 = vsel %vm3409, %v3280, 0
    %3506 = vmatprep.subr.bf16.mxu0 %v1962
    %3507 = vmatpush1.bf16.msra.mxu0 %v1961
    %3508 = vmatprep.subr.bf16.mxu0 %v1964
    %3509 = vmatpush1.bf16.msra.mxu0 %v1963
    %3510 = vmatprep.subr.bf16.mxu0 %v1966
    %3511 = vmatpush1.bf16.msra.mxu0 %v1965
    %3512 = vmatprep.subr.bf16.mxu0 %v1968
    %3513 = vmatpush1.bf16.msra.mxu0 %v1967
    %3514 = vmatprep.subr.bf16.mxu0 %v1970
    %3515 = vmatpush1.bf16.msra.mxu0 %v1969
    %3516 = vmatprep.subr.bf16.mxu0 %v1972
    %3517 = vmatpush1.bf16.msra.mxu0 %v1971
    %3518 = vmatprep.subr.bf16.mxu0 %v1974
    %3519 = vmatpush1.bf16.msra.mxu0 %v1973
    %3520 = vmatprep.subr.bf16.mxu0 %v1976
    %3521 = vmatpush1.bf16.msra.mxu0 %v1975
    %3522 = vmatprep.subr.bf16.mxu0 %v1978
    %3523 = vmatpush1.bf16.msra.mxu0 %v1977
    %3524 = vmatprep.subr.bf16.mxu0 %v1980
    %3525 = vmatpush1.bf16.msra.mxu0 %v1979
    %3526 = vmatprep.subr.bf16.mxu0 %v1982
    %3527 = vmatpush1.bf16.msra.mxu0 %v1981
    %3528 = vmatprep.subr.bf16.mxu0 %v1984
    %3529 = vmatpush1.bf16.msra.mxu0 %v1983
    %3530 = vmatprep.subr.bf16.mxu0 %v1986
    %3531 = vmatpush1.bf16.msra.mxu0 %v1985
    %3532 = vmatprep.subr.bf16.mxu0 %v1988
    %3533 = vmatpush1.bf16.msra.mxu0 %v1987
    %3534 = vmatprep.subr.bf16.mxu0 %v1990
    %3535 = vmatpush1.bf16.msra.mxu0 %v1989
    %3536 = vmatprep.subr.bf16.mxu0 %v1992
    %3537 = vmatpush1.bf16.msra.mxu0 %v1991
    %3538 = vmatprep.mubr.bf16.mxu0 %v3122
    %3539 = vmatmul.mubr.bf16.gmra.mrb[0].mxu0 %v3121
    %v3540 = vpop.f32.mrb[0].mxu0
    %v3541 = vadd.f32 %v2292, %v3540
    %v3542 = vpop.f32.mrb[0].mxu0
    %v3543 = vadd.f32 %v2292, %v3542
    %v3544 = vpop.f32.mrb[0].mxu0
    %v3545 = vadd.f32 %v2297, %v3544
    %v3546 = vpop.f32.mrb[0].mxu0
    %v3547 = vadd.f32 %v2297, %v3546
    %3548 = vmatprep.mubr.bf16.mxu0 %v3127
    %3549 = vmatmul.mubr.bf16.gmra.mrb[0].mxu0 %v3126
    %v3550 = vpop.f32.mrb[0].mxu0
    %v3551 = vadd.f32 %v2302, %v3550
    %v3552 = vpop.f32.mrb[0].mxu0
    %v3553 = vadd.f32 %v2302, %v3552
    %v3554 = vpop.f32.mrb[0].mxu0
    %v3555 = vadd.f32 %v2307, %v3554
    %v3556 = vpop.f32.mrb[0].mxu0
    %v3557 = vadd.f32 %v2307, %v3556
    %3558 = vmatprep.mubr.bf16.mxu0 %v3132
    %3559 = vmatmul.mubr.bf16.gmra.mrb[0].mxu0 %v3131
    %v3560 = vpop.f32.mrb[0].mxu0
    %v3561 = vadd.f32 %v2312, %v3560
    %v3562 = vpop.f32.mrb[0].mxu0
    %v3563 = vadd.f32 %v2312, %v3562
    %v3564 = vpop.f32.mrb[0].mxu0
    %v3565 = vadd.f32 %v2317, %v3564
    %v3566 = vpop.f32.mrb[0].mxu0
    %v3567 = vadd.f32 %v2317, %v3566
    %3568 = vmatprep.mubr.bf16.mxu0 %v3137
    %3569 = vmatmul.mubr.bf16.gmra.mrb[0].mxu0 %v3136
    %v3570 = vpop.f32.mrb[0].mxu0
    %v3571 = vadd.f32 %v2322, %v3570
    %v3572 = vpop.f32.mrb[0].mxu0
    %v3573 = vadd.f32 %v2322, %v3572
    %v3574 = vpop.f32.mrb[0].mxu0
    %v3575 = vadd.f32 %v2327, %v3574
    %v3576 = vpop.f32.mrb[0].mxu0
    %v3577 = vadd.f32 %v2327, %v3576
    %3578 = vmatprep.mubr.bf16.mxu0 %v3142
    %3579 = vmatmul.mubr.bf16.gmra.mrb[0].mxu0 %v3141
    %v3580 = vpop.f32.mrb[0].mxu0
    %v3581 = vadd.f32 %v2332, %v3580
    %v3582 = vpop.f32.mrb[0].mxu0
    %v3583 = vadd.f32 %v2332, %v3582
    %v3584 = vpop.f32.mrb[0].mxu0
    %v3585 = vadd.f32 %v2337, %v3584
    %v3586 = vpop.f32.mrb[0].mxu0
    %v3587 = vadd.f32 %v2337, %v3586
    %3588 = vmatprep.mubr.bf16.mxu0 %v3147
    %3589 = vmatmul.mubr.bf16.gmra.mrb[0].mxu0 %v3146
    %v3590 = vpop.f32.mrb[0].mxu0
    %v3591 = vadd.f32 %v2342, %v3590
    %v3592 = vpop.f32.mrb[0].mxu0
    %v3593 = vadd.f32 %v2342, %v3592
    %v3594 = vpop.f32.mrb[0].mxu0
    %v3595 = vadd.f32 %v2347, %v3594
    %v3596 = vpop.f32.mrb[0].mxu0
    %v3597 = vadd.f32 %v2347, %v3596
    %3598 = vmatprep.mubr.bf16.mxu0 %v3152
    %3599 = vmatmul.mubr.bf16.gmra.mrb[0].mxu0 %v3151
    %v3600 = vpop.f32.mrb[0].mxu0
    %v3601 = vadd.f32 %v2352, %v3600
    %v3602 = vpop.f32.mrb[0].mxu0
    %v3603 = vadd.f32 %v2352, %v3602
    %v3604 = vpop.f32.mrb[0].mxu0
    %v3605 = vadd.f32 %v2357, %v3604
    %v3606 = vpop.f32.mrb[0].mxu0
    %v3607 = vadd.f32 %v2357, %v3606
    %3608 = vmatprep.mubr.bf16.mxu0 %v3157
    %3609 = vmatmul.mubr.bf16.gmra.mrb[0].mxu0 %v3156
    %v3610 = vpop.f32.mrb[0].mxu0
    %v3611 = vadd.f32 %v2362, %v3610
    %v3612 = vpop.f32.mrb[0].mxu0
    %v3613 = vadd.f32 %v2362, %v3612
    %v3614 = vpop.f32.mrb[0].mxu0
    %v3615 = vadd.f32 %v2367, %v3614
    %v3616 = vpop.f32.mrb[0].mxu0
    %v3617 = vadd.f32 %v2367, %v3616
    %3618 = vmatprep.mubr.bf16.mxu0 %v3162
    %3619 = vmatmul.mubr.bf16.gmra.mrb[0].mxu0 %v3161
    %v3620 = vpop.f32.mrb[0].mxu0
    %v3621 = vadd.f32 %v2372, %v3620
    %v3622 = vpop.f32.mrb[0].mxu0
    %v3623 = vadd.f32 %v2372, %v3622
    %v3624 = vpop.f32.mrb[0].mxu0
    %v3625 = vadd.f32 %v2377, %v3624
    %v3626 = vpop.f32.mrb[0].mxu0
    %v3627 = vadd.f32 %v2377, %v3626
    %3628 = vmatprep.mubr.bf16.mxu0 %v3167
    %3629 = vmatmul.mubr.bf16.gmra.mrb[0].mxu0 %v3166
    %v3630 = vpop.f32.mrb[0].mxu0
    %v3631 = vadd.f32 %v2382, %v3630
    %v3632 = vpop.f32.mrb[0].mxu0
    %v3633 = vadd.f32 %v2382, %v3632
    %v3634 = vpop.f32.mrb[0].mxu0
    %v3635 = vadd.f32 %v2387, %v3634
    %v3636 = vpop.f32.mrb[0].mxu0
    %v3637 = vadd.f32 %v2387, %v3636
    %3638 = vmatprep.mubr.bf16.mxu0 %v3172
    %3639 = vmatmul.mubr.bf16.gmra.mrb[0].mxu0 %v3171
    %v3640 = vpop.f32.mrb[0].mxu0
    %v3641 = vadd.f32 %v2392, %v3640
    %v3642 = vpop.f32.mrb[0].mxu0
    %v3643 = vadd.f32 %v2392, %v3642
    %v3644 = vpop.f32.mrb[0].mxu0
    %v3645 = vadd.f32 %v2397, %v3644
    %v3646 = vpop.f32.mrb[0].mxu0
    %v3647 = vadd.f32 %v2397, %v3646
    %3648 = vmatprep.mubr.bf16.mxu0 %v3177
    %3649 = vmatmul.mubr.bf16.gmra.mrb[0].mxu0 %v3176
    %v3650 = vpop.f32.mrb[0].mxu0
    %v3651 = vadd.f32 %v2402, %v3650
    %v3652 = vpop.f32.mrb[0].mxu0
    %v3653 = vadd.f32 %v2402, %v3652
    %v3654 = vpop.f32.mrb[0].mxu0
    %v3655 = vadd.f32 %v2407, %v3654
    %v3656 = vpop.f32.mrb[0].mxu0
    %v3657 = vadd.f32 %v2407, %v3656
    %3658 = vmatprep.mubr.bf16.mxu0 %v3182
    %3659 = vmatmul.mubr.bf16.gmra.mrb[0].mxu0 %v3181
    %v3660 = vpop.f32.mrb[0].mxu0
    %v3661 = vadd.f32 %v2412, %v3660
    %v3662 = vpop.f32.mrb[0].mxu0
    %v3663 = vadd.f32 %v2412, %v3662
    %v3664 = vpop.f32.mrb[0].mxu0
    %v3665 = vadd.f32 %v2417, %v3664
    %v3666 = vpop.f32.mrb[0].mxu0
    %v3667 = vadd.f32 %v2417, %v3666
    %3668 = vmatprep.mubr.bf16.mxu0 %v3187
    %3669 = vmatmul.mubr.bf16.gmra.mrb[0].mxu0 %v3186
    %v3670 = vpop.f32.mrb[0].mxu0
    %v3671 = vadd.f32 %v2422, %v3670
    %v3672 = vpop.f32.mrb[0].mxu0
    %v3673 = vadd.f32 %v2422, %v3672
    %v3674 = vpop.f32.mrb[0].mxu0
    %v3675 = vadd.f32 %v2427, %v3674
    %v3676 = vpop.f32.mrb[0].mxu0
    %v3677 = vadd.f32 %v2427, %v3676
    %3678 = vmatprep.mubr.bf16.mxu0 %v3192
    %3679 = vmatmul.mubr.bf16.gmra.mrb[0].mxu0 %v3191
    %v3680 = vpop.f32.mrb[0].mxu0
    %v3681 = vadd.f32 %v2432, %v3680
    %v3682 = vpop.f32.mrb[0].mxu0
    %v3683 = vadd.f32 %v2432, %v3682
    %v3684 = vpop.f32.mrb[0].mxu0
    %v3685 = vadd.f32 %v2437, %v3684
    %v3686 = vpop.f32.mrb[0].mxu0
    %v3687 = vadd.f32 %v2437, %v3686
    %3688 = vmatprep.mubr.bf16.mxu0 %v3197
    %3689 = vmatmul.mubr.bf16.gmra.mrb[0].mxu0 %v3196
    %v3690 = vpop.f32.mrb[0].mxu0
    %v3691 = vadd.f32 %v2442, %v3690
    %v3692 = vpop.f32.mrb[0].mxu0
    %v3693 = vadd.f32 %v2442, %v3692
    %v3694 = vpop.f32.mrb[0].mxu0
    %v3695 = vadd.f32 %v2447, %v3694
    %v3696 = vpop.f32.mrb[0].mxu0
    %v3697 = vadd.f32 %v2447, %v3696
    %3698 = vmatprep.mubr.bf16.mxu0 %v3202
    %3699 = vmatmul.mubr.bf16.gmra.mrb[0].mxu0 %v3201
    %v3700 = vpop.f32.mrb[0].mxu0
    %v3701 = vadd.f32 %v2452, %v3700
    %v3702 = vpop.f32.mrb[0].mxu0
    %v3703 = vadd.f32 %v2452, %v3702
    %v3704 = vpop.f32.mrb[0].mxu0
    %v3705 = vadd.f32 %v2457, %v3704
    %v3706 = vpop.f32.mrb[0].mxu0
    %v3707 = vadd.f32 %v2457, %v3706
    %3708 = vmatprep.mubr.bf16.mxu0 %v3207
    %3709 = vmatmul.mubr.bf16.gmra.mrb[0].mxu0 %v3206
    %v3710 = vpop.f32.mrb[0].mxu0
    %v3711 = vadd.f32 %v2462, %v3710
    %v3712 = vpop.f32.mrb[0].mxu0
    %v3713 = vadd.f32 %v2462, %v3712
    %v3714 = vpop.f32.mrb[0].mxu0
    %v3715 = vadd.f32 %v2467, %v3714
    %v3716 = vpop.f32.mrb[0].mxu0
    %v3717 = vadd.f32 %v2467, %v3716
    %3718 = vmatprep.mubr.bf16.mxu0 %v3212
    %3719 = vmatmul.mubr.bf16.gmra.mrb[0].mxu0 %v3211
    %v3720 = vpop.f32.mrb[0].mxu0
    %v3721 = vadd.f32 %v2472, %v3720
    %v3722 = vpop.f32.mrb[0].mxu0
    %v3723 = vadd.f32 %v2472, %v3722
    %v3724 = vpop.f32.mrb[0].mxu0
    %v3725 = vadd.f32 %v2477, %v3724
    %v3726 = vpop.f32.mrb[0].mxu0
    %v3727 = vadd.f32 %v2477, %v3726
    %3728 = vmatprep.mubr.bf16.mxu0 %v3217
    %3729 = vmatmul.mubr.bf16.gmra.mrb[0].mxu0 %v3216
    %v3730 = vpop.f32.mrb[0].mxu0
    %v3731 = vadd.f32 %v2482, %v3730
    %v3732 = vpop.f32.mrb[0].mxu0
    %v3733 = vadd.f32 %v2482, %v3732
    %v3734 = vpop.f32.mrb[0].mxu0
    %v3735 = vadd.f32 %v2487, %v3734
    %v3736 = vpop.f32.mrb[0].mxu0
    %v3737 = vadd.f32 %v2487, %v3736
    %3738 = vmatprep.mubr.bf16.mxu0 %v3222
    %3739 = vmatmul.mubr.bf16.gmra.mrb[0].mxu0 %v3221
    %v3740 = vpop.f32.mrb[0].mxu0
    %v3741 = vadd.f32 %v2492, %v3740
    %v3742 = vpop.f32.mrb[0].mxu0
    %v3743 = vadd.f32 %v2492, %v3742
    %v3744 = vpop.f32.mrb[0].mxu0
    %v3745 = vadd.f32 %v2497, %v3744
    %v3746 = vpop.f32.mrb[0].mxu0
    %v3747 = vadd.f32 %v2497, %v3746
    %3748 = vmatprep.mubr.bf16.mxu0 %v3227
    %3749 = vmatmul.mubr.bf16.gmra.mrb[0].mxu0 %v3226
    %v3750 = vpop.f32.mrb[0].mxu0
    %v3751 = vadd.f32 %v2502, %v3750
    %v3752 = vpop.f32.mrb[0].mxu0
    %v3753 = vadd.f32 %v2502, %v3752
    %v3754 = vpop.f32.mrb[0].mxu0
    %v3755 = vadd.f32 %v2507, %v3754
    %v3756 = vpop.f32.mrb[0].mxu0
    %v3757 = vadd.f32 %v2507, %v3756
    %3758 = vmatprep.mubr.bf16.mxu0 %v3232
    %3759 = vmatmul.mubr.bf16.gmra.mrb[0].mxu0 %v3231
    %v3760 = vpop.f32.mrb[0].mxu0
    %v3761 = vadd.f32 %v2512, %v3760
    %v3762 = vpop.f32.mrb[0].mxu0
    %v3763 = vadd.f32 %v2512, %v3762
    %v3764 = vpop.f32.mrb[0].mxu0
    %v3765 = vadd.f32 %v2517, %v3764
    %v3766 = vpop.f32.mrb[0].mxu0
    %v3767 = vadd.f32 %v2517, %v3766
    %3768 = vmatprep.mubr.bf16.mxu0 %v3237
    %3769 = vmatmul.mubr.bf16.gmra.mrb[0].mxu0 %v3236
    %v3770 = vpop.f32.mrb[0].mxu0
    %v3771 = vadd.f32 %v2522, %v3770
    %v3772 = vpop.f32.mrb[0].mxu0
    %v3773 = vadd.f32 %v2522, %v3772
    %v3774 = vpop.f32.mrb[0].mxu0
    %v3775 = vadd.f32 %v2527, %v3774
    %v3776 = vpop.f32.mrb[0].mxu0
    %v3777 = vadd.f32 %v2527, %v3776
    %3778 = vmatprep.mubr.bf16.mxu0 %v3242
    %3779 = vmatmul.mubr.bf16.gmra.mrb[0].mxu0 %v3241
    %v3780 = vpop.f32.mrb[0].mxu0
    %v3781 = vadd.f32 %v2532, %v3780
    %v3782 = vpop.f32.mrb[0].mxu0
    %v3783 = vadd.f32 %v2532, %v3782
    %v3784 = vpop.f32.mrb[0].mxu0
    %v3785 = vadd.f32 %v2537, %v3784
    %v3786 = vpop.f32.mrb[0].mxu0
    %v3787 = vadd.f32 %v2537, %v3786
    %3788 = vmatprep.mubr.bf16.mxu0 %v3247
    %3789 = vmatmul.mubr.bf16.gmra.mrb[0].mxu0 %v3246
    %v3790 = vpop.f32.mrb[0].mxu0
    %v3791 = vadd.f32 %v2542, %v3790
    %v3792 = vpop.f32.mrb[0].mxu0
    %v3793 = vadd.f32 %v2542, %v3792
    %v3794 = vpop.f32.mrb[0].mxu0
    %v3795 = vadd.f32 %v2547, %v3794
    %v3796 = vpop.f32.mrb[0].mxu0
    %v3797 = vadd.f32 %v2547, %v3796
    %3798 = vmatprep.mubr.bf16.mxu0 %v3252
    %3799 = vmatmul.mubr.bf16.gmra.mrb[0].mxu0 %v3251
    %v3800 = vpop.f32.mrb[0].mxu0
    %v3801 = vadd.f32 %v2552, %v3800
    %v3802 = vpop.f32.mrb[0].mxu0
    %v3803 = vadd.f32 %v2552, %v3802
    %v3804 = vpop.f32.mrb[0].mxu0
    %v3805 = vadd.f32 %v2557, %v3804
    %v3806 = vpop.f32.mrb[0].mxu0
    %v3807 = vadd.f32 %v2557, %v3806
    %3808 = vmatprep.mubr.bf16.mxu0 %v3257
    %3809 = vmatmul.mubr.bf16.gmra.mrb[0].mxu0 %v3256
    %v3810 = vpop.f32.mrb[0].mxu0
    %v3811 = vadd.f32 %v2562, %v3810
    %v3812 = vpop.f32.mrb[0].mxu0
    %v3813 = vadd.f32 %v2562, %v3812
    %v3814 = vpop.f32.mrb[0].mxu0
    %v3815 = vadd.f32 %v2567, %v3814
    %v3816 = vpop.f32.mrb[0].mxu0
    %v3817 = vadd.f32 %v2567, %v3816
    %3818 = vmatprep.mubr.bf16.mxu0 %v3262
    %3819 = vmatmul.mubr.bf16.gmra.mrb[0].mxu0 %v3261
    %v3820 = vpop.f32.mrb[0].mxu0
    %v3821 = vadd.f32 %v2572, %v3820
    %v3822 = vpop.f32.mrb[0].mxu0
    %v3823 = vadd.f32 %v2572, %v3822
    %v3824 = vpop.f32.mrb[0].mxu0
    %v3825 = vadd.f32 %v2577, %v3824
    %v3826 = vpop.f32.mrb[0].mxu0
    %v3827 = vadd.f32 %v2577, %v3826
    %3828 = vmatprep.mubr.bf16.mxu0 %v3267
    %3829 = vmatmul.mubr.bf16.gmra.mrb[0].mxu0 %v3266
    %v3830 = vpop.f32.mrb[0].mxu0
    %v3831 = vadd.f32 %v2582, %v3830
    %v3832 = vpop.f32.mrb[0].mxu0
    %v3833 = vadd.f32 %v2582, %v3832
    %v3834 = vpop.f32.mrb[0].mxu0
    %v3835 = vadd.f32 %v2587, %v3834
    %v3836 = vpop.f32.mrb[0].mxu0
    %v3837 = vadd.f32 %v2587, %v3836
    %3838 = vmatprep.mubr.bf16.mxu0 %v3272
    %3839 = vmatmul.mubr.bf16.gmra.mrb[0].mxu0 %v3271
    %v3840 = vpop.f32.mrb[0].mxu0
    %v3841 = vadd.f32 %v2592, %v3840
    %v3842 = vpop.f32.mrb[0].mxu0
    %v3843 = vadd.f32 %v2592, %v3842
    %v3844 = vpop.f32.mrb[0].mxu0
    %v3845 = vadd.f32 %v2597, %v3844
    %v3846 = vpop.f32.mrb[0].mxu0
    %v3847 = vadd.f32 %v2597, %v3846
    %3848 = vmatprep.mubr.bf16.mxu0 %v3277
    %3849 = vmatmul.mubr.bf16.gmra.mrb[0].mxu0 %v3276
    %v3850 = vpop.f32.mrb[0].mxu0
    %v3851 = vadd.f32 %v2602, %v3850
    %v3852 = vpop.f32.mrb[0].mxu0
    %v3853 = vadd.f32 %v2602, %v3852
    %v3854 = vpop.f32.mrb[0].mxu0
    %v3855 = vadd.f32 %v2607, %v3854
    %v3856 = vpop.f32.mrb[0].mxu0
    %v3857 = vadd.f32 %v2607, %v3856
    %3858 = vdwg.mxu0
    %3859 = vmatprep.subr.bf16.mxu0 %v1994
    %3860 = vmatpush1.bf16.msra.mxu0 %v1993
    %3861 = vmatprep.subr.bf16.mxu0 %v1996
    %3862 = vmatpush1.bf16.msra.mxu0 %v1995
    %3863 = vmatprep.subr.bf16.mxu0 %v1998
    %3864 = vmatpush1.bf16.msra.mxu0 %v1997
    %3865 = vmatprep.subr.bf16.mxu0 %v2000
    %3866 = vmatpush1.bf16.msra.mxu0 %v1999
    %3867 = vmatprep.subr.bf16.mxu0 %v2002
    %3868 = vmatpush1.bf16.msra.mxu0 %v2001
    %3869 = vmatprep.subr.bf16.mxu0 %v2004
    %3870 = vmatpush1.bf16.msra.mxu0 %v2003
    %3871 = vmatprep.subr.bf16.mxu0 %v2006
    %3872 = vmatpush1.bf16.msra.mxu0 %v2005
    %3873 = vmatprep.subr.bf16.mxu0 %v2008
    %3874 = vmatpush1.bf16.msra.mxu0 %v2007
    %3875 = vmatprep.subr.bf16.mxu0 %v2010
    %3876 = vmatpush1.bf16.msra.mxu0 %v2009
    %3877 = vmatprep.subr.bf16.mxu0 %v2012
    %3878 = vmatpush1.bf16.msra.mxu0 %v2011
    %3879 = vmatprep.subr.bf16.mxu0 %v2014
    %3880 = vmatpush1.bf16.msra.mxu0 %v2013
    %3881 = vmatprep.subr.bf16.mxu0 %v2016
    %3882 = vmatpush1.bf16.msra.mxu0 %v2015
    %3883 = vmatprep.subr.bf16.mxu0 %v2018
    %3884 = vmatpush1.bf16.msra.mxu0 %v2017
    %3885 = vmatprep.subr.bf16.mxu0 %v2020
    %3886 = vmatpush1.bf16.msra.mxu0 %v2019
    %3887 = vmatprep.subr.bf16.mxu0 %v2022
    %3888 = vmatpush1.bf16.msra.mxu0 %v2021
    %3889 = vmatprep.subr.bf16.mxu0 %v2024
    %3890 = vmatpush1.bf16.msra.mxu0 %v2023
    %3891 = vmatprep.mubr.bf16.mxu0 %v3124
    %3892 = vmatmul.mubr.bf16.gmra.mrb[0].mxu0 %v3123
    %v3893 = vpop.f32.mrb[0].mxu0
    %v3894 = vadd.f32 %v3541, %v3893
    %v3895 = vpop.f32.mrb[0].mxu0
    %v3896 = vadd.f32 %v3543, %v3895
    %v3897 = vpop.f32.mrb[0].mxu0
    %v3898 = vadd.f32 %v3545, %v3897
    %v3899 = vpop.f32.mrb[0].mxu0
    %v3900 = vadd.f32 %v3547, %v3899
    %3901 = vmatprep.mubr.bf16.mxu0 %v3129
    %3902 = vmatmul.mubr.bf16.gmra.mrb[0].mxu0 %v3128
    %v3903 = vpop.f32.mrb[0].mxu0
    %v3904 = vadd.f32 %v3551, %v3903
    %v3905 = vpop.f32.mrb[0].mxu0
    %v3906 = vadd.f32 %v3553, %v3905
    %v3907 = vpop.f32.mrb[0].mxu0
    %v3908 = vadd.f32 %v3555, %v3907
    %v3909 = vpop.f32.mrb[0].mxu0
    %v3910 = vadd.f32 %v3557, %v3909
    %3911 = vmatprep.mubr.bf16.mxu0 %v3134
    %3912 = vmatmul.mubr.bf16.gmra.mrb[0].mxu0 %v3133
    %v3913 = vpop.f32.mrb[0].mxu0
    %v3914 = vadd.f32 %v3561, %v3913
    %v3915 = vpop.f32.mrb[0].mxu0
    %v3916 = vadd.f32 %v3563, %v3915
    %v3917 = vpop.f32.mrb[0].mxu0
    %v3918 = vadd.f32 %v3565, %v3917
    %v3919 = vpop.f32.mrb[0].mxu0
    %v3920 = vadd.f32 %v3567, %v3919
    %3921 = vmatprep.mubr.bf16.mxu0 %v3139
    %3922 = vmatmul.mubr.bf16.gmra.mrb[0].mxu0 %v3138
    %v3923 = vpop.f32.mrb[0].mxu0
    %v3924 = vadd.f32 %v3571, %v3923
    %v3925 = vpop.f32.mrb[0].mxu0
    %v3926 = vadd.f32 %v3573, %v3925
    %v3927 = vpop.f32.mrb[0].mxu0
    %v3928 = vadd.f32 %v3575, %v3927
    %v3929 = vpop.f32.mrb[0].mxu0
    %v3930 = vadd.f32 %v3577, %v3929
    %3931 = vmatprep.mubr.bf16.mxu0 %v3144
    %3932 = vmatmul.mubr.bf16.gmra.mrb[0].mxu0 %v3143
    %v3933 = vpop.f32.mrb[0].mxu0
    %v3934 = vadd.f32 %v3581, %v3933
    %v3935 = vpop.f32.mrb[0].mxu0
    %v3936 = vadd.f32 %v3583, %v3935
    %v3937 = vpop.f32.mrb[0].mxu0
    %v3938 = vadd.f32 %v3585, %v3937
    %v3939 = vpop.f32.mrb[0].mxu0
    %v3940 = vadd.f32 %v3587, %v3939
    %3941 = vmatprep.mubr.bf16.mxu0 %v3149
    %3942 = vmatmul.mubr.bf16.gmra.mrb[0].mxu0 %v3148
    %v3943 = vpop.f32.mrb[0].mxu0
    %v3944 = vadd.f32 %v3591, %v3943
    %v3945 = vpop.f32.mrb[0].mxu0
    %v3946 = vadd.f32 %v3593, %v3945
    %v3947 = vpop.f32.mrb[0].mxu0
    %v3948 = vadd.f32 %v3595, %v3947
    %v3949 = vpop.f32.mrb[0].mxu0
    %v3950 = vadd.f32 %v3597, %v3949
    %3951 = vmatprep.mubr.bf16.mxu0 %v3154
    %3952 = vmatmul.mubr.bf16.gmra.mrb[0].mxu0 %v3153
    %v3953 = vpop.f32.mrb[0].mxu0
    %v3954 = vadd.f32 %v3601, %v3953
    %v3955 = vpop.f32.mrb[0].mxu0
    %v3956 = vadd.f32 %v3603, %v3955
    %v3957 = vpop.f32.mrb[0].mxu0
    %v3958 = vadd.f32 %v3605, %v3957
    %v3959 = vpop.f32.mrb[0].mxu0
    %v3960 = vadd.f32 %v3607, %v3959
    %3961 = vmatprep.mubr.bf16.mxu0 %v3159
    %3962 = vmatmul.mubr.bf16.gmra.mrb[0].mxu0 %v3158
    %v3963 = vpop.f32.mrb[0].mxu0
    %v3964 = vadd.f32 %v3611, %v3963
    %v3965 = vpop.f32.mrb[0].mxu0
    %v3966 = vadd.f32 %v3613, %v3965
    %v3967 = vpop.f32.mrb[0].mxu0
    %v3968 = vadd.f32 %v3615, %v3967
    %v3969 = vpop.f32.mrb[0].mxu0
    %v3970 = vadd.f32 %v3617, %v3969
    %3971 = vmatprep.mubr.bf16.mxu0 %v3164
    %3972 = vmatmul.mubr.bf16.gmra.mrb[0].mxu0 %v3163
    %v3973 = vpop.f32.mrb[0].mxu0
    %v3974 = vadd.f32 %v3621, %v3973
    %v3975 = vpop.f32.mrb[0].mxu0
    %v3976 = vadd.f32 %v3623, %v3975
    %v3977 = vpop.f32.mrb[0].mxu0
    %v3978 = vadd.f32 %v3625, %v3977
    %v3979 = vpop.f32.mrb[0].mxu0
    %v3980 = vadd.f32 %v3627, %v3979
    %3981 = vmatprep.mubr.bf16.mxu0 %v3169
    %3982 = vmatmul.mubr.bf16.gmra.mrb[0].mxu0 %v3168
    %v3983 = vpop.f32.mrb[0].mxu0
    %v3984 = vadd.f32 %v3631, %v3983
    %v3985 = vpop.f32.mrb[0].mxu0
    %v3986 = vadd.f32 %v3633, %v3985
    %v3987 = vpop.f32.mrb[0].mxu0
    %v3988 = vadd.f32 %v3635, %v3987
    %v3989 = vpop.f32.mrb[0].mxu0
    %v3990 = vadd.f32 %v3637, %v3989
    %3991 = vmatprep.mubr.bf16.mxu0 %v3174
    %3992 = vmatmul.mubr.bf16.gmra.mrb[0].mxu0 %v3173
    %v3993 = vpop.f32.mrb[0].mxu0
    %v3994 = vadd.f32 %v3641, %v3993
    %v3995 = vpop.f32.mrb[0].mxu0
    %v3996 = vadd.f32 %v3643, %v3995
    %v3997 = vpop.f32.mrb[0].mxu0
    %v3998 = vadd.f32 %v3645, %v3997
    %v3999 = vpop.f32.mrb[0].mxu0
    %v4000 = vadd.f32 %v3647, %v3999
    %4001 = vmatprep.mubr.bf16.mxu0 %v3179
    %4002 = vmatmul.mubr.bf16.gmra.mrb[0].mxu0 %v3178
    %v4003 = vpop.f32.mrb[0].mxu0
    %v4004 = vadd.f32 %v3651, %v4003
    %v4005 = vpop.f32.mrb[0].mxu0
    %v4006 = vadd.f32 %v3653, %v4005
    %v4007 = vpop.f32.mrb[0].mxu0
    %v4008 = vadd.f32 %v3655, %v4007
    %v4009 = vpop.f32.mrb[0].mxu0
    %v4010 = vadd.f32 %v3657, %v4009
    %4011 = vmatprep.mubr.bf16.mxu0 %v3184
    %4012 = vmatmul.mubr.bf16.gmra.mrb[0].mxu0 %v3183
    %v4013 = vpop.f32.mrb[0].mxu0
    %v4014 = vadd.f32 %v3661, %v4013
    %v4015 = vpop.f32.mrb[0].mxu0
    %v4016 = vadd.f32 %v3663, %v4015
    %v4017 = vpop.f32.mrb[0].mxu0
    %v4018 = vadd.f32 %v3665, %v4017
    %v4019 = vpop.f32.mrb[0].mxu0
    %v4020 = vadd.f32 %v3667, %v4019
    %4021 = vmatprep.mubr.bf16.mxu0 %v3189
    %4022 = vmatmul.mubr.bf16.gmra.mrb[0].mxu0 %v3188
    %v4023 = vpop.f32.mrb[0].mxu0
    %v4024 = vadd.f32 %v3671, %v4023
    %v4025 = vpop.f32.mrb[0].mxu0
    %v4026 = vadd.f32 %v3673, %v4025
    %v4027 = vpop.f32.mrb[0].mxu0
    %v4028 = vadd.f32 %v3675, %v4027
    %v4029 = vpop.f32.mrb[0].mxu0
    %v4030 = vadd.f32 %v3677, %v4029
    %4031 = vmatprep.mubr.bf16.mxu0 %v3194
    %4032 = vmatmul.mubr.bf16.gmra.mrb[0].mxu0 %v3193
    %v4033 = vpop.f32.mrb[0].mxu0
    %v4034 = vadd.f32 %v3681, %v4033
    %v4035 = vpop.f32.mrb[0].mxu0
    %v4036 = vadd.f32 %v3683, %v4035
    %v4037 = vpop.f32.mrb[0].mxu0
    %v4038 = vadd.f32 %v3685, %v4037
    %v4039 = vpop.f32.mrb[0].mxu0
    %v4040 = vadd.f32 %v3687, %v4039
    %4041 = vmatprep.mubr.bf16.mxu0 %v3199
    %4042 = vmatmul.mubr.bf16.gmra.mrb[0].mxu0 %v3198
    %v4043 = vpop.f32.mrb[0].mxu0
    %v4044 = vadd.f32 %v3691, %v4043
    %v4045 = vpop.f32.mrb[0].mxu0
    %v4046 = vadd.f32 %v3693, %v4045
    %v4047 = vpop.f32.mrb[0].mxu0
    %v4048 = vadd.f32 %v3695, %v4047
    %v4049 = vpop.f32.mrb[0].mxu0
    %v4050 = vadd.f32 %v3697, %v4049
    %4051 = vmatprep.mubr.bf16.mxu0 %v3204
    %4052 = vmatmul.mubr.bf16.gmra.mrb[0].mxu0 %v3203
    %v4053 = vpop.f32.mrb[0].mxu0
    %v4054 = vadd.f32 %v3701, %v4053
    %v4055 = vpop.f32.mrb[0].mxu0
    %v4056 = vadd.f32 %v3703, %v4055
    %v4057 = vpop.f32.mrb[0].mxu0
    %v4058 = vadd.f32 %v3705, %v4057
    %v4059 = vpop.f32.mrb[0].mxu0
    %v4060 = vadd.f32 %v3707, %v4059
    %4061 = vmatprep.mubr.bf16.mxu0 %v3209
    %4062 = vmatmul.mubr.bf16.gmra.mrb[0].mxu0 %v3208
    %v4063 = vpop.f32.mrb[0].mxu0
    %v4064 = vadd.f32 %v3711, %v4063
    %v4065 = vpop.f32.mrb[0].mxu0
    %v4066 = vadd.f32 %v3713, %v4065
    %v4067 = vpop.f32.mrb[0].mxu0
    %v4068 = vadd.f32 %v3715, %v4067
    %v4069 = vpop.f32.mrb[0].mxu0
    %v4070 = vadd.f32 %v3717, %v4069
    %4071 = vmatprep.mubr.bf16.mxu0 %v3214
    %4072 = vmatmul.mubr.bf16.gmra.mrb[0].mxu0 %v3213
    %v4073 = vpop.f32.mrb[0].mxu0
    %v4074 = vadd.f32 %v3721, %v4073
    %v4075 = vpop.f32.mrb[0].mxu0
    %v4076 = vadd.f32 %v3723, %v4075
    %v4077 = vpop.f32.mrb[0].mxu0
    %v4078 = vadd.f32 %v3725, %v4077
    %v4079 = vpop.f32.mrb[0].mxu0
    %v4080 = vadd.f32 %v3727, %v4079
    %4081 = vmatprep.mubr.bf16.mxu0 %v3219
    %4082 = vmatmul.mubr.bf16.gmra.mrb[0].mxu0 %v3218
    %v4083 = vpop.f32.mrb[0].mxu0
    %v4084 = vadd.f32 %v3731, %v4083
    %v4085 = vpop.f32.mrb[0].mxu0
    %v4086 = vadd.f32 %v3733, %v4085
    %v4087 = vpop.f32.mrb[0].mxu0
    %v4088 = vadd.f32 %v3735, %v4087
    %v4089 = vpop.f32.mrb[0].mxu0
    %v4090 = vadd.f32 %v3737, %v4089
    %4091 = vmatprep.mubr.bf16.mxu0 %v3224
    %4092 = vmatmul.mubr.bf16.gmra.mrb[0].mxu0 %v3223
    %v4093 = vpop.f32.mrb[0].mxu0
    %v4094 = vadd.f32 %v3741, %v4093
    %v4095 = vpop.f32.mrb[0].mxu0
    %v4096 = vadd.f32 %v3743, %v4095
    %v4097 = vpop.f32.mrb[0].mxu0
    %v4098 = vadd.f32 %v3745, %v4097
    %v4099 = vpop.f32.mrb[0].mxu0
    %v4100 = vadd.f32 %v3747, %v4099
    %4101 = vmatprep.mubr.bf16.mxu0 %v3229
    %4102 = vmatmul.mubr.bf16.gmra.mrb[0].mxu0 %v3228
    %v4103 = vpop.f32.mrb[0].mxu0
    %v4104 = vadd.f32 %v3751, %v4103
    %v4105 = vpop.f32.mrb[0].mxu0
    %v4106 = vadd.f32 %v3753, %v4105
    %v4107 = vpop.f32.mrb[0].mxu0
    %v4108 = vadd.f32 %v3755, %v4107
    %v4109 = vpop.f32.mrb[0].mxu0
    %v4110 = vadd.f32 %v3757, %v4109
    %4111 = vmatprep.mubr.bf16.mxu0 %v3234
    %4112 = vmatmul.mubr.bf16.gmra.mrb[0].mxu0 %v3233
    %v4113 = vpop.f32.mrb[0].mxu0
    %v4114 = vadd.f32 %v3761, %v4113
    %v4115 = vpop.f32.mrb[0].mxu0
    %v4116 = vadd.f32 %v3763, %v4115
    %v4117 = vpop.f32.mrb[0].mxu0
    %v4118 = vadd.f32 %v3765, %v4117
    %v4119 = vpop.f32.mrb[0].mxu0
    %v4120 = vadd.f32 %v3767, %v4119
    %4121 = vmatprep.mubr.bf16.mxu0 %v3239
    %4122 = vmatmul.mubr.bf16.gmra.mrb[0].mxu0 %v3238
    %v4123 = vpop.f32.mrb[0].mxu0
    %v4124 = vadd.f32 %v3771, %v4123
    %v4125 = vpop.f32.mrb[0].mxu0
    %v4126 = vadd.f32 %v3773, %v4125
    %v4127 = vpop.f32.mrb[0].mxu0
    %v4128 = vadd.f32 %v3775, %v4127
    %v4129 = vpop.f32.mrb[0].mxu0
    %v4130 = vadd.f32 %v3777, %v4129
    %4131 = vmatprep.mubr.bf16.mxu0 %v3244
    %4132 = vmatmul.mubr.bf16.gmra.mrb[0].mxu0 %v3243
    %v4133 = vpop.f32.mrb[0].mxu0
    %v4134 = vadd.f32 %v3781, %v4133
    %v4135 = vpop.f32.mrb[0].mxu0
    %v4136 = vadd.f32 %v3783, %v4135
    %v4137 = vpop.f32.mrb[0].mxu0
    %v4138 = vadd.f32 %v3785, %v4137
    %v4139 = vpop.f32.mrb[0].mxu0
    %v4140 = vadd.f32 %v3787, %v4139
    %4141 = vmatprep.mubr.bf16.mxu0 %v3249
    %4142 = vmatmul.mubr.bf16.gmra.mrb[0].mxu0 %v3248
    %v4143 = vpop.f32.mrb[0].mxu0
    %v4144 = vadd.f32 %v3791, %v4143
    %v4145 = vpop.f32.mrb[0].mxu0
    %v4146 = vadd.f32 %v3793, %v4145
    %v4147 = vpop.f32.mrb[0].mxu0
    %v4148 = vadd.f32 %v3795, %v4147
    %v4149 = vpop.f32.mrb[0].mxu0
    %v4150 = vadd.f32 %v3797, %v4149
    %4151 = vmatprep.mubr.bf16.mxu0 %v3254
    %4152 = vmatmul.mubr.bf16.gmra.mrb[0].mxu0 %v3253
    %v4153 = vpop.f32.mrb[0].mxu0
    %v4154 = vadd.f32 %v3801, %v4153
    %v4155 = vpop.f32.mrb[0].mxu0
    %v4156 = vadd.f32 %v3803, %v4155
    %v4157 = vpop.f32.mrb[0].mxu0
    %v4158 = vadd.f32 %v3805, %v4157
    %v4159 = vpop.f32.mrb[0].mxu0
    %v4160 = vadd.f32 %v3807, %v4159
    %4161 = vmatprep.mubr.bf16.mxu0 %v3259
    %4162 = vmatmul.mubr.bf16.gmra.mrb[0].mxu0 %v3258
    %v4163 = vpop.f32.mrb[0].mxu0
    %v4164 = vadd.f32 %v3811, %v4163
    %v4165 = vpop.f32.mrb[0].mxu0
    %v4166 = vadd.f32 %v3813, %v4165
    %v4167 = vpop.f32.mrb[0].mxu0
    %v4168 = vadd.f32 %v3815, %v4167
    %v4169 = vpop.f32.mrb[0].mxu0
    %v4170 = vadd.f32 %v3817, %v4169
    %4171 = vmatprep.mubr.bf16.mxu0 %v3264
    %4172 = vmatmul.mubr.bf16.gmra.mrb[0].mxu0 %v3263
    %v4173 = vpop.f32.mrb[0].mxu0
    %v4174 = vadd.f32 %v3821, %v4173
    %v4175 = vpop.f32.mrb[0].mxu0
    %v4176 = vadd.f32 %v3823, %v4175
    %v4177 = vpop.f32.mrb[0].mxu0
    %v4178 = vadd.f32 %v3825, %v4177
    %v4179 = vpop.f32.mrb[0].mxu0
    %v4180 = vadd.f32 %v3827, %v4179
    %4181 = vmatprep.mubr.bf16.mxu0 %v3269
    %4182 = vmatmul.mubr.bf16.gmra.mrb[0].mxu0 %v3268
    %v4183 = vpop.f32.mrb[0].mxu0
    %v4184 = vadd.f32 %v3831, %v4183
    %v4185 = vpop.f32.mrb[0].mxu0
    %v4186 = vadd.f32 %v3833, %v4185
    %v4187 = vpop.f32.mrb[0].mxu0
    %v4188 = vadd.f32 %v3835, %v4187
    %v4189 = vpop.f32.mrb[0].mxu0
    %v4190 = vadd.f32 %v3837, %v4189
    %4191 = vmatprep.mubr.bf16.mxu0 %v3274
    %4192 = vmatmul.mubr.bf16.gmra.mrb[0].mxu0 %v3273
    %v4193 = vpop.f32.mrb[0].mxu0
    %v4194 = vadd.f32 %v3841, %v4193
    %v4195 = vpop.f32.mrb[0].mxu0
    %v4196 = vadd.f32 %v3843, %v4195
    %v4197 = vpop.f32.mrb[0].mxu0
    %v4198 = vadd.f32 %v3845, %v4197
    %v4199 = vpop.f32.mrb[0].mxu0
    %v4200 = vadd.f32 %v3847, %v4199
    %4201 = vmatprep.mubr.bf16.mxu0 %v3279
    %4202 = vmatmul.mubr.bf16.gmra.mrb[0].mxu0 %v3278
    %v4203 = vpop.f32.mrb[0].mxu0
    %v4204 = vadd.f32 %v3851, %v4203
    %v4205 = vpop.f32.mrb[0].mxu0
    %v4206 = vadd.f32 %v3853, %v4205
    %v4207 = vpop.f32.mrb[0].mxu0
    %v4208 = vadd.f32 %v3855, %v4207
    %v4209 = vpop.f32.mrb[0].mxu0
    %v4210 = vadd.f32 %v3857, %v4209
    %4211 = vdwg.mxu0
    %4212 = vmatprep.subr.bf16.mxu0 %v2026
    %4213 = vmatpush1.bf16.msra.mxu0 %v2025
    %4214 = vmatprep.subr.bf16.mxu0 %v2028
    %4215 = vmatpush1.bf16.msra.mxu0 %v2027
    %4216 = vmatprep.subr.bf16.mxu0 %v2030
    %4217 = vmatpush1.bf16.msra.mxu0 %v2029
    %4218 = vmatprep.subr.bf16.mxu0 %v2032
    %4219 = vmatpush1.bf16.msra.mxu0 %v2031
    %4220 = vmatprep.subr.bf16.mxu0 0
    %4221 = vmatpush1.bf16.msra.mxu0 0
    %4222 = vmatprep.subr.bf16.mxu0 0
    %4223 = vmatpush1.bf16.msra.mxu0 0
    %4224 = vmatprep.subr.bf16.mxu0 0
    %4225 = vmatpush1.bf16.msra.mxu0 0
    %4226 = vmatprep.subr.bf16.mxu0 0
    %4227 = vmatpush1.bf16.msra.mxu0 0
    %4228 = vmatprep.subr.bf16.mxu0 0
    %4229 = vmatpush1.bf16.msra.mxu0 0
    %4230 = vmatprep.subr.bf16.mxu0 0
    %4231 = vmatpush1.bf16.msra.mxu0 0
    %4232 = vmatprep.subr.bf16.mxu0 0
    %4233 = vmatpush1.bf16.msra.mxu0 0
    %4234 = vmatprep.subr.bf16.mxu0 0
    %4235 = vmatpush1.bf16.msra.mxu0 0
    %4236 = vmatprep.subr.bf16.mxu0 0
    %4237 = vmatpush1.bf16.msra.mxu0 0
    %4238 = vmatprep.subr.bf16.mxu0 0
    %4239 = vmatpush1.bf16.msra.mxu0 0
    %4240 = vmatprep.subr.bf16.mxu0 0
    %4241 = vmatpush1.bf16.msra.mxu0 0
    %4242 = vmatprep.subr.bf16.mxu0 0
    %4243 = vmatpush1.bf16.msra.mxu0 0
    %4244 = vmatprep.mubr.bf16.mxu0 0
    %4245 = vmatmul.mubr.bf16.gmra.mrb[0].mxu0 %v3411
    %v4246 = vpop.f32.mrb[0].mxu0
    %v4247 = vadd.f32 %v3894, %v4246
    %v4248 = vpop.f32.mrb[0].mxu0
    %v4249 = vadd.f32 %v3896, %v4248
    %v4250 = vpop.f32.mrb[0].mxu0
    %v4251 = vadd.f32 %v3898, %v4250
    %v4252 = vpop.f32.mrb[0].mxu0
    %v4253 = vadd.f32 %v3900, %v4252
    %4254 = vmatprep.mubr.bf16.mxu0 0
    %4255 = vmatmul.mubr.bf16.gmra.mrb[0].mxu0 %v3414
    %v4256 = vpop.f32.mrb[0].mxu0
    %v4257 = vadd.f32 %v3904, %v4256
    %v4258 = vpop.f32.mrb[0].mxu0
    %v4259 = vadd.f32 %v3906, %v4258
    %v4260 = vpop.f32.mrb[0].mxu0
    %v4261 = vadd.f32 %v3908, %v4260
    %v4262 = vpop.f32.mrb[0].mxu0
    %v4263 = vadd.f32 %v3910, %v4262
    %4264 = vmatprep.mubr.bf16.mxu0 0
    %4265 = vmatmul.mubr.bf16.gmra.mrb[0].mxu0 %v3417
    %v4266 = vpop.f32.mrb[0].mxu0
    %v4267 = vadd.f32 %v3914, %v4266
    %v4268 = vpop.f32.mrb[0].mxu0
    %v4269 = vadd.f32 %v3916, %v4268
    %v4270 = vpop.f32.mrb[0].mxu0
    %v4271 = vadd.f32 %v3918, %v4270
    %v4272 = vpop.f32.mrb[0].mxu0
    %v4273 = vadd.f32 %v3920, %v4272
    %4274 = vmatprep.mubr.bf16.mxu0 0
    %4275 = vmatmul.mubr.bf16.gmra.mrb[0].mxu0 %v3420
    %v4276 = vpop.f32.mrb[0].mxu0
    %v4277 = vadd.f32 %v3924, %v4276
    %v4278 = vpop.f32.mrb[0].mxu0
    %v4279 = vadd.f32 %v3926, %v4278
    %v4280 = vpop.f32.mrb[0].mxu0
    %v4281 = vadd.f32 %v3928, %v4280
    %v4282 = vpop.f32.mrb[0].mxu0
    %v4283 = vadd.f32 %v3930, %v4282
    %4284 = vmatprep.mubr.bf16.mxu0 0
    %4285 = vmatmul.mubr.bf16.gmra.mrb[0].mxu0 %v3423
    %v4286 = vpop.f32.mrb[0].mxu0
    %v4287 = vadd.f32 %v3934, %v4286
    %v4288 = vpop.f32.mrb[0].mxu0
    %v4289 = vadd.f32 %v3936, %v4288
    %v4290 = vpop.f32.mrb[0].mxu0
    %v4291 = vadd.f32 %v3938, %v4290
    %v4292 = vpop.f32.mrb[0].mxu0
    %v4293 = vadd.f32 %v3940, %v4292
    %4294 = vmatprep.mubr.bf16.mxu0 0
    %4295 = vmatmul.mubr.bf16.gmra.mrb[0].mxu0 %v3426
    %v4296 = vpop.f32.mrb[0].mxu0
    %v4297 = vadd.f32 %v3944, %v4296
    %v4298 = vpop.f32.mrb[0].mxu0
    %v4299 = vadd.f32 %v3946, %v4298
    %v4300 = vpop.f32.mrb[0].mxu0
    %v4301 = vadd.f32 %v3948, %v4300
    %v4302 = vpop.f32.mrb[0].mxu0
    %v4303 = vadd.f32 %v3950, %v4302
    %4304 = vmatprep.mubr.bf16.mxu0 0
    %4305 = vmatmul.mubr.bf16.gmra.mrb[0].mxu0 %v3429
    %v4306 = vpop.f32.mrb[0].mxu0
    %v4307 = vadd.f32 %v3954, %v4306
    %v4308 = vpop.f32.mrb[0].mxu0
    %v4309 = vadd.f32 %v3956, %v4308
    %v4310 = vpop.f32.mrb[0].mxu0
    %v4311 = vadd.f32 %v3958, %v4310
    %v4312 = vpop.f32.mrb[0].mxu0
    %v4313 = vadd.f32 %v3960, %v4312
    %4314 = vmatprep.mubr.bf16.mxu0 0
    %4315 = vmatmul.mubr.bf16.gmra.mrb[0].mxu0 %v3432
    %v4316 = vpop.f32.mrb[0].mxu0
    %v4317 = vadd.f32 %v3964, %v4316
    %v4318 = vpop.f32.mrb[0].mxu0
    %v4319 = vadd.f32 %v3966, %v4318
    %v4320 = vpop.f32.mrb[0].mxu0
    %v4321 = vadd.f32 %v3968, %v4320
    %v4322 = vpop.f32.mrb[0].mxu0
    %v4323 = vadd.f32 %v3970, %v4322
    %4324 = vmatprep.mubr.bf16.mxu0 0
    %4325 = vmatmul.mubr.bf16.gmra.mrb[0].mxu0 %v3435
    %v4326 = vpop.f32.mrb[0].mxu0
    %v4327 = vadd.f32 %v3974, %v4326
    %v4328 = vpop.f32.mrb[0].mxu0
    %v4329 = vadd.f32 %v3976, %v4328
    %v4330 = vpop.f32.mrb[0].mxu0
    %v4331 = vadd.f32 %v3978, %v4330
    %v4332 = vpop.f32.mrb[0].mxu0
    %v4333 = vadd.f32 %v3980, %v4332
    %4334 = vmatprep.mubr.bf16.mxu0 0
    %4335 = vmatmul.mubr.bf16.gmra.mrb[0].mxu0 %v3438
    %v4336 = vpop.f32.mrb[0].mxu0
    %v4337 = vadd.f32 %v3984, %v4336
    %v4338 = vpop.f32.mrb[0].mxu0
    %v4339 = vadd.f32 %v3986, %v4338
    %v4340 = vpop.f32.mrb[0].mxu0
    %v4341 = vadd.f32 %v3988, %v4340
    %v4342 = vpop.f32.mrb[0].mxu0
    %v4343 = vadd.f32 %v3990, %v4342
    %4344 = vmatprep.mubr.bf16.mxu0 0
    %4345 = vmatmul.mubr.bf16.gmra.mrb[0].mxu0 %v3441
    %v4346 = vpop.f32.mrb[0].mxu0
    %v4347 = vadd.f32 %v3994, %v4346
    %v4348 = vpop.f32.mrb[0].mxu0
    %v4349 = vadd.f32 %v3996, %v4348
    %v4350 = vpop.f32.mrb[0].mxu0
    %v4351 = vadd.f32 %v3998, %v4350
    %v4352 = vpop.f32.mrb[0].mxu0
    %v4353 = vadd.f32 %v4000, %v4352
    %4354 = vmatprep.mubr.bf16.mxu0 0
    %4355 = vmatmul.mubr.bf16.gmra.mrb[0].mxu0 %v3444
    %v4356 = vpop.f32.mrb[0].mxu0
    %v4357 = vadd.f32 %v4004, %v4356
    %v4358 = vpop.f32.mrb[0].mxu0
    %v4359 = vadd.f32 %v4006, %v4358
    %v4360 = vpop.f32.mrb[0].mxu0
    %v4361 = vadd.f32 %v4008, %v4360
    %v4362 = vpop.f32.mrb[0].mxu0
    %v4363 = vadd.f32 %v4010, %v4362
    %4364 = vmatprep.mubr.bf16.mxu0 0
    %4365 = vmatmul.mubr.bf16.gmra.mrb[0].mxu0 %v3447
    %v4366 = vpop.f32.mrb[0].mxu0
    %v4367 = vadd.f32 %v4014, %v4366
    %v4368 = vpop.f32.mrb[0].mxu0
    %v4369 = vadd.f32 %v4016, %v4368
    %v4370 = vpop.f32.mrb[0].mxu0
    %v4371 = vadd.f32 %v4018, %v4370
    %v4372 = vpop.f32.mrb[0].mxu0
    %v4373 = vadd.f32 %v4020, %v4372
    %4374 = vmatprep.mubr.bf16.mxu0 0
    %4375 = vmatmul.mubr.bf16.gmra.mrb[0].mxu0 %v3450
    %v4376 = vpop.f32.mrb[0].mxu0
    %v4377 = vadd.f32 %v4024, %v4376
    %v4378 = vpop.f32.mrb[0].mxu0
    %v4379 = vadd.f32 %v4026, %v4378
    %v4380 = vpop.f32.mrb[0].mxu0
    %v4381 = vadd.f32 %v4028, %v4380
    %v4382 = vpop.f32.mrb[0].mxu0
    %v4383 = vadd.f32 %v4030, %v4382
    %4384 = vmatprep.mubr.bf16.mxu0 0
    %4385 = vmatmul.mubr.bf16.gmra.mrb[0].mxu0 %v3453
    %v4386 = vpop.f32.mrb[0].mxu0
    %v4387 = vadd.f32 %v4034, %v4386
    %v4388 = vpop.f32.mrb[0].mxu0
    %v4389 = vadd.f32 %v4036, %v4388
    %v4390 = vpop.f32.mrb[0].mxu0
    %v4391 = vadd.f32 %v4038, %v4390
    %v4392 = vpop.f32.mrb[0].mxu0
    %v4393 = vadd.f32 %v4040, %v4392
    %4394 = vmatprep.mubr.bf16.mxu0 0
    %4395 = vmatmul.mubr.bf16.gmra.mrb[0].mxu0 %v3456
    %v4396 = vpop.f32.mrb[0].mxu0
    %v4397 = vadd.f32 %v4044, %v4396
    %v4398 = vpop.f32.mrb[0].mxu0
    %v4399 = vadd.f32 %v4046, %v4398
    %v4400 = vpop.f32.mrb[0].mxu0
    %v4401 = vadd.f32 %v4048, %v4400
    %v4402 = vpop.f32.mrb[0].mxu0
    %v4403 = vadd.f32 %v4050, %v4402
    %4404 = vmatprep.mubr.bf16.mxu0 0
    %4405 = vmatmul.mubr.bf16.gmra.mrb[0].mxu0 %v3459
    %v4406 = vpop.f32.mrb[0].mxu0
    %v4407 = vadd.f32 %v4054, %v4406
    %v4408 = vpop.f32.mrb[0].mxu0
    %v4409 = vadd.f32 %v4056, %v4408
    %v4410 = vpop.f32.mrb[0].mxu0
    %v4411 = vadd.f32 %v4058, %v4410
    %v4412 = vpop.f32.mrb[0].mxu0
    %v4413 = vadd.f32 %v4060, %v4412
    %4414 = vmatprep.mubr.bf16.mxu0 0
    %4415 = vmatmul.mubr.bf16.gmra.mrb[0].mxu0 %v3462
    %v4416 = vpop.f32.mrb[0].mxu0
    %v4417 = vadd.f32 %v4064, %v4416
    %v4418 = vpop.f32.mrb[0].mxu0
    %v4419 = vadd.f32 %v4066, %v4418
    %v4420 = vpop.f32.mrb[0].mxu0
    %v4421 = vadd.f32 %v4068, %v4420
    %v4422 = vpop.f32.mrb[0].mxu0
    %v4423 = vadd.f32 %v4070, %v4422
    %4424 = vmatprep.mubr.bf16.mxu0 0
    %4425 = vmatmul.mubr.bf16.gmra.mrb[0].mxu0 %v3465
    %v4426 = vpop.f32.mrb[0].mxu0
    %v4427 = vadd.f32 %v4074, %v4426
    %v4428 = vpop.f32.mrb[0].mxu0
    %v4429 = vadd.f32 %v4076, %v4428
    %v4430 = vpop.f32.mrb[0].mxu0
    %v4431 = vadd.f32 %v4078, %v4430
    %v4432 = vpop.f32.mrb[0].mxu0
    %v4433 = vadd.f32 %v4080, %v4432
    %4434 = vmatprep.mubr.bf16.mxu0 0
    %4435 = vmatmul.mubr.bf16.gmra.mrb[0].mxu0 %v3468
    %v4436 = vpop.f32.mrb[0].mxu0
    %v4437 = vadd.f32 %v4084, %v4436
    %v4438 = vpop.f32.mrb[0].mxu0
    %v4439 = vadd.f32 %v4086, %v4438
    %v4440 = vpop.f32.mrb[0].mxu0
    %v4441 = vadd.f32 %v4088, %v4440
    %v4442 = vpop.f32.mrb[0].mxu0
    %v4443 = vadd.f32 %v4090, %v4442
    %4444 = vmatprep.mubr.bf16.mxu0 0
    %4445 = vmatmul.mubr.bf16.gmra.mrb[0].mxu0 %v3471
    %v4446 = vpop.f32.mrb[0].mxu0
    %v4447 = vadd.f32 %v4094, %v4446
    %v4448 = vpop.f32.mrb[0].mxu0
    %v4449 = vadd.f32 %v4096, %v4448
    %v4450 = vpop.f32.mrb[0].mxu0
    %v4451 = vadd.f32 %v4098, %v4450
    %v4452 = vpop.f32.mrb[0].mxu0
    %v4453 = vadd.f32 %v4100, %v4452
    %4454 = vmatprep.mubr.bf16.mxu0 0
    %4455 = vmatmul.mubr.bf16.gmra.mrb[0].mxu0 %v3474
    %v4456 = vpop.f32.mrb[0].mxu0
    %v4457 = vadd.f32 %v4104, %v4456
    %v4458 = vpop.f32.mrb[0].mxu0
    %v4459 = vadd.f32 %v4106, %v4458
    %v4460 = vpop.f32.mrb[0].mxu0
    %v4461 = vadd.f32 %v4108, %v4460
    %v4462 = vpop.f32.mrb[0].mxu0
    %v4463 = vadd.f32 %v4110, %v4462
    %4464 = vmatprep.mubr.bf16.mxu0 0
    %4465 = vmatmul.mubr.bf16.gmra.mrb[0].mxu0 %v3477
    %v4466 = vpop.f32.mrb[0].mxu0
    %v4467 = vadd.f32 %v4114, %v4466
    %v4468 = vpop.f32.mrb[0].mxu0
    %v4469 = vadd.f32 %v4116, %v4468
    %v4470 = vpop.f32.mrb[0].mxu0
    %v4471 = vadd.f32 %v4118, %v4470
    %v4472 = vpop.f32.mrb[0].mxu0
    %v4473 = vadd.f32 %v4120, %v4472
    %4474 = vmatprep.mubr.bf16.mxu0 0
    %4475 = vmatmul.mubr.bf16.gmra.mrb[0].mxu0 %v3480
    %v4476 = vpop.f32.mrb[0].mxu0
    %v4477 = vadd.f32 %v4124, %v4476
    %v4478 = vpop.f32.mrb[0].mxu0
    %v4479 = vadd.f32 %v4126, %v4478
    %v4480 = vpop.f32.mrb[0].mxu0
    %v4481 = vadd.f32 %v4128, %v4480
    %v4482 = vpop.f32.mrb[0].mxu0
    %v4483 = vadd.f32 %v4130, %v4482
    %4484 = vmatprep.mubr.bf16.mxu0 0
    %4485 = vmatmul.mubr.bf16.gmra.mrb[0].mxu0 %v3483
    %v4486 = vpop.f32.mrb[0].mxu0
    %v4487 = vadd.f32 %v4134, %v4486
    %v4488 = vpop.f32.mrb[0].mxu0
    %v4489 = vadd.f32 %v4136, %v4488
    %v4490 = vpop.f32.mrb[0].mxu0
    %v4491 = vadd.f32 %v4138, %v4490
    %v4492 = vpop.f32.mrb[0].mxu0
    %v4493 = vadd.f32 %v4140, %v4492
    %4494 = vmatprep.mubr.bf16.mxu0 0
    %4495 = vmatmul.mubr.bf16.gmra.mrb[0].mxu0 %v3486
    %v4496 = vpop.f32.mrb[0].mxu0
    %v4497 = vadd.f32 %v4144, %v4496
    %v4498 = vpop.f32.mrb[0].mxu0
    %v4499 = vadd.f32 %v4146, %v4498
    %v4500 = vpop.f32.mrb[0].mxu0
    %v4501 = vadd.f32 %v4148, %v4500
    %v4502 = vpop.f32.mrb[0].mxu0
    %v4503 = vadd.f32 %v4150, %v4502
    %4504 = vmatprep.mubr.bf16.mxu0 0
    %4505 = vmatmul.mubr.bf16.gmra.mrb[0].mxu0 %v3489
    %v4506 = vpop.f32.mrb[0].mxu0
    %v4507 = vadd.f32 %v4154, %v4506
    %v4508 = vpop.f32.mrb[0].mxu0
    %v4509 = vadd.f32 %v4156, %v4508
    %v4510 = vpop.f32.mrb[0].mxu0
    %v4511 = vadd.f32 %v4158, %v4510
    %v4512 = vpop.f32.mrb[0].mxu0
    %v4513 = vadd.f32 %v4160, %v4512
    %4514 = vmatprep.mubr.bf16.mxu0 0
    %4515 = vmatmul.mubr.bf16.gmra.mrb[0].mxu0 %v3492
    %v4516 = vpop.f32.mrb[0].mxu0
    %v4517 = vadd.f32 %v4164, %v4516
    %v4518 = vpop.f32.mrb[0].mxu0
    %v4519 = vadd.f32 %v4166, %v4518
    %v4520 = vpop.f32.mrb[0].mxu0
    %v4521 = vadd.f32 %v4168, %v4520
    %v4522 = vpop.f32.mrb[0].mxu0
    %v4523 = vadd.f32 %v4170, %v4522
    %4524 = vmatprep.mubr.bf16.mxu0 0
    %4525 = vmatmul.mubr.bf16.gmra.mrb[0].mxu0 %v3495
    %v4526 = vpop.f32.mrb[0].mxu0
    %v4527 = vadd.f32 %v4174, %v4526
    %v4528 = vpop.f32.mrb[0].mxu0
    %v4529 = vadd.f32 %v4176, %v4528
    %v4530 = vpop.f32.mrb[0].mxu0
    %v4531 = vadd.f32 %v4178, %v4530
    %v4532 = vpop.f32.mrb[0].mxu0
    %v4533 = vadd.f32 %v4180, %v4532
    %4534 = vmatprep.mubr.bf16.mxu0 0
    %4535 = vmatmul.mubr.bf16.gmra.mrb[0].mxu0 %v3498
    %v4536 = vpop.f32.mrb[0].mxu0
    %v4537 = vadd.f32 %v4184, %v4536
    %v4538 = vpop.f32.mrb[0].mxu0
    %v4539 = vadd.f32 %v4186, %v4538
    %v4540 = vpop.f32.mrb[0].mxu0
    %v4541 = vadd.f32 %v4188, %v4540
    %v4542 = vpop.f32.mrb[0].mxu0
    %v4543 = vadd.f32 %v4190, %v4542
    %4544 = vmatprep.mubr.bf16.mxu0 0
    %4545 = vmatmul.mubr.bf16.gmra.mrb[0].mxu0 %v3501
    %v4546 = vpop.f32.mrb[0].mxu0
    %v4547 = vadd.f32 %v4194, %v4546
    %v4548 = vpop.f32.mrb[0].mxu0
    %v4549 = vadd.f32 %v4196, %v4548
    %v4550 = vpop.f32.mrb[0].mxu0
    %v4551 = vadd.f32 %v4198, %v4550
    %v4552 = vpop.f32.mrb[0].mxu0
    %v4553 = vadd.f32 %v4200, %v4552
    %4554 = vmatprep.mubr.bf16.mxu0 0
    %4555 = vmatmul.mubr.bf16.gmra.mrb[0].mxu0 %v3504
    %v4556 = vpop.f32.mrb[0].mxu0
    %v4557 = vadd.f32 %v4204, %v4556
    %v4558 = vpop.f32.mrb[0].mxu0
    %v4559 = vadd.f32 %v4206, %v4558
    %v4560 = vpop.f32.mrb[0].mxu0
    %v4561 = vadd.f32 %v4208, %v4560
    %v4562 = vpop.f32.mrb[0].mxu0
    %v4563 = vadd.f32 %v4210, %v4562
    %4564 = vdwg.mxu0
    %v4565 = vmax.f32 %v4247, 0.0
    %v4566 = vmax.f32 %v4249, 0.0
    %v4567 = vmax.f32 %v4251, 0.0
    %v4568 = vmax.f32 %v4253, 0.0
    %v4569 = vmax.f32 %v4257, 0.0
    %v4570 = vmax.f32 %v4259, 0.0
    %v4571 = vmax.f32 %v4261, 0.0
    %v4572 = vmax.f32 %v4263, 0.0
    %v4573 = vmax.f32 %v4267, 0.0
    %v4574 = vmax.f32 %v4269, 0.0
    %v4575 = vmax.f32 %v4271, 0.0
    %v4576 = vmax.f32 %v4273, 0.0
    %v4577 = vmax.f32 %v4277, 0.0
    %v4578 = vmax.f32 %v4279, 0.0
    %v4579 = vmax.f32 %v4281, 0.0
    %v4580 = vmax.f32 %v4283, 0.0
    %v4581 = vmax.f32 %v4287, 0.0
    %v4582 = vmax.f32 %v4289, 0.0
    %v4583 = vmax.f32 %v4291, 0.0
    %v4584 = vmax.f32 %v4293, 0.0
    %v4585 = vmax.f32 %v4297, 0.0
    %v4586 = vmax.f32 %v4299, 0.0
    %v4587 = vmax.f32 %v4301, 0.0
    %v4588 = vmax.f32 %v4303, 0.0
    %v4589 = vmax.f32 %v4307, 0.0
    %v4590 = vmax.f32 %v4309, 0.0
    %v4591 = vmax.f32 %v4311, 0.0
    %v4592 = vmax.f32 %v4313, 0.0
    %v4593 = vmax.f32 %v4317, 0.0
    %v4594 = vmax.f32 %v4319, 0.0
    %v4595 = vmax.f32 %v4321, 0.0
    %v4596 = vmax.f32 %v4323, 0.0
    %v4597 = vmax.f32 %v4327, 0.0
    %v4598 = vmax.f32 %v4329, 0.0
    %v4599 = vmax.f32 %v4331, 0.0
    %v4600 = vmax.f32 %v4333, 0.0
    %v4601 = vmax.f32 %v4337, 0.0
    %v4602 = vmax.f32 %v4339, 0.0
    %v4603 = vmax.f32 %v4341, 0.0
    %v4604 = vmax.f32 %v4343, 0.0
    %v4605 = vmax.f32 %v4347, 0.0
    %v4606 = vmax.f32 %v4349, 0.0
    %v4607 = vmax.f32 %v4351, 0.0
    %v4608 = vmax.f32 %v4353, 0.0
    %v4609 = vmax.f32 %v4357, 0.0
    %v4610 = vmax.f32 %v4359, 0.0
    %v4611 = vmax.f32 %v4361, 0.0
    %v4612 = vmax.f32 %v4363, 0.0
    %v4613 = vmax.f32 %v4367, 0.0
    %v4614 = vmax.f32 %v4369, 0.0
    %v4615 = vmax.f32 %v4371, 0.0
    %v4616 = vmax.f32 %v4373, 0.0
    %v4617 = vmax.f32 %v4377, 0.0
    %v4618 = vmax.f32 %v4379, 0.0
    %v4619 = vmax.f32 %v4381, 0.0
    %v4620 = vmax.f32 %v4383, 0.0
    %v4621 = vmax.f32 %v4387, 0.0
    %v4622 = vmax.f32 %v4389, 0.0
    %v4623 = vmax.f32 %v4391, 0.0
    %v4624 = vmax.f32 %v4393, 0.0
    %v4625 = vmax.f32 %v4397, 0.0
    %v4626 = vmax.f32 %v4399, 0.0
    %v4627 = vmax.f32 %v4401, 0.0
    %v4628 = vmax.f32 %v4403, 0.0
    %v4629 = vmax.f32 %v4407, 0.0
    %v4630 = vmax.f32 %v4409, 0.0
    %v4631 = vmax.f32 %v4411, 0.0
    %v4632 = vmax.f32 %v4413, 0.0
    %v4633 = vmax.f32 %v4417, 0.0
    %v4634 = vmax.f32 %v4419, 0.0
    %v4635 = vmax.f32 %v4421, 0.0
    %v4636 = vmax.f32 %v4423, 0.0
    %v4637 = vmax.f32 %v4427, 0.0
    %v4638 = vmax.f32 %v4429, 0.0
    %v4639 = vmax.f32 %v4431, 0.0
    %v4640 = vmax.f32 %v4433, 0.0
    %v4641 = vmax.f32 %v4437, 0.0
    %v4642 = vmax.f32 %v4439, 0.0
    %v4643 = vmax.f32 %v4441, 0.0
    %v4644 = vmax.f32 %v4443, 0.0
    %v4645 = vmax.f32 %v4447, 0.0
    %v4646 = vmax.f32 %v4449, 0.0
    %v4647 = vmax.f32 %v4451, 0.0
    %v4648 = vmax.f32 %v4453, 0.0
    %v4649 = vmax.f32 %v4457, 0.0
    %v4650 = vmax.f32 %v4459, 0.0
    %v4651 = vmax.f32 %v4461, 0.0
    %v4652 = vmax.f32 %v4463, 0.0
    %v4653 = vmax.f32 %v4467, 0.0
    %v4654 = vmax.f32 %v4469, 0.0
    %v4655 = vmax.f32 %v4471, 0.0
    %v4656 = vmax.f32 %v4473, 0.0
    %v4657 = vmax.f32 %v4477, 0.0
    %v4658 = vmax.f32 %v4479, 0.0
    %v4659 = vmax.f32 %v4481, 0.0
    %v4660 = vmax.f32 %v4483, 0.0
    %v4661 = vmax.f32 %v4487, 0.0
    %v4662 = vmax.f32 %v4489, 0.0
    %v4663 = vmax.f32 %v4491, 0.0
    %v4664 = vmax.f32 %v4493, 0.0
    %v4665 = vmax.f32 %v4497, 0.0
    %v4666 = vmax.f32 %v4499, 0.0
    %v4667 = vmax.f32 %v4501, 0.0
    %v4668 = vmax.f32 %v4503, 0.0
    %v4669 = vmax.f32 %v4507, 0.0
    %v4670 = vmax.f32 %v4509, 0.0
    %v4671 = vmax.f32 %v4511, 0.0
    %v4672 = vmax.f32 %v4513, 0.0
    %v4673 = vmax.f32 %v4517, 0.0
    %v4674 = vmax.f32 %v4519, 0.0
    %v4675 = vmax.f32 %v4521, 0.0
    %v4676 = vmax.f32 %v4523, 0.0
    %v4677 = vmax.f32 %v4527, 0.0
    %v4678 = vmax.f32 %v4529, 0.0
    %v4679 = vmax.f32 %v4531, 0.0
    %v4680 = vmax.f32 %v4533, 0.0
    %v4681 = vmax.f32 %v4537, 0.0
    %v4682 = vmax.f32 %v4539, 0.0
    %v4683 = vmax.f32 %v4541, 0.0
    %v4684 = vmax.f32 %v4543, 0.0
    %v4685 = vmax.f32 %v4547, 0.0
    %v4686 = vmax.f32 %v4549, 0.0
    %v4687 = vmax.f32 %v4551, 0.0
    %v4688 = vmax.f32 %v4553, 0.0
    %v4689 = vmax.f32 %v4557, 0.0
    %v4690 = vmax.f32 %v4559, 0.0
    %v4691 = vmax.f32 %v4561, 0.0
    %v4692 = vmax.f32 %v4563, 0.0
    %v4693 = vadd.f32 %v4565, %v4566
    %v4694 = vadd.f32 %v4567, %v4568
    %v4695 = vadd.f32 %v4569, %v4570
    %v4696 = vadd.f32 %v4571, %v4572
    %v4697 = vadd.f32 %v4573, %v4574
    %v4698 = vadd.f32 %v4575, %v4576
    %v4699 = vadd.f32 %v4577, %v4578
    %v4700 = vadd.f32 %v4579, %v4580
    %v4701 = vadd.f32 %v4581, %v4582
    %v4702 = vadd.f32 %v4583, %v4584
    %v4703 = vadd.f32 %v4585, %v4586
    %v4704 = vadd.f32 %v4587, %v4588
    %v4705 = vadd.f32 %v4589, %v4590
    %v4706 = vadd.f32 %v4591, %v4592
    %v4707 = vadd.f32 %v4593, %v4594
    %v4708 = vadd.f32 %v4595, %v4596
    %v4709 = vadd.f32 %v4597, %v4598
    %v4710 = vadd.f32 %v4599, %v4600
    %v4711 = vadd.f32 %v4601, %v4602
    %v4712 = vadd.f32 %v4603, %v4604
    %v4713 = vadd.f32 %v4605, %v4606
    %v4714 = vadd.f32 %v4607, %v4608
    %v4715 = vadd.f32 %v4609, %v4610
    %v4716 = vadd.f32 %v4611, %v4612
    %v4717 = vadd.f32 %v4613, %v4614
    %v4718 = vadd.f32 %v4615, %v4616
    %v4719 = vadd.f32 %v4617, %v4618
    %v4720 = vadd.f32 %v4619, %v4620
    %v4721 = vadd.f32 %v4621, %v4622
    %v4722 = vadd.f32 %v4623, %v4624
    %v4723 = vadd.f32 %v4625, %v4626
    %v4724 = vadd.f32 %v4627, %v4628
    %v4725 = vadd.f32 %v4629, %v4630
    %v4726 = vadd.f32 %v4631, %v4632
    %v4727 = vadd.f32 %v4633, %v4634
    %v4728 = vadd.f32 %v4635, %v4636
    %v4729 = vadd.f32 %v4637, %v4638
    %v4730 = vadd.f32 %v4639, %v4640
    %v4731 = vadd.f32 %v4641, %v4642
    %v4732 = vadd.f32 %v4643, %v4644
    %v4733 = vadd.f32 %v4645, %v4646
    %v4734 = vadd.f32 %v4647, %v4648
    %v4735 = vadd.f32 %v4649, %v4650
    %v4736 = vadd.f32 %v4651, %v4652
    %v4737 = vadd.f32 %v4653, %v4654
    %v4738 = vadd.f32 %v4655, %v4656
    %v4739 = vadd.f32 %v4657, %v4658
    %v4740 = vadd.f32 %v4659, %v4660
    %v4741 = vadd.f32 %v4661, %v4662
    %v4742 = vadd.f32 %v4663, %v4664
    %v4743 = vadd.f32 %v4665, %v4666
    %v4744 = vadd.f32 %v4667, %v4668
    %v4745 = vadd.f32 %v4669, %v4670
    %v4746 = vadd.f32 %v4671, %v4672
    %v4747 = vadd.f32 %v4673, %v4674
    %v4748 = vadd.f32 %v4675, %v4676
    %v4749 = vadd.f32 %v4677, %v4678
    %v4750 = vadd.f32 %v4679, %v4680
    %v4751 = vadd.f32 %v4681, %v4682
    %v4752 = vadd.f32 %v4683, %v4684
    %v4753 = vadd.f32 %v4685, %v4686
    %v4754 = vadd.f32 %v4687, %v4688
    %v4755 = vadd.f32 %v4689, %v4690
    %v4756 = vadd.f32 %v4691, %v4692
    %v4757 = vpack.c.bf16 %v4694, %v4693
    %v4758 = vpack.c.bf16 %v4696, %v4695
    %v4759 = vpack.c.bf16 %v4698, %v4697
    %v4760 = vpack.c.bf16 %v4700, %v4699
    %v4761 = vpack.c.bf16 %v4702, %v4701
    %v4762 = vpack.c.bf16 %v4704, %v4703
    %v4763 = vpack.c.bf16 %v4706, %v4705
    %v4764 = vpack.c.bf16 %v4708, %v4707
    %v4765 = vpack.c.bf16 %v4710, %v4709
    %v4766 = vpack.c.bf16 %v4712, %v4711
    %v4767 = vpack.c.bf16 %v4714, %v4713
    %v4768 = vpack.c.bf16 %v4716, %v4715
    %v4769 = vpack.c.bf16 %v4718, %v4717
    %v4770 = vpack.c.bf16 %v4720, %v4719
    %v4771 = vpack.c.bf16 %v4722, %v4721
    %v4772 = vpack.c.bf16 %v4724, %v4723
    %v4773 = vpack.c.bf16 %v4726, %v4725
    %v4774 = vpack.c.bf16 %v4728, %v4727
    %v4775 = vpack.c.bf16 %v4730, %v4729
    %v4776 = vpack.c.bf16 %v4732, %v4731
    %v4777 = vpack.c.bf16 %v4734, %v4733
    %v4778 = vpack.c.bf16 %v4736, %v4735
    %v4779 = vpack.c.bf16 %v4738, %v4737
    %v4780 = vpack.c.bf16 %v4740, %v4739
    %v4781 = vpack.c.bf16 %v4742, %v4741
    %v4782 = vpack.c.bf16 %v4744, %v4743
    %v4783 = vpack.c.bf16 %v4746, %v4745
    %v4784 = vpack.c.bf16 %v4748, %v4747
    %v4785 = vpack.c.bf16 %v4750, %v4749
    %v4786 = vpack.c.bf16 %v4752, %v4751
    %v4787 = vpack.c.bf16 %v4754, %v4753
    %v4788 = vpack.c.bf16 %v4756, %v4755
    %v4789 = vld [vmem:[#allocation13] sm:$0xff]
    %v4790 = vld [vmem:[#allocation13 + $0x8] sm:$0xff]
    %v4791 = vld [vmem:[#allocation13 + $0x10] sm:$0xff]
    %v4792 = vld [vmem:[#allocation13 + $0x18] sm:$0xff]
    %v4793 = vld [vmem:[#allocation13 + $0x20] sm:$0xff]
    %v4794 = vld [vmem:[#allocation13 + $0x28] sm:$0xff]
    %v4795 = vld [vmem:[#allocation13 + $0x30] sm:$0xff]
    %v4796 = vld [vmem:[#allocation13 + $0x38] sm:$0xff]
    %v4797 = vld [vmem:[#allocation13 + $0x40] sm:$0xff]
    %v4798 = vld [vmem:[#allocation13 + $0x48] sm:$0xff]
    %v4799 = vld [vmem:[#allocation13 + $0x50] sm:$0xff]
    %v4800 = vld [vmem:[#allocation13 + $0x58] sm:$0xff]
    %v4801 = vld [vmem:[#allocation13 + $0x60] sm:$0xff]
    %v4802 = vld [vmem:[#allocation13 + $0x68] sm:$0xff]
    %v4803 = vld [vmem:[#allocation13 + $0x70] sm:$0xff]
    %v4804 = vld [vmem:[#allocation13 + $0x78] sm:$0xff]
    %v4805 = vld [vmem:[#allocation13 + $0x80] sm:$0xff]
    %v4806 = vld [vmem:[#allocation13 + $0x88] sm:$0xff]
    %v4807 = vld [vmem:[#allocation13 + $0x90] sm:$0xff]
    %v4808 = vld [vmem:[#allocation13 + $0x98] sm:$0xff]
    %v4809 = vld [vmem:[#allocation13 + $0xa0] sm:$0xff]
    %v4810 = vld [vmem:[#allocation13 + $0xa8] sm:$0xff]
    %v4811 = vld [vmem:[#allocation13 + $0xb0] sm:$0xff]
    %v4812 = vld [vmem:[#allocation13 + $0xb8] sm:$0xff]
    %v4813 = vld [vmem:[#allocation13 + $0xc0] sm:$0xff]
    %v4814 = vld [vmem:[#allocation13 + $0xc8] sm:$0xff]
    %v4815 = vld [vmem:[#allocation13 + $0xd0] sm:$0xff]
    %v4816 = vld [vmem:[#allocation13 + $0xd8] sm:$0xff]
    %v4817 = vld [vmem:[#allocation13 + $0xe0] sm:$0xff]
    %v4818 = vld [vmem:[#allocation13 + $0xe8] sm:$0xff]
    %v4819 = vld [vmem:[#allocation13 + $0xf0] sm:$0xff]
    %v4820 = vld [vmem:[#allocation13 + $0xf8] sm:$0xff]
    %v4853 = vunpack.c.l.b16 %v4789
    %v4854 = vunpack.c.h.b16 %v4789
    %v4855 = vunpack.c.l.b16 %v4790
    %v4856 = vunpack.c.h.b16 %v4790
    %v4857 = vunpack.c.l.b16 %v4791
    %v4858 = vunpack.c.h.b16 %v4791
    %v4859 = vunpack.c.l.b16 %v4792
    %v4860 = vunpack.c.h.b16 %v4792
    %v4861 = vunpack.c.l.b16 %v4793
    %v4862 = vunpack.c.h.b16 %v4793
    %v4863 = vunpack.c.l.b16 %v4794
    %v4864 = vunpack.c.h.b16 %v4794
    %v4865 = vunpack.c.l.b16 %v4795
    %v4866 = vunpack.c.h.b16 %v4795
    %v4867 = vunpack.c.l.b16 %v4796
    %v4868 = vunpack.c.h.b16 %v4796
    %v4869 = vunpack.c.l.b16 %v4797
    %v4870 = vunpack.c.h.b16 %v4797
    %v4871 = vunpack.c.l.b16 %v4798
    %v4872 = vunpack.c.h.b16 %v4798
    %v4873 = vunpack.c.l.b16 %v4799
    %v4874 = vunpack.c.h.b16 %v4799
    %v4875 = vunpack.c.l.b16 %v4800
    %v4876 = vunpack.c.h.b16 %v4800
    %v4877 = vunpack.c.l.b16 %v4801
    %v4878 = vunpack.c.h.b16 %v4801
    %v4879 = vunpack.c.l.b16 %v4802
    %v4880 = vunpack.c.h.b16 %v4802
    %v4881 = vunpack.c.l.b16 %v4803
    %v4882 = vunpack.c.h.b16 %v4803
    %v4883 = vunpack.c.l.b16 %v4804
    %v4884 = vunpack.c.h.b16 %v4804
    %v4885 = vunpack.c.l.b16 %v4805
    %v4886 = vunpack.c.h.b16 %v4805
    %v4887 = vunpack.c.l.b16 %v4806
    %v4888 = vunpack.c.h.b16 %v4806
    %v4889 = vunpack.c.l.b16 %v4807
    %v4890 = vunpack.c.h.b16 %v4807
    %v4891 = vunpack.c.l.b16 %v4808
    %v4892 = vunpack.c.h.b16 %v4808
    %v4893 = vunpack.c.l.b16 %v4809
    %v4894 = vunpack.c.h.b16 %v4809
    %v4895 = vunpack.c.l.b16 %v4810
    %v4896 = vunpack.c.h.b16 %v4810
    %v4897 = vunpack.c.l.b16 %v4811
    %v4898 = vunpack.c.h.b16 %v4811
    %v4899 = vunpack.c.l.b16 %v4812
    %v4900 = vunpack.c.h.b16 %v4812
    %v4901 = vunpack.c.l.b16 %v4813
    %v4902 = vunpack.c.h.b16 %v4813
    %v4903 = vunpack.c.l.b16 %v4814
    %v4904 = vunpack.c.h.b16 %v4814
    %v4905 = vunpack.c.l.b16 %v4815
    %v4906 = vunpack.c.h.b16 %v4815
    %v4907 = vunpack.c.l.b16 %v4816
    %v4908 = vunpack.c.h.b16 %v4816
    %v4909 = vunpack.c.l.b16 %v4817
    %v4910 = vunpack.c.h.b16 %v4817
    %v4911 = vunpack.c.l.b16 %v4818
    %v4912 = vunpack.c.h.b16 %v4818
    %v4913 = vunpack.c.l.b16 %v4819
    %v4914 = vunpack.c.h.b16 %v4819
    %v4915 = vunpack.c.l.b16 %v4820
    %v4916 = vunpack.c.h.b16 %v4820
    %v4917 = vpack.c.b16 %v4857, %v4853
    %v4918 = vpack.c.b16 %v4858, %v4854
    %v4919 = vpack.c.b16 %v4859, %v4855
    %v4920 = vpack.c.b16 %v4860, %v4856
    %v4921 = vpack.c.b16 %v4865, %v4861
    %v4922 = vpack.c.b16 %v4866, %v4862
    %v4923 = vpack.c.b16 %v4867, %v4863
    %v4924 = vpack.c.b16 %v4868, %v4864
    %v4925 = vpack.c.b16 %v4873, %v4869
    %v4926 = vpack.c.b16 %v4874, %v4870
    %v4927 = vpack.c.b16 %v4875, %v4871
    %v4928 = vpack.c.b16 %v4876, %v4872
    %v4929 = vpack.c.b16 %v4881, %v4877
    %v4930 = vpack.c.b16 %v4882, %v4878
    %v4931 = vpack.c.b16 %v4883, %v4879
    %v4932 = vpack.c.b16 %v4884, %v4880
    %v4933 = vpack.c.b16 %v4889, %v4885
    %v4934 = vpack.c.b16 %v4890, %v4886
    %v4935 = vpack.c.b16 %v4891, %v4887
    %v4936 = vpack.c.b16 %v4892, %v4888
    %v4937 = vpack.c.b16 %v4897, %v4893
    %v4938 = vpack.c.b16 %v4898, %v4894
    %v4939 = vpack.c.b16 %v4899, %v4895
    %v4940 = vpack.c.b16 %v4900, %v4896
    %v4941 = vpack.c.b16 %v4905, %v4901
    %v4942 = vpack.c.b16 %v4906, %v4902
    %v4943 = vpack.c.b16 %v4907, %v4903
    %v4944 = vpack.c.b16 %v4908, %v4904
    %v4945 = vpack.c.b16 %v4913, %v4909
    %v4946 = vpack.c.b16 %v4914, %v4910
    %v4947 = vpack.c.b16 %v4915, %v4911
    %v4948 = vpack.c.b16 %v4916, %v4912
    %4981 = vmatprep.subr.bf16.mxu0 0
    %4982 = vmatpush1.bf16.msra.mxu0 %v4757
    %4983 = vmatprep.subr.bf16.mxu0 0
    %4984 = vmatpush1.bf16.msra.mxu0 %v4758
    %4985 = vmatprep.subr.bf16.mxu0 0
    %4986 = vmatpush1.bf16.msra.mxu0 %v4759
    %4987 = vmatprep.subr.bf16.mxu0 0
    %4988 = vmatpush1.bf16.msra.mxu0 %v4760
    %4989 = vmatprep.subr.bf16.mxu0 0
    %4990 = vmatpush1.bf16.msra.mxu0 %v4761
    %4991 = vmatprep.subr.bf16.mxu0 0
    %4992 = vmatpush1.bf16.msra.mxu0 %v4762
    %4993 = vmatprep.subr.bf16.mxu0 0
    %4994 = vmatpush1.bf16.msra.mxu0 %v4763
    %4995 = vmatprep.subr.bf16.mxu0 0
    %4996 = vmatpush1.bf16.msra.mxu0 %v4764
    %4997 = vmatprep.subr.bf16.mxu0 0
    %4998 = vmatpush1.bf16.msra.mxu0 %v4765
    %4999 = vmatprep.subr.bf16.mxu0 0
    %5000 = vmatpush1.bf16.msra.mxu0 %v4766
    %5001 = vmatprep.subr.bf16.mxu0 0
    %5002 = vmatpush1.bf16.msra.mxu0 %v4767
    %5003 = vmatprep.subr.bf16.mxu0 0
    %5004 = vmatpush1.bf16.msra.mxu0 %v4768
    %5005 = vmatprep.subr.bf16.mxu0 0
    %5006 = vmatpush1.bf16.msra.mxu0 %v4769
    %5007 = vmatprep.subr.bf16.mxu0 0
    %5008 = vmatpush1.bf16.msra.mxu0 %v4770
    %5009 = vmatprep.subr.bf16.mxu0 0
    %5010 = vmatpush1.bf16.msra.mxu0 %v4771
    %5011 = vmatprep.subr.bf16.mxu0 0
    %5012 = vmatpush1.bf16.msra.mxu0 %v4772
    %5013 = vmatprep.mubr.bf16.mxu0 %v4918
    %5014 = vmatmul.mubr.bf16.gmra.mrb[0].mxu0 %v4917
    %v5015 = vpop.f32.mrb[0].mxu0
    %v5016 = vadd.f32 0.0, %v5015
    %v5017 = vpop.f32.mrb[0].mxu0
    %v5018 = vpop.f32.mrb[0].mxu0
    %v5019 = vadd.f32 0.0, %v5018
    %v5020 = vpop.f32.mrb[0].mxu0
    %5021 = vmatprep.mubr.bf16.mxu0 %v4922
    %5022 = vmatmul.mubr.bf16.gmra.mrb[0].mxu0 %v4921
    %v5023 = vpop.f32.mrb[0].mxu0
    %v5024 = vadd.f32 0.0, %v5023
    %v5025 = vpop.f32.mrb[0].mxu0
    %v5026 = vpop.f32.mrb[0].mxu0
    %v5027 = vadd.f32 0.0, %v5026
    %v5028 = vpop.f32.mrb[0].mxu0
    %5029 = vmatprep.mubr.bf16.mxu0 %v4926
    %5030 = vmatmul.mubr.bf16.gmra.mrb[0].mxu0 %v4925
    %v5031 = vpop.f32.mrb[0].mxu0
    %v5032 = vadd.f32 0.0, %v5031
    %v5033 = vpop.f32.mrb[0].mxu0
    %v5034 = vpop.f32.mrb[0].mxu0
    %v5035 = vadd.f32 0.0, %v5034
    %v5036 = vpop.f32.mrb[0].mxu0
    %5037 = vmatprep.mubr.bf16.mxu0 %v4930
    %5038 = vmatmul.mubr.bf16.gmra.mrb[0].mxu0 %v4929
    %v5039 = vpop.f32.mrb[0].mxu0
    %v5040 = vadd.f32 0.0, %v5039
    %v5041 = vpop.f32.mrb[0].mxu0
    %v5042 = vpop.f32.mrb[0].mxu0
    %v5043 = vadd.f32 0.0, %v5042
    %v5044 = vpop.f32.mrb[0].mxu0
    %5045 = vmatprep.mubr.bf16.mxu0 %v4934
    %5046 = vmatmul.mubr.bf16.gmra.mrb[0].mxu0 %v4933
    %v5047 = vpop.f32.mrb[0].mxu0
    %v5048 = vadd.f32 0.0, %v5047
    %v5049 = vpop.f32.mrb[0].mxu0
    %v5050 = vpop.f32.mrb[0].mxu0
    %v5051 = vadd.f32 0.0, %v5050
    %v5052 = vpop.f32.mrb[0].mxu0
    %5053 = vmatprep.mubr.bf16.mxu0 %v4938
    %5054 = vmatmul.mubr.bf16.gmra.mrb[0].mxu0 %v4937
    %v5055 = vpop.f32.mrb[0].mxu0
    %v5056 = vadd.f32 0.0, %v5055
    %v5057 = vpop.f32.mrb[0].mxu0
    %v5058 = vpop.f32.mrb[0].mxu0
    %v5059 = vadd.f32 0.0, %v5058
    %v5060 = vpop.f32.mrb[0].mxu0
    %5061 = vmatprep.mubr.bf16.mxu0 %v4942
    %5062 = vmatmul.mubr.bf16.gmra.mrb[0].mxu0 %v4941
    %v5063 = vpop.f32.mrb[0].mxu0
    %v5064 = vadd.f32 0.0, %v5063
    %v5065 = vpop.f32.mrb[0].mxu0
    %v5066 = vpop.f32.mrb[0].mxu0
    %v5067 = vadd.f32 0.0, %v5066
    %v5068 = vpop.f32.mrb[0].mxu0
    %5069 = vmatprep.mubr.bf16.mxu0 %v4946
    %5070 = vmatmul.mubr.bf16.gmra.mrb[0].mxu0 %v4945
    %v5071 = vpop.f32.mrb[0].mxu0
    %v5072 = vadd.f32 0.0, %v5071
    %v5073 = vpop.f32.mrb[0].mxu0
    %v5074 = vpop.f32.mrb[0].mxu0
    %v5075 = vadd.f32 0.0, %v5074
    %v5076 = vpop.f32.mrb[0].mxu0
    %5077 = vdwg.mxu0
    %5078 = vmatprep.subr.bf16.mxu0 0
    %5079 = vmatpush1.bf16.msra.mxu0 %v4773
    %5080 = vmatprep.subr.bf16.mxu0 0
    %5081 = vmatpush1.bf16.msra.mxu0 %v4774
    %5082 = vmatprep.subr.bf16.mxu0 0
    %5083 = vmatpush1.bf16.msra.mxu0 %v4775
    %5084 = vmatprep.subr.bf16.mxu0 0
    %5085 = vmatpush1.bf16.msra.mxu0 %v4776
    %5086 = vmatprep.subr.bf16.mxu0 0
    %5087 = vmatpush1.bf16.msra.mxu0 %v4777
    %5088 = vmatprep.subr.bf16.mxu0 0
    %5089 = vmatpush1.bf16.msra.mxu0 %v4778
    %5090 = vmatprep.subr.bf16.mxu0 0
    %5091 = vmatpush1.bf16.msra.mxu0 %v4779
    %5092 = vmatprep.subr.bf16.mxu0 0
    %5093 = vmatpush1.bf16.msra.mxu0 %v4780
    %5094 = vmatprep.subr.bf16.mxu0 0
    %5095 = vmatpush1.bf16.msra.mxu0 %v4781
    %5096 = vmatprep.subr.bf16.mxu0 0
    %5097 = vmatpush1.bf16.msra.mxu0 %v4782
    %5098 = vmatprep.subr.bf16.mxu0 0
    %5099 = vmatpush1.bf16.msra.mxu0 %v4783
    %5100 = vmatprep.subr.bf16.mxu0 0
    %5101 = vmatpush1.bf16.msra.mxu0 %v4784
    %5102 = vmatprep.subr.bf16.mxu0 0
    %5103 = vmatpush1.bf16.msra.mxu0 %v4785
    %5104 = vmatprep.subr.bf16.mxu0 0
    %5105 = vmatpush1.bf16.msra.mxu0 %v4786
    %5106 = vmatprep.subr.bf16.mxu0 0
    %5107 = vmatpush1.bf16.msra.mxu0 %v4787
    %5108 = vmatprep.subr.bf16.mxu0 0
    %5109 = vmatpush1.bf16.msra.mxu0 %v4788
    %5110 = vmatprep.mubr.bf16.mxu0 %v4920
    %5111 = vmatmul.mubr.bf16.gmra.mrb[0].mxu0 %v4919
    %v5112 = vpop.f32.mrb[0].mxu0
    %v5113 = vadd.f32 %v5016, %v5112
    %v5114 = vpop.f32.mrb[0].mxu0
    %v5115 = vpop.f32.mrb[0].mxu0
    %v5116 = vadd.f32 %v5019, %v5115
    %v5117 = vpop.f32.mrb[0].mxu0
    %5118 = vmatprep.mubr.bf16.mxu0 %v4924
    %5119 = vmatmul.mubr.bf16.gmra.mrb[0].mxu0 %v4923
    %v5120 = vpop.f32.mrb[0].mxu0
    %v5121 = vadd.f32 %v5024, %v5120
    %v5122 = vpop.f32.mrb[0].mxu0
    %v5123 = vpop.f32.mrb[0].mxu0
    %v5124 = vadd.f32 %v5027, %v5123
    %v5125 = vpop.f32.mrb[0].mxu0
    %5126 = vmatprep.mubr.bf16.mxu0 %v4928
    %5127 = vmatmul.mubr.bf16.gmra.mrb[0].mxu0 %v4927
    %v5128 = vpop.f32.mrb[0].mxu0
    %v5129 = vadd.f32 %v5032, %v5128
    %v5130 = vpop.f32.mrb[0].mxu0
    %v5131 = vpop.f32.mrb[0].mxu0
    %v5132 = vadd.f32 %v5035, %v5131
    %v5133 = vpop.f32.mrb[0].mxu0
    %5134 = vmatprep.mubr.bf16.mxu0 %v4932
    %5135 = vmatmul.mubr.bf16.gmra.mrb[0].mxu0 %v4931
    %v5136 = vpop.f32.mrb[0].mxu0
    %v5137 = vadd.f32 %v5040, %v5136
    %v5138 = vpop.f32.mrb[0].mxu0
    %v5139 = vpop.f32.mrb[0].mxu0
    %v5140 = vadd.f32 %v5043, %v5139
    %v5141 = vpop.f32.mrb[0].mxu0
    %5142 = vmatprep.mubr.bf16.mxu0 %v4936
    %5143 = vmatmul.mubr.bf16.gmra.mrb[0].mxu0 %v4935
    %v5144 = vpop.f32.mrb[0].mxu0
    %v5145 = vadd.f32 %v5048, %v5144
    %v5146 = vpop.f32.mrb[0].mxu0
    %v5147 = vpop.f32.mrb[0].mxu0
    %v5148 = vadd.f32 %v5051, %v5147
    %v5149 = vpop.f32.mrb[0].mxu0
    %5150 = vmatprep.mubr.bf16.mxu0 %v4940
    %5151 = vmatmul.mubr.bf16.gmra.mrb[0].mxu0 %v4939
    %v5152 = vpop.f32.mrb[0].mxu0
    %v5153 = vadd.f32 %v5056, %v5152
    %v5154 = vpop.f32.mrb[0].mxu0
    %v5155 = vpop.f32.mrb[0].mxu0
    %v5156 = vadd.f32 %v5059, %v5155
    %v5157 = vpop.f32.mrb[0].mxu0
    %5158 = vmatprep.mubr.bf16.mxu0 %v4944
    %5159 = vmatmul.mubr.bf16.gmra.mrb[0].mxu0 %v4943
    %v5160 = vpop.f32.mrb[0].mxu0
    %v5161 = vadd.f32 %v5064, %v5160
    %v5162 = vpop.f32.mrb[0].mxu0
    %v5163 = vpop.f32.mrb[0].mxu0
    %v5164 = vadd.f32 %v5067, %v5163
    %v5165 = vpop.f32.mrb[0].mxu0
    %5166 = vmatprep.mubr.bf16.mxu0 %v4948
    %5167 = vmatmul.mubr.bf16.gmra.mrb[0].mxu0 %v4947
    %v5168 = vpop.f32.mrb[0].mxu0
    %v5169 = vadd.f32 %v5072, %v5168
    %v5170 = vpop.f32.mrb[0].mxu0
    %v5171 = vpop.f32.mrb[0].mxu0
    %v5172 = vadd.f32 %v5075, %v5171
    %v5173 = vpop.f32.mrb[0].mxu0
    %5174 = vdwg.mxu0
    %v5175 = vld [vmem:[#allocation14] sm:$0xff]
    %v5176 = vld [vmem:[#allocation14 + $0x8] sm:$0xff]
    %v5177 = vld [vmem:[#allocation14 + $0x10] sm:$0xff]
    %v5178 = vld [vmem:[#allocation14 + $0x18] sm:$0xff]
    %v5179 = vld [vmem:[#allocation14 + $0x20] sm:$0xff]
    %v5180 = vld [vmem:[#allocation14 + $0x28] sm:$0xff]
    %v5181 = vld [vmem:[#allocation14 + $0x30] sm:$0xff]
    %v5182 = vld [vmem:[#allocation14 + $0x38] sm:$0xff]
    %v5183 = vld [vmem:[#allocation14 + $0x40] sm:$0xff]
    %v5184 = vld [vmem:[#allocation14 + $0x48] sm:$0xff]
    %v5185 = vld [vmem:[#allocation14 + $0x50] sm:$0xff]
    %v5186 = vld [vmem:[#allocation14 + $0x58] sm:$0xff]
    %v5187 = vld [vmem:[#allocation14 + $0x60] sm:$0xff]
    %v5188 = vld [vmem:[#allocation14 + $0x68] sm:$0xff]
    %v5189 = vld [vmem:[#allocation14 + $0x70] sm:$0xff]
    %v5190 = vld [vmem:[#allocation14 + $0x78] sm:$0xff]
    %5192 = vset.pattern.permute.xlu0 0
    %5193 = vperm.xlu0 %5192, %v5175
    %v5194 = vpop.permute.xlu0 %5193
    %5197 = vset.pattern.permute.xlu0 0
    %5198 = vperm.xlu0 %5197, %v5176
    %v5199 = vpop.permute.xlu0 %5198
    %5202 = vset.pattern.permute.xlu0 0
    %5203 = vperm.xlu0 %5202, %v5177
    %v5204 = vpop.permute.xlu0 %5203
    %5207 = vset.pattern.permute.xlu0 0
    %5208 = vperm.xlu0 %5207, %v5178
    %v5209 = vpop.permute.xlu0 %5208
    %5212 = vset.pattern.permute.xlu0 0
    %5213 = vperm.xlu0 %5212, %v5179
    %v5214 = vpop.permute.xlu0 %5213
    %5217 = vset.pattern.permute.xlu0 0
    %5218 = vperm.xlu0 %5217, %v5180
    %v5219 = vpop.permute.xlu0 %5218
    %5222 = vset.pattern.permute.xlu0 0
    %5223 = vperm.xlu0 %5222, %v5181
    %v5224 = vpop.permute.xlu0 %5223
    %5227 = vset.pattern.permute.xlu0 0
    %5228 = vperm.xlu0 %5227, %v5182
    %v5229 = vpop.permute.xlu0 %5228
    %5232 = vset.pattern.permute.xlu0 0
    %5233 = vperm.xlu0 %5232, %v5183
    %v5234 = vpop.permute.xlu0 %5233
    %5237 = vset.pattern.permute.xlu0 0
    %5238 = vperm.xlu0 %5237, %v5184
    %v5239 = vpop.permute.xlu0 %5238
    %5242 = vset.pattern.permute.xlu0 0
    %5243 = vperm.xlu0 %5242, %v5185
    %v5244 = vpop.permute.xlu0 %5243
    %5247 = vset.pattern.permute.xlu0 0
    %5248 = vperm.xlu0 %5247, %v5186
    %v5249 = vpop.permute.xlu0 %5248
    %5252 = vset.pattern.permute.xlu0 0
    %5253 = vperm.xlu0 %5252, %v5187
    %v5254 = vpop.permute.xlu0 %5253
    %5257 = vset.pattern.permute.xlu0 0
    %5258 = vperm.xlu0 %5257, %v5188
    %v5259 = vpop.permute.xlu0 %5258
    %5262 = vset.pattern.permute.xlu0 0
    %5263 = vperm.xlu0 %5262, %v5189
    %v5264 = vpop.permute.xlu0 %5263
    %5267 = vset.pattern.permute.xlu0 0
    %5268 = vperm.xlu0 %5267, %v5190
    %v5269 = vpop.permute.xlu0 %5268
    %v5271 = vmul.f32 %v5113, %v5194
    %v5272 = vmul.f32 %v5116, %v5199
    %v5273 = vmul.f32 %v5121, %v5204
    %v5274 = vmul.f32 %v5124, %v5209
    %v5275 = vmul.f32 %v5129, %v5214
    %v5276 = vmul.f32 %v5132, %v5219
    %v5277 = vmul.f32 %v5137, %v5224
    %v5278 = vmul.f32 %v5140, %v5229
    %v5279 = vmul.f32 %v5145, %v5234
    %v5280 = vmul.f32 %v5148, %v5239
    %v5281 = vmul.f32 %v5153, %v5244
    %v5282 = vmul.f32 %v5156, %v5249
    %v5283 = vmul.f32 %v5161, %v5254
    %v5284 = vmul.f32 %v5164, %v5259
    %v5285 = vmul.f32 %v5169, %v5264
    %v5286 = vmul.f32 %v5172, %v5269
    %v5287 = vld [vmem:[#allocation16] sm:$0xff]
    %v5288 = vld [vmem:[#allocation16 + $0x8] sm:$0xff]
    %v5289 = vld [vmem:[#allocation16 + $0x10] sm:$0xff]
    %v5290 = vld [vmem:[#allocation16 + $0x18] sm:$0xff]
    %v5291 = vld [vmem:[#allocation16 + $0x20] sm:$0xff]
    %v5292 = vld [vmem:[#allocation16 + $0x28] sm:$0xff]
    %v5293 = vld [vmem:[#allocation16 + $0x30] sm:$0xff]
    %v5294 = vld [vmem:[#allocation16 + $0x38] sm:$0xff]
    %v5295 = vld [vmem:[#allocation16 + $0x40] sm:$0xff]
    %v5296 = vld [vmem:[#allocation16 + $0x48] sm:$0xff]
    %v5297 = vld [vmem:[#allocation16 + $0x50] sm:$0xff]
    %v5298 = vld [vmem:[#allocation16 + $0x58] sm:$0xff]
    %v5299 = vld [vmem:[#allocation16 + $0x60] sm:$0xff]
    %v5300 = vld [vmem:[#allocation16 + $0x68] sm:$0xff]
    %v5301 = vld [vmem:[#allocation16 + $0x70] sm:$0xff]
    %v5302 = vld [vmem:[#allocation16 + $0x78] sm:$0xff]
    %5304 = vset.pattern.permute.xlu0 0
    %5305 = vperm.xlu0 %5304, %v5287
    %v5306 = vpop.permute.xlu0 %5305
    %5309 = vset.pattern.permute.xlu0 0
    %5310 = vperm.xlu0 %5309, %v5288
    %v5311 = vpop.permute.xlu0 %5310
    %5314 = vset.pattern.permute.xlu0 0
    %5315 = vperm.xlu0 %5314, %v5289
    %v5316 = vpop.permute.xlu0 %5315
    %5319 = vset.pattern.permute.xlu0 0
    %5320 = vperm.xlu0 %5319, %v5290
    %v5321 = vpop.permute.xlu0 %5320
    %5324 = vset.pattern.permute.xlu0 0
    %5325 = vperm.xlu0 %5324, %v5291
    %v5326 = vpop.permute.xlu0 %5325
    %5329 = vset.pattern.permute.xlu0 0
    %5330 = vperm.xlu0 %5329, %v5292
    %v5331 = vpop.permute.xlu0 %5330
    %5334 = vset.pattern.permute.xlu0 0
    %5335 = vperm.xlu0 %5334, %v5293
    %v5336 = vpop.permute.xlu0 %5335
    %5339 = vset.pattern.permute.xlu0 0
    %5340 = vperm.xlu0 %5339, %v5294
    %v5341 = vpop.permute.xlu0 %5340
    %5344 = vset.pattern.permute.xlu0 0
    %5345 = vperm.xlu0 %5344, %v5295
    %v5346 = vpop.permute.xlu0 %5345
    %5349 = vset.pattern.permute.xlu0 0
    %5350 = vperm.xlu0 %5349, %v5296
    %v5351 = vpop.permute.xlu0 %5350
    %5354 = vset.pattern.permute.xlu0 0
    %5355 = vperm.xlu0 %5354, %v5297
    %v5356 = vpop.permute.xlu0 %5355
    %5359 = vset.pattern.permute.xlu0 0
    %5360 = vperm.xlu0 %5359, %v5298
    %v5361 = vpop.permute.xlu0 %5360
    %5364 = vset.pattern.permute.xlu0 0
    %5365 = vperm.xlu0 %5364, %v5299
    %v5366 = vpop.permute.xlu0 %5365
    %5369 = vset.pattern.permute.xlu0 0
    %5370 = vperm.xlu0 %5369, %v5300
    %v5371 = vpop.permute.xlu0 %5370
    %5374 = vset.pattern.permute.xlu0 0
    %5375 = vperm.xlu0 %5374, %v5301
    %v5376 = vpop.permute.xlu0 %5375
    %5379 = vset.pattern.permute.xlu0 0
    %5380 = vperm.xlu0 %5379, %v5302
    %v5381 = vpop.permute.xlu0 %5380
    %v5383 = vadd.f32 %v5271, %v5306
    %v5384 = vadd.f32 %v5272, %v5311
    %v5385 = vadd.f32 %v5273, %v5316
    %v5386 = vadd.f32 %v5274, %v5321
    %v5387 = vadd.f32 %v5275, %v5326
    %v5388 = vadd.f32 %v5276, %v5331
    %v5389 = vadd.f32 %v5277, %v5336
    %v5390 = vadd.f32 %v5278, %v5341
    %v5391 = vadd.f32 %v5279, %v5346
    %v5392 = vadd.f32 %v5280, %v5351
    %v5393 = vadd.f32 %v5281, %v5356
    %v5394 = vadd.f32 %v5282, %v5361
    %v5395 = vadd.f32 %v5283, %v5366
    %v5396 = vadd.f32 %v5284, %v5371
    %v5397 = vadd.f32 %v5285, %v5376
    %v5398 = vadd.f32 %v5286, %v5381
    %v5399 = vmax.f32 %v5383, 0.0
    %v5400 = vmax.f32 %v5384, 0.0
    %v5401 = vmax.f32 %v5385, 0.0
    %v5402 = vmax.f32 %v5386, 0.0
    %v5403 = vmax.f32 %v5387, 0.0
    %v5404 = vmax.f32 %v5388, 0.0
    %v5405 = vmax.f32 %v5389, 0.0
    %v5406 = vmax.f32 %v5390, 0.0
    %v5407 = vmax.f32 %v5391, 0.0
    %v5408 = vmax.f32 %v5392, 0.0
    %v5409 = vmax.f32 %v5393, 0.0
    %v5410 = vmax.f32 %v5394, 0.0
    %v5411 = vmax.f32 %v5395, 0.0
    %v5412 = vmax.f32 %v5396, 0.0
    %v5413 = vmax.f32 %v5397, 0.0
    %v5414 = vmax.f32 %v5398, 0.0
    %v5415 = vpack.c.bf16 %v5400, %v5399
    %v5416 = vpack.c.bf16 %v5402, %v5401
    %v5417 = vpack.c.bf16 %v5404, %v5403
    %v5418 = vpack.c.bf16 %v5406, %v5405
    %v5419 = vpack.c.bf16 %v5408, %v5407
    %v5420 = vpack.c.bf16 %v5410, %v5409
    %v5421 = vpack.c.bf16 %v5412, %v5411
    %v5422 = vpack.c.bf16 %v5414, %v5413
    %v5423 = vld [vmem:[#allocation17] sm:$0xf]
    %v5424 = vld [vmem:[#allocation17 + $0x4] sm:$0xf]
    %v5425 = vld [vmem:[#allocation19] sm:$0xff]
    %v5426 = vld [vmem:[#allocation19 + $0x8] sm:$0xff]
    %5428 = vset.pattern.permute.xlu0 0
    %5429 = vperm.xlu0 %5428, %v5425
    %v5430 = vpop.permute.xlu0 %5429
    %5433 = vset.pattern.permute.xlu0 0
    %5434 = vperm.xlu0 %5433, %v5426
    %v5435 = vpop.permute.xlu0 %5434
    %v5439 = vunpack.c.l.b16 %v5423
    %v5440 = vunpack.c.l.b16 %v5424
    %v5441 = vpack.c.b16 %v5440, %v5439
    %5443 = vmatprep.subr.bf16.mxu0 0
    %5444 = vmatpush1.bf16.msra.mxu0 %v5415
    %5445 = vmatprep.subr.bf16.mxu0 0
    %5446 = vmatpush1.bf16.msra.mxu0 %v5416
    %5447 = vmatprep.subr.bf16.mxu0 0
    %5448 = vmatpush1.bf16.msra.mxu0 %v5417
    %5449 = vmatprep.subr.bf16.mxu0 0
    %5450 = vmatpush1.bf16.msra.mxu0 %v5418
    %5451 = vmatprep.subr.bf16.mxu0 0
    %5452 = vmatpush1.bf16.msra.mxu0 %v5419
    %5453 = vmatprep.subr.bf16.mxu0 0
    %5454 = vmatpush1.bf16.msra.mxu0 %v5420
    %5455 = vmatprep.subr.bf16.mxu0 0
    %5456 = vmatpush1.bf16.msra.mxu0 %v5421
    %5457 = vmatprep.subr.bf16.mxu0 0
    %5458 = vmatpush1.bf16.msra.mxu0 %v5422
    %5459 = vmatprep.subr.bf16.mxu0 0
    %5460 = vmatpush1.bf16.msra.mxu0 0
    %5461 = vmatprep.subr.bf16.mxu0 0
    %5462 = vmatpush1.bf16.msra.mxu0 0
    %5463 = vmatprep.subr.bf16.mxu0 0
    %5464 = vmatpush1.bf16.msra.mxu0 0
    %5465 = vmatprep.subr.bf16.mxu0 0
    %5466 = vmatpush1.bf16.msra.mxu0 0
    %5467 = vmatprep.subr.bf16.mxu0 0
    %5468 = vmatpush1.bf16.msra.mxu0 0
    %5469 = vmatprep.subr.bf16.mxu0 0
    %5470 = vmatpush1.bf16.msra.mxu0 0
    %5471 = vmatprep.subr.bf16.mxu0 0
    %5472 = vmatpush1.bf16.msra.mxu0 0
    %5473 = vmatprep.subr.bf16.mxu0 0
    %5474 = vmatpush1.bf16.msra.mxu0 0
    %5475 = vmatprep.mubr.bf16.mxu0 0
    %5476 = vmatmul.mubr.bf16.gmra.mrb[0].mxu0 %v5441
    %v5477 = vpop.f32.mrb[0].mxu0
    %v5478 = vadd.f32 %v5430, %v5477
    %v5479 = vpop.f32.mrb[0].mxu0
    %v5480 = vpop.f32.mrb[0].mxu0
    %v5481 = vadd.f32 %v5435, %v5480
    %v5482 = vpop.f32.mrb[0].mxu0
    %5483 = vdwg.mxu0
    %5484 = vxpose.xlu0.b32.start [1/16] %v5478, 128
    %5485 = vxpose.xlu0.b32.cont [2/16] %v5481, 128
    %5486 = vxpose.xlu0.b32.cont [3/16] 0.0, 128
    %5487 = vxpose.xlu0.b32.cont [4/16] 0.0, 128
    %5488 = vxpose.xlu0.b32.cont [5/16] 0.0, 128
    %5489 = vxpose.xlu0.b32.cont [6/16] 0.0, 128
    %5490 = vxpose.xlu0.b32.cont [7/16] 0.0, 128
    %5491 = vxpose.xlu0.b32.cont [8/16] 0.0, 128
    %5492 = vxpose.xlu0.b32.cont [9/16] 0.0, 128
    %5493 = vxpose.xlu0.b32.cont [10/16] 0.0, 128
    %5494 = vxpose.xlu0.b32.cont [11/16] 0.0, 128
    %5495 = vxpose.xlu0.b32.cont [12/16] 0.0, 128
    %5496 = vxpose.xlu0.b32.cont [13/16] 0.0, 128
    %5497 = vxpose.xlu0.b32.cont [14/16] 0.0, 128
    %5498 = vxpose.xlu0.b32.cont [15/16] 0.0, 128
    %5499 = vxpose.xlu0.b32.end [16/16] 0.0, 128
    %v5500 = vpop.trf.xlu0
    %v5501 = vpop.trf.xlu0
    %v5502 = vpop.trf.xlu0
    %v5503 = vpop.trf.xlu0
    %v5504 = vpop.trf.xlu0
    %v5505 = vpop.trf.xlu0
    %v5506 = vpop.trf.xlu0
    %v5507 = vpop.trf.xlu0
    %v5508 = vpop.trf.xlu0
    %v5509 = vpop.trf.xlu0
    %v5510 = vpop.trf.xlu0
    %v5511 = vpop.trf.xlu0
    %v5512 = vpop.trf.xlu0
    %v5513 = vpop.trf.xlu0
    %v5514 = vpop.trf.xlu0
    %v5515 = vpop.trf.xlu0
    %v5516 = vpack.c.bf16 %v5501, %v5500
    %v5517 = vpack.c.bf16 %v5503, %v5502
    %v5518 = vpack.c.bf16 %v5505, %v5504
    %v5519 = vpack.c.bf16 %v5507, %v5506
    %v5520 = vpack.c.bf16 %v5509, %v5508
    %v5521 = vpack.c.bf16 %v5511, %v5510
    %v5522 = vpack.c.bf16 %v5513, %v5512
    %v5523 = vpack.c.bf16 %v5515, %v5514
    %v5524 = vld [vmem:[#allocation20] sm:$0xff]
    %v5525 = vld [vmem:[#allocation20 + $0x8] sm:$0xff]
    %v5526 = vld [vmem:[#allocation20 + $0x10] sm:$0xff]
    %v5527 = vld [vmem:[#allocation20 + $0x18] sm:$0xff]
    %v5528 = vld [vmem:[#allocation20 + $0x20] sm:$0xff]
    %v5529 = vld [vmem:[#allocation20 + $0x28] sm:$0xff]
    %v5530 = vld [vmem:[#allocation20 + $0x30] sm:$0xff]
    %v5531 = vld [vmem:[#allocation20 + $0x38] sm:$0xff]
    %v5540 = vunpack.c.l.b16 %v5524
    %v5541 = vunpack.c.h.b16 %v5524
    %v5542 = vunpack.c.l.b16 %v5525
    %v5543 = vunpack.c.h.b16 %v5525
    %v5544 = vunpack.c.l.b16 %v5526
    %v5545 = vunpack.c.h.b16 %v5526
    %v5546 = vunpack.c.l.b16 %v5527
    %v5547 = vunpack.c.h.b16 %v5527
    %v5548 = vunpack.c.l.b16 %v5528
    %v5549 = vunpack.c.h.b16 %v5528
    %v5550 = vunpack.c.l.b16 %v5529
    %v5551 = vunpack.c.h.b16 %v5529
    %v5552 = vunpack.c.l.b16 %v5530
    %v5553 = vunpack.c.h.b16 %v5530
    %v5554 = vunpack.c.l.b16 %v5531
    %v5555 = vunpack.c.h.b16 %v5531
    %v5556 = vpack.c.b16 %v5548, %v5540
    %v5557 = vpack.c.b16 %v5549, %v5541
    %v5558 = vpack.c.b16 %v5550, %v5542
    %v5559 = vpack.c.b16 %v5551, %v5543
    %v5560 = vpack.c.b16 %v5552, %v5544
    %v5561 = vpack.c.b16 %v5553, %v5545
    %v5562 = vpack.c.b16 %v5554, %v5546
    %v5563 = vpack.c.b16 %v5555, %v5547
    %vm5572 = vcmask 130048
    %v5574 = vsel %vm5572, %v5516, 0
    %v5577 = vsel %vm5572, %v5517, 0
    %v5580 = vsel %vm5572, %v5518, 0
    %v5583 = vsel %vm5572, %v5519, 0
    %v5586 = vsel %vm5572, %v5520, 0
    %v5589 = vsel %vm5572, %v5521, 0
    %v5592 = vsel %vm5572, %v5522, 0
    %v5595 = vsel %vm5572, %v5523, 0
    %5597 = vmatprep.subr.bf16.mxu0 %v5557
    %5598 = vmatpush1.bf16.msra.mxu0 %v5556
    %5599 = vmatprep.subr.bf16.mxu0 0
    %5600 = vmatpush1.bf16.msra.mxu0 0
    %5601 = vmatprep.subr.bf16.mxu0 0
    %5602 = vmatpush1.bf16.msra.mxu0 0
    %5603 = vmatprep.subr.bf16.mxu0 0
    %5604 = vmatpush1.bf16.msra.mxu0 0
    %5605 = vmatprep.subr.bf16.mxu0 0
    %5606 = vmatpush1.bf16.msra.mxu0 0
    %5607 = vmatprep.subr.bf16.mxu0 0
    %5608 = vmatpush1.bf16.msra.mxu0 0
    %5609 = vmatprep.subr.bf16.mxu0 0
    %5610 = vmatpush1.bf16.msra.mxu0 0
    %5611 = vmatprep.subr.bf16.mxu0 0
    %5612 = vmatpush1.bf16.msra.mxu0 0
    %5613 = vmatprep.subr.bf16.mxu0 0
    %5614 = vmatpush1.bf16.msra.mxu0 0
    %5615 = vmatprep.subr.bf16.mxu0 0
    %5616 = vmatpush1.bf16.msra.mxu0 0
    %5617 = vmatprep.subr.bf16.mxu0 0
    %5618 = vmatpush1.bf16.msra.mxu0 0
    %5619 = vmatprep.subr.bf16.mxu0 0
    %5620 = vmatpush1.bf16.msra.mxu0 0
    %5621 = vmatprep.subr.bf16.mxu0 0
    %5622 = vmatpush1.bf16.msra.mxu0 0
    %5623 = vmatprep.subr.bf16.mxu0 0
    %5624 = vmatpush1.bf16.msra.mxu0 0
    %5625 = vmatprep.subr.bf16.mxu0 0
    %5626 = vmatpush1.bf16.msra.mxu0 0
    %5627 = vmatprep.subr.bf16.mxu0 0
    %5628 = vmatpush1.bf16.msra.mxu0 0
    %5629 = vmatprep.mubr.bf16.mxu0 0
    %5630 = vmatmul.mubr.bf16.gmra.mrb[0].mxu0 %v5574
    %v5631 = vpop.f32.mrb[0].mxu0
    %v5632 = vadd.f32 0.0, %v5631
    %v5633 = vpop.f32.mrb[0].mxu0
    %v5634 = vadd.f32 0.0, %v5633
    %v5635 = vpop.f32.mrb[0].mxu0
    %v5636 = vadd.f32 0.0, %v5635
    %v5637 = vpop.f32.mrb[0].mxu0
    %v5638 = vadd.f32 0.0, %v5637
    %5639 = vmatprep.mubr.bf16.mxu0 0
    %5640 = vmatmul.mubr.bf16.gmra.mrb[0].mxu0 %v5577
    %v5641 = vpop.f32.mrb[0].mxu0
    %v5642 = vadd.f32 0.0, %v5641
    %v5643 = vpop.f32.mrb[0].mxu0
    %v5644 = vadd.f32 0.0, %v5643
    %v5645 = vpop.f32.mrb[0].mxu0
    %v5646 = vadd.f32 0.0, %v5645
    %v5647 = vpop.f32.mrb[0].mxu0
    %v5648 = vadd.f32 0.0, %v5647
    %5649 = vmatprep.mubr.bf16.mxu0 0
    %5650 = vmatmul.mubr.bf16.gmra.mrb[0].mxu0 %v5580
    %v5651 = vpop.f32.mrb[0].mxu0
    %v5652 = vadd.f32 0.0, %v5651
    %v5653 = vpop.f32.mrb[0].mxu0
    %v5654 = vadd.f32 0.0, %v5653
    %v5655 = vpop.f32.mrb[0].mxu0
    %v5656 = vadd.f32 0.0, %v5655
    %v5657 = vpop.f32.mrb[0].mxu0
    %v5658 = vadd.f32 0.0, %v5657
    %5659 = vmatprep.mubr.bf16.mxu0 0
    %5660 = vmatmul.mubr.bf16.gmra.mrb[0].mxu0 %v5583
    %v5661 = vpop.f32.mrb[0].mxu0
    %v5662 = vadd.f32 0.0, %v5661
    %v5663 = vpop.f32.mrb[0].mxu0
    %v5664 = vadd.f32 0.0, %v5663
    %v5665 = vpop.f32.mrb[0].mxu0
    %v5666 = vadd.f32 0.0, %v5665
    %v5667 = vpop.f32.mrb[0].mxu0
    %v5668 = vadd.f32 0.0, %v5667
    %5669 = vmatprep.mubr.bf16.mxu0 0
    %5670 = vmatmul.mubr.bf16.gmra.mrb[0].mxu0 %v5586
    %v5671 = vpop.f32.mrb[0].mxu0
    %v5672 = vadd.f32 0.0, %v5671
    %v5673 = vpop.f32.mrb[0].mxu0
    %v5674 = vadd.f32 0.0, %v5673
    %v5675 = vpop.f32.mrb[0].mxu0
    %v5676 = vadd.f32 0.0, %v5675
    %v5677 = vpop.f32.mrb[0].mxu0
    %v5678 = vadd.f32 0.0, %v5677
    %5679 = vmatprep.mubr.bf16.mxu0 0
    %5680 = vmatmul.mubr.bf16.gmra.mrb[0].mxu0 %v5589
    %v5681 = vpop.f32.mrb[0].mxu0
    %v5682 = vadd.f32 0.0, %v5681
    %v5683 = vpop.f32.mrb[0].mxu0
    %v5684 = vadd.f32 0.0, %v5683
    %v5685 = vpop.f32.mrb[0].mxu0
    %v5686 = vadd.f32 0.0, %v5685
    %v5687 = vpop.f32.mrb[0].mxu0
    %v5688 = vadd.f32 0.0, %v5687
    %5689 = vmatprep.mubr.bf16.mxu0 0
    %5690 = vmatmul.mubr.bf16.gmra.mrb[0].mxu0 %v5592
    %v5691 = vpop.f32.mrb[0].mxu0
    %v5692 = vadd.f32 0.0, %v5691
    %v5693 = vpop.f32.mrb[0].mxu0
    %v5694 = vadd.f32 0.0, %v5693
    %v5695 = vpop.f32.mrb[0].mxu0
    %v5696 = vadd.f32 0.0, %v5695
    %v5697 = vpop.f32.mrb[0].mxu0
    %v5698 = vadd.f32 0.0, %v5697
    %5699 = vmatprep.mubr.bf16.mxu0 0
    %5700 = vmatmul.mubr.bf16.gmra.mrb[0].mxu0 %v5595
    %v5701 = vpop.f32.mrb[0].mxu0
    %v5702 = vadd.f32 0.0, %v5701
    %v5703 = vpop.f32.mrb[0].mxu0
    %v5704 = vadd.f32 0.0, %v5703
    %v5705 = vpop.f32.mrb[0].mxu0
    %v5706 = vadd.f32 0.0, %v5705
    %v5707 = vpop.f32.mrb[0].mxu0
    %v5708 = vadd.f32 0.0, %v5707
    %5709 = vdwg.mxu0
    %5710 = vmatprep.subr.bf16.mxu0 %v5559
    %5711 = vmatpush1.bf16.msra.mxu0 %v5558
    %5712 = vmatprep.subr.bf16.mxu0 0
    %5713 = vmatpush1.bf16.msra.mxu0 0
    %5714 = vmatprep.subr.bf16.mxu0 0
    %5715 = vmatpush1.bf16.msra.mxu0 0
    %5716 = vmatprep.subr.bf16.mxu0 0
    %5717 = vmatpush1.bf16.msra.mxu0 0
    %5718 = vmatprep.subr.bf16.mxu0 0
    %5719 = vmatpush1.bf16.msra.mxu0 0
    %5720 = vmatprep.subr.bf16.mxu0 0
    %5721 = vmatpush1.bf16.msra.mxu0 0
    %5722 = vmatprep.subr.bf16.mxu0 0
    %5723 = vmatpush1.bf16.msra.mxu0 0
    %5724 = vmatprep.subr.bf16.mxu0 0
    %5725 = vmatpush1.bf16.msra.mxu0 0
    %5726 = vmatprep.subr.bf16.mxu0 0
    %5727 = vmatpush1.bf16.msra.mxu0 0
    %5728 = vmatprep.subr.bf16.mxu0 0
    %5729 = vmatpush1.bf16.msra.mxu0 0
    %5730 = vmatprep.subr.bf16.mxu0 0
    %5731 = vmatpush1.bf16.msra.mxu0 0
    %5732 = vmatprep.subr.bf16.mxu0 0
    %5733 = vmatpush1.bf16.msra.mxu0 0
    %5734 = vmatprep.subr.bf16.mxu0 0
    %5735 = vmatpush1.bf16.msra.mxu0 0
    %5736 = vmatprep.subr.bf16.mxu0 0
    %5737 = vmatpush1.bf16.msra.mxu0 0
    %5738 = vmatprep.subr.bf16.mxu0 0
    %5739 = vmatpush1.bf16.msra.mxu0 0
    %5740 = vmatprep.subr.bf16.mxu0 0
    %5741 = vmatpush1.bf16.msra.mxu0 0
    %5742 = vmatprep.mubr.bf16.mxu0 0
    %5743 = vmatmul.mubr.bf16.gmra.mrb[0].mxu0 %v5574
    %v5744 = vpop.f32.mrb[0].mxu0
    %v5745 = vadd.f32 0.0, %v5744
    %v5746 = vpop.f32.mrb[0].mxu0
    %v5747 = vadd.f32 0.0, %v5746
    %v5748 = vpop.f32.mrb[0].mxu0
    %v5749 = vadd.f32 0.0, %v5748
    %v5750 = vpop.f32.mrb[0].mxu0
    %v5751 = vadd.f32 0.0, %v5750
    %5752 = vmatprep.mubr.bf16.mxu0 0
    %5753 = vmatmul.mubr.bf16.gmra.mrb[0].mxu0 %v5577
    %v5754 = vpop.f32.mrb[0].mxu0
    %v5755 = vadd.f32 0.0, %v5754
    %v5756 = vpop.f32.mrb[0].mxu0
    %v5757 = vadd.f32 0.0, %v5756
    %v5758 = vpop.f32.mrb[0].mxu0
    %v5759 = vadd.f32 0.0, %v5758
    %v5760 = vpop.f32.mrb[0].mxu0
    %v5761 = vadd.f32 0.0, %v5760
    %5762 = vmatprep.mubr.bf16.mxu0 0
    %5763 = vmatmul.mubr.bf16.gmra.mrb[0].mxu0 %v5580
    %v5764 = vpop.f32.mrb[0].mxu0
    %v5765 = vadd.f32 0.0, %v5764
    %v5766 = vpop.f32.mrb[0].mxu0
    %v5767 = vadd.f32 0.0, %v5766
    %v5768 = vpop.f32.mrb[0].mxu0
    %v5769 = vadd.f32 0.0, %v5768
    %v5770 = vpop.f32.mrb[0].mxu0
    %v5771 = vadd.f32 0.0, %v5770
    %5772 = vmatprep.mubr.bf16.mxu0 0
    %5773 = vmatmul.mubr.bf16.gmra.mrb[0].mxu0 %v5583
    %v5774 = vpop.f32.mrb[0].mxu0
    %v5775 = vadd.f32 0.0, %v5774
    %v5776 = vpop.f32.mrb[0].mxu0
    %v5777 = vadd.f32 0.0, %v5776
    %v5778 = vpop.f32.mrb[0].mxu0
    %v5779 = vadd.f32 0.0, %v5778
    %v5780 = vpop.f32.mrb[0].mxu0
    %v5781 = vadd.f32 0.0, %v5780
    %5782 = vmatprep.mubr.bf16.mxu0 0
    %5783 = vmatmul.mubr.bf16.gmra.mrb[0].mxu0 %v5586
    %v5784 = vpop.f32.mrb[0].mxu0
    %v5785 = vadd.f32 0.0, %v5784
    %v5786 = vpop.f32.mrb[0].mxu0
    %v5787 = vadd.f32 0.0, %v5786
    %v5788 = vpop.f32.mrb[0].mxu0
    %v5789 = vadd.f32 0.0, %v5788
    %v5790 = vpop.f32.mrb[0].mxu0
    %v5791 = vadd.f32 0.0, %v5790
    %5792 = vmatprep.mubr.bf16.mxu0 0
    %5793 = vmatmul.mubr.bf16.gmra.mrb[0].mxu0 %v5589
    %v5794 = vpop.f32.mrb[0].mxu0
    %v5795 = vadd.f32 0.0, %v5794
    %v5796 = vpop.f32.mrb[0].mxu0
    %v5797 = vadd.f32 0.0, %v5796
    %v5798 = vpop.f32.mrb[0].mxu0
    %v5799 = vadd.f32 0.0, %v5798
    %v5800 = vpop.f32.mrb[0].mxu0
    %v5801 = vadd.f32 0.0, %v5800
    %5802 = vmatprep.mubr.bf16.mxu0 0
    %5803 = vmatmul.mubr.bf16.gmra.mrb[0].mxu0 %v5592
    %v5804 = vpop.f32.mrb[0].mxu0
    %v5805 = vadd.f32 0.0, %v5804
    %v5806 = vpop.f32.mrb[0].mxu0
    %v5807 = vadd.f32 0.0, %v5806
    %v5808 = vpop.f32.mrb[0].mxu0
    %v5809 = vadd.f32 0.0, %v5808
    %v5810 = vpop.f32.mrb[0].mxu0
    %v5811 = vadd.f32 0.0, %v5810
    %5812 = vmatprep.mubr.bf16.mxu0 0
    %5813 = vmatmul.mubr.bf16.gmra.mrb[0].mxu0 %v5595
    %v5814 = vpop.f32.mrb[0].mxu0
    %v5815 = vadd.f32 0.0, %v5814
    %v5816 = vpop.f32.mrb[0].mxu0
    %v5817 = vadd.f32 0.0, %v5816
    %v5818 = vpop.f32.mrb[0].mxu0
    %v5819 = vadd.f32 0.0, %v5818
    %v5820 = vpop.f32.mrb[0].mxu0
    %v5821 = vadd.f32 0.0, %v5820
    %5822 = vdwg.mxu0
    %5823 = vmatprep.subr.bf16.mxu0 %v5561
    %5824 = vmatpush1.bf16.msra.mxu0 %v5560
    %5825 = vmatprep.subr.bf16.mxu0 0
    %5826 = vmatpush1.bf16.msra.mxu0 0
    %5827 = vmatprep.subr.bf16.mxu0 0
    %5828 = vmatpush1.bf16.msra.mxu0 0
    %5829 = vmatprep.subr.bf16.mxu0 0
    %5830 = vmatpush1.bf16.msra.mxu0 0
    %5831 = vmatprep.subr.bf16.mxu0 0
    %5832 = vmatpush1.bf16.msra.mxu0 0
    %5833 = vmatprep.subr.bf16.mxu0 0
    %5834 = vmatpush1.bf16.msra.mxu0 0
    %5835 = vmatprep.subr.bf16.mxu0 0
    %5836 = vmatpush1.bf16.msra.mxu0 0
    %5837 = vmatprep.subr.bf16.mxu0 0
    %5838 = vmatpush1.bf16.msra.mxu0 0
    %5839 = vmatprep.subr.bf16.mxu0 0
    %5840 = vmatpush1.bf16.msra.mxu0 0
    %5841 = vmatprep.subr.bf16.mxu0 0
    %5842 = vmatpush1.bf16.msra.mxu0 0
    %5843 = vmatprep.subr.bf16.mxu0 0
    %5844 = vmatpush1.bf16.msra.mxu0 0
    %5845 = vmatprep.subr.bf16.mxu0 0
    %5846 = vmatpush1.bf16.msra.mxu0 0
    %5847 = vmatprep.subr.bf16.mxu0 0
    %5848 = vmatpush1.bf16.msra.mxu0 0
    %5849 = vmatprep.subr.bf16.mxu0 0
    %5850 = vmatpush1.bf16.msra.mxu0 0
    %5851 = vmatprep.subr.bf16.mxu0 0
    %5852 = vmatpush1.bf16.msra.mxu0 0
    %5853 = vmatprep.subr.bf16.mxu0 0
    %5854 = vmatpush1.bf16.msra.mxu0 0
    %5855 = vmatprep.mubr.bf16.mxu0 0
    %5856 = vmatmul.mubr.bf16.gmra.mrb[0].mxu0 %v5574
    %v5857 = vpop.f32.mrb[0].mxu0
    %v5858 = vadd.f32 0.0, %v5857
    %v5859 = vpop.f32.mrb[0].mxu0
    %v5860 = vadd.f32 0.0, %v5859
    %v5861 = vpop.f32.mrb[0].mxu0
    %v5862 = vadd.f32 0.0, %v5861
    %v5863 = vpop.f32.mrb[0].mxu0
    %v5864 = vadd.f32 0.0, %v5863
    %5865 = vmatprep.mubr.bf16.mxu0 0
    %5866 = vmatmul.mubr.bf16.gmra.mrb[0].mxu0 %v5577
    %v5867 = vpop.f32.mrb[0].mxu0
    %v5868 = vadd.f32 0.0, %v5867
    %v5869 = vpop.f32.mrb[0].mxu0
    %v5870 = vadd.f32 0.0, %v5869
    %v5871 = vpop.f32.mrb[0].mxu0
    %v5872 = vadd.f32 0.0, %v5871
    %v5873 = vpop.f32.mrb[0].mxu0
    %v5874 = vadd.f32 0.0, %v5873
    %5875 = vmatprep.mubr.bf16.mxu0 0
    %5876 = vmatmul.mubr.bf16.gmra.mrb[0].mxu0 %v5580
    %v5877 = vpop.f32.mrb[0].mxu0
    %v5878 = vadd.f32 0.0, %v5877
    %v5879 = vpop.f32.mrb[0].mxu0
    %v5880 = vadd.f32 0.0, %v5879
    %v5881 = vpop.f32.mrb[0].mxu0
    %v5882 = vadd.f32 0.0, %v5881
    %v5883 = vpop.f32.mrb[0].mxu0
    %v5884 = vadd.f32 0.0, %v5883
    %5885 = vmatprep.mubr.bf16.mxu0 0
    %5886 = vmatmul.mubr.bf16.gmra.mrb[0].mxu0 %v5583
    %v5887 = vpop.f32.mrb[0].mxu0
    %v5888 = vadd.f32 0.0, %v5887
    %v5889 = vpop.f32.mrb[0].mxu0
    %v5890 = vadd.f32 0.0, %v5889
    %v5891 = vpop.f32.mrb[0].mxu0
    %v5892 = vadd.f32 0.0, %v5891
    %v5893 = vpop.f32.mrb[0].mxu0
    %v5894 = vadd.f32 0.0, %v5893
    %5895 = vmatprep.mubr.bf16.mxu0 0
    %5896 = vmatmul.mubr.bf16.gmra.mrb[0].mxu0 %v5586
    %v5897 = vpop.f32.mrb[0].mxu0
    %v5898 = vadd.f32 0.0, %v5897
    %v5899 = vpop.f32.mrb[0].mxu0
    %v5900 = vadd.f32 0.0, %v5899
    %v5901 = vpop.f32.mrb[0].mxu0
    %v5902 = vadd.f32 0.0, %v5901
    %v5903 = vpop.f32.mrb[0].mxu0
    %v5904 = vadd.f32 0.0, %v5903
    %5905 = vmatprep.mubr.bf16.mxu0 0
    %5906 = vmatmul.mubr.bf16.gmra.mrb[0].mxu0 %v5589
    %v5907 = vpop.f32.mrb[0].mxu0
    %v5908 = vadd.f32 0.0, %v5907
    %v5909 = vpop.f32.mrb[0].mxu0
    %v5910 = vadd.f32 0.0, %v5909
    %v5911 = vpop.f32.mrb[0].mxu0
    %v5912 = vadd.f32 0.0, %v5911
    %v5913 = vpop.f32.mrb[0].mxu0
    %v5914 = vadd.f32 0.0, %v5913
    %5915 = vmatprep.mubr.bf16.mxu0 0
    %5916 = vmatmul.mubr.bf16.gmra.mrb[0].mxu0 %v5592
    %v5917 = vpop.f32.mrb[0].mxu0
    %v5918 = vadd.f32 0.0, %v5917
    %v5919 = vpop.f32.mrb[0].mxu0
    %v5920 = vadd.f32 0.0, %v5919
    %v5921 = vpop.f32.mrb[0].mxu0
    %v5922 = vadd.f32 0.0, %v5921
    %v5923 = vpop.f32.mrb[0].mxu0
    %v5924 = vadd.f32 0.0, %v5923
    %5925 = vmatprep.mubr.bf16.mxu0 0
    %5926 = vmatmul.mubr.bf16.gmra.mrb[0].mxu0 %v5595
    %v5927 = vpop.f32.mrb[0].mxu0
    %v5928 = vadd.f32 0.0, %v5927
    %v5929 = vpop.f32.mrb[0].mxu0
    %v5930 = vadd.f32 0.0, %v5929
    %v5931 = vpop.f32.mrb[0].mxu0
    %v5932 = vadd.f32 0.0, %v5931
    %v5933 = vpop.f32.mrb[0].mxu0
    %v5934 = vadd.f32 0.0, %v5933
    %5935 = vdwg.mxu0
    %5936 = vmatprep.subr.bf16.mxu0 %v5563
    %5937 = vmatpush1.bf16.msra.mxu0 %v5562
    %5938 = vmatprep.subr.bf16.mxu0 0
    %5939 = vmatpush1.bf16.msra.mxu0 0
    %5940 = vmatprep.subr.bf16.mxu0 0
    %5941 = vmatpush1.bf16.msra.mxu0 0
    %5942 = vmatprep.subr.bf16.mxu0 0
    %5943 = vmatpush1.bf16.msra.mxu0 0
    %5944 = vmatprep.subr.bf16.mxu0 0
    %5945 = vmatpush1.bf16.msra.mxu0 0
    %5946 = vmatprep.subr.bf16.mxu0 0
    %5947 = vmatpush1.bf16.msra.mxu0 0
    %5948 = vmatprep.subr.bf16.mxu0 0
    %5949 = vmatpush1.bf16.msra.mxu0 0
    %5950 = vmatprep.subr.bf16.mxu0 0
    %5951 = vmatpush1.bf16.msra.mxu0 0
    %5952 = vmatprep.subr.bf16.mxu0 0
    %5953 = vmatpush1.bf16.msra.mxu0 0
    %5954 = vmatprep.subr.bf16.mxu0 0
    %5955 = vmatpush1.bf16.msra.mxu0 0
    %5956 = vmatprep.subr.bf16.mxu0 0
    %5957 = vmatpush1.bf16.msra.mxu0 0
    %5958 = vmatprep.subr.bf16.mxu0 0
    %5959 = vmatpush1.bf16.msra.mxu0 0
    %5960 = vmatprep.subr.bf16.mxu0 0
    %5961 = vmatpush1.bf16.msra.mxu0 0
    %5962 = vmatprep.subr.bf16.mxu0 0
    %5963 = vmatpush1.bf16.msra.mxu0 0
    %5964 = vmatprep.subr.bf16.mxu0 0
    %5965 = vmatpush1.bf16.msra.mxu0 0
    %5966 = vmatprep.subr.bf16.mxu0 0
    %5967 = vmatpush1.bf16.msra.mxu0 0
    %5968 = vmatprep.mubr.bf16.mxu0 0
    %5969 = vmatmul.mubr.bf16.gmra.mrb[0].mxu0 %v5574
    %v5970 = vpop.f32.mrb[0].mxu0
    %v5971 = vadd.f32 0.0, %v5970
    %v5972 = vpop.f32.mrb[0].mxu0
    %v5973 = vadd.f32 0.0, %v5972
    %v5974 = vpop.f32.mrb[0].mxu0
    %v5975 = vadd.f32 0.0, %v5974
    %v5976 = vpop.f32.mrb[0].mxu0
    %v5977 = vadd.f32 0.0, %v5976
    %5978 = vmatprep.mubr.bf16.mxu0 0
    %5979 = vmatmul.mubr.bf16.gmra.mrb[0].mxu0 %v5577
    %v5980 = vpop.f32.mrb[0].mxu0
    %v5981 = vadd.f32 0.0, %v5980
    %v5982 = vpop.f32.mrb[0].mxu0
    %v5983 = vadd.f32 0.0, %v5982
    %v5984 = vpop.f32.mrb[0].mxu0
    %v5985 = vadd.f32 0.0, %v5984
    %v5986 = vpop.f32.mrb[0].mxu0
    %v5987 = vadd.f32 0.0, %v5986
    %5988 = vmatprep.mubr.bf16.mxu0 0
    %5989 = vmatmul.mubr.bf16.gmra.mrb[0].mxu0 %v5580
    %v5990 = vpop.f32.mrb[0].mxu0
    %v5991 = vadd.f32 0.0, %v5990
    %v5992 = vpop.f32.mrb[0].mxu0
    %v5993 = vadd.f32 0.0, %v5992
    %v5994 = vpop.f32.mrb[0].mxu0
    %v5995 = vadd.f32 0.0, %v5994
    %v5996 = vpop.f32.mrb[0].mxu0
    %v5997 = vadd.f32 0.0, %v5996
    %5998 = vmatprep.mubr.bf16.mxu0 0
    %5999 = vmatmul.mubr.bf16.gmra.mrb[0].mxu0 %v5583
    %v6000 = vpop.f32.mrb[0].mxu0
    %v6001 = vadd.f32 0.0, %v6000
    %v6002 = vpop.f32.mrb[0].mxu0
    %v6003 = vadd.f32 0.0, %v6002
    %v6004 = vpop.f32.mrb[0].mxu0
    %v6005 = vadd.f32 0.0, %v6004
    %v6006 = vpop.f32.mrb[0].mxu0
    %v6007 = vadd.f32 0.0, %v6006
    %6008 = vmatprep.mubr.bf16.mxu0 0
    %6009 = vmatmul.mubr.bf16.gmra.mrb[0].mxu0 %v5586
    %v6010 = vpop.f32.mrb[0].mxu0
    %v6011 = vadd.f32 0.0, %v6010
    %v6012 = vpop.f32.mrb[0].mxu0
    %v6013 = vadd.f32 0.0, %v6012
    %v6014 = vpop.f32.mrb[0].mxu0
    %v6015 = vadd.f32 0.0, %v6014
    %v6016 = vpop.f32.mrb[0].mxu0
    %v6017 = vadd.f32 0.0, %v6016
    %6018 = vmatprep.mubr.bf16.mxu0 0
    %6019 = vmatmul.mubr.bf16.gmra.mrb[0].mxu0 %v5589
    %v6020 = vpop.f32.mrb[0].mxu0
    %v6021 = vadd.f32 0.0, %v6020
    %v6022 = vpop.f32.mrb[0].mxu0
    %v6023 = vadd.f32 0.0, %v6022
    %v6024 = vpop.f32.mrb[0].mxu0
    %v6025 = vadd.f32 0.0, %v6024
    %v6026 = vpop.f32.mrb[0].mxu0
    %v6027 = vadd.f32 0.0, %v6026
    %6028 = vmatprep.mubr.bf16.mxu0 0
    %6029 = vmatmul.mubr.bf16.gmra.mrb[0].mxu0 %v5592
    %v6030 = vpop.f32.mrb[0].mxu0
    %v6031 = vadd.f32 0.0, %v6030
    %v6032 = vpop.f32.mrb[0].mxu0
    %v6033 = vadd.f32 0.0, %v6032
    %v6034 = vpop.f32.mrb[0].mxu0
    %v6035 = vadd.f32 0.0, %v6034
    %v6036 = vpop.f32.mrb[0].mxu0
    %v6037 = vadd.f32 0.0, %v6036
    %6038 = vmatprep.mubr.bf16.mxu0 0
    %6039 = vmatmul.mubr.bf16.gmra.mrb[0].mxu0 %v5595
    %v6040 = vpop.f32.mrb[0].mxu0
    %v6041 = vadd.f32 0.0, %v6040
    %v6042 = vpop.f32.mrb[0].mxu0
    %v6043 = vadd.f32 0.0, %v6042
    %v6044 = vpop.f32.mrb[0].mxu0
    %v6045 = vadd.f32 0.0, %v6044
    %v6046 = vpop.f32.mrb[0].mxu0
    %v6047 = vadd.f32 0.0, %v6046
    %6048 = vdwg.mxu0
    %v6049 = vld [vmem:[#allocation22] sm:$0xff]
    %v6050 = vld [vmem:[#allocation22 + $0x8] sm:$0xff]
    %v6051 = vld [vmem:[#allocation22 + $0x10] sm:$0xff]
    %v6052 = vld [vmem:[#allocation22 + $0x18] sm:$0xff]
    %v6053 = vld [vmem:[#allocation22 + $0x20] sm:$0xff]
    %v6054 = vld [vmem:[#allocation22 + $0x28] sm:$0xff]
    %v6055 = vld [vmem:[#allocation22 + $0x30] sm:$0xff]
    %v6056 = vld [vmem:[#allocation22 + $0x38] sm:$0xff]
    %v6057 = vld [vmem:[#allocation22 + $0x40] sm:$0xff]
    %v6058 = vld [vmem:[#allocation22 + $0x48] sm:$0xff]
    %v6059 = vld [vmem:[#allocation22 + $0x50] sm:$0xff]
    %v6060 = vld [vmem:[#allocation22 + $0x58] sm:$0xff]
    %v6061 = vld [vmem:[#allocation22 + $0x60] sm:$0xff]
    %v6062 = vld [vmem:[#allocation22 + $0x68] sm:$0xff]
    %v6063 = vld [vmem:[#allocation22 + $0x70] sm:$0xff]
    %v6064 = vld [vmem:[#allocation22 + $0x78] sm:$0xff]
    %v6065 = vld [vmem:[#allocation22 + $0x80] sm:$0xff]
    %v6066 = vld [vmem:[#allocation22 + $0x88] sm:$0xff]
    %v6067 = vld [vmem:[#allocation22 + $0x90] sm:$0xff]
    %v6068 = vld [vmem:[#allocation22 + $0x98] sm:$0xff]
    %v6069 = vld [vmem:[#allocation22 + $0xa0] sm:$0xff]
    %v6070 = vld [vmem:[#allocation22 + $0xa8] sm:$0xff]
    %v6071 = vld [vmem:[#allocation22 + $0xb0] sm:$0xff]
    %v6072 = vld [vmem:[#allocation22 + $0xb8] sm:$0xff]
    %v6073 = vld [vmem:[#allocation22 + $0xc0] sm:$0xff]
    %v6074 = vld [vmem:[#allocation22 + $0xc8] sm:$0xff]
    %v6075 = vld [vmem:[#allocation22 + $0xd0] sm:$0xff]
    %v6076 = vld [vmem:[#allocation22 + $0xd8] sm:$0xff]
    %v6077 = vld [vmem:[#allocation22 + $0xe0] sm:$0xff]
    %v6078 = vld [vmem:[#allocation22 + $0xe8] sm:$0xff]
    %v6079 = vld [vmem:[#allocation22 + $0xf0] sm:$0xff]
    %v6080 = vld [vmem:[#allocation22 + $0xf8] sm:$0xff]
    %v6081 = vld [vmem:[#allocation22 + $0x100] sm:$0xff]
    %v6082 = vld [vmem:[#allocation22 + $0x108] sm:$0xff]
    %v6083 = vld [vmem:[#allocation22 + $0x110] sm:$0xff]
    %v6084 = vld [vmem:[#allocation22 + $0x118] sm:$0xff]
    %v6085 = vld [vmem:[#allocation22 + $0x120] sm:$0xff]
    %v6086 = vld [vmem:[#allocation22 + $0x128] sm:$0xff]
    %v6087 = vld [vmem:[#allocation22 + $0x130] sm:$0xff]
    %v6088 = vld [vmem:[#allocation22 + $0x138] sm:$0xff]
    %v6089 = vld [vmem:[#allocation22 + $0x140] sm:$0xff]
    %v6090 = vld [vmem:[#allocation22 + $0x148] sm:$0xff]
    %v6091 = vld [vmem:[#allocation22 + $0x150] sm:$0xff]
    %v6092 = vld [vmem:[#allocation22 + $0x158] sm:$0xff]
    %v6093 = vld [vmem:[#allocation22 + $0x160] sm:$0xff]
    %v6094 = vld [vmem:[#allocation22 + $0x168] sm:$0xff]
    %v6095 = vld [vmem:[#allocation22 + $0x170] sm:$0xff]
    %v6096 = vld [vmem:[#allocation22 + $0x178] sm:$0xff]
    %v6097 = vld [vmem:[#allocation22 + $0x180] sm:$0xff]
    %v6098 = vld [vmem:[#allocation22 + $0x188] sm:$0xff]
    %v6099 = vld [vmem:[#allocation22 + $0x190] sm:$0xff]
    %v6100 = vld [vmem:[#allocation22 + $0x198] sm:$0xff]
    %v6101 = vld [vmem:[#allocation22 + $0x1a0] sm:$0xff]
    %v6102 = vld [vmem:[#allocation22 + $0x1a8] sm:$0xff]
    %v6103 = vld [vmem:[#allocation22 + $0x1b0] sm:$0xff]
    %v6104 = vld [vmem:[#allocation22 + $0x1b8] sm:$0xff]
    %v6105 = vld [vmem:[#allocation22 + $0x1c0] sm:$0xff]
    %v6106 = vld [vmem:[#allocation22 + $0x1c8] sm:$0xff]
    %v6107 = vld [vmem:[#allocation22 + $0x1d0] sm:$0xff]
    %v6108 = vld [vmem:[#allocation22 + $0x1d8] sm:$0xff]
    %v6109 = vld [vmem:[#allocation22 + $0x1e0] sm:$0xff]
    %v6110 = vld [vmem:[#allocation22 + $0x1e8] sm:$0xff]
    %v6111 = vld [vmem:[#allocation22 + $0x1f0] sm:$0xff]
    %v6112 = vld [vmem:[#allocation22 + $0x1f8] sm:$0xff]
    %v6113 = vld [vmem:[#allocation22 + $0x200] sm:$0xff]
    %v6114 = vld [vmem:[#allocation22 + $0x208] sm:$0xff]
    %v6115 = vld [vmem:[#allocation22 + $0x210] sm:$0xff]
    %v6116 = vld [vmem:[#allocation22 + $0x218] sm:$0xff]
    %v6117 = vld [vmem:[#allocation22 + $0x220] sm:$0xff]
    %v6118 = vld [vmem:[#allocation22 + $0x228] sm:$0xff]
    %v6119 = vld [vmem:[#allocation22 + $0x230] sm:$0xff]
    %v6120 = vld [vmem:[#allocation22 + $0x238] sm:$0xff]
    %v6121 = vld [vmem:[#allocation22 + $0x240] sm:$0xff]
    %v6122 = vld [vmem:[#allocation22 + $0x248] sm:$0xff]
    %v6123 = vld [vmem:[#allocation22 + $0x250] sm:$0xff]
    %v6124 = vld [vmem:[#allocation22 + $0x258] sm:$0xff]
    %v6125 = vld [vmem:[#allocation22 + $0x260] sm:$0xff]
    %v6126 = vld [vmem:[#allocation22 + $0x268] sm:$0xff]
    %v6127 = vld [vmem:[#allocation22 + $0x270] sm:$0xff]
    %v6128 = vld [vmem:[#allocation22 + $0x278] sm:$0xff]
    %v6129 = vld [vmem:[#allocation22 + $0x280] sm:$0xff]
    %v6130 = vld [vmem:[#allocation22 + $0x288] sm:$0xff]
    %v6131 = vld [vmem:[#allocation22 + $0x290] sm:$0xff]
    %v6132 = vld [vmem:[#allocation22 + $0x298] sm:$0xff]
    %v6133 = vld [vmem:[#allocation22 + $0x2a0] sm:$0xff]
    %v6134 = vld [vmem:[#allocation22 + $0x2a8] sm:$0xff]
    %v6135 = vld [vmem:[#allocation22 + $0x2b0] sm:$0xff]
    %v6136 = vld [vmem:[#allocation22 + $0x2b8] sm:$0xff]
    %v6137 = vld [vmem:[#allocation22 + $0x2c0] sm:$0xff]
    %v6138 = vld [vmem:[#allocation22 + $0x2c8] sm:$0xff]
    %v6139 = vld [vmem:[#allocation22 + $0x2d0] sm:$0xff]
    %v6140 = vld [vmem:[#allocation22 + $0x2d8] sm:$0xff]
    %v6141 = vld [vmem:[#allocation22 + $0x2e0] sm:$0xff]
    %v6142 = vld [vmem:[#allocation22 + $0x2e8] sm:$0xff]
    %v6143 = vld [vmem:[#allocation22 + $0x2f0] sm:$0xff]
    %v6144 = vld [vmem:[#allocation22 + $0x2f8] sm:$0xff]
    %v6145 = vld [vmem:[#allocation22 + $0x300] sm:$0xff]
    %v6146 = vld [vmem:[#allocation22 + $0x308] sm:$0xff]
    %v6147 = vld [vmem:[#allocation22 + $0x310] sm:$0xff]
    %v6148 = vld [vmem:[#allocation22 + $0x318] sm:$0xff]
    %v6149 = vld [vmem:[#allocation22 + $0x320] sm:$0xff]
    %v6150 = vld [vmem:[#allocation22 + $0x328] sm:$0xff]
    %v6151 = vld [vmem:[#allocation22 + $0x330] sm:$0xff]
    %v6152 = vld [vmem:[#allocation22 + $0x338] sm:$0xff]
    %v6153 = vld [vmem:[#allocation22 + $0x340] sm:$0xff]
    %v6154 = vld [vmem:[#allocation22 + $0x348] sm:$0xff]
    %v6155 = vld [vmem:[#allocation22 + $0x350] sm:$0xff]
    %v6156 = vld [vmem:[#allocation22 + $0x358] sm:$0xff]
    %v6157 = vld [vmem:[#allocation22 + $0x360] sm:$0xff]
    %v6158 = vld [vmem:[#allocation22 + $0x368] sm:$0xff]
    %v6159 = vld [vmem:[#allocation22 + $0x370] sm:$0xff]
    %v6160 = vld [vmem:[#allocation22 + $0x378] sm:$0xff]
    %v6161 = vld [vmem:[#allocation22 + $0x380] sm:$0xff]
    %v6162 = vld [vmem:[#allocation22 + $0x388] sm:$0xff]
    %v6163 = vld [vmem:[#allocation22 + $0x390] sm:$0xff]
    %v6164 = vld [vmem:[#allocation22 + $0x398] sm:$0xff]
    %v6165 = vld [vmem:[#allocation22 + $0x3a0] sm:$0xff]
    %v6166 = vld [vmem:[#allocation22 + $0x3a8] sm:$0xff]
    %v6167 = vld [vmem:[#allocation22 + $0x3b0] sm:$0xff]
    %v6168 = vld [vmem:[#allocation22 + $0x3b8] sm:$0xff]
    %v6169 = vld [vmem:[#allocation22 + $0x3c0] sm:$0xff]
    %v6170 = vld [vmem:[#allocation22 + $0x3c8] sm:$0xff]
    %v6171 = vld [vmem:[#allocation22 + $0x3d0] sm:$0xff]
    %v6172 = vld [vmem:[#allocation22 + $0x3d8] sm:$0xff]
    %v6173 = vld [vmem:[#allocation22 + $0x3e0] sm:$0xff]
    %v6174 = vld [vmem:[#allocation22 + $0x3e8] sm:$0xff]
    %v6175 = vld [vmem:[#allocation22 + $0x3f0] sm:$0xff]
    %v6176 = vld [vmem:[#allocation22 + $0x3f8] sm:$0xff]
    %v6177 = vmul.f32 %v5632, %v6049
    %v6178 = vmul.f32 %v5634, %v6050
    %v6179 = vmul.f32 %v5745, %v6051
    %v6180 = vmul.f32 %v5747, %v6052
    %v6181 = vmul.f32 %v5858, %v6053
    %v6182 = vmul.f32 %v5860, %v6054
    %v6183 = vmul.f32 %v5971, %v6055
    %v6184 = vmul.f32 %v5973, %v6056
    %v6185 = vmul.f32 %v5636, %v6057
    %v6186 = vmul.f32 %v5638, %v6058
    %v6187 = vmul.f32 %v5749, %v6059
    %v6188 = vmul.f32 %v5751, %v6060
    %v6189 = vmul.f32 %v5862, %v6061
    %v6190 = vmul.f32 %v5864, %v6062
    %v6191 = vmul.f32 %v5975, %v6063
    %v6192 = vmul.f32 %v5977, %v6064
    %v6193 = vmul.f32 %v5642, %v6065
    %v6194 = vmul.f32 %v5644, %v6066
    %v6195 = vmul.f32 %v5755, %v6067
    %v6196 = vmul.f32 %v5757, %v6068
    %v6197 = vmul.f32 %v5868, %v6069
    %v6198 = vmul.f32 %v5870, %v6070
    %v6199 = vmul.f32 %v5981, %v6071
    %v6200 = vmul.f32 %v5983, %v6072
    %v6201 = vmul.f32 %v5646, %v6073
    %v6202 = vmul.f32 %v5648, %v6074
    %v6203 = vmul.f32 %v5759, %v6075
    %v6204 = vmul.f32 %v5761, %v6076
    %v6205 = vmul.f32 %v5872, %v6077
    %v6206 = vmul.f32 %v5874, %v6078
    %v6207 = vmul.f32 %v5985, %v6079
    %v6208 = vmul.f32 %v5987, %v6080
    %v6209 = vmul.f32 %v5652, %v6081
    %v6210 = vmul.f32 %v5654, %v6082
    %v6211 = vmul.f32 %v5765, %v6083
    %v6212 = vmul.f32 %v5767, %v6084
    %v6213 = vmul.f32 %v5878, %v6085
    %v6214 = vmul.f32 %v5880, %v6086
    %v6215 = vmul.f32 %v5991, %v6087
    %v6216 = vmul.f32 %v5993, %v6088
    %v6217 = vmul.f32 %v5656, %v6089
    %v6218 = vmul.f32 %v5658, %v6090
    %v6219 = vmul.f32 %v5769, %v6091
    %v6220 = vmul.f32 %v5771, %v6092
    %v6221 = vmul.f32 %v5882, %v6093
    %v6222 = vmul.f32 %v5884, %v6094
    %v6223 = vmul.f32 %v5995, %v6095
    %v6224 = vmul.f32 %v5997, %v6096
    %v6225 = vmul.f32 %v5662, %v6097
    %v6226 = vmul.f32 %v5664, %v6098
    %v6227 = vmul.f32 %v5775, %v6099
    %v6228 = vmul.f32 %v5777, %v6100
    %v6229 = vmul.f32 %v5888, %v6101
    %v6230 = vmul.f32 %v5890, %v6102
    %v6231 = vmul.f32 %v6001, %v6103
    %v6232 = vmul.f32 %v6003, %v6104
    %v6233 = vmul.f32 %v5666, %v6105
    %v6234 = vmul.f32 %v5668, %v6106
    %v6235 = vmul.f32 %v5779, %v6107
    %v6236 = vmul.f32 %v5781, %v6108
    %v6237 = vmul.f32 %v5892, %v6109
    %v6238 = vmul.f32 %v5894, %v6110
    %v6239 = vmul.f32 %v6005, %v6111
    %v6240 = vmul.f32 %v6007, %v6112
    %v6241 = vmul.f32 %v5672, %v6113
    %v6242 = vmul.f32 %v5674, %v6114
    %v6243 = vmul.f32 %v5785, %v6115
    %v6244 = vmul.f32 %v5787, %v6116
    %v6245 = vmul.f32 %v5898, %v6117
    %v6246 = vmul.f32 %v5900, %v6118
    %v6247 = vmul.f32 %v6011, %v6119
    %v6248 = vmul.f32 %v6013, %v6120
    %v6249 = vmul.f32 %v5676, %v6121
    %v6250 = vmul.f32 %v5678, %v6122
    %v6251 = vmul.f32 %v5789, %v6123
    %v6252 = vmul.f32 %v5791, %v6124
    %v6253 = vmul.f32 %v5902, %v6125
    %v6254 = vmul.f32 %v5904, %v6126
    %v6255 = vmul.f32 %v6015, %v6127
    %v6256 = vmul.f32 %v6017, %v6128
    %v6257 = vmul.f32 %v5682, %v6129
    %v6258 = vmul.f32 %v5684, %v6130
    %v6259 = vmul.f32 %v5795, %v6131
    %v6260 = vmul.f32 %v5797, %v6132
    %v6261 = vmul.f32 %v5908, %v6133
    %v6262 = vmul.f32 %v5910, %v6134
    %v6263 = vmul.f32 %v6021, %v6135
    %v6264 = vmul.f32 %v6023, %v6136
    %v6265 = vmul.f32 %v5686, %v6137
    %v6266 = vmul.f32 %v5688, %v6138
    %v6267 = vmul.f32 %v5799, %v6139
    %v6268 = vmul.f32 %v5801, %v6140
    %v6269 = vmul.f32 %v5912, %v6141
    %v6270 = vmul.f32 %v5914, %v6142
    %v6271 = vmul.f32 %v6025, %v6143
    %v6272 = vmul.f32 %v6027, %v6144
    %v6273 = vmul.f32 %v5692, %v6145
    %v6274 = vmul.f32 %v5694, %v6146
    %v6275 = vmul.f32 %v5805, %v6147
    %v6276 = vmul.f32 %v5807, %v6148
    %v6277 = vmul.f32 %v5918, %v6149
    %v6278 = vmul.f32 %v5920, %v6150
    %v6279 = vmul.f32 %v6031, %v6151
    %v6280 = vmul.f32 %v6033, %v6152
    %v6281 = vmul.f32 %v5696, %v6153
    %v6282 = vmul.f32 %v5698, %v6154
    %v6283 = vmul.f32 %v5809, %v6155
    %v6284 = vmul.f32 %v5811, %v6156
    %v6285 = vmul.f32 %v5922, %v6157
    %v6286 = vmul.f32 %v5924, %v6158
    %v6287 = vmul.f32 %v6035, %v6159
    %v6288 = vmul.f32 %v6037, %v6160
    %v6289 = vmul.f32 %v5702, %v6161
    %v6290 = vmul.f32 %v5704, %v6162
    %v6291 = vmul.f32 %v5815, %v6163
    %v6292 = vmul.f32 %v5817, %v6164
    %v6293 = vmul.f32 %v5928, %v6165
    %v6294 = vmul.f32 %v5930, %v6166
    %v6295 = vmul.f32 %v6041, %v6167
    %v6296 = vmul.f32 %v6043, %v6168
    %v6297 = vmul.f32 %v5706, %v6169
    %v6298 = vmul.f32 %v5708, %v6170
    %v6299 = vmul.f32 %v5819, %v6171
    %v6300 = vmul.f32 %v5821, %v6172
    %v6301 = vmul.f32 %v5932, %v6173
    %v6302 = vmul.f32 %v5934, %v6174
    %v6303 = vmul.f32 %v6045, %v6175
    %v6304 = vmul.f32 %v6047, %v6176
    %v6305 = vpack.c.bf16 %v6185, %v6177
    %v6306 = vpack.c.bf16 %v6186, %v6178
    %v6307 = vpack.c.bf16 %v6187, %v6179
    %v6308 = vpack.c.bf16 %v6188, %v6180
    %v6309 = vpack.c.bf16 %v6189, %v6181
    %v6310 = vpack.c.bf16 %v6190, %v6182
    %v6311 = vpack.c.bf16 %v6191, %v6183
    %v6312 = vpack.c.bf16 %v6192, %v6184
    %v6313 = vpack.c.bf16 %v6201, %v6193
    %v6314 = vpack.c.bf16 %v6202, %v6194
    %v6315 = vpack.c.bf16 %v6203, %v6195
    %v6316 = vpack.c.bf16 %v6204, %v6196
    %v6317 = vpack.c.bf16 %v6205, %v6197
    %v6318 = vpack.c.bf16 %v6206, %v6198
    %v6319 = vpack.c.bf16 %v6207, %v6199
    %v6320 = vpack.c.bf16 %v6208, %v6200
    %v6321 = vpack.c.bf16 %v6217, %v6209
    %v6322 = vpack.c.bf16 %v6218, %v6210
    %v6323 = vpack.c.bf16 %v6219, %v6211
    %v6324 = vpack.c.bf16 %v6220, %v6212
    %v6325 = vpack.c.bf16 %v6221, %v6213
    %v6326 = vpack.c.bf16 %v6222, %v6214
    %v6327 = vpack.c.bf16 %v6223, %v6215
    %v6328 = vpack.c.bf16 %v6224, %v6216
    %v6329 = vpack.c.bf16 %v6233, %v6225
    %v6330 = vpack.c.bf16 %v6234, %v6226
    %v6331 = vpack.c.bf16 %v6235, %v6227
    %v6332 = vpack.c.bf16 %v6236, %v6228
    %v6333 = vpack.c.bf16 %v6237, %v6229
    %v6334 = vpack.c.bf16 %v6238, %v6230
    %v6335 = vpack.c.bf16 %v6239, %v6231
    %v6336 = vpack.c.bf16 %v6240, %v6232
    %v6337 = vpack.c.bf16 %v6249, %v6241
    %v6338 = vpack.c.bf16 %v6250, %v6242
    %v6339 = vpack.c.bf16 %v6251, %v6243
    %v6340 = vpack.c.bf16 %v6252, %v6244
    %v6341 = vpack.c.bf16 %v6253, %v6245
    %v6342 = vpack.c.bf16 %v6254, %v6246
    %v6343 = vpack.c.bf16 %v6255, %v6247
    %v6344 = vpack.c.bf16 %v6256, %v6248
    %v6345 = vpack.c.bf16 %v6265, %v6257
    %v6346 = vpack.c.bf16 %v6266, %v6258
    %v6347 = vpack.c.bf16 %v6267, %v6259
    %v6348 = vpack.c.bf16 %v6268, %v6260
    %v6349 = vpack.c.bf16 %v6269, %v6261
    %v6350 = vpack.c.bf16 %v6270, %v6262
    %v6351 = vpack.c.bf16 %v6271, %v6263
    %v6352 = vpack.c.bf16 %v6272, %v6264
    %v6353 = vpack.c.bf16 %v6281, %v6273
    %v6354 = vpack.c.bf16 %v6282, %v6274
    %v6355 = vpack.c.bf16 %v6283, %v6275
    %v6356 = vpack.c.bf16 %v6284, %v6276
    %v6357 = vpack.c.bf16 %v6285, %v6277
    %v6358 = vpack.c.bf16 %v6286, %v6278
    %v6359 = vpack.c.bf16 %v6287, %v6279
    %v6360 = vpack.c.bf16 %v6288, %v6280
    %v6361 = vpack.c.bf16 %v6297, %v6289
    %v6362 = vpack.c.bf16 %v6298, %v6290
    %v6363 = vpack.c.bf16 %v6299, %v6291
    %v6364 = vpack.c.bf16 %v6300, %v6292
    %v6365 = vpack.c.bf16 %v6301, %v6293
    %v6366 = vpack.c.bf16 %v6302, %v6294
    %v6367 = vpack.c.bf16 %v6303, %v6295
    %v6368 = vpack.c.bf16 %v6304, %v6296
    %v6369 = vld [vmem:[#allocation23] sm:$0x1]
    %6370 = vmatprep.subr.bf16.mxu0 %v6306
    %6371 = vmatpush1.bf16.msra.mxu0 %v6305
    %6372 = vmatprep.subr.bf16.mxu0 %v6314
    %6373 = vmatpush1.bf16.msra.mxu0 %v6313
    %6374 = vmatprep.subr.bf16.mxu0 %v6322
    %6375 = vmatpush1.bf16.msra.mxu0 %v6321
    %6376 = vmatprep.subr.bf16.mxu0 %v6330
    %6377 = vmatpush1.bf16.msra.mxu0 %v6329
    %6378 = vmatprep.subr.bf16.mxu0 %v6338
    %6379 = vmatpush1.bf16.msra.mxu0 %v6337
    %6380 = vmatprep.subr.bf16.mxu0 %v6346
    %6381 = vmatpush1.bf16.msra.mxu0 %v6345
    %6382 = vmatprep.subr.bf16.mxu0 %v6354
    %6383 = vmatpush1.bf16.msra.mxu0 %v6353
    %6384 = vmatprep.subr.bf16.mxu0 %v6362
    %6385 = vmatpush1.bf16.msra.mxu0 %v6361
    %6386 = vmatprep.subr.bf16.mxu0 0
    %6387 = vmatpush1.bf16.msra.mxu0 0
    %6388 = vmatprep.subr.bf16.mxu0 0
    %6389 = vmatpush1.bf16.msra.mxu0 0
    %6390 = vmatprep.subr.bf16.mxu0 0
    %6391 = vmatpush1.bf16.msra.mxu0 0
    %6392 = vmatprep.subr.bf16.mxu0 0
    %6393 = vmatpush1.bf16.msra.mxu0 0
    %6394 = vmatprep.subr.bf16.mxu0 0
    %6395 = vmatpush1.bf16.msra.mxu0 0
    %6396 = vmatprep.subr.bf16.mxu0 0
    %6397 = vmatpush1.bf16.msra.mxu0 0
    %6398 = vmatprep.subr.bf16.mxu0 0
    %6399 = vmatpush1.bf16.msra.mxu0 0
    %6400 = vmatprep.subr.bf16.mxu0 0
    %6401 = vmatpush1.bf16.msra.mxu0 0
    %6402 = vmatprep.mubr.bf16.mxu0 0
    %6403 = vmatmul.mubr.bf16.gmra.mrb[0].mxu0 %v6369
    %v6404 = vpop.f32.mrb[0].mxu0
    %v6405 = vadd.f32 0.0, %v6404
    %v6406 = vpop.f32.mrb[0].mxu0
    %v6407 = vadd.f32 0.0, %v6406
    %v6408 = vpop.f32.mrb[0].mxu0
    %v6409 = vpop.f32.mrb[0].mxu0
    %6410 = vdwg.mxu0
    %6411 = vmatprep.subr.bf16.mxu0 %v6308
    %6412 = vmatpush1.bf16.msra.mxu0 %v6307
    %6413 = vmatprep.subr.bf16.mxu0 %v6316
    %6414 = vmatpush1.bf16.msra.mxu0 %v6315
    %6415 = vmatprep.subr.bf16.mxu0 %v6324
    %6416 = vmatpush1.bf16.msra.mxu0 %v6323
    %6417 = vmatprep.subr.bf16.mxu0 %v6332
    %6418 = vmatpush1.bf16.msra.mxu0 %v6331
    %6419 = vmatprep.subr.bf16.mxu0 %v6340
    %6420 = vmatpush1.bf16.msra.mxu0 %v6339
    %6421 = vmatprep.subr.bf16.mxu0 %v6348
    %6422 = vmatpush1.bf16.msra.mxu0 %v6347
    %6423 = vmatprep.subr.bf16.mxu0 %v6356
    %6424 = vmatpush1.bf16.msra.mxu0 %v6355
    %6425 = vmatprep.subr.bf16.mxu0 %v6364
    %6426 = vmatpush1.bf16.msra.mxu0 %v6363
    %6427 = vmatprep.subr.bf16.mxu0 0
    %6428 = vmatpush1.bf16.msra.mxu0 0
    %6429 = vmatprep.subr.bf16.mxu0 0
    %6430 = vmatpush1.bf16.msra.mxu0 0
    %6431 = vmatprep.subr.bf16.mxu0 0
    %6432 = vmatpush1.bf16.msra.mxu0 0
    %6433 = vmatprep.subr.bf16.mxu0 0
    %6434 = vmatpush1.bf16.msra.mxu0 0
    %6435 = vmatprep.subr.bf16.mxu0 0
    %6436 = vmatpush1.bf16.msra.mxu0 0
    %6437 = vmatprep.subr.bf16.mxu0 0
    %6438 = vmatpush1.bf16.msra.mxu0 0
    %6439 = vmatprep.subr.bf16.mxu0 0
    %6440 = vmatpush1.bf16.msra.mxu0 0
    %6441 = vmatprep.subr.bf16.mxu0 0
    %6442 = vmatpush1.bf16.msra.mxu0 0
    %6443 = vmatprep.mubr.bf16.mxu0 0
    %6444 = vmatmul.mubr.bf16.gmra.mrb[0].mxu0 %v6369
    %v6445 = vpop.f32.mrb[0].mxu0
    %v6446 = vadd.f32 0.0, %v6445
    %v6447 = vpop.f32.mrb[0].mxu0
    %v6448 = vadd.f32 0.0, %v6447
    %v6449 = vpop.f32.mrb[0].mxu0
    %v6450 = vpop.f32.mrb[0].mxu0
    %6451 = vdwg.mxu0
    %6452 = vmatprep.subr.bf16.mxu0 %v6310
    %6453 = vmatpush1.bf16.msra.mxu0 %v6309
    %6454 = vmatprep.subr.bf16.mxu0 %v6318
    %6455 = vmatpush1.bf16.msra.mxu0 %v6317
    %6456 = vmatprep.subr.bf16.mxu0 %v6326
    %6457 = vmatpush1.bf16.msra.mxu0 %v6325
    %6458 = vmatprep.subr.bf16.mxu0 %v6334
    %6459 = vmatpush1.bf16.msra.mxu0 %v6333
    %6460 = vmatprep.subr.bf16.mxu0 %v6342
    %6461 = vmatpush1.bf16.msra.mxu0 %v6341
    %6462 = vmatprep.subr.bf16.mxu0 %v6350
    %6463 = vmatpush1.bf16.msra.mxu0 %v6349
    %6464 = vmatprep.subr.bf16.mxu0 %v6358
    %6465 = vmatpush1.bf16.msra.mxu0 %v6357
    %6466 = vmatprep.subr.bf16.mxu0 %v6366
    %6467 = vmatpush1.bf16.msra.mxu0 %v6365
    %6468 = vmatprep.subr.bf16.mxu0 0
    %6469 = vmatpush1.bf16.msra.mxu0 0
    %6470 = vmatprep.subr.bf16.mxu0 0
    %6471 = vmatpush1.bf16.msra.mxu0 0
    %6472 = vmatprep.subr.bf16.mxu0 0
    %6473 = vmatpush1.bf16.msra.mxu0 0
    %6474 = vmatprep.subr.bf16.mxu0 0
    %6475 = vmatpush1.bf16.msra.mxu0 0
    %6476 = vmatprep.subr.bf16.mxu0 0
    %6477 = vmatpush1.bf16.msra.mxu0 0
    %6478 = vmatprep.subr.bf16.mxu0 0
    %6479 = vmatpush1.bf16.msra.mxu0 0
    %6480 = vmatprep.subr.bf16.mxu0 0
    %6481 = vmatpush1.bf16.msra.mxu0 0
    %6482 = vmatprep.subr.bf16.mxu0 0
    %6483 = vmatpush1.bf16.msra.mxu0 0
    %6484 = vmatprep.mubr.bf16.mxu0 0
    %6485 = vmatmul.mubr.bf16.gmra.mrb[0].mxu0 %v6369
    %v6486 = vpop.f32.mrb[0].mxu0
    %v6487 = vadd.f32 0.0, %v6486
    %v6488 = vpop.f32.mrb[0].mxu0
    %v6489 = vadd.f32 0.0, %v6488
    %v6490 = vpop.f32.mrb[0].mxu0
    %v6491 = vpop.f32.mrb[0].mxu0
    %6492 = vdwg.mxu0
    %6493 = vmatprep.subr.bf16.mxu0 %v6312
    %6494 = vmatpush1.bf16.msra.mxu0 %v6311
    %6495 = vmatprep.subr.bf16.mxu0 %v6320
    %6496 = vmatpush1.bf16.msra.mxu0 %v6319
    %6497 = vmatprep.subr.bf16.mxu0 %v6328
    %6498 = vmatpush1.bf16.msra.mxu0 %v6327
    %6499 = vmatprep.subr.bf16.mxu0 %v6336
    %6500 = vmatpush1.bf16.msra.mxu0 %v6335
    %6501 = vmatprep.subr.bf16.mxu0 %v6344
    %6502 = vmatpush1.bf16.msra.mxu0 %v6343
    %6503 = vmatprep.subr.bf16.mxu0 %v6352
    %6504 = vmatpush1.bf16.msra.mxu0 %v6351
    %6505 = vmatprep.subr.bf16.mxu0 %v6360
    %6506 = vmatpush1.bf16.msra.mxu0 %v6359
    %6507 = vmatprep.subr.bf16.mxu0 %v6368
    %6508 = vmatpush1.bf16.msra.mxu0 %v6367
    %6509 = vmatprep.subr.bf16.mxu0 0
    %6510 = vmatpush1.bf16.msra.mxu0 0
    %6511 = vmatprep.subr.bf16.mxu0 0
    %6512 = vmatpush1.bf16.msra.mxu0 0
    %6513 = vmatprep.subr.bf16.mxu0 0
    %6514 = vmatpush1.bf16.msra.mxu0 0
    %6515 = vmatprep.subr.bf16.mxu0 0
    %6516 = vmatpush1.bf16.msra.mxu0 0
    %6517 = vmatprep.subr.bf16.mxu0 0
    %6518 = vmatpush1.bf16.msra.mxu0 0
    %6519 = vmatprep.subr.bf16.mxu0 0
    %6520 = vmatpush1.bf16.msra.mxu0 0
    %6521 = vmatprep.subr.bf16.mxu0 0
    %6522 = vmatpush1.bf16.msra.mxu0 0
    %6523 = vmatprep.subr.bf16.mxu0 0
    %6524 = vmatpush1.bf16.msra.mxu0 0
    %6525 = vmatprep.mubr.bf16.mxu0 0
    %6526 = vmatmul.mubr.bf16.gmra.mrb[0].mxu0 %v6369
    %v6527 = vpop.f32.mrb[0].mxu0
    %v6528 = vadd.f32 0.0, %v6527
    %v6529 = vpop.f32.mrb[0].mxu0
    %v6530 = vadd.f32 0.0, %v6529
    %v6531 = vpop.f32.mrb[0].mxu0
    %v6532 = vpop.f32.mrb[0].mxu0
    %6533 = vdwg.mxu0
    %v6534 = vpack.c.bf16 %v6405, %v6405
    %v6535 = vpack.c.bf16 %v6407, %v6407
    %v6536 = vpack.c.bf16 %v6446, %v6446
    %v6537 = vpack.c.bf16 %v6448, %v6448
    %v6538 = vpack.c.bf16 %v6487, %v6487
    %v6539 = vpack.c.bf16 %v6489, %v6489
    %v6540 = vpack.c.bf16 %v6528, %v6528
    %v6541 = vpack.c.bf16 %v6530, %v6530
    %v6542 = vld [vmem:[#allocation25] sm:$0xff]
    %v6543 = vld [vmem:[#allocation25 + $0x8] sm:$0xff]
    %v6544 = vld [vmem:[#allocation25 + $0x10] sm:$0xff]
    %v6545 = vld [vmem:[#allocation25 + $0x18] sm:$0xff]
    %v6546 = vld [vmem:[#allocation25 + $0x20] sm:$0xff]
    %v6547 = vld [vmem:[#allocation25 + $0x28] sm:$0xff]
    %v6548 = vld [vmem:[#allocation25 + $0x30] sm:$0xff]
    %v6549 = vld [vmem:[#allocation25 + $0x38] sm:$0xff]
    %v6550 = vld [vmem:[#allocation25 + $0x40] sm:$0xff]
    %v6551 = vld [vmem:[#allocation25 + $0x48] sm:$0xff]
    %v6552 = vld [vmem:[#allocation25 + $0x50] sm:$0xff]
    %v6553 = vld [vmem:[#allocation25 + $0x58] sm:$0xff]
    %v6554 = vld [vmem:[#allocation25 + $0x60] sm:$0xff]
    %v6555 = vld [vmem:[#allocation25 + $0x68] sm:$0xff]
    %v6556 = vld [vmem:[#allocation25 + $0x70] sm:$0xff]
    %v6557 = vld [vmem:[#allocation25 + $0x78] sm:$0xff]
    %v6558 = vld [vmem:[#allocation25 + $0x80] sm:$0xff]
    %v6559 = vld [vmem:[#allocation25 + $0x88] sm:$0xff]
    %v6560 = vld [vmem:[#allocation25 + $0x90] sm:$0xff]
    %v6561 = vld [vmem:[#allocation25 + $0x98] sm:$0xff]
    %v6562 = vld [vmem:[#allocation25 + $0xa0] sm:$0xff]
    %v6563 = vld [vmem:[#allocation25 + $0xa8] sm:$0xff]
    %v6564 = vld [vmem:[#allocation25 + $0xb0] sm:$0xff]
    %v6565 = vld [vmem:[#allocation25 + $0xb8] sm:$0xff]
    %v6566 = vld [vmem:[#allocation25 + $0xc0] sm:$0xff]
    %v6567 = vld [vmem:[#allocation25 + $0xc8] sm:$0xff]
    %v6568 = vld [vmem:[#allocation25 + $0xd0] sm:$0xff]
    %v6569 = vld [vmem:[#allocation25 + $0xd8] sm:$0xff]
    %v6570 = vld [vmem:[#allocation25 + $0xe0] sm:$0xff]
    %v6571 = vld [vmem:[#allocation25 + $0xe8] sm:$0xff]
    %v6572 = vld [vmem:[#allocation25 + $0xf0] sm:$0xff]
    %v6573 = vld [vmem:[#allocation25 + $0xf8] sm:$0xff]
    %v6574 = vld [vmem:[#allocation25 + $0x100] sm:$0xff]
    %v6575 = vld [vmem:[#allocation25 + $0x108] sm:$0xff]
    %v6576 = vld [vmem:[#allocation25 + $0x110] sm:$0xff]
    %v6577 = vld [vmem:[#allocation25 + $0x118] sm:$0xff]
    %v6578 = vld [vmem:[#allocation25 + $0x120] sm:$0xff]
    %v6579 = vld [vmem:[#allocation25 + $0x128] sm:$0xff]
    %v6580 = vld [vmem:[#allocation25 + $0x130] sm:$0xff]
    %v6581 = vld [vmem:[#allocation25 + $0x138] sm:$0xff]
    %v6582 = vld [vmem:[#allocation25 + $0x140] sm:$0xff]
    %v6583 = vld [vmem:[#allocation25 + $0x148] sm:$0xff]
    %v6584 = vld [vmem:[#allocation25 + $0x150] sm:$0xff]
    %v6585 = vld [vmem:[#allocation25 + $0x158] sm:$0xff]
    %v6586 = vld [vmem:[#allocation25 + $0x160] sm:$0xff]
    %v6587 = vld [vmem:[#allocation25 + $0x168] sm:$0xff]
    %v6588 = vld [vmem:[#allocation25 + $0x170] sm:$0xff]
    %v6589 = vld [vmem:[#allocation25 + $0x178] sm:$0xff]
    %v6590 = vld [vmem:[#allocation25 + $0x180] sm:$0xff]
    %v6591 = vld [vmem:[#allocation25 + $0x188] sm:$0xff]
    %v6592 = vld [vmem:[#allocation25 + $0x190] sm:$0xff]
    %v6593 = vld [vmem:[#allocation25 + $0x198] sm:$0xff]
    %v6594 = vld [vmem:[#allocation25 + $0x1a0] sm:$0xff]
    %v6595 = vld [vmem:[#allocation25 + $0x1a8] sm:$0xff]
    %v6596 = vld [vmem:[#allocation25 + $0x1b0] sm:$0xff]
    %v6597 = vld [vmem:[#allocation25 + $0x1b8] sm:$0xff]
    %v6598 = vld [vmem:[#allocation25 + $0x1c0] sm:$0xff]
    %v6599 = vld [vmem:[#allocation25 + $0x1c8] sm:$0xff]
    %v6600 = vld [vmem:[#allocation25 + $0x1d0] sm:$0xff]
    %v6601 = vld [vmem:[#allocation25 + $0x1d8] sm:$0xff]
    %v6602 = vld [vmem:[#allocation25 + $0x1e0] sm:$0xff]
    %v6603 = vld [vmem:[#allocation25 + $0x1e8] sm:$0xff]
    %v6604 = vld [vmem:[#allocation25 + $0x1f0] sm:$0xff]
    %v6605 = vld [vmem:[#allocation25 + $0x1f8] sm:$0xff]
    %v6606 = vld [vmem:[#allocation25 + $0x200] sm:$0xff]
    %v6607 = vld [vmem:[#allocation25 + $0x208] sm:$0xff]
    %v6608 = vld [vmem:[#allocation25 + $0x210] sm:$0xff]
    %v6609 = vld [vmem:[#allocation25 + $0x218] sm:$0xff]
    %v6610 = vld [vmem:[#allocation25 + $0x220] sm:$0xff]
    %v6611 = vld [vmem:[#allocation25 + $0x228] sm:$0xff]
    %v6612 = vld [vmem:[#allocation25 + $0x230] sm:$0xff]
    %v6613 = vld [vmem:[#allocation25 + $0x238] sm:$0xff]
    %v6614 = vld [vmem:[#allocation25 + $0x240] sm:$0xff]
    %v6615 = vld [vmem:[#allocation25 + $0x248] sm:$0xff]
    %v6616 = vld [vmem:[#allocation25 + $0x250] sm:$0xff]
    %v6617 = vld [vmem:[#allocation25 + $0x258] sm:$0xff]
    %v6618 = vld [vmem:[#allocation25 + $0x260] sm:$0xff]
    %v6619 = vld [vmem:[#allocation25 + $0x268] sm:$0xff]
    %v6620 = vld [vmem:[#allocation25 + $0x270] sm:$0xff]
    %v6621 = vld [vmem:[#allocation25 + $0x278] sm:$0xff]
    %v6622 = vld [vmem:[#allocation25 + $0x280] sm:$0xff]
    %v6623 = vld [vmem:[#allocation25 + $0x288] sm:$0xff]
    %v6624 = vld [vmem:[#allocation25 + $0x290] sm:$0xff]
    %v6625 = vld [vmem:[#allocation25 + $0x298] sm:$0xff]
    %v6626 = vld [vmem:[#allocation25 + $0x2a0] sm:$0xff]
    %v6627 = vld [vmem:[#allocation25 + $0x2a8] sm:$0xff]
    %v6628 = vld [vmem:[#allocation25 + $0x2b0] sm:$0xff]
    %v6629 = vld [vmem:[#allocation25 + $0x2b8] sm:$0xff]
    %v6630 = vld [vmem:[#allocation25 + $0x2c0] sm:$0xff]
    %v6631 = vld [vmem:[#allocation25 + $0x2c8] sm:$0xff]
    %v6632 = vld [vmem:[#allocation25 + $0x2d0] sm:$0xff]
    %v6633 = vld [vmem:[#allocation25 + $0x2d8] sm:$0xff]
    %v6634 = vld [vmem:[#allocation25 + $0x2e0] sm:$0xff]
    %v6635 = vld [vmem:[#allocation25 + $0x2e8] sm:$0xff]
    %v6636 = vld [vmem:[#allocation25 + $0x2f0] sm:$0xff]
    %v6637 = vld [vmem:[#allocation25 + $0x2f8] sm:$0xff]
    %v6638 = vld [vmem:[#allocation25 + $0x300] sm:$0xff]
    %v6639 = vld [vmem:[#allocation25 + $0x308] sm:$0xff]
    %v6640 = vld [vmem:[#allocation25 + $0x310] sm:$0xff]
    %v6641 = vld [vmem:[#allocation25 + $0x318] sm:$0xff]
    %v6642 = vld [vmem:[#allocation25 + $0x320] sm:$0xff]
    %v6643 = vld [vmem:[#allocation25 + $0x328] sm:$0xff]
    %v6644 = vld [vmem:[#allocation25 + $0x330] sm:$0xff]
    %v6645 = vld [vmem:[#allocation25 + $0x338] sm:$0xff]
    %v6646 = vld [vmem:[#allocation25 + $0x340] sm:$0xff]
    %v6647 = vld [vmem:[#allocation25 + $0x348] sm:$0xff]
    %v6648 = vld [vmem:[#allocation25 + $0x350] sm:$0xff]
    %v6649 = vld [vmem:[#allocation25 + $0x358] sm:$0xff]
    %v6650 = vld [vmem:[#allocation25 + $0x360] sm:$0xff]
    %v6651 = vld [vmem:[#allocation25 + $0x368] sm:$0xff]
    %v6652 = vld [vmem:[#allocation25 + $0x370] sm:$0xff]
    %v6653 = vld [vmem:[#allocation25 + $0x378] sm:$0xff]
    %v6654 = vld [vmem:[#allocation25 + $0x380] sm:$0xff]
    %v6655 = vld [vmem:[#allocation25 + $0x388] sm:$0xff]
    %v6656 = vld [vmem:[#allocation25 + $0x390] sm:$0xff]
    %v6657 = vld [vmem:[#allocation25 + $0x398] sm:$0xff]
    %v6658 = vld [vmem:[#allocation25 + $0x3a0] sm:$0xff]
    %v6659 = vld [vmem:[#allocation25 + $0x3a8] sm:$0xff]
    %v6660 = vld [vmem:[#allocation25 + $0x3b0] sm:$0xff]
    %v6661 = vld [vmem:[#allocation25 + $0x3b8] sm:$0xff]
    %v6662 = vld [vmem:[#allocation25 + $0x3c0] sm:$0xff]
    %v6663 = vld [vmem:[#allocation25 + $0x3c8] sm:$0xff]
    %v6664 = vld [vmem:[#allocation25 + $0x3d0] sm:$0xff]
    %v6665 = vld [vmem:[#allocation25 + $0x3d8] sm:$0xff]
    %v6666 = vld [vmem:[#allocation25 + $0x3e0] sm:$0xff]
    %v6667 = vld [vmem:[#allocation25 + $0x3e8] sm:$0xff]
    %v6668 = vld [vmem:[#allocation25 + $0x3f0] sm:$0xff]
    %v6669 = vld [vmem:[#allocation25 + $0x3f8] sm:$0xff]
    %v6670 = vld [vmem:[#allocation26] sm:$0x3]
    %v6672 = vlaneseq
    %v6673 = vshrl.u32 %v6672, 7
    %v6674 = vsub.s32 0, %v6673
    %v6675 = vrot.slane %v6670, %v6674
    %v6676 = vlaneseq
    %v6677 = vshrl.u32 %v6676, 7
    %v6678 = vsub.s32 1, %v6677
    %v6679 = vrot.slane %v6670, %v6678
    %v6810 = vunpack.c.l.b16 %v6542
    %v6811 = vunpack.c.h.b16 %v6542
    %v6812 = vunpack.c.l.b16 %v6543
    %v6813 = vunpack.c.h.b16 %v6543
    %v6814 = vunpack.c.l.b16 %v6544
    %v6815 = vunpack.c.h.b16 %v6544
    %v6816 = vunpack.c.l.b16 %v6545
    %v6817 = vunpack.c.h.b16 %v6545
    %v6818 = vunpack.c.l.b16 %v6546
    %v6819 = vunpack.c.h.b16 %v6546
    %v6820 = vunpack.c.l.b16 %v6547
    %v6821 = vunpack.c.h.b16 %v6547
    %v6822 = vunpack.c.l.b16 %v6548
    %v6823 = vunpack.c.h.b16 %v6548
    %v6824 = vunpack.c.l.b16 %v6549
    %v6825 = vunpack.c.h.b16 %v6549
    %v6826 = vunpack.c.l.b16 %v6550
    %v6827 = vunpack.c.h.b16 %v6550
    %v6828 = vunpack.c.l.b16 %v6551
    %v6829 = vunpack.c.h.b16 %v6551
    %v6830 = vunpack.c.l.b16 %v6552
    %v6831 = vunpack.c.h.b16 %v6552
    %v6832 = vunpack.c.l.b16 %v6553
    %v6833 = vunpack.c.h.b16 %v6553
    %v6834 = vunpack.c.l.b16 %v6554
    %v6835 = vunpack.c.h.b16 %v6554
    %v6836 = vunpack.c.l.b16 %v6555
    %v6837 = vunpack.c.h.b16 %v6555
    %v6838 = vunpack.c.l.b16 %v6556
    %v6839 = vunpack.c.h.b16 %v6556
    %v6840 = vunpack.c.l.b16 %v6557
    %v6841 = vunpack.c.h.b16 %v6557
    %v6842 = vunpack.c.l.b16 %v6558
    %v6843 = vunpack.c.h.b16 %v6558
    %v6844 = vunpack.c.l.b16 %v6559
    %v6845 = vunpack.c.h.b16 %v6559
    %v6846 = vunpack.c.l.b16 %v6560
    %v6847 = vunpack.c.h.b16 %v6560
    %v6848 = vunpack.c.l.b16 %v6561
    %v6849 = vunpack.c.h.b16 %v6561
    %v6850 = vunpack.c.l.b16 %v6562
    %v6851 = vunpack.c.h.b16 %v6562
    %v6852 = vunpack.c.l.b16 %v6563
    %v6853 = vunpack.c.h.b16 %v6563
    %v6854 = vunpack.c.l.b16 %v6564
    %v6855 = vunpack.c.h.b16 %v6564
    %v6856 = vunpack.c.l.b16 %v6565
    %v6857 = vunpack.c.h.b16 %v6565
    %v6858 = vunpack.c.l.b16 %v6566
    %v6859 = vunpack.c.h.b16 %v6566
    %v6860 = vunpack.c.l.b16 %v6567
    %v6861 = vunpack.c.h.b16 %v6567
    %v6862 = vunpack.c.l.b16 %v6568
    %v6863 = vunpack.c.h.b16 %v6568
    %v6864 = vunpack.c.l.b16 %v6569
    %v6865 = vunpack.c.h.b16 %v6569
    %v6866 = vunpack.c.l.b16 %v6570
    %v6867 = vunpack.c.h.b16 %v6570
    %v6868 = vunpack.c.l.b16 %v6571
    %v6869 = vunpack.c.h.b16 %v6571
    %v6870 = vunpack.c.l.b16 %v6572
    %v6871 = vunpack.c.h.b16 %v6572
    %v6872 = vunpack.c.l.b16 %v6573
    %v6873 = vunpack.c.h.b16 %v6573
    %v6874 = vunpack.c.l.b16 %v6574
    %v6875 = vunpack.c.h.b16 %v6574
    %v6876 = vunpack.c.l.b16 %v6575
    %v6877 = vunpack.c.h.b16 %v6575
    %v6878 = vunpack.c.l.b16 %v6576
    %v6879 = vunpack.c.h.b16 %v6576
    %v6880 = vunpack.c.l.b16 %v6577
    %v6881 = vunpack.c.h.b16 %v6577
    %v6882 = vunpack.c.l.b16 %v6578
    %v6883 = vunpack.c.h.b16 %v6578
    %v6884 = vunpack.c.l.b16 %v6579
    %v6885 = vunpack.c.h.b16 %v6579
    %v6886 = vunpack.c.l.b16 %v6580
    %v6887 = vunpack.c.h.b16 %v6580
    %v6888 = vunpack.c.l.b16 %v6581
    %v6889 = vunpack.c.h.b16 %v6581
    %v6890 = vunpack.c.l.b16 %v6582
    %v6891 = vunpack.c.h.b16 %v6582
    %v6892 = vunpack.c.l.b16 %v6583
    %v6893 = vunpack.c.h.b16 %v6583
    %v6894 = vunpack.c.l.b16 %v6584
    %v6895 = vunpack.c.h.b16 %v6584
    %v6896 = vunpack.c.l.b16 %v6585
    %v6897 = vunpack.c.h.b16 %v6585
    %v6898 = vunpack.c.l.b16 %v6586
    %v6899 = vunpack.c.h.b16 %v6586
    %v6900 = vunpack.c.l.b16 %v6587
    %v6901 = vunpack.c.h.b16 %v6587
    %v6902 = vunpack.c.l.b16 %v6588
    %v6903 = vunpack.c.h.b16 %v6588
    %v6904 = vunpack.c.l.b16 %v6589
    %v6905 = vunpack.c.h.b16 %v6589
    %v6906 = vunpack.c.l.b16 %v6590
    %v6907 = vunpack.c.h.b16 %v6590
    %v6908 = vunpack.c.l.b16 %v6591
    %v6909 = vunpack.c.h.b16 %v6591
    %v6910 = vunpack.c.l.b16 %v6592
    %v6911 = vunpack.c.h.b16 %v6592
    %v6912 = vunpack.c.l.b16 %v6593
    %v6913 = vunpack.c.h.b16 %v6593
    %v6914 = vunpack.c.l.b16 %v6594
    %v6915 = vunpack.c.h.b16 %v6594
    %v6916 = vunpack.c.l.b16 %v6595
    %v6917 = vunpack.c.h.b16 %v6595
    %v6918 = vunpack.c.l.b16 %v6596
    %v6919 = vunpack.c.h.b16 %v6596
    %v6920 = vunpack.c.l.b16 %v6597
    %v6921 = vunpack.c.h.b16 %v6597
    %v6922 = vunpack.c.l.b16 %v6598
    %v6923 = vunpack.c.h.b16 %v6598
    %v6924 = vunpack.c.l.b16 %v6599
    %v6925 = vunpack.c.h.b16 %v6599
    %v6926 = vunpack.c.l.b16 %v6600
    %v6927 = vunpack.c.h.b16 %v6600
    %v6928 = vunpack.c.l.b16 %v6601
    %v6929 = vunpack.c.h.b16 %v6601
    %v6930 = vunpack.c.l.b16 %v6602
    %v6931 = vunpack.c.h.b16 %v6602
    %v6932 = vunpack.c.l.b16 %v6603
    %v6933 = vunpack.c.h.b16 %v6603
    %v6934 = vunpack.c.l.b16 %v6604
    %v6935 = vunpack.c.h.b16 %v6604
    %v6936 = vunpack.c.l.b16 %v6605
    %v6937 = vunpack.c.h.b16 %v6605
    %v6938 = vunpack.c.l.b16 %v6606
    %v6939 = vunpack.c.h.b16 %v6606
    %v6940 = vunpack.c.l.b16 %v6607
    %v6941 = vunpack.c.h.b16 %v6607
    %v6942 = vunpack.c.l.b16 %v6608
    %v6943 = vunpack.c.h.b16 %v6608
    %v6944 = vunpack.c.l.b16 %v6609
    %v6945 = vunpack.c.h.b16 %v6609
    %v6946 = vunpack.c.l.b16 %v6610
    %v6947 = vunpack.c.h.b16 %v6610
    %v6948 = vunpack.c.l.b16 %v6611
    %v6949 = vunpack.c.h.b16 %v6611
    %v6950 = vunpack.c.l.b16 %v6612
    %v6951 = vunpack.c.h.b16 %v6612
    %v6952 = vunpack.c.l.b16 %v6613
    %v6953 = vunpack.c.h.b16 %v6613
    %v6954 = vunpack.c.l.b16 %v6614
    %v6955 = vunpack.c.h.b16 %v6614
    %v6956 = vunpack.c.l.b16 %v6615
    %v6957 = vunpack.c.h.b16 %v6615
    %v6958 = vunpack.c.l.b16 %v6616
    %v6959 = vunpack.c.h.b16 %v6616
    %v6960 = vunpack.c.l.b16 %v6617
    %v6961 = vunpack.c.h.b16 %v6617
    %v6962 = vunpack.c.l.b16 %v6618
    %v6963 = vunpack.c.h.b16 %v6618
    %v6964 = vunpack.c.l.b16 %v6619
    %v6965 = vunpack.c.h.b16 %v6619
    %v6966 = vunpack.c.l.b16 %v6620
    %v6967 = vunpack.c.h.b16 %v6620
    %v6968 = vunpack.c.l.b16 %v6621
    %v6969 = vunpack.c.h.b16 %v6621
    %v6970 = vunpack.c.l.b16 %v6622
    %v6971 = vunpack.c.h.b16 %v6622
    %v6972 = vunpack.c.l.b16 %v6623
    %v6973 = vunpack.c.h.b16 %v6623
    %v6974 = vunpack.c.l.b16 %v6624
    %v6975 = vunpack.c.h.b16 %v6624
    %v6976 = vunpack.c.l.b16 %v6625
    %v6977 = vunpack.c.h.b16 %v6625
    %v6978 = vunpack.c.l.b16 %v6626
    %v6979 = vunpack.c.h.b16 %v6626
    %v6980 = vunpack.c.l.b16 %v6627
    %v6981 = vunpack.c.h.b16 %v6627
    %v6982 = vunpack.c.l.b16 %v6628
    %v6983 = vunpack.c.h.b16 %v6628
    %v6984 = vunpack.c.l.b16 %v6629
    %v6985 = vunpack.c.h.b16 %v6629
    %v6986 = vunpack.c.l.b16 %v6630
    %v6987 = vunpack.c.h.b16 %v6630
    %v6988 = vunpack.c.l.b16 %v6631
    %v6989 = vunpack.c.h.b16 %v6631
    %v6990 = vunpack.c.l.b16 %v6632
    %v6991 = vunpack.c.h.b16 %v6632
    %v6992 = vunpack.c.l.b16 %v6633
    %v6993 = vunpack.c.h.b16 %v6633
    %v6994 = vunpack.c.l.b16 %v6634
    %v6995 = vunpack.c.h.b16 %v6634
    %v6996 = vunpack.c.l.b16 %v6635
    %v6997 = vunpack.c.h.b16 %v6635
    %v6998 = vunpack.c.l.b16 %v6636
    %v6999 = vunpack.c.h.b16 %v6636
    %v7000 = vunpack.c.l.b16 %v6637
    %v7001 = vunpack.c.h.b16 %v6637
    %v7002 = vunpack.c.l.b16 %v6638
    %v7003 = vunpack.c.h.b16 %v6638
    %v7004 = vunpack.c.l.b16 %v6639
    %v7005 = vunpack.c.h.b16 %v6639
    %v7006 = vunpack.c.l.b16 %v6640
    %v7007 = vunpack.c.h.b16 %v6640
    %v7008 = vunpack.c.l.b16 %v6641
    %v7009 = vunpack.c.h.b16 %v6641
    %v7010 = vunpack.c.l.b16 %v6642
    %v7011 = vunpack.c.h.b16 %v6642
    %v7012 = vunpack.c.l.b16 %v6643
    %v7013 = vunpack.c.h.b16 %v6643
    %v7014 = vunpack.c.l.b16 %v6644
    %v7015 = vunpack.c.h.b16 %v6644
    %v7016 = vunpack.c.l.b16 %v6645
    %v7017 = vunpack.c.h.b16 %v6645
    %v7018 = vunpack.c.l.b16 %v6646
    %v7019 = vunpack.c.h.b16 %v6646
    %v7020 = vunpack.c.l.b16 %v6647
    %v7021 = vunpack.c.h.b16 %v6647
    %v7022 = vunpack.c.l.b16 %v6648
    %v7023 = vunpack.c.h.b16 %v6648
    %v7024 = vunpack.c.l.b16 %v6649
    %v7025 = vunpack.c.h.b16 %v6649
    %v7026 = vunpack.c.l.b16 %v6650
    %v7027 = vunpack.c.h.b16 %v6650
    %v7028 = vunpack.c.l.b16 %v6651
    %v7029 = vunpack.c.h.b16 %v6651
    %v7030 = vunpack.c.l.b16 %v6652
    %v7031 = vunpack.c.h.b16 %v6652
    %v7032 = vunpack.c.l.b16 %v6653
    %v7033 = vunpack.c.h.b16 %v6653
    %v7034 = vunpack.c.l.b16 %v6654
    %v7035 = vunpack.c.h.b16 %v6654
    %v7036 = vunpack.c.l.b16 %v6655
    %v7037 = vunpack.c.h.b16 %v6655
    %v7038 = vunpack.c.l.b16 %v6656
    %v7039 = vunpack.c.h.b16 %v6656
    %v7040 = vunpack.c.l.b16 %v6657
    %v7041 = vunpack.c.h.b16 %v6657
    %v7042 = vunpack.c.l.b16 %v6658
    %v7043 = vunpack.c.h.b16 %v6658
    %v7044 = vunpack.c.l.b16 %v6659
    %v7045 = vunpack.c.h.b16 %v6659
    %v7046 = vunpack.c.l.b16 %v6660
    %v7047 = vunpack.c.h.b16 %v6660
    %v7048 = vunpack.c.l.b16 %v6661
    %v7049 = vunpack.c.h.b16 %v6661
    %v7050 = vunpack.c.l.b16 %v6662
    %v7051 = vunpack.c.h.b16 %v6662
    %v7052 = vunpack.c.l.b16 %v6663
    %v7053 = vunpack.c.h.b16 %v6663
    %v7054 = vunpack.c.l.b16 %v6664
    %v7055 = vunpack.c.h.b16 %v6664
    %v7056 = vunpack.c.l.b16 %v6665
    %v7057 = vunpack.c.h.b16 %v6665
    %v7058 = vunpack.c.l.b16 %v6666
    %v7059 = vunpack.c.h.b16 %v6666
    %v7060 = vunpack.c.l.b16 %v6667
    %v7061 = vunpack.c.h.b16 %v6667
    %v7062 = vunpack.c.l.b16 %v6668
    %v7063 = vunpack.c.h.b16 %v6668
    %v7064 = vunpack.c.l.b16 %v6669
    %v7065 = vunpack.c.h.b16 %v6669
    %v7066 = vpack.c.b16 %v6812, %v6810
    %v7067 = vpack.c.b16 %v6813, %v6811
    %v7068 = vpack.c.b16 %v6816, %v6814
    %v7069 = vpack.c.b16 %v6817, %v6815
    %v7070 = vpack.c.b16 %v6820, %v6818
    %v7071 = vpack.c.b16 %v6821, %v6819
    %v7072 = vpack.c.b16 %v6824, %v6822
    %v7073 = vpack.c.b16 %v6825, %v6823
    %v7074 = vpack.c.b16 %v6828, %v6826
    %v7075 = vpack.c.b16 %v6829, %v6827
    %v7076 = vpack.c.b16 %v6832, %v6830
    %v7077 = vpack.c.b16 %v6833, %v6831
    %v7078 = vpack.c.b16 %v6836, %v6834
    %v7079 = vpack.c.b16 %v6837, %v6835
    %v7080 = vpack.c.b16 %v6840, %v6838
    %v7081 = vpack.c.b16 %v6841, %v6839
    %v7082 = vpack.c.b16 %v6844, %v6842
    %v7083 = vpack.c.b16 %v6845, %v6843
    %v7084 = vpack.c.b16 %v6848, %v6846
    %v7085 = vpack.c.b16 %v6849, %v6847
    %v7086 = vpack.c.b16 %v6852, %v6850
    %v7087 = vpack.c.b16 %v6853, %v6851
    %v7088 = vpack.c.b16 %v6856, %v6854
    %v7089 = vpack.c.b16 %v6857, %v6855
    %v7090 = vpack.c.b16 %v6860, %v6858
    %v7091 = vpack.c.b16 %v6861, %v6859
    %v7092 = vpack.c.b16 %v6864, %v6862
    %v7093 = vpack.c.b16 %v6865, %v6863
    %v7094 = vpack.c.b16 %v6868, %v6866
    %v7095 = vpack.c.b16 %v6869, %v6867
    %v7096 = vpack.c.b16 %v6872, %v6870
    %v7097 = vpack.c.b16 %v6873, %v6871
    %v7098 = vpack.c.b16 %v6876, %v6874
    %v7099 = vpack.c.b16 %v6877, %v6875
    %v7100 = vpack.c.b16 %v6880, %v6878
    %v7101 = vpack.c.b16 %v6881, %v6879
    %v7102 = vpack.c.b16 %v6884, %v6882
    %v7103 = vpack.c.b16 %v6885, %v6883
    %v7104 = vpack.c.b16 %v6888, %v6886
    %v7105 = vpack.c.b16 %v6889, %v6887
    %v7106 = vpack.c.b16 %v6892, %v6890
    %v7107 = vpack.c.b16 %v6893, %v6891
    %v7108 = vpack.c.b16 %v6896, %v6894
    %v7109 = vpack.c.b16 %v6897, %v6895
    %v7110 = vpack.c.b16 %v6900, %v6898
    %v7111 = vpack.c.b16 %v6901, %v6899
    %v7112 = vpack.c.b16 %v6904, %v6902
    %v7113 = vpack.c.b16 %v6905, %v6903
    %v7114 = vpack.c.b16 %v6908, %v6906
    %v7115 = vpack.c.b16 %v6909, %v6907
    %v7116 = vpack.c.b16 %v6912, %v6910
    %v7117 = vpack.c.b16 %v6913, %v6911
    %v7118 = vpack.c.b16 %v6916, %v6914
    %v7119 = vpack.c.b16 %v6917, %v6915
    %v7120 = vpack.c.b16 %v6920, %v6918
    %v7121 = vpack.c.b16 %v6921, %v6919
    %v7122 = vpack.c.b16 %v6924, %v6922
    %v7123 = vpack.c.b16 %v6925, %v6923
    %v7124 = vpack.c.b16 %v6928, %v6926
    %v7125 = vpack.c.b16 %v6929, %v6927
    %v7126 = vpack.c.b16 %v6932, %v6930
    %v7127 = vpack.c.b16 %v6933, %v6931
    %v7128 = vpack.c.b16 %v6936, %v6934
    %v7129 = vpack.c.b16 %v6937, %v6935
    %v7130 = vpack.c.b16 %v6940, %v6938
    %v7131 = vpack.c.b16 %v6941, %v6939
    %v7132 = vpack.c.b16 %v6944, %v6942
    %v7133 = vpack.c.b16 %v6945, %v6943
    %v7134 = vpack.c.b16 %v6948, %v6946
    %v7135 = vpack.c.b16 %v6949, %v6947
    %v7136 = vpack.c.b16 %v6952, %v6950
    %v7137 = vpack.c.b16 %v6953, %v6951
    %v7138 = vpack.c.b16 %v6956, %v6954
    %v7139 = vpack.c.b16 %v6957, %v6955
    %v7140 = vpack.c.b16 %v6960, %v6958
    %v7141 = vpack.c.b16 %v6961, %v6959
    %v7142 = vpack.c.b16 %v6964, %v6962
    %v7143 = vpack.c.b16 %v6965, %v6963
    %v7144 = vpack.c.b16 %v6968, %v6966
    %v7145 = vpack.c.b16 %v6969, %v6967
    %v7146 = vpack.c.b16 %v6972, %v6970
    %v7147 = vpack.c.b16 %v6973, %v6971
    %v7148 = vpack.c.b16 %v6976, %v6974
    %v7149 = vpack.c.b16 %v6977, %v6975
    %v7150 = vpack.c.b16 %v6980, %v6978
    %v7151 = vpack.c.b16 %v6981, %v6979
    %v7152 = vpack.c.b16 %v6984, %v6982
    %v7153 = vpack.c.b16 %v6985, %v6983
    %v7154 = vpack.c.b16 %v6988, %v6986
    %v7155 = vpack.c.b16 %v6989, %v6987
    %v7156 = vpack.c.b16 %v6992, %v6990
    %v7157 = vpack.c.b16 %v6993, %v6991
    %v7158 = vpack.c.b16 %v6996, %v6994
    %v7159 = vpack.c.b16 %v6997, %v6995
    %v7160 = vpack.c.b16 %v7000, %v6998
    %v7161 = vpack.c.b16 %v7001, %v6999
    %v7162 = vpack.c.b16 %v7004, %v7002
    %v7163 = vpack.c.b16 %v7005, %v7003
    %v7164 = vpack.c.b16 %v7008, %v7006
    %v7165 = vpack.c.b16 %v7009, %v7007
    %v7166 = vpack.c.b16 %v7012, %v7010
    %v7167 = vpack.c.b16 %v7013, %v7011
    %v7168 = vpack.c.b16 %v7016, %v7014
    %v7169 = vpack.c.b16 %v7017, %v7015
    %v7170 = vpack.c.b16 %v7020, %v7018
    %v7171 = vpack.c.b16 %v7021, %v7019
    %v7172 = vpack.c.b16 %v7024, %v7022
    %v7173 = vpack.c.b16 %v7025, %v7023
    %v7174 = vpack.c.b16 %v7028, %v7026
    %v7175 = vpack.c.b16 %v7029, %v7027
    %v7176 = vpack.c.b16 %v7032, %v7030
    %v7177 = vpack.c.b16 %v7033, %v7031
    %v7178 = vpack.c.b16 %v7036, %v7034
    %v7179 = vpack.c.b16 %v7037, %v7035
    %v7180 = vpack.c.b16 %v7040, %v7038
    %v7181 = vpack.c.b16 %v7041, %v7039
    %v7182 = vpack.c.b16 %v7044, %v7042
    %v7183 = vpack.c.b16 %v7045, %v7043
    %v7184 = vpack.c.b16 %v7048, %v7046
    %v7185 = vpack.c.b16 %v7049, %v7047
    %v7186 = vpack.c.b16 %v7052, %v7050
    %v7187 = vpack.c.b16 %v7053, %v7051
    %v7188 = vpack.c.b16 %v7056, %v7054
    %v7189 = vpack.c.b16 %v7057, %v7055
    %v7190 = vpack.c.b16 %v7060, %v7058
    %v7191 = vpack.c.b16 %v7061, %v7059
    %v7192 = vpack.c.b16 %v7064, %v7062
    %v7193 = vpack.c.b16 %v7065, %v7063
    %7322 = vmatprep.subr.bf16.mxu0 %v7067
    %7323 = vmatpush1.bf16.msra.mxu0 %v7066
    %7324 = vmatprep.subr.bf16.mxu0 %v7069
    %7325 = vmatpush1.bf16.msra.mxu0 %v7068
    %7326 = vmatprep.subr.bf16.mxu0 %v7071
    %7327 = vmatpush1.bf16.msra.mxu0 %v7070
    %7328 = vmatprep.subr.bf16.mxu0 %v7073
    %7329 = vmatpush1.bf16.msra.mxu0 %v7072
    %7330 = vmatprep.subr.bf16.mxu0 %v7075
    %7331 = vmatpush1.bf16.msra.mxu0 %v7074
    %7332 = vmatprep.subr.bf16.mxu0 %v7077
    %7333 = vmatpush1.bf16.msra.mxu0 %v7076
    %7334 = vmatprep.subr.bf16.mxu0 %v7079
    %7335 = vmatpush1.bf16.msra.mxu0 %v7078
    %7336 = vmatprep.subr.bf16.mxu0 %v7081
    %7337 = vmatpush1.bf16.msra.mxu0 %v7080
    %7338 = vmatprep.subr.bf16.mxu0 %v7083
    %7339 = vmatpush1.bf16.msra.mxu0 %v7082
    %7340 = vmatprep.subr.bf16.mxu0 %v7085
    %7341 = vmatpush1.bf16.msra.mxu0 %v7084
    %7342 = vmatprep.subr.bf16.mxu0 %v7087
    %7343 = vmatpush1.bf16.msra.mxu0 %v7086
    %7344 = vmatprep.subr.bf16.mxu0 %v7089
    %7345 = vmatpush1.bf16.msra.mxu0 %v7088
    %7346 = vmatprep.subr.bf16.mxu0 %v7091
    %7347 = vmatpush1.bf16.msra.mxu0 %v7090
    %7348 = vmatprep.subr.bf16.mxu0 %v7093
    %7349 = vmatpush1.bf16.msra.mxu0 %v7092
    %7350 = vmatprep.subr.bf16.mxu0 %v7095
    %7351 = vmatpush1.bf16.msra.mxu0 %v7094
    %7352 = vmatprep.subr.bf16.mxu0 %v7097
    %7353 = vmatpush1.bf16.msra.mxu0 %v7096
    %7354 = vmatprep.mubr.bf16.mxu0 %v6535
    %7355 = vmatmul.mubr.bf16.gmra.mrb[0].mxu0 %v6534
    %v7356 = vpop.f32.mrb[0].mxu0
    %v7357 = vadd.f32 %v6675, %v7356
    %v7358 = vpop.f32.mrb[0].mxu0
    %v7359 = vadd.f32 %v6679, %v7358
    %v7360 = vpop.f32.mrb[0].mxu0
    %v7361 = vpop.f32.mrb[0].mxu0
    %7362 = vdwg.mxu0
    %7363 = vmatprep.subr.bf16.mxu0 %v7099
    %7364 = vmatpush1.bf16.msra.mxu0 %v7098
    %7365 = vmatprep.subr.bf16.mxu0 %v7101
    %7366 = vmatpush1.bf16.msra.mxu0 %v7100
    %7367 = vmatprep.subr.bf16.mxu0 %v7103
    %7368 = vmatpush1.bf16.msra.mxu0 %v7102
    %7369 = vmatprep.subr.bf16.mxu0 %v7105
    %7370 = vmatpush1.bf16.msra.mxu0 %v7104
    %7371 = vmatprep.subr.bf16.mxu0 %v7107
    %7372 = vmatpush1.bf16.msra.mxu0 %v7106
    %7373 = vmatprep.subr.bf16.mxu0 %v7109
    %7374 = vmatpush1.bf16.msra.mxu0 %v7108
    %7375 = vmatprep.subr.bf16.mxu0 %v7111
    %7376 = vmatpush1.bf16.msra.mxu0 %v7110
    %7377 = vmatprep.subr.bf16.mxu0 %v7113
    %7378 = vmatpush1.bf16.msra.mxu0 %v7112
    %7379 = vmatprep.subr.bf16.mxu0 %v7115
    %7380 = vmatpush1.bf16.msra.mxu0 %v7114
    %7381 = vmatprep.subr.bf16.mxu0 %v7117
    %7382 = vmatpush1.bf16.msra.mxu0 %v7116
    %7383 = vmatprep.subr.bf16.mxu0 %v7119
    %7384 = vmatpush1.bf16.msra.mxu0 %v7118
    %7385 = vmatprep.subr.bf16.mxu0 %v7121
    %7386 = vmatpush1.bf16.msra.mxu0 %v7120
    %7387 = vmatprep.subr.bf16.mxu0 %v7123
    %7388 = vmatpush1.bf16.msra.mxu0 %v7122
    %7389 = vmatprep.subr.bf16.mxu0 %v7125
    %7390 = vmatpush1.bf16.msra.mxu0 %v7124
    %7391 = vmatprep.subr.bf16.mxu0 %v7127
    %7392 = vmatpush1.bf16.msra.mxu0 %v7126
    %7393 = vmatprep.subr.bf16.mxu0 %v7129
    %7394 = vmatpush1.bf16.msra.mxu0 %v7128
    %7395 = vmatprep.mubr.bf16.mxu0 %v6537
    %7396 = vmatmul.mubr.bf16.gmra.mrb[0].mxu0 %v6536
    %v7397 = vpop.f32.mrb[0].mxu0
    %v7398 = vadd.f32 %v7357, %v7397
    %v7399 = vpop.f32.mrb[0].mxu0
    %v7400 = vadd.f32 %v7359, %v7399
    %v7401 = vpop.f32.mrb[0].mxu0
    %v7402 = vpop.f32.mrb[0].mxu0
    %7403 = vdwg.mxu0
    %7404 = vmatprep.subr.bf16.mxu0 %v7131
    %7405 = vmatpush1.bf16.msra.mxu0 %v7130
    %7406 = vmatprep.subr.bf16.mxu0 %v7133
    %7407 = vmatpush1.bf16.msra.mxu0 %v7132
    %7408 = vmatprep.subr.bf16.mxu0 %v7135
    %7409 = vmatpush1.bf16.msra.mxu0 %v7134
    %7410 = vmatprep.subr.bf16.mxu0 %v7137
    %7411 = vmatpush1.bf16.msra.mxu0 %v7136
    %7412 = vmatprep.subr.bf16.mxu0 %v7139
    %7413 = vmatpush1.bf16.msra.mxu0 %v7138
    %7414 = vmatprep.subr.bf16.mxu0 %v7141
    %7415 = vmatpush1.bf16.msra.mxu0 %v7140
    %7416 = vmatprep.subr.bf16.mxu0 %v7143
    %7417 = vmatpush1.bf16.msra.mxu0 %v7142
    %7418 = vmatprep.subr.bf16.mxu0 %v7145
    %7419 = vmatpush1.bf16.msra.mxu0 %v7144
    %7420 = vmatprep.subr.bf16.mxu0 %v7147
    %7421 = vmatpush1.bf16.msra.mxu0 %v7146
    %7422 = vmatprep.subr.bf16.mxu0 %v7149
    %7423 = vmatpush1.bf16.msra.mxu0 %v7148
    %7424 = vmatprep.subr.bf16.mxu0 %v7151
    %7425 = vmatpush1.bf16.msra.mxu0 %v7150
    %7426 = vmatprep.subr.bf16.mxu0 %v7153
    %7427 = vmatpush1.bf16.msra.mxu0 %v7152
    %7428 = vmatprep.subr.bf16.mxu0 %v7155
    %7429 = vmatpush1.bf16.msra.mxu0 %v7154
    %7430 = vmatprep.subr.bf16.mxu0 %v7157
    %7431 = vmatpush1.bf16.msra.mxu0 %v7156
    %7432 = vmatprep.subr.bf16.mxu0 %v7159
    %7433 = vmatpush1.bf16.msra.mxu0 %v7158
    %7434 = vmatprep.subr.bf16.mxu0 %v7161
    %7435 = vmatpush1.bf16.msra.mxu0 %v7160
    %7436 = vmatprep.mubr.bf16.mxu0 %v6539
    %7437 = vmatmul.mubr.bf16.gmra.mrb[0].mxu0 %v6538
    %v7438 = vpop.f32.mrb[0].mxu0
    %v7439 = vadd.f32 %v7398, %v7438
    %v7440 = vpop.f32.mrb[0].mxu0
    %v7441 = vadd.f32 %v7400, %v7440
    %v7442 = vpop.f32.mrb[0].mxu0
    %v7443 = vpop.f32.mrb[0].mxu0
    %7444 = vdwg.mxu0
    %7445 = vmatprep.subr.bf16.mxu0 %v7163
    %7446 = vmatpush1.bf16.msra.mxu0 %v7162
    %7447 = vmatprep.subr.bf16.mxu0 %v7165
    %7448 = vmatpush1.bf16.msra.mxu0 %v7164
    %7449 = vmatprep.subr.bf16.mxu0 %v7167
    %7450 = vmatpush1.bf16.msra.mxu0 %v7166
    %7451 = vmatprep.subr.bf16.mxu0 %v7169
    %7452 = vmatpush1.bf16.msra.mxu0 %v7168
    %7453 = vmatprep.subr.bf16.mxu0 %v7171
    %7454 = vmatpush1.bf16.msra.mxu0 %v7170
    %7455 = vmatprep.subr.bf16.mxu0 %v7173
    %7456 = vmatpush1.bf16.msra.mxu0 %v7172
    %7457 = vmatprep.subr.bf16.mxu0 %v7175
    %7458 = vmatpush1.bf16.msra.mxu0 %v7174
    %7459 = vmatprep.subr.bf16.mxu0 %v7177
    %7460 = vmatpush1.bf16.msra.mxu0 %v7176
    %7461 = vmatprep.subr.bf16.mxu0 %v7179
    %7462 = vmatpush1.bf16.msra.mxu0 %v7178
    %7463 = vmatprep.subr.bf16.mxu0 %v7181
    %7464 = vmatpush1.bf16.msra.mxu0 %v7180
    %7465 = vmatprep.subr.bf16.mxu0 %v7183
    %7466 = vmatpush1.bf16.msra.mxu0 %v7182
    %7467 = vmatprep.subr.bf16.mxu0 %v7185
    %7468 = vmatpush1.bf16.msra.mxu0 %v7184
    %7469 = vmatprep.subr.bf16.mxu0 %v7187
    %7470 = vmatpush1.bf16.msra.mxu0 %v7186
    %7471 = vmatprep.subr.bf16.mxu0 %v7189
    %7472 = vmatpush1.bf16.msra.mxu0 %v7188
    %7473 = vmatprep.subr.bf16.mxu0 %v7191
    %7474 = vmatpush1.bf16.msra.mxu0 %v7190
    %7475 = vmatprep.subr.bf16.mxu0 %v7193
    %7476 = vmatpush1.bf16.msra.mxu0 %v7192
    %7477 = vmatprep.mubr.bf16.mxu0 %v6541
    %7478 = vmatmul.mubr.bf16.gmra.mrb[0].mxu0 %v6540
    %v7479 = vpop.f32.mrb[0].mxu0
    %v7480 = vadd.f32 %v7439, %v7479
    %v7481 = vpop.f32.mrb[0].mxu0
    %v7482 = vadd.f32 %v7441, %v7481
    %v7483 = vpop.f32.mrb[0].mxu0
    %v7484 = vpop.f32.mrb[0].mxu0
    %7485 = vdwg.mxu0
    %v7486 = vmax.f32 %v7480, 0.0
    %v7487 = vmax.f32 %v7482, 0.0
    %v7490 = vcombine.low %v7486, %v7487
    %v7492 = vunpack.c.l.s4 1983009808
    %v7493 = vunpack.c.0.s8 %v7492
    %v7494 = vlaneseq
    %v7495 = vshrl.u32 %v7494, 7
    %v7496 = vsub.s32 %v7493, %v7495
    %v7497 = vrot.slane %v7490, %v7496
    %7499 = vst [vmem:[#allocation28] sm:$0xf] %v7497
    // Predicated region
    $region130: #{image_embedding_forward.1} parent=1 // pred_check
      _
    $region131: #{image_embedding_forward.1} parent=1 // pred_check_branch
      %7501 = sbr.rel (0) target = $region133
    $region132: #{image_embedding_forward.1} parent=1 // pred_region
      %s7503 = ssub.s32 64, 64
      %7504 = vsyncadd [#allocation4], %s7503
      %s7506 = sshll.u32 [#allocation28], 4
      %s7507 = int_to_ptr.vmem [resolvable:$true] %s7506
      %7509 = dma.vmem_to_hbm [thread:$0]  %s7507, 64, %s16, [#allocation4]
    $region133: #{image_embedding_forward.1} parent=1 // pred_fallthru
      _
    // Predicated region
    $region134: #{image_embedding_forward.1} parent=1 // pred_check
      _
    $region135: #{image_embedding_forward.1} parent=1 // pred_check_branch
      %7511 = sbr.rel (0) target = $region137
    $region136: #{image_embedding_forward.1} parent=1 // pred_region
      %7512 = dma.done [#allocation4], 64
    $region137: #{image_embedding_forward.1} parent=1 // pred_fallthru
      _
    %7513 = vsyncpa [#allocation3], 1
    %7514 = vsyncpa [#allocation6], 1
    %7515 = vsyncpa [#allocation9], 1
    %7516 = vsyncpa [#allocation12], 1
    %7517 = vsyncpa [#allocation15], 1
    %7518 = vsyncpa [#allocation18], 1
    %7519 = vsyncpa [#allocation21], 1
    %7520 = vsyncpa [#allocation24], 1
    %7521 = vsyncpa [#allocation27], 1
    %7522 = vsyncpa [#allocation4], 1

</llo_original>
